<compile_context>
chip_gen: v7x
topology: tpu7x:2x2x1
jax: 0.10.0
libtpu: 0.0.40
codegen_flags: <defaults>
</compile_context>

<pallas_src>
import jax
import jax.numpy as jnp
from jax import lax
from jax.experimental import pallas as pl
from jax.experimental.pallas import tpu as pltpu

LANE = 128


def _round_up(x, m):
    return ((x + m - 1) // m) * m


def _pad_to(w, shape):
    pads = [(0, s - d) for d, s in zip(w.shape, shape)]
    return jnp.pad(w, pads)


# ----------------------------- Pallas kernels ------------------------------

def _dual_pw_conv_kernel(x_ref, w_ref, y1_ref, y2_ref):
    # conv1 and conv2 (both 1x1) fused: one x read, one (Cin, 2C) matmul
    # (Cout=256 fills the 256-wide MXU on v6e/v7x), two lane-dense outputs.
    C = y1_ref.shape[-1]
    out = jnp.dot(x_ref[...], w_ref[...], preferred_element_type=jnp.float32)
    y1_ref[...] = out[:, :C].astype(y1_ref.dtype)
    y2_ref[...] = out[:, C:].astype(y2_ref.dtype)


def _concat_conv_kernel(y1_ref, y2_ref, wt_ref, wb_ref, o_ref):
    # concat_conv(cat([y1, y2])) == y1 @ Wc_top + y2 @ Wc_bot (no concat tensor).
    acc = jnp.dot(y1_ref[...], wt_ref[...], preferred_element_type=jnp.float32)
    acc = acc + jnp.dot(y2_ref[...], wb_ref[...], preferred_element_type=jnp.float32)
    o_ref[...] = acc.astype(o_ref.dtype)


def _resblock_chain_kernel(x_ref, w1_ref, w2g_ref, o_ref, ybuf, hbuf):
    # y <- y + conv3x3(relu(conv1x1(y))) chained over all blocks, one image.
    #   x_ref:   (1, H, W, C)  bf16
    #   w1_ref:  (B, C, C)     bf16  1x1 weights as (Cin, Cout)
    #   w2g_ref: (B, 3, 3C, C) bf16  3x3 weights grouped: [dw, dh*C + cin, cout]
    #   ybuf:    (HW, C)  f32  scratch  residual stream (kept in f32)
    #   hbuf:    (H+2, W, C) bf16 scratch  relu(1x1) with a zero row halo
    _, H, W, C = x_ref.shape
    HW = H * W
    num_blocks = w1_ref.shape[0]

    ybuf[...] = x_ref[0].reshape(HW, C).astype(jnp.float32)

    # Zero only the two halo rows.  Done unconditionally (not pl.when(pid==0))
    # because scratch is per-core and uninitialized; cost is just 2*W*C.
    hbuf[0] = jnp.zeros((W, C), hbuf.dtype)
    hbuf[H + 1] = jnp.zeros((W, C), hbuf.dtype)

    # Column index per flattened row; (HW, 1) broadcasts across lanes for free.
    col = lax.broadcasted_iota(jnp.int32, (H, W, 1), 1).reshape(HW, 1)
    not_left_edge = col > 0
    not_right_edge = col < W - 1

    for b in range(num_blocks):                      # static, unrolled
        # 1x1 conv + ReLU; h lives only in VMEM (bf16, halves footprint).
        h = jnp.dot(ybuf[...].astype(jnp.bfloat16), w1_ref[b],
                    preferred_element_type=jnp.float32)
        hbuf[1:H + 1] = jnp.maximum(h, 0.0).reshape(H, W, C).astype(hbuf.dtype)

        # Group the three row taps along the contraction dim: K = 3*C.
        cat3 = jnp.concatenate(
            [hbuf[dh:dh + H].reshape(HW, C) for dh in range(3)], axis=-1)

        acc = ybuf[...]                              # residual (f32)
        for dw in range(3):                          # kernel column offset dw-1
            g = jnp.dot(cat3, w2g_ref[b, dw], preferred_element_type=jnp.float32)
            if dw == 0:
                # needs h column x-1: shift down one slot, zero column 0.
                g = jnp.where(not_left_edge, pltpu.roll(g, shift=1, axis=0), 0.0)
            elif dw == 2:
                # needs h column x+1: shift up one slot, zero column W-1.
                g = jnp.where(not_right_edge,
                              pltpu.roll(g, shift=HW - 1, axis=0), 0.0)
            acc = acc + g
        ybuf[...] = acc

    o_ref[0] = ybuf[...].reshape(H, W, C).astype(o_ref.dtype)


# ------------------------------ wrappers ------------------------------------

def dual_pointwise_conv(x2d, w12, half_c, *, block_m=1024):
    """(y1, y2) = (x2d @ w12[:, :half_c], x2d @ w12[:, half_c:]), x read once."""
    M, Cin = x2d.shape
    tm = M if M <= block_m else block_m
    return pl.pallas_call(
        _dual_pw_conv_kernel,
        out_shape=(jax.ShapeDtypeStruct((M, half_c), jnp.bfloat16),
                   jax.ShapeDtypeStruct((M, half_c), jnp.bfloat16)),
        grid=(pl.cdiv(M, tm),),
        in_specs=[
            pl.BlockSpec((tm, Cin), lambda i: (i, 0)),
            pl.BlockSpec((Cin, 2 * half_c), lambda i: (0, 0)),
        ],
        out_specs=(
            pl.BlockSpec((tm, half_c), lambda i: (i, 0)),
            pl.BlockSpec((tm, half_c), lambda i: (i, 0)),
        ),
        compiler_params=pltpu.CompilerParams(dimension_semantics=("parallel",)),
    )(x2d, w12)


def concat_pointwise_conv(y1_2d, y2_2d, wt, wb, *, out_dtype=jnp.float32,
                          block_m=1024):
    """out = y1 @ wt + y2 @ wb, tiled over M (fused concat + 1x1 conv)."""
    M, C = y1_2d.shape
    Cout = wt.shape[1]
    tm = M if M <= block_m else block_m
    return pl.pallas_call(
        _concat_conv_kernel,
        out_shape=jax.ShapeDtypeStruct((M, Cout), out_dtype),
        grid=(pl.cdiv(M, tm),),
        in_specs=[
            pl.BlockSpec((tm, C), lambda i: (i, 0)),
            pl.BlockSpec((tm, C), lambda i: (i, 0)),
            pl.BlockSpec((C, Cout), lambda i: (0, 0)),
            pl.BlockSpec((C, Cout), lambda i: (0, 0)),
        ],
        out_specs=pl.BlockSpec((tm, Cout), lambda i: (i, 0)),
        compiler_params=pltpu.CompilerParams(dimension_semantics=("parallel",)),
    )(y1_2d, y2_2d, wt, wb)


def fused_resblock_chain(y1_nhwc, w1_stack, w2g_stack):
    """All ResBlocks in ONE pallas_call; y1 never round-trips HBM between blocks."""
    N, H, W, C = y1_nhwc.shape
    B = w1_stack.shape[0]
    return pl.pallas_call(
        _resblock_chain_kernel,
        out_shape=jax.ShapeDtypeStruct((N, H, W, C), jnp.bfloat16),
        grid=(N,),
        in_specs=[
            pl.BlockSpec((1, H, W, C), lambda n: (n, 0, 0, 0)),
            pl.BlockSpec((B, C, C), lambda n: (0, 0, 0)),
            pl.BlockSpec((B, 3, 3 * C, C), lambda n: (0, 0, 0, 0)),
        ],
        out_specs=pl.BlockSpec((1, H, W, C), lambda n: (n, 0, 0, 0)),
        scratch_shapes=[
            pltpu.VMEM((H * W, C), jnp.float32),       # residual stream
            pltpu.VMEM((H + 2, W, C), jnp.bfloat16),   # h with row halo
        ],
        compiler_params=pltpu.CompilerParams(
            dimension_semantics=("parallel",),
            vmem_limit_bytes=64 * 1024 * 1024),
    )(y1_nhwc, w1_stack, w2g_stack)


# --------------------------- parameter creation ------------------------------

def make_csp_params(key, in_channels, out_channels, num_blocks, dtype=jnp.float32):
    half = out_channels // 2
    keys = jax.random.split(key, 3 + 2 * num_blocks)

    def init(k, shape, fan_in):
        return (jax.random.normal(k, shape, dtype) * (1.0 / jnp.sqrt(fan_in))).astype(dtype)

    params = {
        # 1x1 conv weights stored as (Cin, Cout)
        "conv1": init(keys[0], (in_channels, half), in_channels),
        "conv2": init(keys[1], (in_channels, half), in_channels),
        "concat_conv": init(keys[2], (out_channels, out_channels), out_channels),
        "blocks": [],
    }
    for b in range(num_blocks):
        w1 = init(keys[3 + 2 * b], (half, half), half)             # 1x1: (Cin, Cout)
        w2 = init(keys[4 + 2 * b], (3, 3, half, half), 9 * half)   # 3x3: HWIO
        params["blocks"].append((w1, w2))
    return params


# ------------------------------ forward pass ---------------------------------

@jax.jit
def csp_block_forward(x_nchw, params):
    N, Cin, H, W = x_nchw.shape
    half = params["conv1"].shape[1]
    out_channels = params["concat_conv"].shape[1]
    num_blocks = len(params["blocks"])

    cin_p = _round_up(Cin, LANE)
    ch_p = _round_up(half, LANE)
    cout_p = _round_up(out_channels, LANE)
    bf16 = jnp.bfloat16

    # NCHW -> NHWC, zero-pad channels to a lane-dense multiple of 128 (exact),
    # bf16 matmul operands (f32 accumulation inside the kernels).
    x = jnp.transpose(x_nchw, (0, 2, 3, 1))
    x = jnp.pad(x, ((0, 0), (0, 0), (0, 0), (0, cin_p - Cin)))
    M = N * H * W
    x2d = x.reshape(M, cin_p).astype(bf16)

    # conv1 | conv2 weights concatenated along Cout -> single matmul, x read once.
    w12 = jnp.concatenate(
        [_pad_to(params["conv1"], (cin_p, ch_p)),
         _pad_to(params["conv2"], (cin_p, ch_p))], axis=1).astype(bf16)

    wc = params["concat_conv"]
    wct = _pad_to(wc[:half, :], (ch_p, cout_p)).astype(bf16)   # rows consumed by y1
    wcb = _pad_to(wc[half:, :], (ch_p, cout_p)).astype(bf16)   # rows consumed by y2

    y1_2d, y2_2d = dual_pointwise_conv(x2d, w12, ch_p)

    if num_blocks > 0:
        w1_stack = jnp.stack(
            [_pad_to(w1, (ch_p, ch_p)) for (w1, _) in params["blocks"]]).astype(bf16)
        # 3x3 HWIO -> (dw, dh*C + cin, cout): the three row taps share one K=3C dot.
        w2g_stack = jnp.stack(
            [jnp.transpose(_pad_to(w2, (3, 3, ch_p, ch_p)), (1, 0, 2, 3))
               .reshape(3, 3 * ch_p, ch_p)
             for (_, w2) in params["blocks"]]).astype(bf16)
        y1 = fused_resblock_chain(y1_2d.reshape(N, H, W, ch_p), w1_stack, w2g_stack)
        y1_2d = y1.reshape(M, ch_p)

    # Fused concat + 1x1 conv (f32 output), un-pad channels, back to NCHW.
    out2d = concat_pointwise_conv(y1_2d, y2_2d, wct, wcb)
    out = out2d.reshape(N, H, W, cout_p)[..., :out_channels]
    return jnp.transpose(out, (0, 3, 1, 2))


# ------------------------- pure-JAX reference (check) -------------------------

def _bf(a):
    return a.astype(jnp.bfloat16)


def csp_block_reference(x_nchw, params):
    """XLA reference that mirrors the kernel's bf16 quantization points."""
    f32 = jnp.float32
    x = _bf(jnp.transpose(x_nchw, (0, 2, 3, 1)))
    y1 = _bf(jnp.einsum("nhwc,cd->nhwd", x, _bf(params["conv1"]),
                        preferred_element_type=f32)).astype(f32)
    y2 = _bf(jnp.einsum("nhwc,cd->nhwd", x, _bf(params["conv2"]),
                        preferred_element_type=f32))
    for (w1, w2) in params["blocks"]:
        h = _bf(jnp.maximum(
            jnp.einsum("nhwc,cd->nhwd", _bf(y1), _bf(w1),
                       preferred_element_type=f32), 0.0))
        conv = lax.conv_general_dilated(
            h, _bf(w2), window_strides=(1, 1), padding="SAME",
            dimension_numbers=("NHWC", "HWIO", "NHWC"),
            preferred_element_type=f32)
        y1 = y1 + conv
    cat = jnp.concatenate([_bf(y1), y2], axis=-1)
    out = jnp.einsum("nhwc,cd->nhwd", cat, _bf(params["concat_conv"]),
                     preferred_element_type=f32)
    return jnp.transpose(out, (0, 3, 1, 2))


# ----------------------------------- main ------------------------------------

if __name__ == "__main__":
    key = jax.random.PRNGKey(0)
    k_x, k_p = jax.random.split(key)

    N, in_channels, H, W = 2, 4, 16, 16
    out_channels, num_blocks = 8, 2

    x = jax.random.normal(k_x, (N, in_channels, H, W), jnp.float32)
    params = make_csp_params(k_p, in_channels, out_channels, num_blocks)

    out = jax.block_until_ready(csp_block_forward(x, params))
    ref = jax.block_until_ready(csp_block_reference(x, params))

    assert out.shape == (N, out_channels, H, W)
    assert out.dtype == jnp.float32
    max_err = float(jnp.max(jnp.abs(out - ref)))
    assert jnp.allclose(out, ref, rtol=1e-2, atol=1e-2), \
        f"mismatch vs JAX reference (max abs err = {max_err})"

    print("KERNEL_OK")
</pallas_src>

<mosaic_0001>
module attributes {stable_mosaic.version = 11 : i64} {
  func.func @_dual_pw_conv_kernel(%arg0: i32, %arg1: memref<512x128xbf16, #tpu.memory_space<vmem>>, %arg2: memref<128x256xbf16, #tpu.memory_space<vmem>>, %arg3: memref<512x128xbf16, #tpu.memory_space<vmem>>, %arg4: memref<512x128xbf16, #tpu.memory_space<vmem>>) attributes {dimension_semantics = [#tpu.dimension_semantics<parallel>], iteration_bounds = array<i64: 1>, scalar_prefetch = 0 : i64, scratch_operands = 0 : i64, tpu.core_type = #tpu.core_type<tc>, window_params = [{transform_indices = @transform_0, window_bounds = array<i64: 512, 128>}, {pipeline_mode = #tpu.pipeline_mode<synchronous>, transform_indices = @transform_1, window_bounds = array<i64: 128, 256>}, {transform_indices = @transform_2, window_bounds = array<i64: 512, 128>}, {transform_indices = @transform_3, window_bounds = array<i64: 512, 128>}]} {
    %c0 = arith.constant 0 : index
    %c0_0 = arith.constant 0 : index
    %0 = vector.load %arg1[%c0, %c0_0] : memref<512x128xbf16, #tpu.memory_space<vmem>>, vector<512x128xbf16>
    %c0_1 = arith.constant 0 : index
    %c0_2 = arith.constant 0 : index
    %1 = vector.load %arg2[%c0_1, %c0_2] : memref<128x256xbf16, #tpu.memory_space<vmem>>, vector<128x256xbf16>
    %cst = arith.constant dense<0.000000e+00> : vector<512x256xf32>
    %2 = tpu.matmul %0, %1, %cst {dimension_numbers = #tpu.dot_dimension_numbers<[1], [0], [0], [1], [0, 0, 1, 1], [], []>} : vector<512x128xbf16>, vector<128x256xbf16>, vector<512x256xf32> -> vector<512x256xf32>
    %3 = vector.extract_strided_slice %2 {offsets = [0, 0], sizes = [512, 128], strides = [1, 1]} : vector<512x256xf32> to vector<512x128xf32>
    %4 = arith.truncf %3 : vector<512x128xf32> to vector<512x128xbf16>
    %c0_3 = arith.constant 0 : index
    %c0_4 = arith.constant 0 : index
    %5 = vector.load %arg3[%c0_3, %c0_4] : memref<512x128xbf16, #tpu.memory_space<vmem>>, vector<512x128xbf16>
    tpu.vector_store %arg3[%c0_3, %c0_4], %4 {strides = array<i32>} : memref<512x128xbf16, #tpu.memory_space<vmem>>, vector<512x128xbf16>,
    %6 = vector.extract_strided_slice %2 {offsets = [0, 128], sizes = [512, 128], strides = [1, 1]} : vector<512x256xf32> to vector<512x128xf32>
    %7 = arith.truncf %6 : vector<512x128xf32> to vector<512x128xbf16>
    %c0_5 = arith.constant 0 : index
    %c0_6 = arith.constant 0 : index
    %8 = vector.load %arg4[%c0_5, %c0_6] : memref<512x128xbf16, #tpu.memory_space<vmem>>, vector<512x128xbf16>
    tpu.vector_store %arg4[%c0_5, %c0_6], %7 {strides = array<i32>} : memref<512x128xbf16, #tpu.memory_space<vmem>>, vector<512x128xbf16>,
    return
  }
  func.func @transform_0(%arg0: i32) -> (i32, i32) {
    %c0_i32 = arith.constant 0 : i32
    %c0_i32_0 = arith.constant 0 : i32
    return %arg0, %c0_i32 : i32, i32
  }
  func.func @transform_1(%arg0: i32) -> (i32, i32) {
    %c0_i32 = arith.constant 0 : i32
    %c0_i32_0 = arith.constant 0 : i32
    %c0_i32_1 = arith.constant 0 : i32
    return %c0_i32, %c0_i32_0 : i32, i32
  }
  func.func @transform_2(%arg0: i32) -> (i32, i32) {
    %c0_i32 = arith.constant 0 : i32
    %c0_i32_0 = arith.constant 0 : i32
    return %arg0, %c0_i32 : i32, i32
  }
  func.func @transform_3(%arg0: i32) -> (i32, i32) {
    %c0_i32 = arith.constant 0 : i32
    %c0_i32_0 = arith.constant 0 : i32
    return %arg0, %c0_i32 : i32, i32
  }
}

module attributes {stable_mosaic.version = 11 : i64} {
  func.func @_resblock_chain_kernel(%arg0: i32, %arg1: memref<1x16x16x128xbf16, #tpu.memory_space<vmem>>, %arg2: memref<2x128x128xbf16, #tpu.memory_space<vmem>>, %arg3: memref<2x3x384x128xbf16, #tpu.memory_space<vmem>>, %arg4: memref<1x16x16x128xbf16, #tpu.memory_space<vmem>>, %arg5: memref<256x128xf32, #tpu.memory_space<vmem>>, %arg6: memref<18x16x128xbf16, #tpu.memory_space<vmem>>) attributes {dimension_semantics = [#tpu.dimension_semantics<parallel>], iteration_bounds = array<i64: 2>, scalar_prefetch = 0 : i64, scratch_operands = 2 : i64, tpu.core_type = #tpu.core_type<tc>, window_params = [{transform_indices = @transform_0, window_bounds = array<i64: 1, 16, 16, 128>}, {pipeline_mode = #tpu.pipeline_mode<synchronous>, transform_indices = @transform_1, window_bounds = array<i64: 2, 128, 128>}, {pipeline_mode = #tpu.pipeline_mode<synchronous>, transform_indices = @transform_2, window_bounds = array<i64: 2, 3, 384, 128>}, {transform_indices = @transform_3, window_bounds = array<i64: 1, 16, 16, 128>}]} {
    %c0 = arith.constant 0 : index
    %c0_0 = arith.constant 0 : index
    %c0_1 = arith.constant 0 : index
    %c0_2 = arith.constant 0 : index
    %0 = vector.load %arg1[%c0, %c0_0, %c0_1, %c0_2] : memref<1x16x16x128xbf16, #tpu.memory_space<vmem>>, vector<1x16x16x128xbf16>
    %1 = vector.shape_cast %0 : vector<1x16x16x128xbf16> to vector<16x16x128xbf16>
    %2 = vector.shape_cast %1 : vector<16x16x128xbf16> to vector<256x128xbf16>
    %3 = arith.extf %2 : vector<256x128xbf16> to vector<256x128xf32>
    %c0_3 = arith.constant 0 : index
    %c0_4 = arith.constant 0 : index
    %4 = vector.load %arg5[%c0_3, %c0_4] : memref<256x128xf32, #tpu.memory_space<vmem>>, vector<256x128xf32>
    tpu.vector_store %arg5[%c0_3, %c0_4], %3 {strides = array<i32>} : memref<256x128xf32, #tpu.memory_space<vmem>>, vector<256x128xf32>,
    %cst = arith.constant 0.000000e+00 : bf16
    %5 = vector.broadcast %cst : bf16 to vector<16x128xbf16>
    %c0_5 = arith.constant 0 : index
    %c0_6 = arith.constant 0 : index
    %c0_7 = arith.constant 0 : index
    %6 = vector.load %arg6[%c0_5, %c0_6, %c0_7] : memref<18x16x128xbf16, #tpu.memory_space<vmem>>, vector<1x16x128xbf16>
    %7 = vector.shape_cast %6 : vector<1x16x128xbf16> to vector<16x128xbf16>
    %8 = vector.shape_cast %5 : vector<16x128xbf16> to vector<1x16x128xbf16>
    tpu.vector_store %arg6[%c0_5, %c0_6, %c0_7], %8 {strides = array<i32>} : memref<18x16x128xbf16, #tpu.memory_space<vmem>>, vector<1x16x128xbf16>,
    %cst_8 = arith.constant 0.000000e+00 : bf16
    %9 = vector.broadcast %cst_8 : bf16 to vector<16x128xbf16>
    %c17 = arith.constant 17 : index
    %c0_9 = arith.constant 0 : index
    %c0_10 = arith.constant 0 : index
    %10 = vector.load %arg6[%c17, %c0_9, %c0_10] : memref<18x16x128xbf16, #tpu.memory_space<vmem>>, vector<1x16x128xbf16>
    %11 = vector.shape_cast %10 : vector<1x16x128xbf16> to vector<16x128xbf16>
    %12 = vector.shape_cast %9 : vector<16x128xbf16> to vector<1x16x128xbf16>
    tpu.vector_store %arg6[%c17, %c0_9, %c0_10], %12 {strides = array<i32>} : memref<18x16x128xbf16, #tpu.memory_space<vmem>>, vector<1x16x128xbf16>,
    %13 = tpu.iota {dimensions = array<i32: 1>} : vector<16x16x1xi32>
    %14 = vector.shape_cast %13 : vector<16x16x1xi32> to vector<256x1xi32>
    %c0_i32 = arith.constant 0 : i32
    %15 = vector.broadcast %c0_i32 : i32 to vector<256x1xi32>
    %16 = arith.cmpi sgt, %14, %15 : vector<256x1xi32>
    %c15_i32 = arith.constant 15 : i32
    %17 = vector.broadcast %c15_i32 : i32 to vector<256x1xi32>
    %18 = arith.cmpi slt, %14, %17 : vector<256x1xi32>
    %c0_11 = arith.constant 0 : index
    %c0_12 = arith.constant 0 : index
    %19 = vector.load %arg5[%c0_11, %c0_12] : memref<256x128xf32, #tpu.memory_space<vmem>>, vector<256x128xf32>
    %20 = arith.truncf %19 : vector<256x128xf32> to vector<256x128xbf16>
    %c0_13 = arith.constant 0 : index
    %c0_14 = arith.constant 0 : index
    %c0_15 = arith.constant 0 : index
    %21 = vector.load %arg2[%c0_13, %c0_14, %c0_15] : memref<2x128x128xbf16, #tpu.memory_space<vmem>>, vector<1x128x128xbf16>
    %22 = vector.shape_cast %21 : vector<1x128x128xbf16> to vector<128x128xbf16>
    %cst_16 = arith.constant dense<0.000000e+00> : vector<256x128xf32>
    %23 = tpu.matmul %20, %22, %cst_16 {dimension_numbers = #tpu.dot_dimension_numbers<[1], [0], [0], [1], [0, 0, 1, 1], [], []>} : vector<256x128xbf16>, vector<128x128xbf16>, vector<256x128xf32> -> vector<256x128xf32>
    %cst_17 = arith.constant 0.000000e+00 : f32
    %24 = vector.broadcast %cst_17 : f32 to vector<256x128xf32>
    %25 = arith.maximumf %23, %24 : vector<256x128xf32>
    %26 = vector.shape_cast %25 : vector<256x128xf32> to vector<16x16x128xf32>
    %27 = arith.truncf %26 : vector<16x16x128xf32> to vector<16x16x128xbf16>
    %c1 = arith.constant 1 : index
    %c0_18 = arith.constant 0 : index
    %c0_19 = arith.constant 0 : index
    %28 = vector.load %arg6[%c1, %c0_18, %c0_19] : memref<18x16x128xbf16, #tpu.memory_space<vmem>>, vector<16x16x128xbf16>
    tpu.vector_store %arg6[%c1, %c0_18, %c0_19], %27 {strides = array<i32>} : memref<18x16x128xbf16, #tpu.memory_space<vmem>>, vector<16x16x128xbf16>,
    %c0_20 = arith.constant 0 : index
    %c0_21 = arith.constant 0 : index
    %c0_22 = arith.constant 0 : index
    %29 = vector.load %arg6[%c0_20, %c0_21, %c0_22] : memref<18x16x128xbf16, #tpu.memory_space<vmem>>, vector<16x16x128xbf16>
    %30 = vector.shape_cast %29 : vector<16x16x128xbf16> to vector<256x128xbf16>
    %c1_23 = arith.constant 1 : index
    %c0_24 = arith.constant 0 : index
    %c0_25 = arith.constant 0 : index
    %31 = vector.load %arg6[%c1_23, %c0_24, %c0_25] : memref<18x16x128xbf16, #tpu.memory_space<vmem>>, vector<16x16x128xbf16>
    %32 = vector.shape_cast %31 : vector<16x16x128xbf16> to vector<256x128xbf16>
    %c2 = arith.constant 2 : index
    %c0_26 = arith.constant 0 : index
    %c0_27 = arith.constant 0 : index
    %33 = vector.load %arg6[%c2, %c0_26, %c0_27] : memref<18x16x128xbf16, #tpu.memory_space<vmem>>, vector<16x16x128xbf16>
    %34 = vector.shape_cast %33 : vector<16x16x128xbf16> to vector<256x128xbf16>
    %35 = tpu.concatenate %30, %32, %34 in 1 : vector<256x128xbf16>, vector<256x128xbf16>, vector<256x128xbf16> -> vector<256x384xbf16>
    %c0_28 = arith.constant 0 : index
    %c0_29 = arith.constant 0 : index
    %36 = vector.load %arg5[%c0_28, %c0_29] : memref<256x128xf32, #tpu.memory_space<vmem>>, vector<256x128xf32>
    %c0_30 = arith.constant 0 : index
    %c0_31 = arith.constant 0 : index
    %c0_32 = arith.constant 0 : index
    %c0_33 = arith.constant 0 : index
    %37 = vector.load %arg3[%c0_30, %c0_31, %c0_32, %c0_33] : memref<2x3x384x128xbf16, #tpu.memory_space<vmem>>, vector<1x1x384x128xbf16>
    %38 = vector.shape_cast %37 : vector<1x1x384x128xbf16> to vector<384x128xbf16>
    %cst_34 = arith.constant dense<0.000000e+00> : vector<256x128xf32>
    %39 = tpu.matmul %35, %38, %cst_34 {dimension_numbers = #tpu.dot_dimension_numbers<[1], [0], [0], [1], [0, 0, 1, 1], [], []>} : vector<256x384xbf16>, vector<384x128xbf16>, vector<256x128xf32> -> vector<256x128xf32>
    %c1_i32 = arith.constant 1 : i32
    %40 = tpu.dynamic_rotate %39 by %c1_i32 dim 0 : vector<256x128xf32>, i32 -> vector<256x128xf32>
    %cst_35 = arith.constant 0.000000e+00 : f32
    %41 = vector.shape_cast %16 : vector<256x1xi1> to vector<256x1xi1>
    %42 = vector.broadcast %41 : vector<256x1xi1> to vector<256x128xi1>
    %43 = vector.broadcast %cst_35 : f32 to vector<256x128xf32>
    %44 = arith.select %42, %40, %43 : vector<256x128xi1>, vector<256x128xf32>
    %45 = arith.addf %36, %44 : vector<256x128xf32>
    %c0_36 = arith.constant 0 : index
    %c1_37 = arith.constant 1 : index
    %c0_38 = arith.constant 0 : index
    %c0_39 = arith.constant 0 : index
    %46 = vector.load %arg3[%c0_36, %c1_37, %c0_38, %c0_39] : memref<2x3x384x128xbf16, #tpu.memory_space<vmem>>, vector<1x1x384x128xbf16>
    %47 = vector.shape_cast %46 : vector<1x1x384x128xbf16> to vector<384x128xbf16>
    %cst_40 = arith.constant dense<0.000000e+00> : vector<256x128xf32>
    %48 = tpu.matmul %35, %47, %cst_40 {dimension_numbers = #tpu.dot_dimension_numbers<[1], [0], [0], [1], [0, 0, 1, 1], [], []>} : vector<256x384xbf16>, vector<384x128xbf16>, vector<256x128xf32> -> vector<256x128xf32>
    %49 = arith.addf %45, %48 : vector<256x128xf32>
    %c0_41 = arith.constant 0 : index
    %c2_42 = arith.constant 2 : index
    %c0_43 = arith.constant 0 : index
    %c0_44 = arith.constant 0 : index
    %50 = vector.load %arg3[%c0_41, %c2_42, %c0_43, %c0_44] : memref<2x3x384x128xbf16, #tpu.memory_space<vmem>>, vector<1x1x384x128xbf16>
    %51 = vector.shape_cast %50 : vector<1x1x384x128xbf16> to vector<384x128xbf16>
    %cst_45 = arith.constant dense<0.000000e+00> : vector<256x128xf32>
    %52 = tpu.matmul %35, %51, %cst_45 {dimension_numbers = #tpu.dot_dimension_numbers<[1], [0], [0], [1], [0, 0, 1, 1], [], []>} : vector<256x384xbf16>, vector<384x128xbf16>, vector<256x128xf32> -> vector<256x128xf32>
    %c255_i32 = arith.constant 255 : i32
    %53 = tpu.dynamic_rotate %52 by %c255_i32 dim 0 : vector<256x128xf32>, i32 -> vector<256x128xf32>
    %cst_46 = arith.constant 0.000000e+00 : f32
    %54 = vector.shape_cast %18 : vector<256x1xi1> to vector<256x1xi1>
    %55 = vector.broadcast %54 : vector<256x1xi1> to vector<256x128xi1>
    %56 = vector.broadcast %cst_46 : f32 to vector<256x128xf32>
    %57 = arith.select %55, %53, %56 : vector<256x128xi1>, vector<256x128xf32>
    %58 = arith.addf %49, %57 : vector<256x128xf32>
    %c0_47 = arith.constant 0 : index
    %c0_48 = arith.constant 0 : index
    %59 = vector.load %arg5[%c0_47, %c0_48] : memref<256x128xf32, #tpu.memory_space<vmem>>, vector<256x128xf32>
    tpu.vector_store %arg5[%c0_47, %c0_48], %58 {strides = array<i32>} : memref<256x128xf32, #tpu.memory_space<vmem>>, vector<256x128xf32>,
    %c0_49 = arith.constant 0 : index
    %c0_50 = arith.constant 0 : index
    %60 = vector.load %arg5[%c0_49, %c0_50] : memref<256x128xf32, #tpu.memory_space<vmem>>, vector<256x128xf32>
    %61 = arith.truncf %60 : vector<256x128xf32> to vector<256x128xbf16>
    %c1_51 = arith.constant 1 : index
    %c0_52 = arith.constant 0 : index
    %c0_53 = arith.constant 0 : index
    %62 = vector.load %arg2[%c1_51, %c0_52, %c0_53] : memref<2x128x128xbf16, #tpu.memory_space<vmem>>, vector<1x128x128xbf16>
    %63 = vector.shape_cast %62 : vector<1x128x128xbf16> to vector<128x128xbf16>
    %cst_54 = arith.constant dense<0.000000e+00> : vector<256x128xf32>
    %64 = tpu.matmul %61, %63, %cst_54 {dimension_numbers = #tpu.dot_dimension_numbers<[1], [0], [0], [1], [0, 0, 1, 1], [], []>} : vector<256x128xbf16>, vector<128x128xbf16>, vector<256x128xf32> -> vector<256x128xf32>
    %cst_55 = arith.constant 0.000000e+00 : f32
    %65 = vector.broadcast %cst_55 : f32 to vector<256x128xf32>
    %66 = arith.maximumf %64, %65 : vector<256x128xf32>
    %67 = vector.shape_cast %66 : vector<256x128xf32> to vector<16x16x128xf32>
    %68 = arith.truncf %67 : vector<16x16x128xf32> to vector<16x16x128xbf16>
    %c1_56 = arith.constant 1 : index
    %c0_57 = arith.constant 0 : index
    %c0_58 = arith.constant 0 : index
    %69 = vector.load %arg6[%c1_56, %c0_57, %c0_58] : memref<18x16x128xbf16, #tpu.memory_space<vmem>>, vector<16x16x128xbf16>
    tpu.vector_store %arg6[%c1_56, %c0_57, %c0_58], %68 {strides = array<i32>} : memref<18x16x128xbf16, #tpu.memory_space<vmem>>, vector<16x16x128xbf16>,
    %c0_59 = arith.constant 0 : index
    %c0_60 = arith.constant 0 : index
    %c0_61 = arith.constant 0 : index
    %70 = vector.load %arg6[%c0_59, %c0_60, %c0_61] : memref<18x16x128xbf16, #tpu.memory_space<vmem>>, vector<16x16x128xbf16>
    %71 = vector.shape_cast %70 : vector<16x16x128xbf16> to vector<256x128xbf16>
    %c1_62 = arith.constant 1 : index
    %c0_63 = arith.constant 0 : index
    %c0_64 = arith.constant 0 : index
    %72 = vector.load %arg6[%c1_62, %c0_63, %c0_64] : memref<18x16x128xbf16, #tpu.memory_space<vmem>>, vector<16x16x128xbf16>
    %73 = vector.shape_cast %72 : vector<16x16x128xbf16> to vector<256x128xbf16>
    %c2_65 = arith.constant 2 : index
    %c0_66 = arith.constant 0 : index
    %c0_67 = arith.constant 0 : index
    %74 = vector.load %arg6[%c2_65, %c0_66, %c0_67] : memref<18x16x128xbf16, #tpu.memory_space<vmem>>, vector<16x16x128xbf16>
    %75 = vector.shape_cast %74 : vector<16x16x128xbf16> to vector<256x128xbf16>
    %76 = tpu.concatenate %71, %73, %75 in 1 : vector<256x128xbf16>, vector<256x128xbf16>, vector<256x128xbf16> -> vector<256x384xbf16>
    %c0_68 = arith.constant 0 : index
    %c0_69 = arith.constant 0 : index
    %77 = vector.load %arg5[%c0_68, %c0_69] : memref<256x128xf32, #tpu.memory_space<vmem>>, vector<256x128xf32>
    %c1_70 = arith.constant 1 : index
    %c0_71 = arith.constant 0 : index
    %c0_72 = arith.constant 0 : index
    %c0_73 = arith.constant 0 : index
    %78 = vector.load %arg3[%c1_70, %c0_71, %c0_72, %c0_73] : memref<2x3x384x128xbf16, #tpu.memory_space<vmem>>, vector<1x1x384x128xbf16>
    %79 = vector.shape_cast %78 : vector<1x1x384x128xbf16> to vector<384x128xbf16>
    %cst_74 = arith.constant dense<0.000000e+00> : vector<256x128xf32>
    %80 = tpu.matmul %76, %79, %cst_74 {dimension_numbers = #tpu.dot_dimension_numbers<[1], [0], [0], [1], [0, 0, 1, 1], [], []>} : vector<256x384xbf16>, vector<384x128xbf16>, vector<256x128xf32> -> vector<256x128xf32>
    %c1_i32_75 = arith.constant 1 : i32
    %81 = tpu.dynamic_rotate %80 by %c1_i32_75 dim 0 : vector<256x128xf32>, i32 -> vector<256x128xf32>
    %cst_76 = arith.constant 0.000000e+00 : f32
    %82 = vector.shape_cast %16 : vector<256x1xi1> to vector<256x1xi1>
    %83 = vector.broadcast %82 : vector<256x1xi1> to vector<256x128xi1>
    %84 = vector.broadcast %cst_76 : f32 to vector<256x128xf32>
    %85 = arith.select %83, %81, %84 : vector<256x128xi1>, vector<256x128xf32>
    %86 = arith.addf %77, %85 : vector<256x128xf32>
    %c1_77 = arith.constant 1 : index
    %c1_78 = arith.constant 1 : index
    %c0_79 = arith.constant 0 : index
    %c0_80 = arith.constant 0 : index
    %87 = vector.load %arg3[%c1_77, %c1_78, %c0_79, %c0_80] : memref<2x3x384x128xbf16, #tpu.memory_space<vmem>>, vector<1x1x384x128xbf16>
    %88 = vector.shape_cast %87 : vector<1x1x384x128xbf16> to vector<384x128xbf16>
    %cst_81 = arith.constant dense<0.000000e+00> : vector<256x128xf32>
    %89 = tpu.matmul %76, %88, %cst_81 {dimension_numbers = #tpu.dot_dimension_numbers<[1], [0], [0], [1], [0, 0, 1, 1], [], []>} : vector<256x384xbf16>, vector<384x128xbf16>, vector<256x128xf32> -> vector<256x128xf32>
    %90 = arith.addf %86, %89 : vector<256x128xf32>
    %c1_82 = arith.constant 1 : index
    %c2_83 = arith.constant 2 : index
    %c0_84 = arith.constant 0 : index
    %c0_85 = arith.constant 0 : index
    %91 = vector.load %arg3[%c1_82, %c2_83, %c0_84, %c0_85] : memref<2x3x384x128xbf16, #tpu.memory_space<vmem>>, vector<1x1x384x128xbf16>
    %92 = vector.shape_cast %91 : vector<1x1x384x128xbf16> to vector<384x128xbf16>
    %cst_86 = arith.constant dense<0.000000e+00> : vector<256x128xf32>
    %93 = tpu.matmul %76, %92, %cst_86 {dimension_numbers = #tpu.dot_dimension_numbers<[1], [0], [0], [1], [0, 0, 1, 1], [], []>} : vector<256x384xbf16>, vector<384x128xbf16>, vector<256x128xf32> -> vector<256x128xf32>
    %c255_i32_87 = arith.constant 255 : i32
    %94 = tpu.dynamic_rotate %93 by %c255_i32_87 dim 0 : vector<256x128xf32>, i32 -> vector<256x128xf32>
    %cst_88 = arith.constant 0.000000e+00 : f32
    %95 = vector.shape_cast %18 : vector<256x1xi1> to vector<256x1xi1>
    %96 = vector.broadcast %95 : vector<256x1xi1> to vector<256x128xi1>
    %97 = vector.broadcast %cst_88 : f32 to vector<256x128xf32>
    %98 = arith.select %96, %94, %97 : vector<256x128xi1>, vector<256x128xf32>
    %99 = arith.addf %90, %98 : vector<256x128xf32>
    %c0_89 = arith.constant 0 : index
    %c0_90 = arith.constant 0 : index
    %100 = vector.load %arg5[%c0_89, %c0_90] : memref<256x128xf32, #tpu.memory_space<vmem>>, vector<256x128xf32>
    tpu.vector_store %arg5[%c0_89, %c0_90], %99 {strides = array<i32>} : memref<256x128xf32, #tpu.memory_space<vmem>>, vector<256x128xf32>,
    %c0_91 = arith.constant 0 : index
    %c0_92 = arith.constant 0 : index
    %101 = vector.load %arg5[%c0_91, %c0_92] : memref<256x128xf32, #tpu.memory_space<vmem>>, vector<256x128xf32>
    %102 = vector.shape_cast %101 : vector<256x128xf32> to vector<16x16x128xf32>
    %103 = arith.truncf %102 : vector<16x16x128xf32> to vector<16x16x128xbf16>
    %c0_93 = arith.constant 0 : index
    %c0_94 = arith.constant 0 : index
    %c0_95 = arith.constant 0 : index
    %c0_96 = arith.constant 0 : index
    %104 = vector.load %arg4[%c0_93, %c0_94, %c0_95, %c0_96] : memref<1x16x16x128xbf16, #tpu.memory_space<vmem>>, vector<1x16x16x128xbf16>
    %105 = vector.shape_cast %104 : vector<1x16x16x128xbf16> to vector<16x16x128xbf16>
    %106 = vector.shape_cast %103 : vector<16x16x128xbf16> to vector<1x16x16x128xbf16>
    tpu.vector_store %arg4[%c0_93, %c0_94, %c0_95, %c0_96], %106 {strides = array<i32>} : memref<1x16x16x128xbf16, #tpu.memory_space<vmem>>, vector<1x16x16x128xbf16>,
    return
  }
  func.func @transform_0(%arg0: i32) -> (i32, i32, i32, i32) {
    %c0_i32 = arith.constant 0 : i32
    %c0_i32_0 = arith.constant 0 : i32
    %c0_i32_1 = arith.constant 0 : i32
    %c0_i32_2 = arith.constant 0 : i32
    return %arg0, %c0_i32, %c0_i32_0, %c0_i32_1 : i32, i32, i32, i32
  }
  func.func @transform_1(%arg0: i32) -> (i32, i32, i32) {
    %c0_i32 = arith.constant 0 : i32
    %c0_i32_0 = arith.constant 0 : i32
    %c0_i32_1 = arith.constant 0 : i32
    %c0_i32_2 = arith.constant 0 : i32
    return %c0_i32, %c0_i32_0, %c0_i32_1 : i32, i32, i32
  }
  func.func @transform_2(%arg0: i32) -> (i32, i32, i32, i32) {
    %c0_i32 = arith.constant 0 : i32
    %c0_i32_0 = arith.constant 0 : i32
    %c0_i32_1 = arith.constant 0 : i32
    %c0_i32_2 = arith.constant 0 : i32
    %c0_i32_3 = arith.constant 0 : i32
    return %c0_i32, %c0_i32_0, %c0_i32_1, %c0_i32_2 : i32, i32, i32, i32
  }
  func.func @transform_3(%arg0: i32) -> (i32, i32, i32, i32) {
    %c0_i32 = arith.constant 0 : i32
    %c0_i32_0 = arith.constant 0 : i32
    %c0_i32_1 = arith.constant 0 : i32
    %c0_i32_2 = arith.constant 0 : i32
    return %arg0, %c0_i32, %c0_i32_0, %c0_i32_1 : i32, i32, i32, i32
  }
}

module attributes {stable_mosaic.version = 11 : i64} {
  func.func @_concat_conv_kernel(%arg0: i32, %arg1: memref<512x128xbf16, #tpu.memory_space<vmem>>, %arg2: memref<512x128xbf16, #tpu.memory_space<vmem>>, %arg3: memref<128x128xbf16, #tpu.memory_space<vmem>>, %arg4: memref<128x128xbf16, #tpu.memory_space<vmem>>, %arg5: memref<512x128xf32, #tpu.memory_space<vmem>>) attributes {dimension_semantics = [#tpu.dimension_semantics<parallel>], iteration_bounds = array<i64: 1>, scalar_prefetch = 0 : i64, scratch_operands = 0 : i64, tpu.core_type = #tpu.core_type<tc>, window_params = [{transform_indices = @transform_0, window_bounds = array<i64: 512, 128>}, {transform_indices = @transform_1, window_bounds = array<i64: 512, 128>}, {pipeline_mode = #tpu.pipeline_mode<synchronous>, transform_indices = @transform_2, window_bounds = array<i64: 128, 128>}, {pipeline_mode = #tpu.pipeline_mode<synchronous>, transform_indices = @transform_3, window_bounds = array<i64: 128, 128>}, {transform_indices = @transform_4, window_bounds = array<i64: 512, 128>}]} {
    %c0 = arith.constant 0 : index
    %c0_0 = arith.constant 0 : index
    %0 = vector.load %arg1[%c0, %c0_0] : memref<512x128xbf16, #tpu.memory_space<vmem>>, vector<512x128xbf16>
    %c0_1 = arith.constant 0 : index
    %c0_2 = arith.constant 0 : index
    %1 = vector.load %arg3[%c0_1, %c0_2] : memref<128x128xbf16, #tpu.memory_space<vmem>>, vector<128x128xbf16>
    %cst = arith.constant dense<0.000000e+00> : vector<512x128xf32>
    %2 = tpu.matmul %0, %1, %cst {dimension_numbers = #tpu.dot_dimension_numbers<[1], [0], [0], [1], [0, 0, 1, 1], [], []>} : vector<512x128xbf16>, vector<128x128xbf16>, vector<512x128xf32> -> vector<512x128xf32>
    %c0_3 = arith.constant 0 : index
    %c0_4 = arith.constant 0 : index
    %3 = vector.load %arg2[%c0_3, %c0_4] : memref<512x128xbf16, #tpu.memory_space<vmem>>, vector<512x128xbf16>
    %c0_5 = arith.constant 0 : index
    %c0_6 = arith.constant 0 : index
    %4 = vector.load %arg4[%c0_5, %c0_6] : memref<128x128xbf16, #tpu.memory_space<vmem>>, vector<128x128xbf16>
    %cst_7 = arith.constant dense<0.000000e+00> : vector<512x128xf32>
    %5 = tpu.matmul %3, %4, %cst_7 {dimension_numbers = #tpu.dot_dimension_numbers<[1], [0], [0], [1], [0, 0, 1, 1], [], []>} : vector<512x128xbf16>, vector<128x128xbf16>, vector<512x128xf32> -> vector<512x128xf32>
    %6 = arith.addf %2, %5 : vector<512x128xf32>
    %c0_8 = arith.constant 0 : index
    %c0_9 = arith.constant 0 : index
    %7 = vector.load %arg5[%c0_8, %c0_9] : memref<512x128xf32, #tpu.memory_space<vmem>>, vector<512x128xf32>
    tpu.vector_store %arg5[%c0_8, %c0_9], %6 {strides = array<i32>} : memref<512x128xf32, #tpu.memory_space<vmem>>, vector<512x128xf32>,
    return
  }
  func.func @transform_0(%arg0: i32) -> (i32, i32) {
    %c0_i32 = arith.constant 0 : i32
    %c0_i32_0 = arith.constant 0 : i32
    return %arg0, %c0_i32 : i32, i32
  }
  func.func @transform_1(%arg0: i32) -> (i32, i32) {
    %c0_i32 = arith.constant 0 : i32
    %c0_i32_0 = arith.constant 0 : i32
    return %arg0, %c0_i32 : i32, i32
  }
  func.func @transform_2(%arg0: i32) -> (i32, i32) {
    %c0_i32 = arith.constant 0 : i32
    %c0_i32_0 = arith.constant 0 : i32
    %c0_i32_1 = arith.constant 0 : i32
    return %c0_i32, %c0_i32_0 : i32, i32
  }
  func.func @transform_3(%arg0: i32) -> (i32, i32) {
    %c0_i32 = arith.constant 0 : i32
    %c0_i32_0 = arith.constant 0 : i32
    %c0_i32_1 = arith.constant 0 : i32
    return %c0_i32, %c0_i32_0 : i32, i32
  }
  func.func @transform_4(%arg0: i32) -> (i32, i32) {
    %c0_i32 = arith.constant 0 : i32
    %c0_i32_0 = arith.constant 0 : i32
    return %arg0, %c0_i32 : i32, i32
  }
}

</mosaic_0001>

<llo_original>
// kernel: csp_block_forward.5
$region0: #{csp_block_forward.5}
  #allocation0 [shape = 'u32[]', space=smem, size = 0x4, offset = 0x4, fixed_abs, tag = 'smem constant byte address 0x4 - core index']
  #allocation1 [shape = 'u32[144,128]{1,0:T(1,128)}', space=vmem, size = 0x12000, scoped, tag = 'internal scratch']
  %s0 = inlined_call_operand.hbm [shape: bf16[512,128], index: 0, kind: input, shape index: {}]
  %s1 = inlined_call_operand.hbm [shape: bf16[512,128], index: 1, kind: input, shape index: {}]
  %s2 = inlined_call_operand.vmem [shape: bf16[128,128], index: 2, kind: input, shape index: {}]
  %s3 = inlined_call_operand.vmem [shape: bf16[128,128], index: 3, kind: input, shape index: {}]
  %s4 = inlined_call_operand.vmem [shape: f32[512,128], index: 4, kind: output, shape index: {}]
  %s5 = sld [smem:[#allocation0]]
  $region34: #{csp_block_forward.5} parent=0
    _
  %s7 = ssub.s32 1, %s5
  %s8 = scalar_select 0, %s7, %s5
  $region1: #{csp_block_forward.5} parent=0
    #allocation2 [shape = 'u8[131072]{0}', space=vmem, size = 0x20000, scoped, tag = 'input window, operand 0, single buffered']
    #allocation3 [shape = 's32[1]{0}', space=sflag, size = 0x4, scoped, tag = 'scoped memory for csp_block_forward.5']
    #allocation4 [shape = 'u8[131072]{0}', space=vmem, size = 0x20000, scoped, tag = 'input window, operand 1, single buffered']
    #allocation5 [shape = 's32[1]{0}', space=sflag, size = 0x4, scoped, tag = 'scoped memory for csp_block_forward.5']
    %9 = vsyncpa [#allocation3], 0
    %10 = vsyncpa [#allocation5], 0
    // Predicated region
    $region2: #{csp_block_forward.5} parent=1 // pred_check
      _
    $region3: #{csp_block_forward.5} parent=1 // pred_check_branch
      %12 = sbr.rel (0) target = $region5
    $region4: #{csp_block_forward.5} parent=1 // pred_region
      %s14 = ssub.s32 4096, 4096
      %15 = vsyncadd [#allocation3], %s14
      %s16 = sshll.u32 [#allocation2], 4
      %s17 = int_to_ptr.vmem [resolvable:$true] %s16
      %22 = dma.hbm_to_vmem [thread:$0]  %s0, 4096, %s17, [#allocation3], 64, 64, 4
    $region5: #{csp_block_forward.5} parent=1 // pred_fallthru
      _
    // Predicated region
    $region6: #{csp_block_forward.5} parent=1 // pred_check
      _
    $region7: #{csp_block_forward.5} parent=1 // pred_check_branch
      %24 = sbr.rel (0) target = $region9
    $region8: #{csp_block_forward.5} parent=1 // pred_region
      %s26 = ssub.s32 4096, 4096
      %27 = vsyncadd [#allocation5], %s26
      %s28 = sshll.u32 [#allocation4], 4
      %s29 = int_to_ptr.vmem [resolvable:$true] %s28
      %34 = dma.hbm_to_vmem [thread:$0]  %s1, 4096, %s29, [#allocation5], 64, 64, 4
    $region9: #{csp_block_forward.5} parent=1 // pred_fallthru
      _
    // Predicated region
    $region10: #{csp_block_forward.5} parent=1 // pred_check
      _
    $region11: #{csp_block_forward.5} parent=1 // pred_check_branch
      %36 = sbr.rel (0) target = $region13
    $region12: #{csp_block_forward.5} parent=1 // pred_region
      _
    $region13: #{csp_block_forward.5} parent=1 // pred_fallthru
      _
    // Predicated region
    $region14: #{csp_block_forward.5} parent=1 // pred_check
      _
    $region15: #{csp_block_forward.5} parent=1 // pred_check_branch
      %38 = sbr.rel (0) target = $region17
    $region16: #{csp_block_forward.5} parent=1 // pred_region
      _
    $region17: #{csp_block_forward.5} parent=1 // pred_fallthru
      _
    // Predicated region
    $region18: #{csp_block_forward.5} parent=1 // pred_check
      _
    $region19: #{csp_block_forward.5} parent=1 // pred_check_branch
      %40 = sbr.rel (0) target = $region21
    $region20: #{csp_block_forward.5} parent=1 // pred_region
      %41 = dma.done [#allocation3], 4096
    $region21: #{csp_block_forward.5} parent=1 // pred_fallthru
      _
    // Predicated region
    $region22: #{csp_block_forward.5} parent=1 // pred_check
      _
    $region23: #{csp_block_forward.5} parent=1 // pred_check_branch
      %43 = sbr.rel (0) target = $region25
    $region24: #{csp_block_forward.5} parent=1 // pred_region
      %44 = dma.done [#allocation5], 4096
    $region25: #{csp_block_forward.5} parent=1 // pred_fallthru
      _
    %v46 = vld [vmem:[#allocation2] sm:$0xf]
    %v47 = vld [vmem:[#allocation2 + $0x4] sm:$0xf]
    %v48 = vld [vmem:[#allocation2 + $0x8] sm:$0xf]
    %v49 = vld [vmem:[#allocation2 + $0xc] sm:$0xf]
    %v50 = vld [vmem:[#allocation2 + $0x10] sm:$0xf]
    %v51 = vld [vmem:[#allocation2 + $0x14] sm:$0xf]
    %v52 = vld [vmem:[#allocation2 + $0x18] sm:$0xf]
    %v53 = vld [vmem:[#allocation2 + $0x1c] sm:$0xf]
    %v54 = vld [vmem:[#allocation2 + $0x20] sm:$0xf]
    %v55 = vld [vmem:[#allocation2 + $0x24] sm:$0xf]
    %v56 = vld [vmem:[#allocation2 + $0x28] sm:$0xf]
    %v57 = vld [vmem:[#allocation2 + $0x2c] sm:$0xf]
    %v58 = vld [vmem:[#allocation2 + $0x30] sm:$0xf]
    %v59 = vld [vmem:[#allocation2 + $0x34] sm:$0xf]
    %v60 = vld [vmem:[#allocation2 + $0x38] sm:$0xf]
    %v61 = vld [vmem:[#allocation2 + $0x3c] sm:$0xf]
    %v62 = vld [vmem:[#allocation2 + $0x40] sm:$0xf]
    %v63 = vld [vmem:[#allocation2 + $0x44] sm:$0xf]
    %v64 = vld [vmem:[#allocation2 + $0x48] sm:$0xf]
    %v65 = vld [vmem:[#allocation2 + $0x4c] sm:$0xf]
    %v66 = vld [vmem:[#allocation2 + $0x50] sm:$0xf]
    %v67 = vld [vmem:[#allocation2 + $0x54] sm:$0xf]
    %v68 = vld [vmem:[#allocation2 + $0x58] sm:$0xf]
    %v69 = vld [vmem:[#allocation2 + $0x5c] sm:$0xf]
    %v70 = vld [vmem:[#allocation2 + $0x60] sm:$0xf]
    %v71 = vld [vmem:[#allocation2 + $0x64] sm:$0xf]
    %v72 = vld [vmem:[#allocation2 + $0x68] sm:$0xf]
    %v73 = vld [vmem:[#allocation2 + $0x6c] sm:$0xf]
    %v74 = vld [vmem:[#allocation2 + $0x70] sm:$0xf]
    %v75 = vld [vmem:[#allocation2 + $0x74] sm:$0xf]
    %v76 = vld [vmem:[#allocation2 + $0x78] sm:$0xf]
    %v77 = vld [vmem:[#allocation2 + $0x7c] sm:$0xf]
    %v78 = vld [vmem:[#allocation2 + $0x80] sm:$0xf]
    %v79 = vld [vmem:[#allocation2 + $0x84] sm:$0xf]
    %v80 = vld [vmem:[#allocation2 + $0x88] sm:$0xf]
    %v81 = vld [vmem:[#allocation2 + $0x8c] sm:$0xf]
    %v82 = vld [vmem:[#allocation2 + $0x90] sm:$0xf]
    %v83 = vld [vmem:[#allocation2 + $0x94] sm:$0xf]
    %v84 = vld [vmem:[#allocation2 + $0x98] sm:$0xf]
    %v85 = vld [vmem:[#allocation2 + $0x9c] sm:$0xf]
    %v86 = vld [vmem:[#allocation2 + $0xa0] sm:$0xf]
    %v87 = vld [vmem:[#allocation2 + $0xa4] sm:$0xf]
    %v88 = vld [vmem:[#allocation2 + $0xa8] sm:$0xf]
    %v89 = vld [vmem:[#allocation2 + $0xac] sm:$0xf]
    %v90 = vld [vmem:[#allocation2 + $0xb0] sm:$0xf]
    %v91 = vld [vmem:[#allocation2 + $0xb4] sm:$0xf]
    %v92 = vld [vmem:[#allocation2 + $0xb8] sm:$0xf]
    %v93 = vld [vmem:[#allocation2 + $0xbc] sm:$0xf]
    %v94 = vld [vmem:[#allocation2 + $0xc0] sm:$0xf]
    %v95 = vld [vmem:[#allocation2 + $0xc4] sm:$0xf]
    %v96 = vld [vmem:[#allocation2 + $0xc8] sm:$0xf]
    %v97 = vld [vmem:[#allocation2 + $0xcc] sm:$0xf]
    %v98 = vld [vmem:[#allocation2 + $0xd0] sm:$0xf]
    %v99 = vld [vmem:[#allocation2 + $0xd4] sm:$0xf]
    %v100 = vld [vmem:[#allocation2 + $0xd8] sm:$0xf]
    %v101 = vld [vmem:[#allocation2 + $0xdc] sm:$0xf]
    %v102 = vld [vmem:[#allocation2 + $0xe0] sm:$0xf]
    %v103 = vld [vmem:[#allocation2 + $0xe4] sm:$0xf]
    %v104 = vld [vmem:[#allocation2 + $0xe8] sm:$0xf]
    %v105 = vld [vmem:[#allocation2 + $0xec] sm:$0xf]
    %v106 = vld [vmem:[#allocation2 + $0xf0] sm:$0xf]
    %v107 = vld [vmem:[#allocation2 + $0xf4] sm:$0xf]
    %v108 = vld [vmem:[#allocation2 + $0xf8] sm:$0xf]
    %v109 = vld [vmem:[#allocation2 + $0xfc] sm:$0xf]
    %v110 = vld [vmem:[%s2] sm:$0xf]
    %v111 = vld [vmem:[%s2 + $0x4] sm:$0xf]
    %v112 = vld [vmem:[%s2 + $0x8] sm:$0xf]
    %v113 = vld [vmem:[%s2 + $0xc] sm:$0xf]
    %v114 = vld [vmem:[%s2 + $0x10] sm:$0xf]
    %v115 = vld [vmem:[%s2 + $0x14] sm:$0xf]
    %v116 = vld [vmem:[%s2 + $0x18] sm:$0xf]
    %v117 = vld [vmem:[%s2 + $0x1c] sm:$0xf]
    %v118 = vld [vmem:[%s2 + $0x20] sm:$0xf]
    %v119 = vld [vmem:[%s2 + $0x24] sm:$0xf]
    %v120 = vld [vmem:[%s2 + $0x28] sm:$0xf]
    %v121 = vld [vmem:[%s2 + $0x2c] sm:$0xf]
    %v122 = vld [vmem:[%s2 + $0x30] sm:$0xf]
    %v123 = vld [vmem:[%s2 + $0x34] sm:$0xf]
    %v124 = vld [vmem:[%s2 + $0x38] sm:$0xf]
    %v125 = vld [vmem:[%s2 + $0x3c] sm:$0xf]
    %v126 = vld [vmem:[#allocation4] sm:$0xf]
    %v127 = vld [vmem:[#allocation4 + $0x4] sm:$0xf]
    %v128 = vld [vmem:[#allocation4 + $0x8] sm:$0xf]
    %v129 = vld [vmem:[#allocation4 + $0xc] sm:$0xf]
    %v130 = vld [vmem:[#allocation4 + $0x10] sm:$0xf]
    %v131 = vld [vmem:[#allocation4 + $0x14] sm:$0xf]
    %v132 = vld [vmem:[#allocation4 + $0x18] sm:$0xf]
    %v133 = vld [vmem:[#allocation4 + $0x1c] sm:$0xf]
    %v134 = vld [vmem:[#allocation4 + $0x20] sm:$0xf]
    %v135 = vld [vmem:[#allocation4 + $0x24] sm:$0xf]
    %v136 = vld [vmem:[#allocation4 + $0x28] sm:$0xf]
    %v137 = vld [vmem:[#allocation4 + $0x2c] sm:$0xf]
    %v138 = vld [vmem:[#allocation4 + $0x30] sm:$0xf]
    %v139 = vld [vmem:[#allocation4 + $0x34] sm:$0xf]
    %v140 = vld [vmem:[#allocation4 + $0x38] sm:$0xf]
    %v141 = vld [vmem:[#allocation4 + $0x3c] sm:$0xf]
    %v142 = vld [vmem:[#allocation4 + $0x40] sm:$0xf]
    %v143 = vld [vmem:[#allocation4 + $0x44] sm:$0xf]
    %v144 = vld [vmem:[#allocation4 + $0x48] sm:$0xf]
    %v145 = vld [vmem:[#allocation4 + $0x4c] sm:$0xf]
    %v146 = vld [vmem:[#allocation4 + $0x50] sm:$0xf]
    %v147 = vld [vmem:[#allocation4 + $0x54] sm:$0xf]
    %v148 = vld [vmem:[#allocation4 + $0x58] sm:$0xf]
    %v149 = vld [vmem:[#allocation4 + $0x5c] sm:$0xf]
    %v150 = vld [vmem:[#allocation4 + $0x60] sm:$0xf]
    %v151 = vld [vmem:[#allocation4 + $0x64] sm:$0xf]
    %v152 = vld [vmem:[#allocation4 + $0x68] sm:$0xf]
    %v153 = vld [vmem:[#allocation4 + $0x6c] sm:$0xf]
    %v154 = vld [vmem:[#allocation4 + $0x70] sm:$0xf]
    %v155 = vld [vmem:[#allocation4 + $0x74] sm:$0xf]
    %v156 = vld [vmem:[#allocation4 + $0x78] sm:$0xf]
    %v157 = vld [vmem:[#allocation4 + $0x7c] sm:$0xf]
    %v158 = vld [vmem:[#allocation4 + $0x80] sm:$0xf]
    %v159 = vld [vmem:[#allocation4 + $0x84] sm:$0xf]
    %v160 = vld [vmem:[#allocation4 + $0x88] sm:$0xf]
    %v161 = vld [vmem:[#allocation4 + $0x8c] sm:$0xf]
    %v162 = vld [vmem:[#allocation4 + $0x90] sm:$0xf]
    %v163 = vld [vmem:[#allocation4 + $0x94] sm:$0xf]
    %v164 = vld [vmem:[#allocation4 + $0x98] sm:$0xf]
    %v165 = vld [vmem:[#allocation4 + $0x9c] sm:$0xf]
    %v166 = vld [vmem:[#allocation4 + $0xa0] sm:$0xf]
    %v167 = vld [vmem:[#allocation4 + $0xa4] sm:$0xf]
    %v168 = vld [vmem:[#allocation4 + $0xa8] sm:$0xf]
    %v169 = vld [vmem:[#allocation4 + $0xac] sm:$0xf]
    %v170 = vld [vmem:[#allocation4 + $0xb0] sm:$0xf]
    %v171 = vld [vmem:[#allocation4 + $0xb4] sm:$0xf]
    %v172 = vld [vmem:[#allocation4 + $0xb8] sm:$0xf]
    %v173 = vld [vmem:[#allocation4 + $0xbc] sm:$0xf]
    %v174 = vld [vmem:[#allocation4 + $0xc0] sm:$0xf]
    %v175 = vld [vmem:[#allocation4 + $0xc4] sm:$0xf]
    %v176 = vld [vmem:[#allocation4 + $0xc8] sm:$0xf]
    %v177 = vld [vmem:[#allocation4 + $0xcc] sm:$0xf]
    %v178 = vld [vmem:[#allocation4 + $0xd0] sm:$0xf]
    %v179 = vld [vmem:[#allocation4 + $0xd4] sm:$0xf]
    %v180 = vld [vmem:[#allocation4 + $0xd8] sm:$0xf]
    %v181 = vld [vmem:[#allocation4 + $0xdc] sm:$0xf]
    %v182 = vld [vmem:[#allocation4 + $0xe0] sm:$0xf]
    %v183 = vld [vmem:[#allocation4 + $0xe4] sm:$0xf]
    %v184 = vld [vmem:[#allocation4 + $0xe8] sm:$0xf]
    %v185 = vld [vmem:[#allocation4 + $0xec] sm:$0xf]
    %v186 = vld [vmem:[#allocation4 + $0xf0] sm:$0xf]
    %v187 = vld [vmem:[#allocation4 + $0xf4] sm:$0xf]
    %v188 = vld [vmem:[#allocation4 + $0xf8] sm:$0xf]
    %v189 = vld [vmem:[#allocation4 + $0xfc] sm:$0xf]
    %v190 = vld [vmem:[%s3] sm:$0xf]
    %v191 = vld [vmem:[%s3 + $0x4] sm:$0xf]
    %v192 = vld [vmem:[%s3 + $0x8] sm:$0xf]
    %v193 = vld [vmem:[%s3 + $0xc] sm:$0xf]
    %v194 = vld [vmem:[%s3 + $0x10] sm:$0xf]
    %v195 = vld [vmem:[%s3 + $0x14] sm:$0xf]
    %v196 = vld [vmem:[%s3 + $0x18] sm:$0xf]
    %v197 = vld [vmem:[%s3 + $0x1c] sm:$0xf]
    %v198 = vld [vmem:[%s3 + $0x20] sm:$0xf]
    %v199 = vld [vmem:[%s3 + $0x24] sm:$0xf]
    %v200 = vld [vmem:[%s3 + $0x28] sm:$0xf]
    %v201 = vld [vmem:[%s3 + $0x2c] sm:$0xf]
    %v202 = vld [vmem:[%s3 + $0x30] sm:$0xf]
    %v203 = vld [vmem:[%s3 + $0x34] sm:$0xf]
    %v204 = vld [vmem:[%s3 + $0x38] sm:$0xf]
    %v205 = vld [vmem:[%s3 + $0x3c] sm:$0xf]
    %v270 = vunpack.c.l.b16 %v126
    %v271 = vunpack.c.l.b16 %v127
    %v272 = vunpack.c.l.b16 %v128
    %v273 = vunpack.c.l.b16 %v129
    %v274 = vunpack.c.l.b16 %v130
    %v275 = vunpack.c.l.b16 %v131
    %v276 = vunpack.c.l.b16 %v132
    %v277 = vunpack.c.l.b16 %v133
    %v278 = vunpack.c.l.b16 %v134
    %v279 = vunpack.c.l.b16 %v135
    %v280 = vunpack.c.l.b16 %v136
    %v281 = vunpack.c.l.b16 %v137
    %v282 = vunpack.c.l.b16 %v138
    %v283 = vunpack.c.l.b16 %v139
    %v284 = vunpack.c.l.b16 %v140
    %v285 = vunpack.c.l.b16 %v141
    %v286 = vunpack.c.l.b16 %v142
    %v287 = vunpack.c.l.b16 %v143
    %v288 = vunpack.c.l.b16 %v144
    %v289 = vunpack.c.l.b16 %v145
    %v290 = vunpack.c.l.b16 %v146
    %v291 = vunpack.c.l.b16 %v147
    %v292 = vunpack.c.l.b16 %v148
    %v293 = vunpack.c.l.b16 %v149
    %v294 = vunpack.c.l.b16 %v150
    %v295 = vunpack.c.l.b16 %v151
    %v296 = vunpack.c.l.b16 %v152
    %v297 = vunpack.c.l.b16 %v153
    %v298 = vunpack.c.l.b16 %v154
    %v299 = vunpack.c.l.b16 %v155
    %v300 = vunpack.c.l.b16 %v156
    %v301 = vunpack.c.l.b16 %v157
    %v302 = vunpack.c.l.b16 %v158
    %v303 = vunpack.c.l.b16 %v159
    %v304 = vunpack.c.l.b16 %v160
    %v305 = vunpack.c.l.b16 %v161
    %v306 = vunpack.c.l.b16 %v162
    %v307 = vunpack.c.l.b16 %v163
    %v308 = vunpack.c.l.b16 %v164
    %v309 = vunpack.c.l.b16 %v165
    %v310 = vunpack.c.l.b16 %v166
    %v311 = vunpack.c.l.b16 %v167
    %v312 = vunpack.c.l.b16 %v168
    %v313 = vunpack.c.l.b16 %v169
    %v314 = vunpack.c.l.b16 %v170
    %v315 = vunpack.c.l.b16 %v171
    %v316 = vunpack.c.l.b16 %v172
    %v317 = vunpack.c.l.b16 %v173
    %v318 = vunpack.c.l.b16 %v174
    %v319 = vunpack.c.l.b16 %v175
    %v320 = vunpack.c.l.b16 %v176
    %v321 = vunpack.c.l.b16 %v177
    %v322 = vunpack.c.l.b16 %v178
    %v323 = vunpack.c.l.b16 %v179
    %v324 = vunpack.c.l.b16 %v180
    %v325 = vunpack.c.l.b16 %v181
    %v326 = vunpack.c.l.b16 %v182
    %v327 = vunpack.c.l.b16 %v183
    %v328 = vunpack.c.l.b16 %v184
    %v329 = vunpack.c.l.b16 %v185
    %v330 = vunpack.c.l.b16 %v186
    %v331 = vunpack.c.l.b16 %v187
    %v332 = vunpack.c.l.b16 %v188
    %v333 = vunpack.c.l.b16 %v189
    %v334 = vpack.c.b16 %v271, %v270
    %v335 = vpack.c.b16 %v273, %v272
    %v336 = vpack.c.b16 %v275, %v274
    %v337 = vpack.c.b16 %v277, %v276
    %v338 = vpack.c.b16 %v279, %v278
    %v339 = vpack.c.b16 %v281, %v280
    %v340 = vpack.c.b16 %v283, %v282
    %v341 = vpack.c.b16 %v285, %v284
    %v342 = vpack.c.b16 %v287, %v286
    %v343 = vpack.c.b16 %v289, %v288
    %v344 = vpack.c.b16 %v291, %v290
    %v345 = vpack.c.b16 %v293, %v292
    %v346 = vpack.c.b16 %v295, %v294
    %v347 = vpack.c.b16 %v297, %v296
    %v348 = vpack.c.b16 %v299, %v298
    %v349 = vpack.c.b16 %v301, %v300
    %v350 = vpack.c.b16 %v303, %v302
    %v351 = vpack.c.b16 %v305, %v304
    %v352 = vpack.c.b16 %v307, %v306
    %v353 = vpack.c.b16 %v309, %v308
    %v354 = vpack.c.b16 %v311, %v310
    %v355 = vpack.c.b16 %v313, %v312
    %v356 = vpack.c.b16 %v315, %v314
    %v357 = vpack.c.b16 %v317, %v316
    %v358 = vpack.c.b16 %v319, %v318
    %v359 = vpack.c.b16 %v321, %v320
    %v360 = vpack.c.b16 %v323, %v322
    %v361 = vpack.c.b16 %v325, %v324
    %v362 = vpack.c.b16 %v327, %v326
    %v363 = vpack.c.b16 %v329, %v328
    %v364 = vpack.c.b16 %v331, %v330
    %v365 = vpack.c.b16 %v333, %v332
    %v414 = vunpack.c.l.b16 %v190
    %v415 = vunpack.c.l.b16 %v191
    %v416 = vunpack.c.l.b16 %v192
    %v417 = vunpack.c.l.b16 %v193
    %v418 = vunpack.c.l.b16 %v194
    %v419 = vunpack.c.l.b16 %v195
    %v420 = vunpack.c.l.b16 %v196
    %v421 = vunpack.c.l.b16 %v197
    %v422 = vunpack.c.l.b16 %v198
    %v423 = vunpack.c.l.b16 %v199
    %v424 = vunpack.c.l.b16 %v200
    %v425 = vunpack.c.l.b16 %v201
    %v426 = vunpack.c.l.b16 %v202
    %v427 = vunpack.c.l.b16 %v203
    %v428 = vunpack.c.l.b16 %v204
    %v429 = vunpack.c.l.b16 %v205
    %v430 = vpack.c.b16 %v415, %v414
    %v431 = vpack.c.b16 %v417, %v416
    %v432 = vpack.c.b16 %v419, %v418
    %v433 = vpack.c.b16 %v421, %v420
    %v434 = vpack.c.b16 %v423, %v422
    %v435 = vpack.c.b16 %v425, %v424
    %v436 = vpack.c.b16 %v427, %v426
    %v437 = vpack.c.b16 %v429, %v428
    %446 = vmatprep.subr.bf16.mxu0 0
    %447 = vmatpush1.bf16.msra.mxu0 %v430
    %448 = vmatprep.subr.bf16.mxu0 0
    %449 = vmatpush1.bf16.msra.mxu0 %v431
    %450 = vmatprep.subr.bf16.mxu0 0
    %451 = vmatpush1.bf16.msra.mxu0 %v432
    %452 = vmatprep.subr.bf16.mxu0 0
    %453 = vmatpush1.bf16.msra.mxu0 %v433
    %454 = vmatprep.subr.bf16.mxu0 0
    %455 = vmatpush1.bf16.msra.mxu0 %v434
    %456 = vmatprep.subr.bf16.mxu0 0
    %457 = vmatpush1.bf16.msra.mxu0 %v435
    %458 = vmatprep.subr.bf16.mxu0 0
    %459 = vmatpush1.bf16.msra.mxu0 %v436
    %460 = vmatprep.subr.bf16.mxu0 0
    %461 = vmatpush1.bf16.msra.mxu0 %v437
    %462 = vmatprep.subr.bf16.mxu0 0
    %463 = vmatpush1.bf16.msra.mxu0 0
    %464 = vmatprep.subr.bf16.mxu0 0
    %465 = vmatpush1.bf16.msra.mxu0 0
    %466 = vmatprep.subr.bf16.mxu0 0
    %467 = vmatpush1.bf16.msra.mxu0 0
    %468 = vmatprep.subr.bf16.mxu0 0
    %469 = vmatpush1.bf16.msra.mxu0 0
    %470 = vmatprep.subr.bf16.mxu0 0
    %471 = vmatpush1.bf16.msra.mxu0 0
    %472 = vmatprep.subr.bf16.mxu0 0
    %473 = vmatpush1.bf16.msra.mxu0 0
    %474 = vmatprep.subr.bf16.mxu0 0
    %475 = vmatpush1.bf16.msra.mxu0 0
    %476 = vmatprep.subr.bf16.mxu0 0
    %477 = vmatpush1.bf16.msra.mxu0 0
    %478 = vmatprep.mubr.bf16.mxu0 0
    %479 = vmatmul.mubr.bf16.gmra.mrb[0].mxu0 %v334
    %v480 = vpop.f32.mrb[0].mxu0
    %v481 = vadd.f32 0.0, %v480
    %v482 = vpop.f32.mrb[0].mxu0
    %v483 = vpop.f32.mrb[0].mxu0
    %v484 = vadd.f32 0.0, %v483
    %v485 = vpop.f32.mrb[0].mxu0
    %486 = vmatprep.mubr.bf16.mxu0 0
    %487 = vmatmul.mubr.bf16.gmra.mrb[0].mxu0 %v335
    %v488 = vpop.f32.mrb[0].mxu0
    %v489 = vadd.f32 0.0, %v488
    %v490 = vpop.f32.mrb[0].mxu0
    %v491 = vpop.f32.mrb[0].mxu0
    %v492 = vadd.f32 0.0, %v491
    %v493 = vpop.f32.mrb[0].mxu0
    %494 = vmatprep.mubr.bf16.mxu0 0
    %495 = vmatmul.mubr.bf16.gmra.mrb[0].mxu0 %v336
    %v496 = vpop.f32.mrb[0].mxu0
    %v497 = vadd.f32 0.0, %v496
    %v498 = vpop.f32.mrb[0].mxu0
    %v499 = vpop.f32.mrb[0].mxu0
    %v500 = vadd.f32 0.0, %v499
    %v501 = vpop.f32.mrb[0].mxu0
    %502 = vmatprep.mubr.bf16.mxu0 0
    %503 = vmatmul.mubr.bf16.gmra.mrb[0].mxu0 %v337
    %v504 = vpop.f32.mrb[0].mxu0
    %v505 = vadd.f32 0.0, %v504
    %v506 = vpop.f32.mrb[0].mxu0
    %v507 = vpop.f32.mrb[0].mxu0
    %v508 = vadd.f32 0.0, %v507
    %v509 = vpop.f32.mrb[0].mxu0
    %510 = vmatprep.mubr.bf16.mxu0 0
    %511 = vmatmul.mubr.bf16.gmra.mrb[0].mxu0 %v338
    %v512 = vpop.f32.mrb[0].mxu0
    %v513 = vadd.f32 0.0, %v512
    %v514 = vpop.f32.mrb[0].mxu0
    %v515 = vpop.f32.mrb[0].mxu0
    %v516 = vadd.f32 0.0, %v515
    %v517 = vpop.f32.mrb[0].mxu0
    %518 = vmatprep.mubr.bf16.mxu0 0
    %519 = vmatmul.mubr.bf16.gmra.mrb[0].mxu0 %v339
    %v520 = vpop.f32.mrb[0].mxu0
    %v521 = vadd.f32 0.0, %v520
    %v522 = vpop.f32.mrb[0].mxu0
    %v523 = vpop.f32.mrb[0].mxu0
    %v524 = vadd.f32 0.0, %v523
    %v525 = vpop.f32.mrb[0].mxu0
    %526 = vmatprep.mubr.bf16.mxu0 0
    %527 = vmatmul.mubr.bf16.gmra.mrb[0].mxu0 %v340
    %v528 = vpop.f32.mrb[0].mxu0
    %v529 = vadd.f32 0.0, %v528
    %v530 = vpop.f32.mrb[0].mxu0
    %v531 = vpop.f32.mrb[0].mxu0
    %v532 = vadd.f32 0.0, %v531
    %v533 = vpop.f32.mrb[0].mxu0
    %534 = vmatprep.mubr.bf16.mxu0 0
    %535 = vmatmul.mubr.bf16.gmra.mrb[0].mxu0 %v341
    %v536 = vpop.f32.mrb[0].mxu0
    %v537 = vadd.f32 0.0, %v536
    %v538 = vpop.f32.mrb[0].mxu0
    %v539 = vpop.f32.mrb[0].mxu0
    %v540 = vadd.f32 0.0, %v539
    %v541 = vpop.f32.mrb[0].mxu0
    %542 = vmatprep.mubr.bf16.mxu0 0
    %543 = vmatmul.mubr.bf16.gmra.mrb[0].mxu0 %v342
    %v544 = vpop.f32.mrb[0].mxu0
    %v545 = vadd.f32 0.0, %v544
    %v546 = vpop.f32.mrb[0].mxu0
    %v547 = vpop.f32.mrb[0].mxu0
    %v548 = vadd.f32 0.0, %v547
    %v549 = vpop.f32.mrb[0].mxu0
    %550 = vmatprep.mubr.bf16.mxu0 0
    %551 = vmatmul.mubr.bf16.gmra.mrb[0].mxu0 %v343
    %v552 = vpop.f32.mrb[0].mxu0
    %v553 = vadd.f32 0.0, %v552
    %v554 = vpop.f32.mrb[0].mxu0
    %v555 = vpop.f32.mrb[0].mxu0
    %v556 = vadd.f32 0.0, %v555
    %v557 = vpop.f32.mrb[0].mxu0
    %558 = vmatprep.mubr.bf16.mxu0 0
    %559 = vmatmul.mubr.bf16.gmra.mrb[0].mxu0 %v344
    %v560 = vpop.f32.mrb[0].mxu0
    %v561 = vadd.f32 0.0, %v560
    %v562 = vpop.f32.mrb[0].mxu0
    %v563 = vpop.f32.mrb[0].mxu0
    %v564 = vadd.f32 0.0, %v563
    %v565 = vpop.f32.mrb[0].mxu0
    %566 = vmatprep.mubr.bf16.mxu0 0
    %567 = vmatmul.mubr.bf16.gmra.mrb[0].mxu0 %v345
    %v568 = vpop.f32.mrb[0].mxu0
    %v569 = vadd.f32 0.0, %v568
    %v570 = vpop.f32.mrb[0].mxu0
    %v571 = vpop.f32.mrb[0].mxu0
    %v572 = vadd.f32 0.0, %v571
    %v573 = vpop.f32.mrb[0].mxu0
    %574 = vmatprep.mubr.bf16.mxu0 0
    %575 = vmatmul.mubr.bf16.gmra.mrb[0].mxu0 %v346
    %v576 = vpop.f32.mrb[0].mxu0
    %v577 = vadd.f32 0.0, %v576
    %v578 = vpop.f32.mrb[0].mxu0
    %v579 = vpop.f32.mrb[0].mxu0
    %v580 = vadd.f32 0.0, %v579
    %v581 = vpop.f32.mrb[0].mxu0
    %582 = vmatprep.mubr.bf16.mxu0 0
    %583 = vmatmul.mubr.bf16.gmra.mrb[0].mxu0 %v347
    %v584 = vpop.f32.mrb[0].mxu0
    %v585 = vadd.f32 0.0, %v584
    %v586 = vpop.f32.mrb[0].mxu0
    %v587 = vpop.f32.mrb[0].mxu0
    %v588 = vadd.f32 0.0, %v587
    %v589 = vpop.f32.mrb[0].mxu0
    %590 = vmatprep.mubr.bf16.mxu0 0
    %591 = vmatmul.mubr.bf16.gmra.mrb[0].mxu0 %v348
    %v592 = vpop.f32.mrb[0].mxu0
    %v593 = vadd.f32 0.0, %v592
    %v594 = vpop.f32.mrb[0].mxu0
    %v595 = vpop.f32.mrb[0].mxu0
    %v596 = vadd.f32 0.0, %v595
    %v597 = vpop.f32.mrb[0].mxu0
    %598 = vmatprep.mubr.bf16.mxu0 0
    %599 = vmatmul.mubr.bf16.gmra.mrb[0].mxu0 %v349
    %v600 = vpop.f32.mrb[0].mxu0
    %v601 = vadd.f32 0.0, %v600
    %v602 = vpop.f32.mrb[0].mxu0
    %v603 = vpop.f32.mrb[0].mxu0
    %v604 = vadd.f32 0.0, %v603
    %v605 = vpop.f32.mrb[0].mxu0
    %606 = vmatprep.mubr.bf16.mxu0 0
    %607 = vmatmul.mubr.bf16.gmra.mrb[0].mxu0 %v350
    %v608 = vpop.f32.mrb[0].mxu0
    %v609 = vadd.f32 0.0, %v608
    %v610 = vpop.f32.mrb[0].mxu0
    %v611 = vpop.f32.mrb[0].mxu0
    %v612 = vadd.f32 0.0, %v611
    %v613 = vpop.f32.mrb[0].mxu0
    %614 = vmatprep.mubr.bf16.mxu0 0
    %615 = vmatmul.mubr.bf16.gmra.mrb[0].mxu0 %v351
    %v616 = vpop.f32.mrb[0].mxu0
    %v617 = vadd.f32 0.0, %v616
    %v618 = vpop.f32.mrb[0].mxu0
    %v619 = vpop.f32.mrb[0].mxu0
    %v620 = vadd.f32 0.0, %v619
    %v621 = vpop.f32.mrb[0].mxu0
    %622 = vmatprep.mubr.bf16.mxu0 0
    %623 = vmatmul.mubr.bf16.gmra.mrb[0].mxu0 %v352
    %v624 = vpop.f32.mrb[0].mxu0
    %v625 = vadd.f32 0.0, %v624
    %v626 = vpop.f32.mrb[0].mxu0
    %v627 = vpop.f32.mrb[0].mxu0
    %v628 = vadd.f32 0.0, %v627
    %v629 = vpop.f32.mrb[0].mxu0
    %630 = vmatprep.mubr.bf16.mxu0 0
    %631 = vmatmul.mubr.bf16.gmra.mrb[0].mxu0 %v353
    %v632 = vpop.f32.mrb[0].mxu0
    %v633 = vadd.f32 0.0, %v632
    %v634 = vpop.f32.mrb[0].mxu0
    %v635 = vpop.f32.mrb[0].mxu0
    %v636 = vadd.f32 0.0, %v635
    %v637 = vpop.f32.mrb[0].mxu0
    %638 = vmatprep.mubr.bf16.mxu0 0
    %639 = vmatmul.mubr.bf16.gmra.mrb[0].mxu0 %v354
    %v640 = vpop.f32.mrb[0].mxu0
    %v641 = vadd.f32 0.0, %v640
    %v642 = vpop.f32.mrb[0].mxu0
    %v643 = vpop.f32.mrb[0].mxu0
    %v644 = vadd.f32 0.0, %v643
    %v645 = vpop.f32.mrb[0].mxu0
    %646 = vmatprep.mubr.bf16.mxu0 0
    %647 = vmatmul.mubr.bf16.gmra.mrb[0].mxu0 %v355
    %v648 = vpop.f32.mrb[0].mxu0
    %v649 = vadd.f32 0.0, %v648
    %v650 = vpop.f32.mrb[0].mxu0
    %v651 = vpop.f32.mrb[0].mxu0
    %v652 = vadd.f32 0.0, %v651
    %v653 = vpop.f32.mrb[0].mxu0
    %654 = vmatprep.mubr.bf16.mxu0 0
    %655 = vmatmul.mubr.bf16.gmra.mrb[0].mxu0 %v356
    %v656 = vpop.f32.mrb[0].mxu0
    %v657 = vadd.f32 0.0, %v656
    %v658 = vpop.f32.mrb[0].mxu0
    %v659 = vpop.f32.mrb[0].mxu0
    %v660 = vadd.f32 0.0, %v659
    %v661 = vpop.f32.mrb[0].mxu0
    %662 = vmatprep.mubr.bf16.mxu0 0
    %663 = vmatmul.mubr.bf16.gmra.mrb[0].mxu0 %v357
    %v664 = vpop.f32.mrb[0].mxu0
    %v665 = vadd.f32 0.0, %v664
    %v666 = vpop.f32.mrb[0].mxu0
    %v667 = vpop.f32.mrb[0].mxu0
    %v668 = vadd.f32 0.0, %v667
    %v669 = vpop.f32.mrb[0].mxu0
    %670 = vmatprep.mubr.bf16.mxu0 0
    %671 = vmatmul.mubr.bf16.gmra.mrb[0].mxu0 %v358
    %v672 = vpop.f32.mrb[0].mxu0
    %v673 = vadd.f32 0.0, %v672
    %v674 = vpop.f32.mrb[0].mxu0
    %v675 = vpop.f32.mrb[0].mxu0
    %v676 = vadd.f32 0.0, %v675
    %v677 = vpop.f32.mrb[0].mxu0
    %678 = vmatprep.mubr.bf16.mxu0 0
    %679 = vmatmul.mubr.bf16.gmra.mrb[0].mxu0 %v359
    %v680 = vpop.f32.mrb[0].mxu0
    %v681 = vadd.f32 0.0, %v680
    %v682 = vpop.f32.mrb[0].mxu0
    %v683 = vpop.f32.mrb[0].mxu0
    %v684 = vadd.f32 0.0, %v683
    %v685 = vpop.f32.mrb[0].mxu0
    %686 = vmatprep.mubr.bf16.mxu0 0
    %687 = vmatmul.mubr.bf16.gmra.mrb[0].mxu0 %v360
    %v688 = vpop.f32.mrb[0].mxu0
    %v689 = vadd.f32 0.0, %v688
    %v690 = vpop.f32.mrb[0].mxu0
    %v691 = vpop.f32.mrb[0].mxu0
    %v692 = vadd.f32 0.0, %v691
    %v693 = vpop.f32.mrb[0].mxu0
    %694 = vmatprep.mubr.bf16.mxu0 0
    %695 = vmatmul.mubr.bf16.gmra.mrb[0].mxu0 %v361
    %v696 = vpop.f32.mrb[0].mxu0
    %v697 = vadd.f32 0.0, %v696
    %v698 = vpop.f32.mrb[0].mxu0
    %v699 = vpop.f32.mrb[0].mxu0
    %v700 = vadd.f32 0.0, %v699
    %v701 = vpop.f32.mrb[0].mxu0
    %702 = vmatprep.mubr.bf16.mxu0 0
    %703 = vmatmul.mubr.bf16.gmra.mrb[0].mxu0 %v362
    %v704 = vpop.f32.mrb[0].mxu0
    %v705 = vadd.f32 0.0, %v704
    %v706 = vpop.f32.mrb[0].mxu0
    %v707 = vpop.f32.mrb[0].mxu0
    %v708 = vadd.f32 0.0, %v707
    %v709 = vpop.f32.mrb[0].mxu0
    %710 = vmatprep.mubr.bf16.mxu0 0
    %711 = vmatmul.mubr.bf16.gmra.mrb[0].mxu0 %v363
    %v712 = vpop.f32.mrb[0].mxu0
    %v713 = vadd.f32 0.0, %v712
    %v714 = vpop.f32.mrb[0].mxu0
    %v715 = vpop.f32.mrb[0].mxu0
    %v716 = vadd.f32 0.0, %v715
    %v717 = vpop.f32.mrb[0].mxu0
    %718 = vmatprep.mubr.bf16.mxu0 0
    %719 = vmatmul.mubr.bf16.gmra.mrb[0].mxu0 %v364
    %v720 = vpop.f32.mrb[0].mxu0
    %v721 = vadd.f32 0.0, %v720
    %v722 = vpop.f32.mrb[0].mxu0
    %v723 = vpop.f32.mrb[0].mxu0
    %v724 = vadd.f32 0.0, %v723
    %v725 = vpop.f32.mrb[0].mxu0
    %726 = vmatprep.mubr.bf16.mxu0 0
    %727 = vmatmul.mubr.bf16.gmra.mrb[0].mxu0 %v365
    %v728 = vpop.f32.mrb[0].mxu0
    %v729 = vadd.f32 0.0, %v728
    %v730 = vpop.f32.mrb[0].mxu0
    %v731 = vpop.f32.mrb[0].mxu0
    %v732 = vadd.f32 0.0, %v731
    %v733 = vpop.f32.mrb[0].mxu0
    %734 = vdwg.mxu0
    %v799 = vunpack.c.l.b16 %v46
    %v800 = vunpack.c.l.b16 %v47
    %v801 = vunpack.c.l.b16 %v48
    %v802 = vunpack.c.l.b16 %v49
    %v803 = vunpack.c.l.b16 %v50
    %v804 = vunpack.c.l.b16 %v51
    %v805 = vunpack.c.l.b16 %v52
    %v806 = vunpack.c.l.b16 %v53
    %v807 = vunpack.c.l.b16 %v54
    %v808 = vunpack.c.l.b16 %v55
    %v809 = vunpack.c.l.b16 %v56
    %v810 = vunpack.c.l.b16 %v57
    %v811 = vunpack.c.l.b16 %v58
    %v812 = vunpack.c.l.b16 %v59
    %v813 = vunpack.c.l.b16 %v60
    %v814 = vunpack.c.l.b16 %v61
    %v815 = vunpack.c.l.b16 %v62
    %v816 = vunpack.c.l.b16 %v63
    %v817 = vunpack.c.l.b16 %v64
    %v818 = vunpack.c.l.b16 %v65
    %v819 = vunpack.c.l.b16 %v66
    %v820 = vunpack.c.l.b16 %v67
    %v821 = vunpack.c.l.b16 %v68
    %v822 = vunpack.c.l.b16 %v69
    %v823 = vunpack.c.l.b16 %v70
    %v824 = vunpack.c.l.b16 %v71
    %v825 = vunpack.c.l.b16 %v72
    %v826 = vunpack.c.l.b16 %v73
    %v827 = vunpack.c.l.b16 %v74
    %v828 = vunpack.c.l.b16 %v75
    %v829 = vunpack.c.l.b16 %v76
    %v830 = vunpack.c.l.b16 %v77
    %v831 = vunpack.c.l.b16 %v78
    %v832 = vunpack.c.l.b16 %v79
    %v833 = vunpack.c.l.b16 %v80
    %v834 = vunpack.c.l.b16 %v81
    %v835 = vunpack.c.l.b16 %v82
    %v836 = vunpack.c.l.b16 %v83
    %v837 = vunpack.c.l.b16 %v84
    %v838 = vunpack.c.l.b16 %v85
    %v839 = vunpack.c.l.b16 %v86
    %v840 = vunpack.c.l.b16 %v87
    %v841 = vunpack.c.l.b16 %v88
    %v842 = vunpack.c.l.b16 %v89
    %v843 = vunpack.c.l.b16 %v90
    %v844 = vunpack.c.l.b16 %v91
    %v845 = vunpack.c.l.b16 %v92
    %v846 = vunpack.c.l.b16 %v93
    %v847 = vunpack.c.l.b16 %v94
    %v848 = vunpack.c.l.b16 %v95
    %v849 = vunpack.c.l.b16 %v96
    %v850 = vunpack.c.l.b16 %v97
    %v851 = vunpack.c.l.b16 %v98
    %v852 = vunpack.c.l.b16 %v99
    %v853 = vunpack.c.l.b16 %v100
    %v854 = vunpack.c.l.b16 %v101
    %v855 = vunpack.c.l.b16 %v102
    %v856 = vunpack.c.l.b16 %v103
    %v857 = vunpack.c.l.b16 %v104
    %v858 = vunpack.c.l.b16 %v105
    %v859 = vunpack.c.l.b16 %v106
    %v860 = vunpack.c.l.b16 %v107
    %v861 = vunpack.c.l.b16 %v108
    %v862 = vunpack.c.l.b16 %v109
    %v863 = vpack.c.b16 %v800, %v799
    %v864 = vpack.c.b16 %v802, %v801
    %v865 = vpack.c.b16 %v804, %v803
    %v866 = vpack.c.b16 %v806, %v805
    %v867 = vpack.c.b16 %v808, %v807
    %v868 = vpack.c.b16 %v810, %v809
    %v869 = vpack.c.b16 %v812, %v811
    %v870 = vpack.c.b16 %v814, %v813
    %v871 = vpack.c.b16 %v816, %v815
    %v872 = vpack.c.b16 %v818, %v817
    %v873 = vpack.c.b16 %v820, %v819
    %v874 = vpack.c.b16 %v822, %v821
    %v875 = vpack.c.b16 %v824, %v823
    %v876 = vpack.c.b16 %v826, %v825
    %v877 = vpack.c.b16 %v828, %v827
    %v878 = vpack.c.b16 %v830, %v829
    %v879 = vpack.c.b16 %v832, %v831
    %v880 = vpack.c.b16 %v834, %v833
    %v881 = vpack.c.b16 %v836, %v835
    %v882 = vpack.c.b16 %v838, %v837
    %v883 = vpack.c.b16 %v840, %v839
    %v884 = vpack.c.b16 %v842, %v841
    %v885 = vpack.c.b16 %v844, %v843
    %v886 = vpack.c.b16 %v846, %v845
    %v887 = vpack.c.b16 %v848, %v847
    %v888 = vpack.c.b16 %v850, %v849
    %v889 = vpack.c.b16 %v852, %v851
    %v890 = vpack.c.b16 %v854, %v853
    %v891 = vpack.c.b16 %v856, %v855
    %v892 = vpack.c.b16 %v858, %v857
    %v893 = vpack.c.b16 %v860, %v859
    %v894 = vpack.c.b16 %v862, %v861
    %v943 = vunpack.c.l.b16 %v110
    %v944 = vunpack.c.l.b16 %v111
    %v945 = vunpack.c.l.b16 %v112
    %v946 = vunpack.c.l.b16 %v113
    %v947 = vunpack.c.l.b16 %v114
    %v948 = vunpack.c.l.b16 %v115
    %v949 = vunpack.c.l.b16 %v116
    %v950 = vunpack.c.l.b16 %v117
    %v951 = vunpack.c.l.b16 %v118
    %v952 = vunpack.c.l.b16 %v119
    %v953 = vunpack.c.l.b16 %v120
    %v954 = vunpack.c.l.b16 %v121
    %v955 = vunpack.c.l.b16 %v122
    %v956 = vunpack.c.l.b16 %v123
    %v957 = vunpack.c.l.b16 %v124
    %v958 = vunpack.c.l.b16 %v125
    %v959 = vpack.c.b16 %v944, %v943
    %v960 = vpack.c.b16 %v946, %v945
    %v961 = vpack.c.b16 %v948, %v947
    %v962 = vpack.c.b16 %v950, %v949
    %v963 = vpack.c.b16 %v952, %v951
    %v964 = vpack.c.b16 %v954, %v953
    %v965 = vpack.c.b16 %v956, %v955
    %v966 = vpack.c.b16 %v958, %v957
    %975 = vmatprep.subr.bf16.mxu0 0
    %976 = vmatpush1.bf16.msra.mxu0 %v959
    %977 = vmatprep.subr.bf16.mxu0 0
    %978 = vmatpush1.bf16.msra.mxu0 %v960
    %979 = vmatprep.subr.bf16.mxu0 0
    %980 = vmatpush1.bf16.msra.mxu0 %v961
    %981 = vmatprep.subr.bf16.mxu0 0
    %982 = vmatpush1.bf16.msra.mxu0 %v962
    %983 = vmatprep.subr.bf16.mxu0 0
    %984 = vmatpush1.bf16.msra.mxu0 %v963
    %985 = vmatprep.subr.bf16.mxu0 0
    %986 = vmatpush1.bf16.msra.mxu0 %v964
    %987 = vmatprep.subr.bf16.mxu0 0
    %988 = vmatpush1.bf16.msra.mxu0 %v965
    %989 = vmatprep.subr.bf16.mxu0 0
    %990 = vmatpush1.bf16.msra.mxu0 %v966
    %991 = vmatprep.subr.bf16.mxu0 0
    %992 = vmatpush1.bf16.msra.mxu0 0
    %993 = vmatprep.subr.bf16.mxu0 0
    %994 = vmatpush1.bf16.msra.mxu0 0
    %995 = vmatprep.subr.bf16.mxu0 0
    %996 = vmatpush1.bf16.msra.mxu0 0
    %997 = vmatprep.subr.bf16.mxu0 0
    %998 = vmatpush1.bf16.msra.mxu0 0
    %999 = vmatprep.subr.bf16.mxu0 0
    %1000 = vmatpush1.bf16.msra.mxu0 0
    %1001 = vmatprep.subr.bf16.mxu0 0
    %1002 = vmatpush1.bf16.msra.mxu0 0
    %1003 = vmatprep.subr.bf16.mxu0 0
    %1004 = vmatpush1.bf16.msra.mxu0 0
    %1005 = vmatprep.subr.bf16.mxu0 0
    %1006 = vmatpush1.bf16.msra.mxu0 0
    %1007 = vmatprep.mubr.bf16.mxu0 0
    %1008 = vmatmul.mubr.bf16.gmra.mrb[0].mxu0 %v863
    %v1009 = vpop.f32.mrb[0].mxu0
    %v1010 = vadd.f32 %v481, %v1009
    %v1011 = vpop.f32.mrb[0].mxu0
    %v1012 = vpop.f32.mrb[0].mxu0
    %v1013 = vadd.f32 %v484, %v1012
    %v1014 = vpop.f32.mrb[0].mxu0
    %1015 = vmatprep.mubr.bf16.mxu0 0
    %1016 = vmatmul.mubr.bf16.gmra.mrb[0].mxu0 %v864
    %v1017 = vpop.f32.mrb[0].mxu0
    %v1018 = vadd.f32 %v489, %v1017
    %v1019 = vpop.f32.mrb[0].mxu0
    %v1020 = vpop.f32.mrb[0].mxu0
    %v1021 = vadd.f32 %v492, %v1020
    %v1022 = vpop.f32.mrb[0].mxu0
    %1023 = vmatprep.mubr.bf16.mxu0 0
    %1024 = vmatmul.mubr.bf16.gmra.mrb[0].mxu0 %v865
    %v1025 = vpop.f32.mrb[0].mxu0
    %v1026 = vadd.f32 %v497, %v1025
    %v1027 = vpop.f32.mrb[0].mxu0
    %v1028 = vpop.f32.mrb[0].mxu0
    %v1029 = vadd.f32 %v500, %v1028
    %v1030 = vpop.f32.mrb[0].mxu0
    %1031 = vmatprep.mubr.bf16.mxu0 0
    %1032 = vmatmul.mubr.bf16.gmra.mrb[0].mxu0 %v866
    %v1033 = vpop.f32.mrb[0].mxu0
    %v1034 = vadd.f32 %v505, %v1033
    %v1035 = vpop.f32.mrb[0].mxu0
    %v1036 = vpop.f32.mrb[0].mxu0
    %v1037 = vadd.f32 %v508, %v1036
    %v1038 = vpop.f32.mrb[0].mxu0
    %1039 = vmatprep.mubr.bf16.mxu0 0
    %1040 = vmatmul.mubr.bf16.gmra.mrb[0].mxu0 %v867
    %v1041 = vpop.f32.mrb[0].mxu0
    %v1042 = vadd.f32 %v513, %v1041
    %v1043 = vpop.f32.mrb[0].mxu0
    %v1044 = vpop.f32.mrb[0].mxu0
    %v1045 = vadd.f32 %v516, %v1044
    %v1046 = vpop.f32.mrb[0].mxu0
    %1047 = vmatprep.mubr.bf16.mxu0 0
    %1048 = vmatmul.mubr.bf16.gmra.mrb[0].mxu0 %v868
    %v1049 = vpop.f32.mrb[0].mxu0
    %v1050 = vadd.f32 %v521, %v1049
    %v1051 = vpop.f32.mrb[0].mxu0
    %v1052 = vpop.f32.mrb[0].mxu0
    %v1053 = vadd.f32 %v524, %v1052
    %v1054 = vpop.f32.mrb[0].mxu0
    %1055 = vmatprep.mubr.bf16.mxu0 0
    %1056 = vmatmul.mubr.bf16.gmra.mrb[0].mxu0 %v869
    %v1057 = vpop.f32.mrb[0].mxu0
    %v1058 = vadd.f32 %v529, %v1057
    %v1059 = vpop.f32.mrb[0].mxu0
    %v1060 = vpop.f32.mrb[0].mxu0
    %v1061 = vadd.f32 %v532, %v1060
    %v1062 = vpop.f32.mrb[0].mxu0
    %1063 = vmatprep.mubr.bf16.mxu0 0
    %1064 = vmatmul.mubr.bf16.gmra.mrb[0].mxu0 %v870
    %v1065 = vpop.f32.mrb[0].mxu0
    %v1066 = vadd.f32 %v537, %v1065
    %v1067 = vpop.f32.mrb[0].mxu0
    %v1068 = vpop.f32.mrb[0].mxu0
    %v1069 = vadd.f32 %v540, %v1068
    %v1070 = vpop.f32.mrb[0].mxu0
    %1071 = vmatprep.mubr.bf16.mxu0 0
    %1072 = vmatmul.mubr.bf16.gmra.mrb[0].mxu0 %v871
    %v1073 = vpop.f32.mrb[0].mxu0
    %v1074 = vadd.f32 %v545, %v1073
    %v1075 = vpop.f32.mrb[0].mxu0
    %v1076 = vpop.f32.mrb[0].mxu0
    %v1077 = vadd.f32 %v548, %v1076
    %v1078 = vpop.f32.mrb[0].mxu0
    %1079 = vmatprep.mubr.bf16.mxu0 0
    %1080 = vmatmul.mubr.bf16.gmra.mrb[0].mxu0 %v872
    %v1081 = vpop.f32.mrb[0].mxu0
    %v1082 = vadd.f32 %v553, %v1081
    %v1083 = vpop.f32.mrb[0].mxu0
    %v1084 = vpop.f32.mrb[0].mxu0
    %v1085 = vadd.f32 %v556, %v1084
    %v1086 = vpop.f32.mrb[0].mxu0
    %1087 = vmatprep.mubr.bf16.mxu0 0
    %1088 = vmatmul.mubr.bf16.gmra.mrb[0].mxu0 %v873
    %v1089 = vpop.f32.mrb[0].mxu0
    %v1090 = vadd.f32 %v561, %v1089
    %v1091 = vpop.f32.mrb[0].mxu0
    %v1092 = vpop.f32.mrb[0].mxu0
    %v1093 = vadd.f32 %v564, %v1092
    %v1094 = vpop.f32.mrb[0].mxu0
    %1095 = vmatprep.mubr.bf16.mxu0 0
    %1096 = vmatmul.mubr.bf16.gmra.mrb[0].mxu0 %v874
    %v1097 = vpop.f32.mrb[0].mxu0
    %v1098 = vadd.f32 %v569, %v1097
    %v1099 = vpop.f32.mrb[0].mxu0
    %v1100 = vpop.f32.mrb[0].mxu0
    %v1101 = vadd.f32 %v572, %v1100
    %v1102 = vpop.f32.mrb[0].mxu0
    %1103 = vmatprep.mubr.bf16.mxu0 0
    %1104 = vmatmul.mubr.bf16.gmra.mrb[0].mxu0 %v875
    %v1105 = vpop.f32.mrb[0].mxu0
    %v1106 = vadd.f32 %v577, %v1105
    %v1107 = vpop.f32.mrb[0].mxu0
    %v1108 = vpop.f32.mrb[0].mxu0
    %v1109 = vadd.f32 %v580, %v1108
    %v1110 = vpop.f32.mrb[0].mxu0
    %1111 = vmatprep.mubr.bf16.mxu0 0
    %1112 = vmatmul.mubr.bf16.gmra.mrb[0].mxu0 %v876
    %v1113 = vpop.f32.mrb[0].mxu0
    %v1114 = vadd.f32 %v585, %v1113
    %v1115 = vpop.f32.mrb[0].mxu0
    %v1116 = vpop.f32.mrb[0].mxu0
    %v1117 = vadd.f32 %v588, %v1116
    %v1118 = vpop.f32.mrb[0].mxu0
    %1119 = vmatprep.mubr.bf16.mxu0 0
    %1120 = vmatmul.mubr.bf16.gmra.mrb[0].mxu0 %v877
    %v1121 = vpop.f32.mrb[0].mxu0
    %v1122 = vadd.f32 %v593, %v1121
    %v1123 = vpop.f32.mrb[0].mxu0
    %v1124 = vpop.f32.mrb[0].mxu0
    %v1125 = vadd.f32 %v596, %v1124
    %v1126 = vpop.f32.mrb[0].mxu0
    %1127 = vmatprep.mubr.bf16.mxu0 0
    %1128 = vmatmul.mubr.bf16.gmra.mrb[0].mxu0 %v878
    %v1129 = vpop.f32.mrb[0].mxu0
    %v1130 = vadd.f32 %v601, %v1129
    %v1131 = vpop.f32.mrb[0].mxu0
    %v1132 = vpop.f32.mrb[0].mxu0
    %v1133 = vadd.f32 %v604, %v1132
    %v1134 = vpop.f32.mrb[0].mxu0
    %1135 = vmatprep.mubr.bf16.mxu0 0
    %1136 = vmatmul.mubr.bf16.gmra.mrb[0].mxu0 %v879
    %v1137 = vpop.f32.mrb[0].mxu0
    %v1138 = vadd.f32 %v609, %v1137
    %v1139 = vpop.f32.mrb[0].mxu0
    %v1140 = vpop.f32.mrb[0].mxu0
    %v1141 = vadd.f32 %v612, %v1140
    %v1142 = vpop.f32.mrb[0].mxu0
    %1143 = vmatprep.mubr.bf16.mxu0 0
    %1144 = vmatmul.mubr.bf16.gmra.mrb[0].mxu0 %v880
    %v1145 = vpop.f32.mrb[0].mxu0
    %v1146 = vadd.f32 %v617, %v1145
    %v1147 = vpop.f32.mrb[0].mxu0
    %v1148 = vpop.f32.mrb[0].mxu0
    %v1149 = vadd.f32 %v620, %v1148
    %v1150 = vpop.f32.mrb[0].mxu0
    %1151 = vmatprep.mubr.bf16.mxu0 0
    %1152 = vmatmul.mubr.bf16.gmra.mrb[0].mxu0 %v881
    %v1153 = vpop.f32.mrb[0].mxu0
    %v1154 = vadd.f32 %v625, %v1153
    %v1155 = vpop.f32.mrb[0].mxu0
    %v1156 = vpop.f32.mrb[0].mxu0
    %v1157 = vadd.f32 %v628, %v1156
    %v1158 = vpop.f32.mrb[0].mxu0
    %1159 = vmatprep.mubr.bf16.mxu0 0
    %1160 = vmatmul.mubr.bf16.gmra.mrb[0].mxu0 %v882
    %v1161 = vpop.f32.mrb[0].mxu0
    %v1162 = vadd.f32 %v633, %v1161
    %v1163 = vpop.f32.mrb[0].mxu0
    %v1164 = vpop.f32.mrb[0].mxu0
    %v1165 = vadd.f32 %v636, %v1164
    %v1166 = vpop.f32.mrb[0].mxu0
    %1167 = vmatprep.mubr.bf16.mxu0 0
    %1168 = vmatmul.mubr.bf16.gmra.mrb[0].mxu0 %v883
    %v1169 = vpop.f32.mrb[0].mxu0
    %v1170 = vadd.f32 %v641, %v1169
    %v1171 = vpop.f32.mrb[0].mxu0
    %v1172 = vpop.f32.mrb[0].mxu0
    %v1173 = vadd.f32 %v644, %v1172
    %v1174 = vpop.f32.mrb[0].mxu0
    %1175 = vmatprep.mubr.bf16.mxu0 0
    %1176 = vmatmul.mubr.bf16.gmra.mrb[0].mxu0 %v884
    %v1177 = vpop.f32.mrb[0].mxu0
    %v1178 = vadd.f32 %v649, %v1177
    %v1179 = vpop.f32.mrb[0].mxu0
    %v1180 = vpop.f32.mrb[0].mxu0
    %v1181 = vadd.f32 %v652, %v1180
    %v1182 = vpop.f32.mrb[0].mxu0
    %1183 = vmatprep.mubr.bf16.mxu0 0
    %1184 = vmatmul.mubr.bf16.gmra.mrb[0].mxu0 %v885
    %v1185 = vpop.f32.mrb[0].mxu0
    %v1186 = vadd.f32 %v657, %v1185
    %v1187 = vpop.f32.mrb[0].mxu0
    %v1188 = vpop.f32.mrb[0].mxu0
    %v1189 = vadd.f32 %v660, %v1188
    %v1190 = vpop.f32.mrb[0].mxu0
    %1191 = vmatprep.mubr.bf16.mxu0 0
    %1192 = vmatmul.mubr.bf16.gmra.mrb[0].mxu0 %v886
    %v1193 = vpop.f32.mrb[0].mxu0
    %v1194 = vadd.f32 %v665, %v1193
    %v1195 = vpop.f32.mrb[0].mxu0
    %v1196 = vpop.f32.mrb[0].mxu0
    %v1197 = vadd.f32 %v668, %v1196
    %v1198 = vpop.f32.mrb[0].mxu0
    %1199 = vmatprep.mubr.bf16.mxu0 0
    %1200 = vmatmul.mubr.bf16.gmra.mrb[0].mxu0 %v887
    %v1201 = vpop.f32.mrb[0].mxu0
    %v1202 = vadd.f32 %v673, %v1201
    %v1203 = vpop.f32.mrb[0].mxu0
    %v1204 = vpop.f32.mrb[0].mxu0
    %v1205 = vadd.f32 %v676, %v1204
    %v1206 = vpop.f32.mrb[0].mxu0
    %1207 = vmatprep.mubr.bf16.mxu0 0
    %1208 = vmatmul.mubr.bf16.gmra.mrb[0].mxu0 %v888
    %v1209 = vpop.f32.mrb[0].mxu0
    %v1210 = vadd.f32 %v681, %v1209
    %v1211 = vpop.f32.mrb[0].mxu0
    %v1212 = vpop.f32.mrb[0].mxu0
    %v1213 = vadd.f32 %v684, %v1212
    %v1214 = vpop.f32.mrb[0].mxu0
    %1215 = vmatprep.mubr.bf16.mxu0 0
    %1216 = vmatmul.mubr.bf16.gmra.mrb[0].mxu0 %v889
    %v1217 = vpop.f32.mrb[0].mxu0
    %v1218 = vadd.f32 %v689, %v1217
    %v1219 = vpop.f32.mrb[0].mxu0
    %v1220 = vpop.f32.mrb[0].mxu0
    %v1221 = vadd.f32 %v692, %v1220
    %v1222 = vpop.f32.mrb[0].mxu0
    %1223 = vmatprep.mubr.bf16.mxu0 0
    %1224 = vmatmul.mubr.bf16.gmra.mrb[0].mxu0 %v890
    %v1225 = vpop.f32.mrb[0].mxu0
    %v1226 = vadd.f32 %v697, %v1225
    %v1227 = vpop.f32.mrb[0].mxu0
    %v1228 = vpop.f32.mrb[0].mxu0
    %v1229 = vadd.f32 %v700, %v1228
    %v1230 = vpop.f32.mrb[0].mxu0
    %1231 = vmatprep.mubr.bf16.mxu0 0
    %1232 = vmatmul.mubr.bf16.gmra.mrb[0].mxu0 %v891
    %v1233 = vpop.f32.mrb[0].mxu0
    %v1234 = vadd.f32 %v705, %v1233
    %v1235 = vpop.f32.mrb[0].mxu0
    %v1236 = vpop.f32.mrb[0].mxu0
    %v1237 = vadd.f32 %v708, %v1236
    %v1238 = vpop.f32.mrb[0].mxu0
    %1239 = vmatprep.mubr.bf16.mxu0 0
    %1240 = vmatmul.mubr.bf16.gmra.mrb[0].mxu0 %v892
    %v1241 = vpop.f32.mrb[0].mxu0
    %v1242 = vadd.f32 %v713, %v1241
    %v1243 = vpop.f32.mrb[0].mxu0
    %v1244 = vpop.f32.mrb[0].mxu0
    %v1245 = vadd.f32 %v716, %v1244
    %v1246 = vpop.f32.mrb[0].mxu0
    %1247 = vmatprep.mubr.bf16.mxu0 0
    %1248 = vmatmul.mubr.bf16.gmra.mrb[0].mxu0 %v893
    %v1249 = vpop.f32.mrb[0].mxu0
    %v1250 = vadd.f32 %v721, %v1249
    %v1251 = vpop.f32.mrb[0].mxu0
    %v1252 = vpop.f32.mrb[0].mxu0
    %v1253 = vadd.f32 %v724, %v1252
    %v1254 = vpop.f32.mrb[0].mxu0
    %1255 = vmatprep.mubr.bf16.mxu0 0
    %1256 = vmatmul.mubr.bf16.gmra.mrb[0].mxu0 %v894
    %v1257 = vpop.f32.mrb[0].mxu0
    %v1258 = vadd.f32 %v729, %v1257
    %v1259 = vpop.f32.mrb[0].mxu0
    %v1260 = vpop.f32.mrb[0].mxu0
    %v1261 = vadd.f32 %v732, %v1260
    %v1262 = vpop.f32.mrb[0].mxu0
    %1263 = vdwg.mxu0
    %1264 = vst [vmem:[%s4] sm:$0xff] %v1010
    %1265 = vst [vmem:[%s4 + $0x8] sm:$0xff] %v1013
    %1266 = vst [vmem:[%s4 + $0x10] sm:$0xff] %v1018
    %1267 = vst [vmem:[%s4 + $0x18] sm:$0xff] %v1021
    %1268 = vst [vmem:[%s4 + $0x20] sm:$0xff] %v1026
    %1269 = vst [vmem:[%s4 + $0x28] sm:$0xff] %v1029
    %1270 = vst [vmem:[%s4 + $0x30] sm:$0xff] %v1034
    %1271 = vst [vmem:[%s4 + $0x38] sm:$0xff] %v1037
    %1272 = vst [vmem:[%s4 + $0x40] sm:$0xff] %v1042
    %1273 = vst [vmem:[%s4 + $0x48] sm:$0xff] %v1045
    %1274 = vst [vmem:[%s4 + $0x50] sm:$0xff] %v1050
    %1275 = vst [vmem:[%s4 + $0x58] sm:$0xff] %v1053
    %1276 = vst [vmem:[%s4 + $0x60] sm:$0xff] %v1058
    %1277 = vst [vmem:[%s4 + $0x68] sm:$0xff] %v1061
    %1278 = vst [vmem:[%s4 + $0x70] sm:$0xff] %v1066
    %1279 = vst [vmem:[%s4 + $0x78] sm:$0xff] %v1069
    %1280 = vst [vmem:[%s4 + $0x80] sm:$0xff] %v1074
    %1281 = vst [vmem:[%s4 + $0x88] sm:$0xff] %v1077
    %1282 = vst [vmem:[%s4 + $0x90] sm:$0xff] %v1082
    %1283 = vst [vmem:[%s4 + $0x98] sm:$0xff] %v1085
    %1284 = vst [vmem:[%s4 + $0xa0] sm:$0xff] %v1090
    %1285 = vst [vmem:[%s4 + $0xa8] sm:$0xff] %v1093
    %1286 = vst [vmem:[%s4 + $0xb0] sm:$0xff] %v1098
    %1287 = vst [vmem:[%s4 + $0xb8] sm:$0xff] %v1101
    %1288 = vst [vmem:[%s4 + $0xc0] sm:$0xff] %v1106
    %1289 = vst [vmem:[%s4 + $0xc8] sm:$0xff] %v1109
    %1290 = vst [vmem:[%s4 + $0xd0] sm:$0xff] %v1114
    %1291 = vst [vmem:[%s4 + $0xd8] sm:$0xff] %v1117
    %1292 = vst [vmem:[%s4 + $0xe0] sm:$0xff] %v1122
    %1293 = vst [vmem:[%s4 + $0xe8] sm:$0xff] %v1125
    %1294 = vst [vmem:[%s4 + $0xf0] sm:$0xff] %v1130
    %1295 = vst [vmem:[%s4 + $0xf8] sm:$0xff] %v1133
    %1296 = vst [vmem:[%s4 + $0x100] sm:$0xff] %v1138
    %1297 = vst [vmem:[%s4 + $0x108] sm:$0xff] %v1141
    %1298 = vst [vmem:[%s4 + $0x110] sm:$0xff] %v1146
    %1299 = vst [vmem:[%s4 + $0x118] sm:$0xff] %v1149
    %1300 = vst [vmem:[%s4 + $0x120] sm:$0xff] %v1154
    %1301 = vst [vmem:[%s4 + $0x128] sm:$0xff] %v1157
    %1302 = vst [vmem:[%s4 + $0x130] sm:$0xff] %v1162
    %1303 = vst [vmem:[%s4 + $0x138] sm:$0xff] %v1165
    %1304 = vst [vmem:[%s4 + $0x140] sm:$0xff] %v1170
    %1305 = vst [vmem:[%s4 + $0x148] sm:$0xff] %v1173
    %1306 = vst [vmem:[%s4 + $0x150] sm:$0xff] %v1178
    %1307 = vst [vmem:[%s4 + $0x158] sm:$0xff] %v1181
    %1308 = vst [vmem:[%s4 + $0x160] sm:$0xff] %v1186
    %1309 = vst [vmem:[%s4 + $0x168] sm:$0xff] %v1189
    %1310 = vst [vmem:[%s4 + $0x170] sm:$0xff] %v1194
    %1311 = vst [vmem:[%s4 + $0x178] sm:$0xff] %v1197
    %1312 = vst [vmem:[%s4 + $0x180] sm:$0xff] %v1202
    %1313 = vst [vmem:[%s4 + $0x188] sm:$0xff] %v1205
    %1314 = vst [vmem:[%s4 + $0x190] sm:$0xff] %v1210
    %1315 = vst [vmem:[%s4 + $0x198] sm:$0xff] %v1213
    %1316 = vst [vmem:[%s4 + $0x1a0] sm:$0xff] %v1218
    %1317 = vst [vmem:[%s4 + $0x1a8] sm:$0xff] %v1221
    %1318 = vst [vmem:[%s4 + $0x1b0] sm:$0xff] %v1226
    %1319 = vst [vmem:[%s4 + $0x1b8] sm:$0xff] %v1229
    %1320 = vst [vmem:[%s4 + $0x1c0] sm:$0xff] %v1234
    %1321 = vst [vmem:[%s4 + $0x1c8] sm:$0xff] %v1237
    %1322 = vst [vmem:[%s4 + $0x1d0] sm:$0xff] %v1242
    %1323 = vst [vmem:[%s4 + $0x1d8] sm:$0xff] %v1245
    %1324 = vst [vmem:[%s4 + $0x1e0] sm:$0xff] %v1250
    %1325 = vst [vmem:[%s4 + $0x1e8] sm:$0xff] %v1253
    %1326 = vst [vmem:[%s4 + $0x1f0] sm:$0xff] %v1258
    %1327 = vst [vmem:[%s4 + $0x1f8] sm:$0xff] %v1261
    // Predicated region
    $region26: #{csp_block_forward.5} parent=1 // pred_check
      _
    $region27: #{csp_block_forward.5} parent=1 // pred_check_branch
      %1329 = sbr.rel (0) target = $region29
    $region28: #{csp_block_forward.5} parent=1 // pred_region
      _
    $region29: #{csp_block_forward.5} parent=1 // pred_fallthru
      _
    // Predicated region
    $region30: #{csp_block_forward.5} parent=1 // pred_check
      _
    $region31: #{csp_block_forward.5} parent=1 // pred_check_branch
      %1331 = sbr.rel (0) target = $region33
    $region32: #{csp_block_forward.5} parent=1 // pred_region
      _
    $region33: #{csp_block_forward.5} parent=1 // pred_fallthru
      _
    %1332 = vsyncpa [#allocation3], 1
    %1333 = vsyncpa [#allocation5], 1

// kernel: csp_block_forward.3
$region0: #{csp_block_forward.3}
  #allocation0 [shape = 'u32[]', space=smem, size = 0x4, offset = 0x4, fixed_abs, tag = 'smem constant byte address 0x4 - core index']
  #allocation1 [shape = 'u32[144,128]{1,0:T(1,128)}', space=vmem, size = 0x12000, scoped, tag = 'internal scratch']
  %s0 = inlined_call_operand.vmem [shape: bf16[512,128], index: 0, kind: input, shape index: {}]
  %s1 = inlined_call_operand.vmem [shape: bf16[128,256], index: 1, kind: input, shape index: {}]
  %s2 = inlined_call_operand.hbm [shape: bf16[512,128], index: 2, kind: output, shape index: {0}]
  %s3 = inlined_call_operand.hbm [shape: bf16[512,128], index: 3, kind: output, shape index: {1}]
  %4 = xla_tuple %s2, %s3
  %s5 = sld [smem:[#allocation0]]
  $region26: #{csp_block_forward.3} parent=0
    _
  %s7 = ssub.s32 1, %s5
  %s8 = scalar_select 0, %s7, %s5
  $region1: #{csp_block_forward.3} parent=0
    #allocation2 [shape = 'u8[131072]{0}', space=vmem, size = 0x20000, scoped, tag = 'output window, operand 0, single buffered']
    #allocation3 [shape = 's32[1]{0}', space=sflag, size = 0x4, scoped, tag = 'scoped memory for csp_block_forward.3']
    #allocation4 [shape = 'u8[131072]{0}', space=vmem, size = 0x20000, scoped, tag = 'output window, operand 1, single buffered']
    #allocation5 [shape = 's32[1]{0}', space=sflag, size = 0x4, scoped, tag = 'scoped memory for csp_block_forward.3']
    %9 = vsyncpa [#allocation3], 0
    %10 = vsyncpa [#allocation5], 0
    // Predicated region
    $region2: #{csp_block_forward.3} parent=1 // pred_check
      _
    $region3: #{csp_block_forward.3} parent=1 // pred_check_branch
      %12 = sbr.rel (0) target = $region5
    $region4: #{csp_block_forward.3} parent=1 // pred_region
      _
    $region5: #{csp_block_forward.3} parent=1 // pred_fallthru
      _
    // Predicated region
    $region6: #{csp_block_forward.3} parent=1 // pred_check
      _
    $region7: #{csp_block_forward.3} parent=1 // pred_check_branch
      %14 = sbr.rel (0) target = $region9
    $region8: #{csp_block_forward.3} parent=1 // pred_region
      _
    $region9: #{csp_block_forward.3} parent=1 // pred_fallthru
      _
    %v16 = vld [vmem:[%s0] sm:$0xf]
    %v17 = vld [vmem:[%s0 + $0x4] sm:$0xf]
    %v18 = vld [vmem:[%s0 + $0x8] sm:$0xf]
    %v19 = vld [vmem:[%s0 + $0xc] sm:$0xf]
    %v20 = vld [vmem:[%s0 + $0x10] sm:$0xf]
    %v21 = vld [vmem:[%s0 + $0x14] sm:$0xf]
    %v22 = vld [vmem:[%s0 + $0x18] sm:$0xf]
    %v23 = vld [vmem:[%s0 + $0x1c] sm:$0xf]
    %v24 = vld [vmem:[%s0 + $0x20] sm:$0xf]
    %v25 = vld [vmem:[%s0 + $0x24] sm:$0xf]
    %v26 = vld [vmem:[%s0 + $0x28] sm:$0xf]
    %v27 = vld [vmem:[%s0 + $0x2c] sm:$0xf]
    %v28 = vld [vmem:[%s0 + $0x30] sm:$0xf]
    %v29 = vld [vmem:[%s0 + $0x34] sm:$0xf]
    %v30 = vld [vmem:[%s0 + $0x38] sm:$0xf]
    %v31 = vld [vmem:[%s0 + $0x3c] sm:$0xf]
    %v32 = vld [vmem:[%s0 + $0x40] sm:$0xf]
    %v33 = vld [vmem:[%s0 + $0x44] sm:$0xf]
    %v34 = vld [vmem:[%s0 + $0x48] sm:$0xf]
    %v35 = vld [vmem:[%s0 + $0x4c] sm:$0xf]
    %v36 = vld [vmem:[%s0 + $0x50] sm:$0xf]
    %v37 = vld [vmem:[%s0 + $0x54] sm:$0xf]
    %v38 = vld [vmem:[%s0 + $0x58] sm:$0xf]
    %v39 = vld [vmem:[%s0 + $0x5c] sm:$0xf]
    %v40 = vld [vmem:[%s0 + $0x60] sm:$0xf]
    %v41 = vld [vmem:[%s0 + $0x64] sm:$0xf]
    %v42 = vld [vmem:[%s0 + $0x68] sm:$0xf]
    %v43 = vld [vmem:[%s0 + $0x6c] sm:$0xf]
    %v44 = vld [vmem:[%s0 + $0x70] sm:$0xf]
    %v45 = vld [vmem:[%s0 + $0x74] sm:$0xf]
    %v46 = vld [vmem:[%s0 + $0x78] sm:$0xf]
    %v47 = vld [vmem:[%s0 + $0x7c] sm:$0xf]
    %v48 = vld [vmem:[%s0 + $0x80] sm:$0xf]
    %v49 = vld [vmem:[%s0 + $0x84] sm:$0xf]
    %v50 = vld [vmem:[%s0 + $0x88] sm:$0xf]
    %v51 = vld [vmem:[%s0 + $0x8c] sm:$0xf]
    %v52 = vld [vmem:[%s0 + $0x90] sm:$0xf]
    %v53 = vld [vmem:[%s0 + $0x94] sm:$0xf]
    %v54 = vld [vmem:[%s0 + $0x98] sm:$0xf]
    %v55 = vld [vmem:[%s0 + $0x9c] sm:$0xf]
    %v56 = vld [vmem:[%s0 + $0xa0] sm:$0xf]
    %v57 = vld [vmem:[%s0 + $0xa4] sm:$0xf]
    %v58 = vld [vmem:[%s0 + $0xa8] sm:$0xf]
    %v59 = vld [vmem:[%s0 + $0xac] sm:$0xf]
    %v60 = vld [vmem:[%s0 + $0xb0] sm:$0xf]
    %v61 = vld [vmem:[%s0 + $0xb4] sm:$0xf]
    %v62 = vld [vmem:[%s0 + $0xb8] sm:$0xf]
    %v63 = vld [vmem:[%s0 + $0xbc] sm:$0xf]
    %v64 = vld [vmem:[%s0 + $0xc0] sm:$0xf]
    %v65 = vld [vmem:[%s0 + $0xc4] sm:$0xf]
    %v66 = vld [vmem:[%s0 + $0xc8] sm:$0xf]
    %v67 = vld [vmem:[%s0 + $0xcc] sm:$0xf]
    %v68 = vld [vmem:[%s0 + $0xd0] sm:$0xf]
    %v69 = vld [vmem:[%s0 + $0xd4] sm:$0xf]
    %v70 = vld [vmem:[%s0 + $0xd8] sm:$0xf]
    %v71 = vld [vmem:[%s0 + $0xdc] sm:$0xf]
    %v72 = vld [vmem:[%s0 + $0xe0] sm:$0xf]
    %v73 = vld [vmem:[%s0 + $0xe4] sm:$0xf]
    %v74 = vld [vmem:[%s0 + $0xe8] sm:$0xf]
    %v75 = vld [vmem:[%s0 + $0xec] sm:$0xf]
    %v76 = vld [vmem:[%s0 + $0xf0] sm:$0xf]
    %v77 = vld [vmem:[%s0 + $0xf4] sm:$0xf]
    %v78 = vld [vmem:[%s0 + $0xf8] sm:$0xf]
    %v79 = vld [vmem:[%s0 + $0xfc] sm:$0xf]
    %v80 = vld [vmem:[%s1] sm:$0xff]
    %v81 = vld [vmem:[%s1 + $0x8] sm:$0xff]
    %v82 = vld [vmem:[%s1 + $0x10] sm:$0xff]
    %v83 = vld [vmem:[%s1 + $0x18] sm:$0xff]
    %v84 = vld [vmem:[%s1 + $0x20] sm:$0xff]
    %v85 = vld [vmem:[%s1 + $0x28] sm:$0xff]
    %v86 = vld [vmem:[%s1 + $0x30] sm:$0xff]
    %v87 = vld [vmem:[%s1 + $0x38] sm:$0xff]
    %v88 = vld [vmem:[%s1 + $0x40] sm:$0xff]
    %v89 = vld [vmem:[%s1 + $0x48] sm:$0xff]
    %v90 = vld [vmem:[%s1 + $0x50] sm:$0xff]
    %v91 = vld [vmem:[%s1 + $0x58] sm:$0xff]
    %v92 = vld [vmem:[%s1 + $0x60] sm:$0xff]
    %v93 = vld [vmem:[%s1 + $0x68] sm:$0xff]
    %v94 = vld [vmem:[%s1 + $0x70] sm:$0xff]
    %v95 = vld [vmem:[%s1 + $0x78] sm:$0xff]
    %v160 = vunpack.c.l.b16 %v16
    %v161 = vunpack.c.l.b16 %v17
    %v162 = vunpack.c.l.b16 %v18
    %v163 = vunpack.c.l.b16 %v19
    %v164 = vunpack.c.l.b16 %v20
    %v165 = vunpack.c.l.b16 %v21
    %v166 = vunpack.c.l.b16 %v22
    %v167 = vunpack.c.l.b16 %v23
    %v168 = vunpack.c.l.b16 %v24
    %v169 = vunpack.c.l.b16 %v25
    %v170 = vunpack.c.l.b16 %v26
    %v171 = vunpack.c.l.b16 %v27
    %v172 = vunpack.c.l.b16 %v28
    %v173 = vunpack.c.l.b16 %v29
    %v174 = vunpack.c.l.b16 %v30
    %v175 = vunpack.c.l.b16 %v31
    %v176 = vunpack.c.l.b16 %v32
    %v177 = vunpack.c.l.b16 %v33
    %v178 = vunpack.c.l.b16 %v34
    %v179 = vunpack.c.l.b16 %v35
    %v180 = vunpack.c.l.b16 %v36
    %v181 = vunpack.c.l.b16 %v37
    %v182 = vunpack.c.l.b16 %v38
    %v183 = vunpack.c.l.b16 %v39
    %v184 = vunpack.c.l.b16 %v40
    %v185 = vunpack.c.l.b16 %v41
    %v186 = vunpack.c.l.b16 %v42
    %v187 = vunpack.c.l.b16 %v43
    %v188 = vunpack.c.l.b16 %v44
    %v189 = vunpack.c.l.b16 %v45
    %v190 = vunpack.c.l.b16 %v46
    %v191 = vunpack.c.l.b16 %v47
    %v192 = vunpack.c.l.b16 %v48
    %v193 = vunpack.c.l.b16 %v49
    %v194 = vunpack.c.l.b16 %v50
    %v195 = vunpack.c.l.b16 %v51
    %v196 = vunpack.c.l.b16 %v52
    %v197 = vunpack.c.l.b16 %v53
    %v198 = vunpack.c.l.b16 %v54
    %v199 = vunpack.c.l.b16 %v55
    %v200 = vunpack.c.l.b16 %v56
    %v201 = vunpack.c.l.b16 %v57
    %v202 = vunpack.c.l.b16 %v58
    %v203 = vunpack.c.l.b16 %v59
    %v204 = vunpack.c.l.b16 %v60
    %v205 = vunpack.c.l.b16 %v61
    %v206 = vunpack.c.l.b16 %v62
    %v207 = vunpack.c.l.b16 %v63
    %v208 = vunpack.c.l.b16 %v64
    %v209 = vunpack.c.l.b16 %v65
    %v210 = vunpack.c.l.b16 %v66
    %v211 = vunpack.c.l.b16 %v67
    %v212 = vunpack.c.l.b16 %v68
    %v213 = vunpack.c.l.b16 %v69
    %v214 = vunpack.c.l.b16 %v70
    %v215 = vunpack.c.l.b16 %v71
    %v216 = vunpack.c.l.b16 %v72
    %v217 = vunpack.c.l.b16 %v73
    %v218 = vunpack.c.l.b16 %v74
    %v219 = vunpack.c.l.b16 %v75
    %v220 = vunpack.c.l.b16 %v76
    %v221 = vunpack.c.l.b16 %v77
    %v222 = vunpack.c.l.b16 %v78
    %v223 = vunpack.c.l.b16 %v79
    %v224 = vpack.c.b16 %v161, %v160
    %v225 = vpack.c.b16 %v163, %v162
    %v226 = vpack.c.b16 %v165, %v164
    %v227 = vpack.c.b16 %v167, %v166
    %v228 = vpack.c.b16 %v169, %v168
    %v229 = vpack.c.b16 %v171, %v170
    %v230 = vpack.c.b16 %v173, %v172
    %v231 = vpack.c.b16 %v175, %v174
    %v232 = vpack.c.b16 %v177, %v176
    %v233 = vpack.c.b16 %v179, %v178
    %v234 = vpack.c.b16 %v181, %v180
    %v235 = vpack.c.b16 %v183, %v182
    %v236 = vpack.c.b16 %v185, %v184
    %v237 = vpack.c.b16 %v187, %v186
    %v238 = vpack.c.b16 %v189, %v188
    %v239 = vpack.c.b16 %v191, %v190
    %v240 = vpack.c.b16 %v193, %v192
    %v241 = vpack.c.b16 %v195, %v194
    %v242 = vpack.c.b16 %v197, %v196
    %v243 = vpack.c.b16 %v199, %v198
    %v244 = vpack.c.b16 %v201, %v200
    %v245 = vpack.c.b16 %v203, %v202
    %v246 = vpack.c.b16 %v205, %v204
    %v247 = vpack.c.b16 %v207, %v206
    %v248 = vpack.c.b16 %v209, %v208
    %v249 = vpack.c.b16 %v211, %v210
    %v250 = vpack.c.b16 %v213, %v212
    %v251 = vpack.c.b16 %v215, %v214
    %v252 = vpack.c.b16 %v217, %v216
    %v253 = vpack.c.b16 %v219, %v218
    %v254 = vpack.c.b16 %v221, %v220
    %v255 = vpack.c.b16 %v223, %v222
    %v304 = vunpack.c.l.b16 %v80
    %v305 = vunpack.c.h.b16 %v80
    %v306 = vunpack.c.l.b16 %v81
    %v307 = vunpack.c.h.b16 %v81
    %v308 = vunpack.c.l.b16 %v82
    %v309 = vunpack.c.h.b16 %v82
    %v310 = vunpack.c.l.b16 %v83
    %v311 = vunpack.c.h.b16 %v83
    %v312 = vunpack.c.l.b16 %v84
    %v313 = vunpack.c.h.b16 %v84
    %v314 = vunpack.c.l.b16 %v85
    %v315 = vunpack.c.h.b16 %v85
    %v316 = vunpack.c.l.b16 %v86
    %v317 = vunpack.c.h.b16 %v86
    %v318 = vunpack.c.l.b16 %v87
    %v319 = vunpack.c.h.b16 %v87
    %v320 = vunpack.c.l.b16 %v88
    %v321 = vunpack.c.h.b16 %v88
    %v322 = vunpack.c.l.b16 %v89
    %v323 = vunpack.c.h.b16 %v89
    %v324 = vunpack.c.l.b16 %v90
    %v325 = vunpack.c.h.b16 %v90
    %v326 = vunpack.c.l.b16 %v91
    %v327 = vunpack.c.h.b16 %v91
    %v328 = vunpack.c.l.b16 %v92
    %v329 = vunpack.c.h.b16 %v92
    %v330 = vunpack.c.l.b16 %v93
    %v331 = vunpack.c.h.b16 %v93
    %v332 = vunpack.c.l.b16 %v94
    %v333 = vunpack.c.h.b16 %v94
    %v334 = vunpack.c.l.b16 %v95
    %v335 = vunpack.c.h.b16 %v95
    %v336 = vpack.c.b16 %v306, %v304
    %v337 = vpack.c.b16 %v307, %v305
    %v338 = vpack.c.b16 %v310, %v308
    %v339 = vpack.c.b16 %v311, %v309
    %v340 = vpack.c.b16 %v314, %v312
    %v341 = vpack.c.b16 %v315, %v313
    %v342 = vpack.c.b16 %v318, %v316
    %v343 = vpack.c.b16 %v319, %v317
    %v344 = vpack.c.b16 %v322, %v320
    %v345 = vpack.c.b16 %v323, %v321
    %v346 = vpack.c.b16 %v326, %v324
    %v347 = vpack.c.b16 %v327, %v325
    %v348 = vpack.c.b16 %v330, %v328
    %v349 = vpack.c.b16 %v331, %v329
    %v350 = vpack.c.b16 %v334, %v332
    %v351 = vpack.c.b16 %v335, %v333
    %368 = vmatprep.subr.bf16.mxu0 %v337
    %369 = vmatpush1.bf16.msra.mxu0 %v336
    %370 = vmatprep.subr.bf16.mxu0 %v339
    %371 = vmatpush1.bf16.msra.mxu0 %v338
    %372 = vmatprep.subr.bf16.mxu0 %v341
    %373 = vmatpush1.bf16.msra.mxu0 %v340
    %374 = vmatprep.subr.bf16.mxu0 %v343
    %375 = vmatpush1.bf16.msra.mxu0 %v342
    %376 = vmatprep.subr.bf16.mxu0 %v345
    %377 = vmatpush1.bf16.msra.mxu0 %v344
    %378 = vmatprep.subr.bf16.mxu0 %v347
    %379 = vmatpush1.bf16.msra.mxu0 %v346
    %380 = vmatprep.subr.bf16.mxu0 %v349
    %381 = vmatpush1.bf16.msra.mxu0 %v348
    %382 = vmatprep.subr.bf16.mxu0 %v351
    %383 = vmatpush1.bf16.msra.mxu0 %v350
    %384 = vmatprep.subr.bf16.mxu0 0
    %385 = vmatpush1.bf16.msra.mxu0 0
    %386 = vmatprep.subr.bf16.mxu0 0
    %387 = vmatpush1.bf16.msra.mxu0 0
    %388 = vmatprep.subr.bf16.mxu0 0
    %389 = vmatpush1.bf16.msra.mxu0 0
    %390 = vmatprep.subr.bf16.mxu0 0
    %391 = vmatpush1.bf16.msra.mxu0 0
    %392 = vmatprep.subr.bf16.mxu0 0
    %393 = vmatpush1.bf16.msra.mxu0 0
    %394 = vmatprep.subr.bf16.mxu0 0
    %395 = vmatpush1.bf16.msra.mxu0 0
    %396 = vmatprep.subr.bf16.mxu0 0
    %397 = vmatpush1.bf16.msra.mxu0 0
    %398 = vmatprep.subr.bf16.mxu0 0
    %399 = vmatpush1.bf16.msra.mxu0 0
    %400 = vmatprep.mubr.bf16.mxu0 0
    %401 = vmatmul.mubr.bf16.gmra.mrb[0].mxu0 %v224
    %v402 = vpop.f32.mrb[0].mxu0
    %v403 = vadd.f32 0.0, %v402
    %v404 = vpop.f32.mrb[0].mxu0
    %v405 = vadd.f32 0.0, %v404
    %v406 = vpop.f32.mrb[0].mxu0
    %v407 = vadd.f32 0.0, %v406
    %v408 = vpop.f32.mrb[0].mxu0
    %v409 = vadd.f32 0.0, %v408
    %410 = vmatprep.mubr.bf16.mxu0 0
    %411 = vmatmul.mubr.bf16.gmra.mrb[0].mxu0 %v225
    %v412 = vpop.f32.mrb[0].mxu0
    %v413 = vadd.f32 0.0, %v412
    %v414 = vpop.f32.mrb[0].mxu0
    %v415 = vadd.f32 0.0, %v414
    %v416 = vpop.f32.mrb[0].mxu0
    %v417 = vadd.f32 0.0, %v416
    %v418 = vpop.f32.mrb[0].mxu0
    %v419 = vadd.f32 0.0, %v418
    %420 = vmatprep.mubr.bf16.mxu0 0
    %421 = vmatmul.mubr.bf16.gmra.mrb[0].mxu0 %v226
    %v422 = vpop.f32.mrb[0].mxu0
    %v423 = vadd.f32 0.0, %v422
    %v424 = vpop.f32.mrb[0].mxu0
    %v425 = vadd.f32 0.0, %v424
    %v426 = vpop.f32.mrb[0].mxu0
    %v427 = vadd.f32 0.0, %v426
    %v428 = vpop.f32.mrb[0].mxu0
    %v429 = vadd.f32 0.0, %v428
    %430 = vmatprep.mubr.bf16.mxu0 0
    %431 = vmatmul.mubr.bf16.gmra.mrb[0].mxu0 %v227
    %v432 = vpop.f32.mrb[0].mxu0
    %v433 = vadd.f32 0.0, %v432
    %v434 = vpop.f32.mrb[0].mxu0
    %v435 = vadd.f32 0.0, %v434
    %v436 = vpop.f32.mrb[0].mxu0
    %v437 = vadd.f32 0.0, %v436
    %v438 = vpop.f32.mrb[0].mxu0
    %v439 = vadd.f32 0.0, %v438
    %440 = vmatprep.mubr.bf16.mxu0 0
    %441 = vmatmul.mubr.bf16.gmra.mrb[0].mxu0 %v228
    %v442 = vpop.f32.mrb[0].mxu0
    %v443 = vadd.f32 0.0, %v442
    %v444 = vpop.f32.mrb[0].mxu0
    %v445 = vadd.f32 0.0, %v444
    %v446 = vpop.f32.mrb[0].mxu0
    %v447 = vadd.f32 0.0, %v446
    %v448 = vpop.f32.mrb[0].mxu0
    %v449 = vadd.f32 0.0, %v448
    %450 = vmatprep.mubr.bf16.mxu0 0
    %451 = vmatmul.mubr.bf16.gmra.mrb[0].mxu0 %v229
    %v452 = vpop.f32.mrb[0].mxu0
    %v453 = vadd.f32 0.0, %v452
    %v454 = vpop.f32.mrb[0].mxu0
    %v455 = vadd.f32 0.0, %v454
    %v456 = vpop.f32.mrb[0].mxu0
    %v457 = vadd.f32 0.0, %v456
    %v458 = vpop.f32.mrb[0].mxu0
    %v459 = vadd.f32 0.0, %v458
    %460 = vmatprep.mubr.bf16.mxu0 0
    %461 = vmatmul.mubr.bf16.gmra.mrb[0].mxu0 %v230
    %v462 = vpop.f32.mrb[0].mxu0
    %v463 = vadd.f32 0.0, %v462
    %v464 = vpop.f32.mrb[0].mxu0
    %v465 = vadd.f32 0.0, %v464
    %v466 = vpop.f32.mrb[0].mxu0
    %v467 = vadd.f32 0.0, %v466
    %v468 = vpop.f32.mrb[0].mxu0
    %v469 = vadd.f32 0.0, %v468
    %470 = vmatprep.mubr.bf16.mxu0 0
    %471 = vmatmul.mubr.bf16.gmra.mrb[0].mxu0 %v231
    %v472 = vpop.f32.mrb[0].mxu0
    %v473 = vadd.f32 0.0, %v472
    %v474 = vpop.f32.mrb[0].mxu0
    %v475 = vadd.f32 0.0, %v474
    %v476 = vpop.f32.mrb[0].mxu0
    %v477 = vadd.f32 0.0, %v476
    %v478 = vpop.f32.mrb[0].mxu0
    %v479 = vadd.f32 0.0, %v478
    %480 = vmatprep.mubr.bf16.mxu0 0
    %481 = vmatmul.mubr.bf16.gmra.mrb[0].mxu0 %v232
    %v482 = vpop.f32.mrb[0].mxu0
    %v483 = vadd.f32 0.0, %v482
    %v484 = vpop.f32.mrb[0].mxu0
    %v485 = vadd.f32 0.0, %v484
    %v486 = vpop.f32.mrb[0].mxu0
    %v487 = vadd.f32 0.0, %v486
    %v488 = vpop.f32.mrb[0].mxu0
    %v489 = vadd.f32 0.0, %v488
    %490 = vmatprep.mubr.bf16.mxu0 0
    %491 = vmatmul.mubr.bf16.gmra.mrb[0].mxu0 %v233
    %v492 = vpop.f32.mrb[0].mxu0
    %v493 = vadd.f32 0.0, %v492
    %v494 = vpop.f32.mrb[0].mxu0
    %v495 = vadd.f32 0.0, %v494
    %v496 = vpop.f32.mrb[0].mxu0
    %v497 = vadd.f32 0.0, %v496
    %v498 = vpop.f32.mrb[0].mxu0
    %v499 = vadd.f32 0.0, %v498
    %500 = vmatprep.mubr.bf16.mxu0 0
    %501 = vmatmul.mubr.bf16.gmra.mrb[0].mxu0 %v234
    %v502 = vpop.f32.mrb[0].mxu0
    %v503 = vadd.f32 0.0, %v502
    %v504 = vpop.f32.mrb[0].mxu0
    %v505 = vadd.f32 0.0, %v504
    %v506 = vpop.f32.mrb[0].mxu0
    %v507 = vadd.f32 0.0, %v506
    %v508 = vpop.f32.mrb[0].mxu0
    %v509 = vadd.f32 0.0, %v508
    %510 = vmatprep.mubr.bf16.mxu0 0
    %511 = vmatmul.mubr.bf16.gmra.mrb[0].mxu0 %v235
    %v512 = vpop.f32.mrb[0].mxu0
    %v513 = vadd.f32 0.0, %v512
    %v514 = vpop.f32.mrb[0].mxu0
    %v515 = vadd.f32 0.0, %v514
    %v516 = vpop.f32.mrb[0].mxu0
    %v517 = vadd.f32 0.0, %v516
    %v518 = vpop.f32.mrb[0].mxu0
    %v519 = vadd.f32 0.0, %v518
    %520 = vmatprep.mubr.bf16.mxu0 0
    %521 = vmatmul.mubr.bf16.gmra.mrb[0].mxu0 %v236
    %v522 = vpop.f32.mrb[0].mxu0
    %v523 = vadd.f32 0.0, %v522
    %v524 = vpop.f32.mrb[0].mxu0
    %v525 = vadd.f32 0.0, %v524
    %v526 = vpop.f32.mrb[0].mxu0
    %v527 = vadd.f32 0.0, %v526
    %v528 = vpop.f32.mrb[0].mxu0
    %v529 = vadd.f32 0.0, %v528
    %530 = vmatprep.mubr.bf16.mxu0 0
    %531 = vmatmul.mubr.bf16.gmra.mrb[0].mxu0 %v237
    %v532 = vpop.f32.mrb[0].mxu0
    %v533 = vadd.f32 0.0, %v532
    %v534 = vpop.f32.mrb[0].mxu0
    %v535 = vadd.f32 0.0, %v534
    %v536 = vpop.f32.mrb[0].mxu0
    %v537 = vadd.f32 0.0, %v536
    %v538 = vpop.f32.mrb[0].mxu0
    %v539 = vadd.f32 0.0, %v538
    %540 = vmatprep.mubr.bf16.mxu0 0
    %541 = vmatmul.mubr.bf16.gmra.mrb[0].mxu0 %v238
    %v542 = vpop.f32.mrb[0].mxu0
    %v543 = vadd.f32 0.0, %v542
    %v544 = vpop.f32.mrb[0].mxu0
    %v545 = vadd.f32 0.0, %v544
    %v546 = vpop.f32.mrb[0].mxu0
    %v547 = vadd.f32 0.0, %v546
    %v548 = vpop.f32.mrb[0].mxu0
    %v549 = vadd.f32 0.0, %v548
    %550 = vmatprep.mubr.bf16.mxu0 0
    %551 = vmatmul.mubr.bf16.gmra.mrb[0].mxu0 %v239
    %v552 = vpop.f32.mrb[0].mxu0
    %v553 = vadd.f32 0.0, %v552
    %v554 = vpop.f32.mrb[0].mxu0
    %v555 = vadd.f32 0.0, %v554
    %v556 = vpop.f32.mrb[0].mxu0
    %v557 = vadd.f32 0.0, %v556
    %v558 = vpop.f32.mrb[0].mxu0
    %v559 = vadd.f32 0.0, %v558
    %560 = vmatprep.mubr.bf16.mxu0 0
    %561 = vmatmul.mubr.bf16.gmra.mrb[0].mxu0 %v240
    %v562 = vpop.f32.mrb[0].mxu0
    %v563 = vadd.f32 0.0, %v562
    %v564 = vpop.f32.mrb[0].mxu0
    %v565 = vadd.f32 0.0, %v564
    %v566 = vpop.f32.mrb[0].mxu0
    %v567 = vadd.f32 0.0, %v566
    %v568 = vpop.f32.mrb[0].mxu0
    %v569 = vadd.f32 0.0, %v568
    %570 = vmatprep.mubr.bf16.mxu0 0
    %571 = vmatmul.mubr.bf16.gmra.mrb[0].mxu0 %v241
    %v572 = vpop.f32.mrb[0].mxu0
    %v573 = vadd.f32 0.0, %v572
    %v574 = vpop.f32.mrb[0].mxu0
    %v575 = vadd.f32 0.0, %v574
    %v576 = vpop.f32.mrb[0].mxu0
    %v577 = vadd.f32 0.0, %v576
    %v578 = vpop.f32.mrb[0].mxu0
    %v579 = vadd.f32 0.0, %v578
    %580 = vmatprep.mubr.bf16.mxu0 0
    %581 = vmatmul.mubr.bf16.gmra.mrb[0].mxu0 %v242
    %v582 = vpop.f32.mrb[0].mxu0
    %v583 = vadd.f32 0.0, %v582
    %v584 = vpop.f32.mrb[0].mxu0
    %v585 = vadd.f32 0.0, %v584
    %v586 = vpop.f32.mrb[0].mxu0
    %v587 = vadd.f32 0.0, %v586
    %v588 = vpop.f32.mrb[0].mxu0
    %v589 = vadd.f32 0.0, %v588
    %590 = vmatprep.mubr.bf16.mxu0 0
    %591 = vmatmul.mubr.bf16.gmra.mrb[0].mxu0 %v243
    %v592 = vpop.f32.mrb[0].mxu0
    %v593 = vadd.f32 0.0, %v592
    %v594 = vpop.f32.mrb[0].mxu0
    %v595 = vadd.f32 0.0, %v594
    %v596 = vpop.f32.mrb[0].mxu0
    %v597 = vadd.f32 0.0, %v596
    %v598 = vpop.f32.mrb[0].mxu0
    %v599 = vadd.f32 0.0, %v598
    %600 = vmatprep.mubr.bf16.mxu0 0
    %601 = vmatmul.mubr.bf16.gmra.mrb[0].mxu0 %v244
    %v602 = vpop.f32.mrb[0].mxu0
    %v603 = vadd.f32 0.0, %v602
    %v604 = vpop.f32.mrb[0].mxu0
    %v605 = vadd.f32 0.0, %v604
    %v606 = vpop.f32.mrb[0].mxu0
    %v607 = vadd.f32 0.0, %v606
    %v608 = vpop.f32.mrb[0].mxu0
    %v609 = vadd.f32 0.0, %v608
    %610 = vmatprep.mubr.bf16.mxu0 0
    %611 = vmatmul.mubr.bf16.gmra.mrb[0].mxu0 %v245
    %v612 = vpop.f32.mrb[0].mxu0
    %v613 = vadd.f32 0.0, %v612
    %v614 = vpop.f32.mrb[0].mxu0
    %v615 = vadd.f32 0.0, %v614
    %v616 = vpop.f32.mrb[0].mxu0
    %v617 = vadd.f32 0.0, %v616
    %v618 = vpop.f32.mrb[0].mxu0
    %v619 = vadd.f32 0.0, %v618
    %620 = vmatprep.mubr.bf16.mxu0 0
    %621 = vmatmul.mubr.bf16.gmra.mrb[0].mxu0 %v246
    %v622 = vpop.f32.mrb[0].mxu0
    %v623 = vadd.f32 0.0, %v622
    %v624 = vpop.f32.mrb[0].mxu0
    %v625 = vadd.f32 0.0, %v624
    %v626 = vpop.f32.mrb[0].mxu0
    %v627 = vadd.f32 0.0, %v626
    %v628 = vpop.f32.mrb[0].mxu0
    %v629 = vadd.f32 0.0, %v628
    %630 = vmatprep.mubr.bf16.mxu0 0
    %631 = vmatmul.mubr.bf16.gmra.mrb[0].mxu0 %v247
    %v632 = vpop.f32.mrb[0].mxu0
    %v633 = vadd.f32 0.0, %v632
    %v634 = vpop.f32.mrb[0].mxu0
    %v635 = vadd.f32 0.0, %v634
    %v636 = vpop.f32.mrb[0].mxu0
    %v637 = vadd.f32 0.0, %v636
    %v638 = vpop.f32.mrb[0].mxu0
    %v639 = vadd.f32 0.0, %v638
    %640 = vmatprep.mubr.bf16.mxu0 0
    %641 = vmatmul.mubr.bf16.gmra.mrb[0].mxu0 %v248
    %v642 = vpop.f32.mrb[0].mxu0
    %v643 = vadd.f32 0.0, %v642
    %v644 = vpop.f32.mrb[0].mxu0
    %v645 = vadd.f32 0.0, %v644
    %v646 = vpop.f32.mrb[0].mxu0
    %v647 = vadd.f32 0.0, %v646
    %v648 = vpop.f32.mrb[0].mxu0
    %v649 = vadd.f32 0.0, %v648
    %650 = vmatprep.mubr.bf16.mxu0 0
    %651 = vmatmul.mubr.bf16.gmra.mrb[0].mxu0 %v249
    %v652 = vpop.f32.mrb[0].mxu0
    %v653 = vadd.f32 0.0, %v652
    %v654 = vpop.f32.mrb[0].mxu0
    %v655 = vadd.f32 0.0, %v654
    %v656 = vpop.f32.mrb[0].mxu0
    %v657 = vadd.f32 0.0, %v656
    %v658 = vpop.f32.mrb[0].mxu0
    %v659 = vadd.f32 0.0, %v658
    %660 = vmatprep.mubr.bf16.mxu0 0
    %661 = vmatmul.mubr.bf16.gmra.mrb[0].mxu0 %v250
    %v662 = vpop.f32.mrb[0].mxu0
    %v663 = vadd.f32 0.0, %v662
    %v664 = vpop.f32.mrb[0].mxu0
    %v665 = vadd.f32 0.0, %v664
    %v666 = vpop.f32.mrb[0].mxu0
    %v667 = vadd.f32 0.0, %v666
    %v668 = vpop.f32.mrb[0].mxu0
    %v669 = vadd.f32 0.0, %v668
    %670 = vmatprep.mubr.bf16.mxu0 0
    %671 = vmatmul.mubr.bf16.gmra.mrb[0].mxu0 %v251
    %v672 = vpop.f32.mrb[0].mxu0
    %v673 = vadd.f32 0.0, %v672
    %v674 = vpop.f32.mrb[0].mxu0
    %v675 = vadd.f32 0.0, %v674
    %v676 = vpop.f32.mrb[0].mxu0
    %v677 = vadd.f32 0.0, %v676
    %v678 = vpop.f32.mrb[0].mxu0
    %v679 = vadd.f32 0.0, %v678
    %680 = vmatprep.mubr.bf16.mxu0 0
    %681 = vmatmul.mubr.bf16.gmra.mrb[0].mxu0 %v252
    %v682 = vpop.f32.mrb[0].mxu0
    %v683 = vadd.f32 0.0, %v682
    %v684 = vpop.f32.mrb[0].mxu0
    %v685 = vadd.f32 0.0, %v684
    %v686 = vpop.f32.mrb[0].mxu0
    %v687 = vadd.f32 0.0, %v686
    %v688 = vpop.f32.mrb[0].mxu0
    %v689 = vadd.f32 0.0, %v688
    %690 = vmatprep.mubr.bf16.mxu0 0
    %691 = vmatmul.mubr.bf16.gmra.mrb[0].mxu0 %v253
    %v692 = vpop.f32.mrb[0].mxu0
    %v693 = vadd.f32 0.0, %v692
    %v694 = vpop.f32.mrb[0].mxu0
    %v695 = vadd.f32 0.0, %v694
    %v696 = vpop.f32.mrb[0].mxu0
    %v697 = vadd.f32 0.0, %v696
    %v698 = vpop.f32.mrb[0].mxu0
    %v699 = vadd.f32 0.0, %v698
    %700 = vmatprep.mubr.bf16.mxu0 0
    %701 = vmatmul.mubr.bf16.gmra.mrb[0].mxu0 %v254
    %v702 = vpop.f32.mrb[0].mxu0
    %v703 = vadd.f32 0.0, %v702
    %v704 = vpop.f32.mrb[0].mxu0
    %v705 = vadd.f32 0.0, %v704
    %v706 = vpop.f32.mrb[0].mxu0
    %v707 = vadd.f32 0.0, %v706
    %v708 = vpop.f32.mrb[0].mxu0
    %v709 = vadd.f32 0.0, %v708
    %710 = vmatprep.mubr.bf16.mxu0 0
    %711 = vmatmul.mubr.bf16.gmra.mrb[0].mxu0 %v255
    %v712 = vpop.f32.mrb[0].mxu0
    %v713 = vadd.f32 0.0, %v712
    %v714 = vpop.f32.mrb[0].mxu0
    %v715 = vadd.f32 0.0, %v714
    %v716 = vpop.f32.mrb[0].mxu0
    %v717 = vadd.f32 0.0, %v716
    %v718 = vpop.f32.mrb[0].mxu0
    %v719 = vadd.f32 0.0, %v718
    %720 = vdwg.mxu0
    %v721 = vpack.c.bf16 %v407, %v403
    %v722 = vpack.c.bf16 %v417, %v413
    %v723 = vpack.c.bf16 %v427, %v423
    %v724 = vpack.c.bf16 %v437, %v433
    %v725 = vpack.c.bf16 %v447, %v443
    %v726 = vpack.c.bf16 %v457, %v453
    %v727 = vpack.c.bf16 %v467, %v463
    %v728 = vpack.c.bf16 %v477, %v473
    %v729 = vpack.c.bf16 %v487, %v483
    %v730 = vpack.c.bf16 %v497, %v493
    %v731 = vpack.c.bf16 %v507, %v503
    %v732 = vpack.c.bf16 %v517, %v513
    %v733 = vpack.c.bf16 %v527, %v523
    %v734 = vpack.c.bf16 %v537, %v533
    %v735 = vpack.c.bf16 %v547, %v543
    %v736 = vpack.c.bf16 %v557, %v553
    %v737 = vpack.c.bf16 %v567, %v563
    %v738 = vpack.c.bf16 %v577, %v573
    %v739 = vpack.c.bf16 %v587, %v583
    %v740 = vpack.c.bf16 %v597, %v593
    %v741 = vpack.c.bf16 %v607, %v603
    %v742 = vpack.c.bf16 %v617, %v613
    %v743 = vpack.c.bf16 %v627, %v623
    %v744 = vpack.c.bf16 %v637, %v633
    %v745 = vpack.c.bf16 %v647, %v643
    %v746 = vpack.c.bf16 %v657, %v653
    %v747 = vpack.c.bf16 %v667, %v663
    %v748 = vpack.c.bf16 %v677, %v673
    %v749 = vpack.c.bf16 %v687, %v683
    %v750 = vpack.c.bf16 %v697, %v693
    %v751 = vpack.c.bf16 %v707, %v703
    %v752 = vpack.c.bf16 %v717, %v713
    %v785 = vunpack.c.l.b16 %v721
    %v786 = vunpack.c.h.b16 %v721
    %v787 = vunpack.c.l.b16 %v722
    %v788 = vunpack.c.h.b16 %v722
    %v789 = vunpack.c.l.b16 %v723
    %v790 = vunpack.c.h.b16 %v723
    %v791 = vunpack.c.l.b16 %v724
    %v792 = vunpack.c.h.b16 %v724
    %v793 = vunpack.c.l.b16 %v725
    %v794 = vunpack.c.h.b16 %v725
    %v795 = vunpack.c.l.b16 %v726
    %v796 = vunpack.c.h.b16 %v726
    %v797 = vunpack.c.l.b16 %v727
    %v798 = vunpack.c.h.b16 %v727
    %v799 = vunpack.c.l.b16 %v728
    %v800 = vunpack.c.h.b16 %v728
    %v801 = vunpack.c.l.b16 %v729
    %v802 = vunpack.c.h.b16 %v729
    %v803 = vunpack.c.l.b16 %v730
    %v804 = vunpack.c.h.b16 %v730
    %v805 = vunpack.c.l.b16 %v731
    %v806 = vunpack.c.h.b16 %v731
    %v807 = vunpack.c.l.b16 %v732
    %v808 = vunpack.c.h.b16 %v732
    %v809 = vunpack.c.l.b16 %v733
    %v810 = vunpack.c.h.b16 %v733
    %v811 = vunpack.c.l.b16 %v734
    %v812 = vunpack.c.h.b16 %v734
    %v813 = vunpack.c.l.b16 %v735
    %v814 = vunpack.c.h.b16 %v735
    %v815 = vunpack.c.l.b16 %v736
    %v816 = vunpack.c.h.b16 %v736
    %v817 = vunpack.c.l.b16 %v737
    %v818 = vunpack.c.h.b16 %v737
    %v819 = vunpack.c.l.b16 %v738
    %v820 = vunpack.c.h.b16 %v738
    %v821 = vunpack.c.l.b16 %v739
    %v822 = vunpack.c.h.b16 %v739
    %v823 = vunpack.c.l.b16 %v740
    %v824 = vunpack.c.h.b16 %v740
    %v825 = vunpack.c.l.b16 %v741
    %v826 = vunpack.c.h.b16 %v741
    %v827 = vunpack.c.l.b16 %v742
    %v828 = vunpack.c.h.b16 %v742
    %v829 = vunpack.c.l.b16 %v743
    %v830 = vunpack.c.h.b16 %v743
    %v831 = vunpack.c.l.b16 %v744
    %v832 = vunpack.c.h.b16 %v744
    %v833 = vunpack.c.l.b16 %v745
    %v834 = vunpack.c.h.b16 %v745
    %v835 = vunpack.c.l.b16 %v746
    %v836 = vunpack.c.h.b16 %v746
    %v837 = vunpack.c.l.b16 %v747
    %v838 = vunpack.c.h.b16 %v747
    %v839 = vunpack.c.l.b16 %v748
    %v840 = vunpack.c.h.b16 %v748
    %v841 = vunpack.c.l.b16 %v749
    %v842 = vunpack.c.h.b16 %v749
    %v843 = vunpack.c.l.b16 %v750
    %v844 = vunpack.c.h.b16 %v750
    %v845 = vunpack.c.l.b16 %v751
    %v846 = vunpack.c.h.b16 %v751
    %v847 = vunpack.c.l.b16 %v752
    %v848 = vunpack.c.h.b16 %v752
    %v849 = vpack.c.b16 %v785, %v785
    %v850 = vpack.c.b16 %v786, %v786
    %v851 = vpack.c.b16 %v787, %v787
    %v852 = vpack.c.b16 %v788, %v788
    %v853 = vpack.c.b16 %v789, %v789
    %v854 = vpack.c.b16 %v790, %v790
    %v855 = vpack.c.b16 %v791, %v791
    %v856 = vpack.c.b16 %v792, %v792
    %v857 = vpack.c.b16 %v793, %v793
    %v858 = vpack.c.b16 %v794, %v794
    %v859 = vpack.c.b16 %v795, %v795
    %v860 = vpack.c.b16 %v796, %v796
    %v861 = vpack.c.b16 %v797, %v797
    %v862 = vpack.c.b16 %v798, %v798
    %v863 = vpack.c.b16 %v799, %v799
    %v864 = vpack.c.b16 %v800, %v800
    %v865 = vpack.c.b16 %v801, %v801
    %v866 = vpack.c.b16 %v802, %v802
    %v867 = vpack.c.b16 %v803, %v803
    %v868 = vpack.c.b16 %v804, %v804
    %v869 = vpack.c.b16 %v805, %v805
    %v870 = vpack.c.b16 %v806, %v806
    %v871 = vpack.c.b16 %v807, %v807
    %v872 = vpack.c.b16 %v808, %v808
    %v873 = vpack.c.b16 %v809, %v809
    %v874 = vpack.c.b16 %v810, %v810
    %v875 = vpack.c.b16 %v811, %v811
    %v876 = vpack.c.b16 %v812, %v812
    %v877 = vpack.c.b16 %v813, %v813
    %v878 = vpack.c.b16 %v814, %v814
    %v879 = vpack.c.b16 %v815, %v815
    %v880 = vpack.c.b16 %v816, %v816
    %v881 = vpack.c.b16 %v817, %v817
    %v882 = vpack.c.b16 %v818, %v818
    %v883 = vpack.c.b16 %v819, %v819
    %v884 = vpack.c.b16 %v820, %v820
    %v885 = vpack.c.b16 %v821, %v821
    %v886 = vpack.c.b16 %v822, %v822
    %v887 = vpack.c.b16 %v823, %v823
    %v888 = vpack.c.b16 %v824, %v824
    %v889 = vpack.c.b16 %v825, %v825
    %v890 = vpack.c.b16 %v826, %v826
    %v891 = vpack.c.b16 %v827, %v827
    %v892 = vpack.c.b16 %v828, %v828
    %v893 = vpack.c.b16 %v829, %v829
    %v894 = vpack.c.b16 %v830, %v830
    %v895 = vpack.c.b16 %v831, %v831
    %v896 = vpack.c.b16 %v832, %v832
    %v897 = vpack.c.b16 %v833, %v833
    %v898 = vpack.c.b16 %v834, %v834
    %v899 = vpack.c.b16 %v835, %v835
    %v900 = vpack.c.b16 %v836, %v836
    %v901 = vpack.c.b16 %v837, %v837
    %v902 = vpack.c.b16 %v838, %v838
    %v903 = vpack.c.b16 %v839, %v839
    %v904 = vpack.c.b16 %v840, %v840
    %v905 = vpack.c.b16 %v841, %v841
    %v906 = vpack.c.b16 %v842, %v842
    %v907 = vpack.c.b16 %v843, %v843
    %v908 = vpack.c.b16 %v844, %v844
    %v909 = vpack.c.b16 %v845, %v845
    %v910 = vpack.c.b16 %v846, %v846
    %v911 = vpack.c.b16 %v847, %v847
    %v912 = vpack.c.b16 %v848, %v848
    %977 = vst [vmem:[#allocation2] sm:$0xf] %v849
    %978 = vst [vmem:[#allocation2 + $0x4] sm:$0xf] %v850
    %979 = vst [vmem:[#allocation2 + $0x8] sm:$0xf] %v851
    %980 = vst [vmem:[#allocation2 + $0xc] sm:$0xf] %v852
    %981 = vst [vmem:[#allocation2 + $0x10] sm:$0xf] %v853
    %982 = vst [vmem:[#allocation2 + $0x14] sm:$0xf] %v854
    %983 = vst [vmem:[#allocation2 + $0x18] sm:$0xf] %v855
    %984 = vst [vmem:[#allocation2 + $0x1c] sm:$0xf] %v856
    %985 = vst [vmem:[#allocation2 + $0x20] sm:$0xf] %v857
    %986 = vst [vmem:[#allocation2 + $0x24] sm:$0xf] %v858
    %987 = vst [vmem:[#allocation2 + $0x28] sm:$0xf] %v859
    %988 = vst [vmem:[#allocation2 + $0x2c] sm:$0xf] %v860
    %989 = vst [vmem:[#allocation2 + $0x30] sm:$0xf] %v861
    %990 = vst [vmem:[#allocation2 + $0x34] sm:$0xf] %v862
    %991 = vst [vmem:[#allocation2 + $0x38] sm:$0xf] %v863
    %992 = vst [vmem:[#allocation2 + $0x3c] sm:$0xf] %v864
    %993 = vst [vmem:[#allocation2 + $0x40] sm:$0xf] %v865
    %994 = vst [vmem:[#allocation2 + $0x44] sm:$0xf] %v866
    %995 = vst [vmem:[#allocation2 + $0x48] sm:$0xf] %v867
    %996 = vst [vmem:[#allocation2 + $0x4c] sm:$0xf] %v868
    %997 = vst [vmem:[#allocation2 + $0x50] sm:$0xf] %v869
    %998 = vst [vmem:[#allocation2 + $0x54] sm:$0xf] %v870
    %999 = vst [vmem:[#allocation2 + $0x58] sm:$0xf] %v871
    %1000 = vst [vmem:[#allocation2 + $0x5c] sm:$0xf] %v872
    %1001 = vst [vmem:[#allocation2 + $0x60] sm:$0xf] %v873
    %1002 = vst [vmem:[#allocation2 + $0x64] sm:$0xf] %v874
    %1003 = vst [vmem:[#allocation2 + $0x68] sm:$0xf] %v875
    %1004 = vst [vmem:[#allocation2 + $0x6c] sm:$0xf] %v876
    %1005 = vst [vmem:[#allocation2 + $0x70] sm:$0xf] %v877
    %1006 = vst [vmem:[#allocation2 + $0x74] sm:$0xf] %v878
    %1007 = vst [vmem:[#allocation2 + $0x78] sm:$0xf] %v879
    %1008 = vst [vmem:[#allocation2 + $0x7c] sm:$0xf] %v880
    %1009 = vst [vmem:[#allocation2 + $0x80] sm:$0xf] %v881
    %1010 = vst [vmem:[#allocation2 + $0x84] sm:$0xf] %v882
    %1011 = vst [vmem:[#allocation2 + $0x88] sm:$0xf] %v883
    %1012 = vst [vmem:[#allocation2 + $0x8c] sm:$0xf] %v884
    %1013 = vst [vmem:[#allocation2 + $0x90] sm:$0xf] %v885
    %1014 = vst [vmem:[#allocation2 + $0x94] sm:$0xf] %v886
    %1015 = vst [vmem:[#allocation2 + $0x98] sm:$0xf] %v887
    %1016 = vst [vmem:[#allocation2 + $0x9c] sm:$0xf] %v888
    %1017 = vst [vmem:[#allocation2 + $0xa0] sm:$0xf] %v889
    %1018 = vst [vmem:[#allocation2 + $0xa4] sm:$0xf] %v890
    %1019 = vst [vmem:[#allocation2 + $0xa8] sm:$0xf] %v891
    %1020 = vst [vmem:[#allocation2 + $0xac] sm:$0xf] %v892
    %1021 = vst [vmem:[#allocation2 + $0xb0] sm:$0xf] %v893
    %1022 = vst [vmem:[#allocation2 + $0xb4] sm:$0xf] %v894
    %1023 = vst [vmem:[#allocation2 + $0xb8] sm:$0xf] %v895
    %1024 = vst [vmem:[#allocation2 + $0xbc] sm:$0xf] %v896
    %1025 = vst [vmem:[#allocation2 + $0xc0] sm:$0xf] %v897
    %1026 = vst [vmem:[#allocation2 + $0xc4] sm:$0xf] %v898
    %1027 = vst [vmem:[#allocation2 + $0xc8] sm:$0xf] %v899
    %1028 = vst [vmem:[#allocation2 + $0xcc] sm:$0xf] %v900
    %1029 = vst [vmem:[#allocation2 + $0xd0] sm:$0xf] %v901
    %1030 = vst [vmem:[#allocation2 + $0xd4] sm:$0xf] %v902
    %1031 = vst [vmem:[#allocation2 + $0xd8] sm:$0xf] %v903
    %1032 = vst [vmem:[#allocation2 + $0xdc] sm:$0xf] %v904
    %1033 = vst [vmem:[#allocation2 + $0xe0] sm:$0xf] %v905
    %1034 = vst [vmem:[#allocation2 + $0xe4] sm:$0xf] %v906
    %1035 = vst [vmem:[#allocation2 + $0xe8] sm:$0xf] %v907
    %1036 = vst [vmem:[#allocation2 + $0xec] sm:$0xf] %v908
    %1037 = vst [vmem:[#allocation2 + $0xf0] sm:$0xf] %v909
    %1038 = vst [vmem:[#allocation2 + $0xf4] sm:$0xf] %v910
    %1039 = vst [vmem:[#allocation2 + $0xf8] sm:$0xf] %v911
    %1040 = vst [vmem:[#allocation2 + $0xfc] sm:$0xf] %v912
    %v1041 = vpack.c.bf16 %v409, %v405
    %v1042 = vpack.c.bf16 %v419, %v415
    %v1043 = vpack.c.bf16 %v429, %v425
    %v1044 = vpack.c.bf16 %v439, %v435
    %v1045 = vpack.c.bf16 %v449, %v445
    %v1046 = vpack.c.bf16 %v459, %v455
    %v1047 = vpack.c.bf16 %v469, %v465
    %v1048 = vpack.c.bf16 %v479, %v475
    %v1049 = vpack.c.bf16 %v489, %v485
    %v1050 = vpack.c.bf16 %v499, %v495
    %v1051 = vpack.c.bf16 %v509, %v505
    %v1052 = vpack.c.bf16 %v519, %v515
    %v1053 = vpack.c.bf16 %v529, %v525
    %v1054 = vpack.c.bf16 %v539, %v535
    %v1055 = vpack.c.bf16 %v549, %v545
    %v1056 = vpack.c.bf16 %v559, %v555
    %v1057 = vpack.c.bf16 %v569, %v565
    %v1058 = vpack.c.bf16 %v579, %v575
    %v1059 = vpack.c.bf16 %v589, %v585
    %v1060 = vpack.c.bf16 %v599, %v595
    %v1061 = vpack.c.bf16 %v609, %v605
    %v1062 = vpack.c.bf16 %v619, %v615
    %v1063 = vpack.c.bf16 %v629, %v625
    %v1064 = vpack.c.bf16 %v639, %v635
    %v1065 = vpack.c.bf16 %v649, %v645
    %v1066 = vpack.c.bf16 %v659, %v655
    %v1067 = vpack.c.bf16 %v669, %v665
    %v1068 = vpack.c.bf16 %v679, %v675
    %v1069 = vpack.c.bf16 %v689, %v685
    %v1070 = vpack.c.bf16 %v699, %v695
    %v1071 = vpack.c.bf16 %v709, %v705
    %v1072 = vpack.c.bf16 %v719, %v715
    %v1105 = vunpack.c.l.b16 %v1041
    %v1106 = vunpack.c.h.b16 %v1041
    %v1107 = vunpack.c.l.b16 %v1042
    %v1108 = vunpack.c.h.b16 %v1042
    %v1109 = vunpack.c.l.b16 %v1043
    %v1110 = vunpack.c.h.b16 %v1043
    %v1111 = vunpack.c.l.b16 %v1044
    %v1112 = vunpack.c.h.b16 %v1044
    %v1113 = vunpack.c.l.b16 %v1045
    %v1114 = vunpack.c.h.b16 %v1045
    %v1115 = vunpack.c.l.b16 %v1046
    %v1116 = vunpack.c.h.b16 %v1046
    %v1117 = vunpack.c.l.b16 %v1047
    %v1118 = vunpack.c.h.b16 %v1047
    %v1119 = vunpack.c.l.b16 %v1048
    %v1120 = vunpack.c.h.b16 %v1048
    %v1121 = vunpack.c.l.b16 %v1049
    %v1122 = vunpack.c.h.b16 %v1049
    %v1123 = vunpack.c.l.b16 %v1050
    %v1124 = vunpack.c.h.b16 %v1050
    %v1125 = vunpack.c.l.b16 %v1051
    %v1126 = vunpack.c.h.b16 %v1051
    %v1127 = vunpack.c.l.b16 %v1052
    %v1128 = vunpack.c.h.b16 %v1052
    %v1129 = vunpack.c.l.b16 %v1053
    %v1130 = vunpack.c.h.b16 %v1053
    %v1131 = vunpack.c.l.b16 %v1054
    %v1132 = vunpack.c.h.b16 %v1054
    %v1133 = vunpack.c.l.b16 %v1055
    %v1134 = vunpack.c.h.b16 %v1055
    %v1135 = vunpack.c.l.b16 %v1056
    %v1136 = vunpack.c.h.b16 %v1056
    %v1137 = vunpack.c.l.b16 %v1057
    %v1138 = vunpack.c.h.b16 %v1057
    %v1139 = vunpack.c.l.b16 %v1058
    %v1140 = vunpack.c.h.b16 %v1058
    %v1141 = vunpack.c.l.b16 %v1059
    %v1142 = vunpack.c.h.b16 %v1059
    %v1143 = vunpack.c.l.b16 %v1060
    %v1144 = vunpack.c.h.b16 %v1060
    %v1145 = vunpack.c.l.b16 %v1061
    %v1146 = vunpack.c.h.b16 %v1061
    %v1147 = vunpack.c.l.b16 %v1062
    %v1148 = vunpack.c.h.b16 %v1062
    %v1149 = vunpack.c.l.b16 %v1063
    %v1150 = vunpack.c.h.b16 %v1063
    %v1151 = vunpack.c.l.b16 %v1064
    %v1152 = vunpack.c.h.b16 %v1064
    %v1153 = vunpack.c.l.b16 %v1065
    %v1154 = vunpack.c.h.b16 %v1065
    %v1155 = vunpack.c.l.b16 %v1066
    %v1156 = vunpack.c.h.b16 %v1066
    %v1157 = vunpack.c.l.b16 %v1067
    %v1158 = vunpack.c.h.b16 %v1067
    %v1159 = vunpack.c.l.b16 %v1068
    %v1160 = vunpack.c.h.b16 %v1068
    %v1161 = vunpack.c.l.b16 %v1069
    %v1162 = vunpack.c.h.b16 %v1069
    %v1163 = vunpack.c.l.b16 %v1070
    %v1164 = vunpack.c.h.b16 %v1070
    %v1165 = vunpack.c.l.b16 %v1071
    %v1166 = vunpack.c.h.b16 %v1071
    %v1167 = vunpack.c.l.b16 %v1072
    %v1168 = vunpack.c.h.b16 %v1072
    %v1169 = vpack.c.b16 %v1105, %v1105
    %v1170 = vpack.c.b16 %v1106, %v1106
    %v1171 = vpack.c.b16 %v1107, %v1107
    %v1172 = vpack.c.b16 %v1108, %v1108
    %v1173 = vpack.c.b16 %v1109, %v1109
    %v1174 = vpack.c.b16 %v1110, %v1110
    %v1175 = vpack.c.b16 %v1111, %v1111
    %v1176 = vpack.c.b16 %v1112, %v1112
    %v1177 = vpack.c.b16 %v1113, %v1113
    %v1178 = vpack.c.b16 %v1114, %v1114
    %v1179 = vpack.c.b16 %v1115, %v1115
    %v1180 = vpack.c.b16 %v1116, %v1116
    %v1181 = vpack.c.b16 %v1117, %v1117
    %v1182 = vpack.c.b16 %v1118, %v1118
    %v1183 = vpack.c.b16 %v1119, %v1119
    %v1184 = vpack.c.b16 %v1120, %v1120
    %v1185 = vpack.c.b16 %v1121, %v1121
    %v1186 = vpack.c.b16 %v1122, %v1122
    %v1187 = vpack.c.b16 %v1123, %v1123
    %v1188 = vpack.c.b16 %v1124, %v1124
    %v1189 = vpack.c.b16 %v1125, %v1125
    %v1190 = vpack.c.b16 %v1126, %v1126
    %v1191 = vpack.c.b16 %v1127, %v1127
    %v1192 = vpack.c.b16 %v1128, %v1128
    %v1193 = vpack.c.b16 %v1129, %v1129
    %v1194 = vpack.c.b16 %v1130, %v1130
    %v1195 = vpack.c.b16 %v1131, %v1131
    %v1196 = vpack.c.b16 %v1132, %v1132
    %v1197 = vpack.c.b16 %v1133, %v1133
    %v1198 = vpack.c.b16 %v1134, %v1134
    %v1199 = vpack.c.b16 %v1135, %v1135
    %v1200 = vpack.c.b16 %v1136, %v1136
    %v1201 = vpack.c.b16 %v1137, %v1137
    %v1202 = vpack.c.b16 %v1138, %v1138
    %v1203 = vpack.c.b16 %v1139, %v1139
    %v1204 = vpack.c.b16 %v1140, %v1140
    %v1205 = vpack.c.b16 %v1141, %v1141
    %v1206 = vpack.c.b16 %v1142, %v1142
    %v1207 = vpack.c.b16 %v1143, %v1143
    %v1208 = vpack.c.b16 %v1144, %v1144
    %v1209 = vpack.c.b16 %v1145, %v1145
    %v1210 = vpack.c.b16 %v1146, %v1146
    %v1211 = vpack.c.b16 %v1147, %v1147
    %v1212 = vpack.c.b16 %v1148, %v1148
    %v1213 = vpack.c.b16 %v1149, %v1149
    %v1214 = vpack.c.b16 %v1150, %v1150
    %v1215 = vpack.c.b16 %v1151, %v1151
    %v1216 = vpack.c.b16 %v1152, %v1152
    %v1217 = vpack.c.b16 %v1153, %v1153
    %v1218 = vpack.c.b16 %v1154, %v1154
    %v1219 = vpack.c.b16 %v1155, %v1155
    %v1220 = vpack.c.b16 %v1156, %v1156
    %v1221 = vpack.c.b16 %v1157, %v1157
    %v1222 = vpack.c.b16 %v1158, %v1158
    %v1223 = vpack.c.b16 %v1159, %v1159
    %v1224 = vpack.c.b16 %v1160, %v1160
    %v1225 = vpack.c.b16 %v1161, %v1161
    %v1226 = vpack.c.b16 %v1162, %v1162
    %v1227 = vpack.c.b16 %v1163, %v1163
    %v1228 = vpack.c.b16 %v1164, %v1164
    %v1229 = vpack.c.b16 %v1165, %v1165
    %v1230 = vpack.c.b16 %v1166, %v1166
    %v1231 = vpack.c.b16 %v1167, %v1167
    %v1232 = vpack.c.b16 %v1168, %v1168
    %1297 = vst [vmem:[#allocation4] sm:$0xf] %v1169
    %1298 = vst [vmem:[#allocation4 + $0x4] sm:$0xf] %v1170
    %1299 = vst [vmem:[#allocation4 + $0x8] sm:$0xf] %v1171
    %1300 = vst [vmem:[#allocation4 + $0xc] sm:$0xf] %v1172
    %1301 = vst [vmem:[#allocation4 + $0x10] sm:$0xf] %v1173
    %1302 = vst [vmem:[#allocation4 + $0x14] sm:$0xf] %v1174
    %1303 = vst [vmem:[#allocation4 + $0x18] sm:$0xf] %v1175
    %1304 = vst [vmem:[#allocation4 + $0x1c] sm:$0xf] %v1176
    %1305 = vst [vmem:[#allocation4 + $0x20] sm:$0xf] %v1177
    %1306 = vst [vmem:[#allocation4 + $0x24] sm:$0xf] %v1178
    %1307 = vst [vmem:[#allocation4 + $0x28] sm:$0xf] %v1179
    %1308 = vst [vmem:[#allocation4 + $0x2c] sm:$0xf] %v1180
    %1309 = vst [vmem:[#allocation4 + $0x30] sm:$0xf] %v1181
    %1310 = vst [vmem:[#allocation4 + $0x34] sm:$0xf] %v1182
    %1311 = vst [vmem:[#allocation4 + $0x38] sm:$0xf] %v1183
    %1312 = vst [vmem:[#allocation4 + $0x3c] sm:$0xf] %v1184
    %1313 = vst [vmem:[#allocation4 + $0x40] sm:$0xf] %v1185
    %1314 = vst [vmem:[#allocation4 + $0x44] sm:$0xf] %v1186
    %1315 = vst [vmem:[#allocation4 + $0x48] sm:$0xf] %v1187
    %1316 = vst [vmem:[#allocation4 + $0x4c] sm:$0xf] %v1188
    %1317 = vst [vmem:[#allocation4 + $0x50] sm:$0xf] %v1189
    %1318 = vst [vmem:[#allocation4 + $0x54] sm:$0xf] %v1190
    %1319 = vst [vmem:[#allocation4 + $0x58] sm:$0xf] %v1191
    %1320 = vst [vmem:[#allocation4 + $0x5c] sm:$0xf] %v1192
    %1321 = vst [vmem:[#allocation4 + $0x60] sm:$0xf] %v1193
    %1322 = vst [vmem:[#allocation4 + $0x64] sm:$0xf] %v1194
    %1323 = vst [vmem:[#allocation4 + $0x68] sm:$0xf] %v1195
    %1324 = vst [vmem:[#allocation4 + $0x6c] sm:$0xf] %v1196
    %1325 = vst [vmem:[#allocation4 + $0x70] sm:$0xf] %v1197
    %1326 = vst [vmem:[#allocation4 + $0x74] sm:$0xf] %v1198
    %1327 = vst [vmem:[#allocation4 + $0x78] sm:$0xf] %v1199
    %1328 = vst [vmem:[#allocation4 + $0x7c] sm:$0xf] %v1200
    %1329 = vst [vmem:[#allocation4 + $0x80] sm:$0xf] %v1201
    %1330 = vst [vmem:[#allocation4 + $0x84] sm:$0xf] %v1202
    %1331 = vst [vmem:[#allocation4 + $0x88] sm:$0xf] %v1203
    %1332 = vst [vmem:[#allocation4 + $0x8c] sm:$0xf] %v1204
    %1333 = vst [vmem:[#allocation4 + $0x90] sm:$0xf] %v1205
    %1334 = vst [vmem:[#allocation4 + $0x94] sm:$0xf] %v1206
    %1335 = vst [vmem:[#allocation4 + $0x98] sm:$0xf] %v1207
    %1336 = vst [vmem:[#allocation4 + $0x9c] sm:$0xf] %v1208
    %1337 = vst [vmem:[#allocation4 + $0xa0] sm:$0xf] %v1209
    %1338 = vst [vmem:[#allocation4 + $0xa4] sm:$0xf] %v1210
    %1339 = vst [vmem:[#allocation4 + $0xa8] sm:$0xf] %v1211
    %1340 = vst [vmem:[#allocation4 + $0xac] sm:$0xf] %v1212
    %1341 = vst [vmem:[#allocation4 + $0xb0] sm:$0xf] %v1213
    %1342 = vst [vmem:[#allocation4 + $0xb4] sm:$0xf] %v1214
    %1343 = vst [vmem:[#allocation4 + $0xb8] sm:$0xf] %v1215
    %1344 = vst [vmem:[#allocation4 + $0xbc] sm:$0xf] %v1216
    %1345 = vst [vmem:[#allocation4 + $0xc0] sm:$0xf] %v1217
    %1346 = vst [vmem:[#allocation4 + $0xc4] sm:$0xf] %v1218
    %1347 = vst [vmem:[#allocation4 + $0xc8] sm:$0xf] %v1219
    %1348 = vst [vmem:[#allocation4 + $0xcc] sm:$0xf] %v1220
    %1349 = vst [vmem:[#allocation4 + $0xd0] sm:$0xf] %v1221
    %1350 = vst [vmem:[#allocation4 + $0xd4] sm:$0xf] %v1222
    %1351 = vst [vmem:[#allocation4 + $0xd8] sm:$0xf] %v1223
    %1352 = vst [vmem:[#allocation4 + $0xdc] sm:$0xf] %v1224
    %1353 = vst [vmem:[#allocation4 + $0xe0] sm:$0xf] %v1225
    %1354 = vst [vmem:[#allocation4 + $0xe4] sm:$0xf] %v1226
    %1355 = vst [vmem:[#allocation4 + $0xe8] sm:$0xf] %v1227
    %1356 = vst [vmem:[#allocation4 + $0xec] sm:$0xf] %v1228
    %1357 = vst [vmem:[#allocation4 + $0xf0] sm:$0xf] %v1229
    %1358 = vst [vmem:[#allocation4 + $0xf4] sm:$0xf] %v1230
    %1359 = vst [vmem:[#allocation4 + $0xf8] sm:$0xf] %v1231
    %1360 = vst [vmem:[#allocation4 + $0xfc] sm:$0xf] %v1232
    // Predicated region
    $region10: #{csp_block_forward.3} parent=1 // pred_check
      _
    $region11: #{csp_block_forward.3} parent=1 // pred_check_branch
      %1362 = sbr.rel (0) target = $region13
    $region12: #{csp_block_forward.3} parent=1 // pred_region
      %s1364 = ssub.s32 4096, 4096
      %1365 = vsyncadd [#allocation3], %s1364
      %s1366 = sshll.u32 [#allocation2], 4
      %s1367 = int_to_ptr.vmem [resolvable:$true] %s1366
      %1372 = dma.vmem_to_hbm [thread:$0]  %s1367, 4096, %s2, [#allocation3], 64, 64, 4
    $region13: #{csp_block_forward.3} parent=1 // pred_fallthru
      _
    // Predicated region
    $region14: #{csp_block_forward.3} parent=1 // pred_check
      _
    $region15: #{csp_block_forward.3} parent=1 // pred_check_branch
      %1374 = sbr.rel (0) target = $region17
    $region16: #{csp_block_forward.3} parent=1 // pred_region
      %s1376 = ssub.s32 4096, 4096
      %1377 = vsyncadd [#allocation5], %s1376
      %s1378 = sshll.u32 [#allocation4], 4
      %s1379 = int_to_ptr.vmem [resolvable:$true] %s1378
      %1384 = dma.vmem_to_hbm [thread:$0]  %s1379, 4096, %s3, [#allocation5], 64, 64, 4
    $region17: #{csp_block_forward.3} parent=1 // pred_fallthru
      _
    // Predicated region
    $region18: #{csp_block_forward.3} parent=1 // pred_check
      _
    $region19: #{csp_block_forward.3} parent=1 // pred_check_branch
      %1386 = sbr.rel (0) target = $region21
    $region20: #{csp_block_forward.3} parent=1 // pred_region
      %1387 = dma.done [#allocation3], 4096
    $region21: #{csp_block_forward.3} parent=1 // pred_fallthru
      _
    // Predicated region
    $region22: #{csp_block_forward.3} parent=1 // pred_check
      _
    $region23: #{csp_block_forward.3} parent=1 // pred_check_branch
      %1389 = sbr.rel (0) target = $region25
    $region24: #{csp_block_forward.3} parent=1 // pred_region
      %1390 = dma.done [#allocation5], 4096
    $region25: #{csp_block_forward.3} parent=1 // pred_fallthru
      _
    %1391 = vsyncpa [#allocation3], 1
    %1392 = vsyncpa [#allocation5], 1

// kernel: csp_block_forward.4
$region0: #{csp_block_forward.4}
  #allocation0 [shape = 'u32[]', space=smem, size = 0x4, offset = 0x4, fixed_abs, tag = 'smem constant byte address 0x4 - core index']
  #allocation1 [shape = 'u32[144,128]{1,0:T(1,128)}', space=vmem, size = 0x12000, scoped, tag = 'internal scratch']
  #allocation2 [shape = 'f32[256,128]{1,0:T(8,128)}', space=vmem, size = 0x20000, scoped, tag = 'scratch operand']
  #allocation3 [shape = 'bf16[18,16,128]{2,1,0:T(16,128)(2,1)}', space=vmem, size = 0x12000, scoped, tag = 'scratch operand']
  %s0 = inlined_call_operand.hbm [shape: bf16[2,16,16,128], index: 0, kind: input, shape index: {}]
  %s1 = inlined_call_operand.hbm [shape: bf16[2,128,128], index: 1, kind: input, shape index: {}]
  %s2 = inlined_call_operand.hbm [shape: bf16[2,3,384,128], index: 2, kind: input, shape index: {}]
  %s3 = inlined_call_operand.hbm [shape: bf16[2,16,16,128], index: 3, kind: output, shape index: {}]
  %s4 = sld [smem:[#allocation0]]
  $region57: #{csp_block_forward.4} parent=0
    _
  %s6 = ssub.s32 1, %s4
  %s7 = scalar_select 0, %s6, %s4
  $region1: #{csp_block_forward.4} parent=0
    #allocation4 [shape = 'u8[131072]{0}', space=vmem, size = 0x20000, scoped, tag = 'input window, operand 0']
    #allocation5 [shape = 's32[2]{0}', space=sflag, size = 0x8, scoped, tag = 'scoped memory for csp_block_forward.4']
    #allocation6 [shape = 's32[2]{0}', space=sflag, size = 0x8, scoped, tag = 'scoped memory for csp_block_forward.4']
    #allocation7 [shape = 'u8[65536]{0}', space=vmem, size = 0x10000, scoped, tag = 'input window, operand 1, single buffered']
    #allocation8 [shape = 's32[1]{0}', space=sflag, size = 0x4, scoped, tag = 'scoped memory for csp_block_forward.4']
    #allocation9 [shape = 'u8[589824]{0}', space=vmem, size = 0x90000, scoped, tag = 'input window, operand 2, single buffered']
    #allocation10 [shape = 'u8[131072]{0}', space=vmem, size = 0x20000, scoped, tag = 'output window, operand 0']
    %8 = vsyncpa [#allocation5], 0
    %s9 = scalar_lea.sflag [#allocation5], 1
    %10 = vsyncpa %s9, 0
    %11 = vsyncpa [#allocation8], 0
    %12 = vsyncpa [#allocation6], 0
    %s13 = scalar_lea.sflag [#allocation6], 1
    %14 = vsyncpa %s13, 0
    loop: start=0, step=1, limit=4
    $region2: #{csp_block_forward.4} parent=1 // loop_pre_header
      _
    $region3: #{csp_block_forward.4} parent=1 // loop_header
      %s16 = sphi 0, %s20
      %p17 = scmp.ge.s32.totalorder %s16, 4
      %s26 = sphi 0, %s28
      %s29 = sphi 0, %s26
      %s30 = sphi 0, %s29
      %s46 = sphi 0, %s30
      %s50 = sphi 0, %s50
      %s52 = sphi 0, %s50
      %s53 = sphi 0, %s52
      %s67 = sphi 0, %s53
      %s71 = sphi 0, %s71
      %s73 = sphi 0, %s71
      %s74 = sphi 0, %s73
      %s88 = sphi 0, %s74
      %s94 = sphi 0, %s96
      %s97 = sphi 0, %s94
      %s98 = sphi 0, %s97
      %s114 = sphi 0, %s98
    $region4: #{csp_block_forward.4} parent=1 // loop_header_branch
      %19 = sbr.rel (%p17) target = $region8
    $region5: #{csp_block_forward.4} parent=1 // loop_body
      %s21 = ssub.s32 %s16, 1
      %s22 = ssub.s32 %s16, 2
      %s23 = sadd.s32 %s16, 1
      %s24 = ssub.s32 %s16, %s23
      %p25 = scmp.eq.s32.totalorder %s24, 0
      %s27 = sadd.s32 %s26, 1
      %s28 = scalar_select %p25, %s26, %s27
      %p31 = pneg %p25
      %p32 = scmp.eq.s32.totalorder %s16, 1
      %p33 = por %p31, %p32
      %p34 = scmp.ne.s32.totalorder %s26, %s29
      %p35 = scmp.eq.s32.totalorder %s16, 0
      %p36 = por %p34, %p35
      %p37 = scmp.ne.s32.totalorder %s26, %s29
      %p38 = scmp.eq.s32.totalorder %s21, 1
      %p39 = por %p37, %p38
      %p40 = scmp.ne.s32.totalorder %s29, %s30
      %p41 = scmp.eq.s32.totalorder %s21, 0
      %p42 = por %p40, %p41
      %p43 = scmp.ne.s32.totalorder %s29, %s30
      %p44 = scmp.eq.s32.totalorder %s22, 1
      %p45 = por %p43, %p44
      %p47 = scmp.ne.s32.totalorder %s30, %s46
      %p48 = scmp.eq.s32.totalorder %s22, 0
      %p49 = por %p47, %p48
      %s51 = sadd.s32 %s50, 1
      %p54 = scmp.eq.s32.totalorder %s16, 1
      %p55 = scmp.ne.s32.totalorder %s50, %s52
      %p56 = scmp.eq.s32.totalorder %s16, 0
      %p57 = por %p55, %p56
      %p58 = scmp.ne.s32.totalorder %s50, %s52
      %p59 = scmp.eq.s32.totalorder %s21, 1
      %p60 = por %p58, %p59
      %p61 = scmp.ne.s32.totalorder %s52, %s53
      %p62 = scmp.eq.s32.totalorder %s21, 0
      %p63 = por %p61, %p62
      %p64 = scmp.ne.s32.totalorder %s52, %s53
      %p65 = scmp.eq.s32.totalorder %s22, 1
      %p66 = por %p64, %p65
      %p68 = scmp.ne.s32.totalorder %s53, %s67
      %p69 = scmp.eq.s32.totalorder %s22, 0
      %p70 = por %p68, %p69
      %s72 = sadd.s32 %s71, 1
      %p75 = scmp.eq.s32.totalorder %s16, 1
      %p76 = scmp.ne.s32.totalorder %s71, %s73
      %p77 = scmp.eq.s32.totalorder %s16, 0
      %p78 = por %p76, %p77
      %p79 = scmp.ne.s32.totalorder %s71, %s73
      %p80 = scmp.eq.s32.totalorder %s21, 1
      %p81 = por %p79, %p80
      %p82 = scmp.ne.s32.totalorder %s73, %s74
      %p83 = scmp.eq.s32.totalorder %s21, 0
      %p84 = por %p82, %p83
      %p85 = scmp.ne.s32.totalorder %s73, %s74
      %p86 = scmp.eq.s32.totalorder %s22, 1
      %p87 = por %p85, %p86
      %p89 = scmp.ne.s32.totalorder %s74, %s88
      %p90 = scmp.eq.s32.totalorder %s22, 0
      %p91 = por %p89, %p90
      %s92 = ssub.s32 %s16, %s23
      %p93 = scmp.eq.s32.totalorder %s92, 0
      %s95 = sadd.s32 %s94, 1
      %s96 = scalar_select %p93, %s94, %s95
      %p99 = pneg %p93
      %p100 = scmp.eq.s32.totalorder %s16, 1
      %p101 = por %p99, %p100
      %p102 = scmp.ne.s32.totalorder %s94, %s97
      %p103 = scmp.eq.s32.totalorder %s16, 0
      %p104 = por %p102, %p103
      %p105 = scmp.ne.s32.totalorder %s94, %s97
      %p106 = scmp.eq.s32.totalorder %s21, 1
      %p107 = por %p105, %p106
      %p108 = scmp.ne.s32.totalorder %s97, %s98
      %p109 = scmp.eq.s32.totalorder %s21, 0
      %p110 = por %p108, %p109
      %p111 = scmp.ne.s32.totalorder %s97, %s98
      %p112 = scmp.eq.s32.totalorder %s22, 1
      %p113 = por %p111, %p112
      %p115 = scmp.ne.s32.totalorder %s98, %s114
      %p116 = scmp.eq.s32.totalorder %s22, 0
      %p117 = por %p115, %p116
      %p118 = scmp.le.s32.totalorder 1, %s16
      %p119 = scmp.lt.s32.totalorder %s16, 3
      %p120 = pnand %p118, %p119
      %p121 = pneg %p120
      // Predicated region
      $region9: #{csp_block_forward.4} parent=5 // pred_check
        _
      $region10: #{csp_block_forward.4} parent=5 // pred_check_branch
        %123 = sbr.rel (%p120) target = $region12
      $region11: #{csp_block_forward.4} parent=5 // pred_region
        %s124 = ssub.s32 %s16, 1
        // Predicated region
        $region13: #{csp_block_forward.4} parent=11 // pred_check
          %p125 = pneg %p63
        $region14: #{csp_block_forward.4} parent=11 // pred_check_branch
          %127 = sbr.rel (%p125) target = $region16
        $region15: #{csp_block_forward.4} parent=11 // pred_region
          %s129 = ssub.s32 2048, 2048
          %130 = vsyncadd [#allocation8], %s129
          %s131 = sshll.u32 [#allocation7], 4
          %s132 = int_to_ptr.vmem [resolvable:$true] %s131
          %137 = dma.hbm_to_vmem [thread:$0]  %s1, 2048, %s132, [#allocation8], 64, 64, 4
        $region16: #{csp_block_forward.4} parent=11 // pred_fallthru
          _
        // Predicated region
        $region17: #{csp_block_forward.4} parent=11 // pred_check
          %p138 = pneg %p84
        $region18: #{csp_block_forward.4} parent=11 // pred_check_branch
          %140 = sbr.rel (%p138) target = $region20
        $region19: #{csp_block_forward.4} parent=11 // pred_region
          %s142 = ssub.s32 18432, 18432
          %143 = vsyncadd [#allocation8], %s142
          %s144 = sshll.u32 [#allocation9], 4
          %s145 = int_to_ptr.vmem [resolvable:$true] %s144
          %150 = dma.hbm_to_vmem [thread:$0]  %s2, 18432, %s145, [#allocation8], 64, 64, 4
        $region20: #{csp_block_forward.4} parent=11 // pred_fallthru
          _
      $region12: #{csp_block_forward.4} parent=5 // pred_fallthru
        _
      %p151 = scmp.lt.s32.totalorder %s16, 2
      // Predicated region
      $region21: #{csp_block_forward.4} parent=5 // pred_check
        %p152 = pneg %p151
      $region22: #{csp_block_forward.4} parent=5 // pred_check_branch
        %154 = sbr.rel (%p152) target = $region24
      $region23: #{csp_block_forward.4} parent=5 // pred_region
        // Predicated region
        $region25: #{csp_block_forward.4} parent=23 // pred_check
          %p155 = pneg %p36
        $region26: #{csp_block_forward.4} parent=23 // pred_check_branch
          %157 = sbr.rel (%p155) target = $region28
        $region27: #{csp_block_forward.4} parent=23 // pred_region
          %s158 = sand.u32 %s26, 1
          %s159 = scalar_lea.sflag [#allocation5], %s158
          %s160 = sand.u32 %s26, 1
          %s161 = smul.addr %s160, 128
          %s162 = scalar_lea.vmem [#allocation4], %s161
          %s164 = ssub.s32 2048, 2048
          %165 = vsyncadd %s159, %s164
          %s166 = smul.addr %s16, 32
          %s167 = smul.addr %s166, 64
          %s168 = scalar_lea.hbm %s0, %s167
          %s169 = sshll.u32 %s162, 4
          %s170 = int_to_ptr.vmem [resolvable:$true] %s169
          %175 = dma.hbm_to_vmem [thread:$0]  %s168, 2048, %s170, %s159, 64, 64, 4
        $region28: #{csp_block_forward.4} parent=23 // pred_fallthru
          _
      $region24: #{csp_block_forward.4} parent=5 // pred_fallthru
        _
      %p176 = scmp.le.s32.totalorder 1, %s16
      %p177 = scmp.lt.s32.totalorder %s16, 3
      %p178 = pnand %p176, %p177
      %p179 = pneg %p178
      // Predicated region
      $region29: #{csp_block_forward.4} parent=5 // pred_check
        _
      $region30: #{csp_block_forward.4} parent=5 // pred_check_branch
        %181 = sbr.rel (%p178) target = $region32
      $region31: #{csp_block_forward.4} parent=5 // pred_region
        %s182 = ssub.s32 %s16, 1
        %s183 = sand.u32 %s29, 1
        %s184 = scalar_lea.sflag [#allocation5], %s183
        %s185 = sand.u32 %s29, 1
        %s186 = smul.addr %s185, 128
        %s187 = scalar_lea.vmem [#allocation4], %s186
        // Predicated region
        $region33: #{csp_block_forward.4} parent=31 // pred_check
          %p188 = pneg %p42
        $region34: #{csp_block_forward.4} parent=31 // pred_check_branch
          %190 = sbr.rel (%p188) target = $region36
        $region35: #{csp_block_forward.4} parent=31 // pred_region
          %191 = dma.done %s184, 2048
        $region36: #{csp_block_forward.4} parent=31 // pred_fallthru
          _
        // Predicated region
        $region37: #{csp_block_forward.4} parent=31 // pred_check
          %p192 = pneg %p63
        $region38: #{csp_block_forward.4} parent=31 // pred_check_branch
          %194 = sbr.rel (%p192) target = $region40
        $region39: #{csp_block_forward.4} parent=31 // pred_region
          %195 = dma.done [#allocation8], 2048
        $region40: #{csp_block_forward.4} parent=31 // pred_fallthru
          _
        // Predicated region
        $region41: #{csp_block_forward.4} parent=31 // pred_check
          %p196 = pneg %p84
        $region42: #{csp_block_forward.4} parent=31 // pred_check_branch
          %198 = sbr.rel (%p196) target = $region44
        $region43: #{csp_block_forward.4} parent=31 // pred_region
          %199 = dma.done [#allocation8], 18432
        $region44: #{csp_block_forward.4} parent=31 // pred_fallthru
          _
        %s200 = sand.u32 %s29, 1
        %s201 = scalar_lea.sflag [#allocation5], %s200
        %s202 = sand.u32 %s29, 1
        %s203 = smul.addr %s202, 128
        %s204 = scalar_lea.vmem [#allocation4], %s203
        %p205 = pneg %p42
        %p206 = pneg %p39
        %p207 = pneg %p63
        %p208 = pneg %p60
        %p209 = pneg %p84
        %p210 = pneg %p81
        %p211 = pneg %p110
        %p212 = pneg %p107
        %s213 = sand.u32 %s97, 1
        %s214 = scalar_lea.sflag [#allocation6], %s213
        %s215 = sand.u32 %s97, 1
        %s216 = smul.addr %s215, 128
        %s217 = scalar_lea.vmem [#allocation10], %s216
        %v219 = vld [vmem:[%s187] sm:$0xf]
        %v220 = vld [vmem:[%s187 + $0x4] sm:$0xf]
        %v221 = vld [vmem:[%s187 + $0x8] sm:$0xf]
        %v222 = vld [vmem:[%s187 + $0xc] sm:$0xf]
        %v223 = vld [vmem:[%s187 + $0x10] sm:$0xf]
        %v224 = vld [vmem:[%s187 + $0x14] sm:$0xf]
        %v225 = vld [vmem:[%s187 + $0x18] sm:$0xf]
        %v226 = vld [vmem:[%s187 + $0x1c] sm:$0xf]
        %v227 = vld [vmem:[%s187 + $0x20] sm:$0xf]
        %v228 = vld [vmem:[%s187 + $0x24] sm:$0xf]
        %v229 = vld [vmem:[%s187 + $0x28] sm:$0xf]
        %v230 = vld [vmem:[%s187 + $0x2c] sm:$0xf]
        %v231 = vld [vmem:[%s187 + $0x30] sm:$0xf]
        %v232 = vld [vmem:[%s187 + $0x34] sm:$0xf]
        %v233 = vld [vmem:[%s187 + $0x38] sm:$0xf]
        %v234 = vld [vmem:[%s187 + $0x3c] sm:$0xf]
        %v235 = vld [vmem:[%s187 + $0x40] sm:$0xf]
        %v236 = vld [vmem:[%s187 + $0x44] sm:$0xf]
        %v237 = vld [vmem:[%s187 + $0x48] sm:$0xf]
        %v238 = vld [vmem:[%s187 + $0x4c] sm:$0xf]
        %v239 = vld [vmem:[%s187 + $0x50] sm:$0xf]
        %v240 = vld [vmem:[%s187 + $0x54] sm:$0xf]
        %v241 = vld [vmem:[%s187 + $0x58] sm:$0xf]
        %v242 = vld [vmem:[%s187 + $0x5c] sm:$0xf]
        %v243 = vld [vmem:[%s187 + $0x60] sm:$0xf]
        %v244 = vld [vmem:[%s187 + $0x64] sm:$0xf]
        %v245 = vld [vmem:[%s187 + $0x68] sm:$0xf]
        %v246 = vld [vmem:[%s187 + $0x6c] sm:$0xf]
        %v247 = vld [vmem:[%s187 + $0x70] sm:$0xf]
        %v248 = vld [vmem:[%s187 + $0x74] sm:$0xf]
        %v249 = vld [vmem:[%s187 + $0x78] sm:$0xf]
        %v250 = vld [vmem:[%s187 + $0x7c] sm:$0xf]
        %v251 = vunpack.c.l.bf16 %v219
        %v252 = vunpack.c.l.bf16 %v220
        %v253 = vunpack.c.l.bf16 %v221
        %v254 = vunpack.c.l.bf16 %v222
        %v255 = vunpack.c.l.bf16 %v223
        %v256 = vunpack.c.l.bf16 %v224
        %v257 = vunpack.c.l.bf16 %v225
        %v258 = vunpack.c.l.bf16 %v226
        %v259 = vunpack.c.l.bf16 %v227
        %v260 = vunpack.c.l.bf16 %v228
        %v261 = vunpack.c.l.bf16 %v229
        %v262 = vunpack.c.l.bf16 %v230
        %v263 = vunpack.c.l.bf16 %v231
        %v264 = vunpack.c.l.bf16 %v232
        %v265 = vunpack.c.l.bf16 %v233
        %v266 = vunpack.c.l.bf16 %v234
        %v267 = vunpack.c.l.bf16 %v235
        %v268 = vunpack.c.l.bf16 %v236
        %v269 = vunpack.c.l.bf16 %v237
        %v270 = vunpack.c.l.bf16 %v238
        %v271 = vunpack.c.l.bf16 %v239
        %v272 = vunpack.c.l.bf16 %v240
        %v273 = vunpack.c.l.bf16 %v241
        %v274 = vunpack.c.l.bf16 %v242
        %v275 = vunpack.c.l.bf16 %v243
        %v276 = vunpack.c.l.bf16 %v244
        %v277 = vunpack.c.l.bf16 %v245
        %v278 = vunpack.c.l.bf16 %v246
        %v279 = vunpack.c.l.bf16 %v247
        %v280 = vunpack.c.l.bf16 %v248
        %v281 = vunpack.c.l.bf16 %v249
        %v282 = vunpack.c.l.bf16 %v250
        %283 = vst [vmem:[#allocation2] sm:$0xff] %v251
        %284 = vst [vmem:[#allocation2 + $0x8] sm:$0xff] %v252
        %285 = vst [vmem:[#allocation2 + $0x10] sm:$0xff] %v253
        %286 = vst [vmem:[#allocation2 + $0x18] sm:$0xff] %v254
        %287 = vst [vmem:[#allocation2 + $0x20] sm:$0xff] %v255
        %288 = vst [vmem:[#allocation2 + $0x28] sm:$0xff] %v256
        %289 = vst [vmem:[#allocation2 + $0x30] sm:$0xff] %v257
        %290 = vst [vmem:[#allocation2 + $0x38] sm:$0xff] %v258
        %291 = vst [vmem:[#allocation2 + $0x40] sm:$0xff] %v259
        %292 = vst [vmem:[#allocation2 + $0x48] sm:$0xff] %v260
        %293 = vst [vmem:[#allocation2 + $0x50] sm:$0xff] %v261
        %294 = vst [vmem:[#allocation2 + $0x58] sm:$0xff] %v262
        %295 = vst [vmem:[#allocation2 + $0x60] sm:$0xff] %v263
        %296 = vst [vmem:[#allocation2 + $0x68] sm:$0xff] %v264
        %297 = vst [vmem:[#allocation2 + $0x70] sm:$0xff] %v265
        %298 = vst [vmem:[#allocation2 + $0x78] sm:$0xff] %v266
        %299 = vst [vmem:[#allocation2 + $0x80] sm:$0xff] %v267
        %300 = vst [vmem:[#allocation2 + $0x88] sm:$0xff] %v268
        %301 = vst [vmem:[#allocation2 + $0x90] sm:$0xff] %v269
        %302 = vst [vmem:[#allocation2 + $0x98] sm:$0xff] %v270
        %303 = vst [vmem:[#allocation2 + $0xa0] sm:$0xff] %v271
        %304 = vst [vmem:[#allocation2 + $0xa8] sm:$0xff] %v272
        %305 = vst [vmem:[#allocation2 + $0xb0] sm:$0xff] %v273
        %306 = vst [vmem:[#allocation2 + $0xb8] sm:$0xff] %v274
        %307 = vst [vmem:[#allocation2 + $0xc0] sm:$0xff] %v275
        %308 = vst [vmem:[#allocation2 + $0xc8] sm:$0xff] %v276
        %309 = vst [vmem:[#allocation2 + $0xd0] sm:$0xff] %v277
        %310 = vst [vmem:[#allocation2 + $0xd8] sm:$0xff] %v278
        %311 = vst [vmem:[#allocation2 + $0xe0] sm:$0xff] %v279
        %312 = vst [vmem:[#allocation2 + $0xe8] sm:$0xff] %v280
        %313 = vst [vmem:[#allocation2 + $0xf0] sm:$0xff] %v281
        %314 = vst [vmem:[#allocation2 + $0xf8] sm:$0xff] %v282
        %315 = vst [vmem:[#allocation3] sm:$0xff] 0
        %s316 = scalar_lea.vmem [#allocation3], 136
        %317 = vst [vmem:[%s316] sm:$0xff] 0
        %v318 = vlaneseq
        %v319 = vshrl.u32 %v318, 7
        %v320 = vadd.s32 %v319, 8
        %vm321 = vcmp.gt.s32.totalorder %v319, 0
        %vm322 = vcmp.gt.s32.totalorder %v320, 0
        %vm323 = vcmp.lt.s32.totalorder %v319, 15
        %vm324 = vcmp.lt.s32.totalorder %v320, 15
        %v325 = vld [vmem:[#allocation2] sm:$0xff]
        %v326 = vld [vmem:[#allocation2 + $0x8] sm:$0xff]
        %v327 = vld [vmem:[#allocation2 + $0x10] sm:$0xff]
        %v328 = vld [vmem:[#allocation2 + $0x18] sm:$0xff]
        %v329 = vld [vmem:[#allocation2 + $0x20] sm:$0xff]
        %v330 = vld [vmem:[#allocation2 + $0x28] sm:$0xff]
        %v331 = vld [vmem:[#allocation2 + $0x30] sm:$0xff]
        %v332 = vld [vmem:[#allocation2 + $0x38] sm:$0xff]
        %v333 = vld [vmem:[#allocation2 + $0x40] sm:$0xff]
        %v334 = vld [vmem:[#allocation2 + $0x48] sm:$0xff]
        %v335 = vld [vmem:[#allocation2 + $0x50] sm:$0xff]
        %v336 = vld [vmem:[#allocation2 + $0x58] sm:$0xff]
        %v337 = vld [vmem:[#allocation2 + $0x60] sm:$0xff]
        %v338 = vld [vmem:[#allocation2 + $0x68] sm:$0xff]
        %v339 = vld [vmem:[#allocation2 + $0x70] sm:$0xff]
        %v340 = vld [vmem:[#allocation2 + $0x78] sm:$0xff]
        %v341 = vld [vmem:[#allocation2 + $0x80] sm:$0xff]
        %v342 = vld [vmem:[#allocation2 + $0x88] sm:$0xff]
        %v343 = vld [vmem:[#allocation2 + $0x90] sm:$0xff]
        %v344 = vld [vmem:[#allocation2 + $0x98] sm:$0xff]
        %v345 = vld [vmem:[#allocation2 + $0xa0] sm:$0xff]
        %v346 = vld [vmem:[#allocation2 + $0xa8] sm:$0xff]
        %v347 = vld [vmem:[#allocation2 + $0xb0] sm:$0xff]
        %v348 = vld [vmem:[#allocation2 + $0xb8] sm:$0xff]
        %v349 = vld [vmem:[#allocation2 + $0xc0] sm:$0xff]
        %v350 = vld [vmem:[#allocation2 + $0xc8] sm:$0xff]
        %v351 = vld [vmem:[#allocation2 + $0xd0] sm:$0xff]
        %v352 = vld [vmem:[#allocation2 + $0xd8] sm:$0xff]
        %v353 = vld [vmem:[#allocation2 + $0xe0] sm:$0xff]
        %v354 = vld [vmem:[#allocation2 + $0xe8] sm:$0xff]
        %v355 = vld [vmem:[#allocation2 + $0xf0] sm:$0xff]
        %v356 = vld [vmem:[#allocation2 + $0xf8] sm:$0xff]
        %v357 = vpack.c.bf16 %v326, %v325
        %v358 = vpack.c.bf16 %v328, %v327
        %v359 = vpack.c.bf16 %v330, %v329
        %v360 = vpack.c.bf16 %v332, %v331
        %v361 = vpack.c.bf16 %v334, %v333
        %v362 = vpack.c.bf16 %v336, %v335
        %v363 = vpack.c.bf16 %v338, %v337
        %v364 = vpack.c.bf16 %v340, %v339
        %v365 = vpack.c.bf16 %v342, %v341
        %v366 = vpack.c.bf16 %v344, %v343
        %v367 = vpack.c.bf16 %v346, %v345
        %v368 = vpack.c.bf16 %v348, %v347
        %v369 = vpack.c.bf16 %v350, %v349
        %v370 = vpack.c.bf16 %v352, %v351
        %v371 = vpack.c.bf16 %v354, %v353
        %v372 = vpack.c.bf16 %v356, %v355
        %v373 = vld [vmem:[#allocation7] sm:$0xf]
        %v374 = vld [vmem:[#allocation7 + $0x4] sm:$0xf]
        %v375 = vld [vmem:[#allocation7 + $0x8] sm:$0xf]
        %v376 = vld [vmem:[#allocation7 + $0xc] sm:$0xf]
        %v377 = vld [vmem:[#allocation7 + $0x10] sm:$0xf]
        %v378 = vld [vmem:[#allocation7 + $0x14] sm:$0xf]
        %v379 = vld [vmem:[#allocation7 + $0x18] sm:$0xf]
        %v380 = vld [vmem:[#allocation7 + $0x1c] sm:$0xf]
        %v381 = vld [vmem:[#allocation7 + $0x20] sm:$0xf]
        %v382 = vld [vmem:[#allocation7 + $0x24] sm:$0xf]
        %v383 = vld [vmem:[#allocation7 + $0x28] sm:$0xf]
        %v384 = vld [vmem:[#allocation7 + $0x2c] sm:$0xf]
        %v385 = vld [vmem:[#allocation7 + $0x30] sm:$0xf]
        %v386 = vld [vmem:[#allocation7 + $0x34] sm:$0xf]
        %v387 = vld [vmem:[#allocation7 + $0x38] sm:$0xf]
        %v388 = vld [vmem:[#allocation7 + $0x3c] sm:$0xf]
        %v405 = vunpack.c.l.b16 %v373
        %v406 = vunpack.c.l.b16 %v374
        %v407 = vunpack.c.l.b16 %v375
        %v408 = vunpack.c.l.b16 %v376
        %v409 = vunpack.c.l.b16 %v377
        %v410 = vunpack.c.l.b16 %v378
        %v411 = vunpack.c.l.b16 %v379
        %v412 = vunpack.c.l.b16 %v380
        %v413 = vunpack.c.l.b16 %v381
        %v414 = vunpack.c.l.b16 %v382
        %v415 = vunpack.c.l.b16 %v383
        %v416 = vunpack.c.l.b16 %v384
        %v417 = vunpack.c.l.b16 %v385
        %v418 = vunpack.c.l.b16 %v386
        %v419 = vunpack.c.l.b16 %v387
        %v420 = vunpack.c.l.b16 %v388
        %v421 = vpack.c.b16 %v406, %v405
        %v422 = vpack.c.b16 %v408, %v407
        %v423 = vpack.c.b16 %v410, %v409
        %v424 = vpack.c.b16 %v412, %v411
        %v425 = vpack.c.b16 %v414, %v413
        %v426 = vpack.c.b16 %v416, %v415
        %v427 = vpack.c.b16 %v418, %v417
        %v428 = vpack.c.b16 %v420, %v419
        %437 = vmatprep.subr.bf16.mxu0 0
        %438 = vmatpush1.bf16.msra.mxu0 %v421
        %439 = vmatprep.subr.bf16.mxu0 0
        %440 = vmatpush1.bf16.msra.mxu0 %v422
        %441 = vmatprep.subr.bf16.mxu0 0
        %442 = vmatpush1.bf16.msra.mxu0 %v423
        %443 = vmatprep.subr.bf16.mxu0 0
        %444 = vmatpush1.bf16.msra.mxu0 %v424
        %445 = vmatprep.subr.bf16.mxu0 0
        %446 = vmatpush1.bf16.msra.mxu0 %v425
        %447 = vmatprep.subr.bf16.mxu0 0
        %448 = vmatpush1.bf16.msra.mxu0 %v426
        %449 = vmatprep.subr.bf16.mxu0 0
        %450 = vmatpush1.bf16.msra.mxu0 %v427
        %451 = vmatprep.subr.bf16.mxu0 0
        %452 = vmatpush1.bf16.msra.mxu0 %v428
        %453 = vmatprep.subr.bf16.mxu0 0
        %454 = vmatpush1.bf16.msra.mxu0 0
        %455 = vmatprep.subr.bf16.mxu0 0
        %456 = vmatpush1.bf16.msra.mxu0 0
        %457 = vmatprep.subr.bf16.mxu0 0
        %458 = vmatpush1.bf16.msra.mxu0 0
        %459 = vmatprep.subr.bf16.mxu0 0
        %460 = vmatpush1.bf16.msra.mxu0 0
        %461 = vmatprep.subr.bf16.mxu0 0
        %462 = vmatpush1.bf16.msra.mxu0 0
        %463 = vmatprep.subr.bf16.mxu0 0
        %464 = vmatpush1.bf16.msra.mxu0 0
        %465 = vmatprep.subr.bf16.mxu0 0
        %466 = vmatpush1.bf16.msra.mxu0 0
        %467 = vmatprep.subr.bf16.mxu0 0
        %468 = vmatpush1.bf16.msra.mxu0 0
        %469 = vmatprep.mubr.bf16.mxu0 0
        %470 = vmatmul.mubr.bf16.gmra.mrb[0].mxu0 %v357
        %v471 = vpop.f32.mrb[0].mxu0
        %v472 = vadd.f32 0.0, %v471
        %v473 = vpop.f32.mrb[0].mxu0
        %v474 = vpop.f32.mrb[0].mxu0
        %v475 = vadd.f32 0.0, %v474
        %v476 = vpop.f32.mrb[0].mxu0
        %477 = vmatprep.mubr.bf16.mxu0 0
        %478 = vmatmul.mubr.bf16.gmra.mrb[0].mxu0 %v358
        %v479 = vpop.f32.mrb[0].mxu0
        %v480 = vadd.f32 0.0, %v479
        %v481 = vpop.f32.mrb[0].mxu0
        %v482 = vpop.f32.mrb[0].mxu0
        %v483 = vadd.f32 0.0, %v482
        %v484 = vpop.f32.mrb[0].mxu0
        %485 = vmatprep.mubr.bf16.mxu0 0
        %486 = vmatmul.mubr.bf16.gmra.mrb[0].mxu0 %v359
        %v487 = vpop.f32.mrb[0].mxu0
        %v488 = vadd.f32 0.0, %v487
        %v489 = vpop.f32.mrb[0].mxu0
        %v490 = vpop.f32.mrb[0].mxu0
        %v491 = vadd.f32 0.0, %v490
        %v492 = vpop.f32.mrb[0].mxu0
        %493 = vmatprep.mubr.bf16.mxu0 0
        %494 = vmatmul.mubr.bf16.gmra.mrb[0].mxu0 %v360
        %v495 = vpop.f32.mrb[0].mxu0
        %v496 = vadd.f32 0.0, %v495
        %v497 = vpop.f32.mrb[0].mxu0
        %v498 = vpop.f32.mrb[0].mxu0
        %v499 = vadd.f32 0.0, %v498
        %v500 = vpop.f32.mrb[0].mxu0
        %501 = vmatprep.mubr.bf16.mxu0 0
        %502 = vmatmul.mubr.bf16.gmra.mrb[0].mxu0 %v361
        %v503 = vpop.f32.mrb[0].mxu0
        %v504 = vadd.f32 0.0, %v503
        %v505 = vpop.f32.mrb[0].mxu0
        %v506 = vpop.f32.mrb[0].mxu0
        %v507 = vadd.f32 0.0, %v506
        %v508 = vpop.f32.mrb[0].mxu0
        %509 = vmatprep.mubr.bf16.mxu0 0
        %510 = vmatmul.mubr.bf16.gmra.mrb[0].mxu0 %v362
        %v511 = vpop.f32.mrb[0].mxu0
        %v512 = vadd.f32 0.0, %v511
        %v513 = vpop.f32.mrb[0].mxu0
        %v514 = vpop.f32.mrb[0].mxu0
        %v515 = vadd.f32 0.0, %v514
        %v516 = vpop.f32.mrb[0].mxu0
        %517 = vmatprep.mubr.bf16.mxu0 0
        %518 = vmatmul.mubr.bf16.gmra.mrb[0].mxu0 %v363
        %v519 = vpop.f32.mrb[0].mxu0
        %v520 = vadd.f32 0.0, %v519
        %v521 = vpop.f32.mrb[0].mxu0
        %v522 = vpop.f32.mrb[0].mxu0
        %v523 = vadd.f32 0.0, %v522
        %v524 = vpop.f32.mrb[0].mxu0
        %525 = vmatprep.mubr.bf16.mxu0 0
        %526 = vmatmul.mubr.bf16.gmra.mrb[0].mxu0 %v364
        %v527 = vpop.f32.mrb[0].mxu0
        %v528 = vadd.f32 0.0, %v527
        %v529 = vpop.f32.mrb[0].mxu0
        %v530 = vpop.f32.mrb[0].mxu0
        %v531 = vadd.f32 0.0, %v530
        %v532 = vpop.f32.mrb[0].mxu0
        %533 = vmatprep.mubr.bf16.mxu0 0
        %534 = vmatmul.mubr.bf16.gmra.mrb[0].mxu0 %v365
        %v535 = vpop.f32.mrb[0].mxu0
        %v536 = vadd.f32 0.0, %v535
        %v537 = vpop.f32.mrb[0].mxu0
        %v538 = vpop.f32.mrb[0].mxu0
        %v539 = vadd.f32 0.0, %v538
        %v540 = vpop.f32.mrb[0].mxu0
        %541 = vmatprep.mubr.bf16.mxu0 0
        %542 = vmatmul.mubr.bf16.gmra.mrb[0].mxu0 %v366
        %v543 = vpop.f32.mrb[0].mxu0
        %v544 = vadd.f32 0.0, %v543
        %v545 = vpop.f32.mrb[0].mxu0
        %v546 = vpop.f32.mrb[0].mxu0
        %v547 = vadd.f32 0.0, %v546
        %v548 = vpop.f32.mrb[0].mxu0
        %549 = vmatprep.mubr.bf16.mxu0 0
        %550 = vmatmul.mubr.bf16.gmra.mrb[0].mxu0 %v367
        %v551 = vpop.f32.mrb[0].mxu0
        %v552 = vadd.f32 0.0, %v551
        %v553 = vpop.f32.mrb[0].mxu0
        %v554 = vpop.f32.mrb[0].mxu0
        %v555 = vadd.f32 0.0, %v554
        %v556 = vpop.f32.mrb[0].mxu0
        %557 = vmatprep.mubr.bf16.mxu0 0
        %558 = vmatmul.mubr.bf16.gmra.mrb[0].mxu0 %v368
        %v559 = vpop.f32.mrb[0].mxu0
        %v560 = vadd.f32 0.0, %v559
        %v561 = vpop.f32.mrb[0].mxu0
        %v562 = vpop.f32.mrb[0].mxu0
        %v563 = vadd.f32 0.0, %v562
        %v564 = vpop.f32.mrb[0].mxu0
        %565 = vmatprep.mubr.bf16.mxu0 0
        %566 = vmatmul.mubr.bf16.gmra.mrb[0].mxu0 %v369
        %v567 = vpop.f32.mrb[0].mxu0
        %v568 = vadd.f32 0.0, %v567
        %v569 = vpop.f32.mrb[0].mxu0
        %v570 = vpop.f32.mrb[0].mxu0
        %v571 = vadd.f32 0.0, %v570
        %v572 = vpop.f32.mrb[0].mxu0
        %573 = vmatprep.mubr.bf16.mxu0 0
        %574 = vmatmul.mubr.bf16.gmra.mrb[0].mxu0 %v370
        %v575 = vpop.f32.mrb[0].mxu0
        %v576 = vadd.f32 0.0, %v575
        %v577 = vpop.f32.mrb[0].mxu0
        %v578 = vpop.f32.mrb[0].mxu0
        %v579 = vadd.f32 0.0, %v578
        %v580 = vpop.f32.mrb[0].mxu0
        %581 = vmatprep.mubr.bf16.mxu0 0
        %582 = vmatmul.mubr.bf16.gmra.mrb[0].mxu0 %v371
        %v583 = vpop.f32.mrb[0].mxu0
        %v584 = vadd.f32 0.0, %v583
        %v585 = vpop.f32.mrb[0].mxu0
        %v586 = vpop.f32.mrb[0].mxu0
        %v587 = vadd.f32 0.0, %v586
        %v588 = vpop.f32.mrb[0].mxu0
        %589 = vmatprep.mubr.bf16.mxu0 0
        %590 = vmatmul.mubr.bf16.gmra.mrb[0].mxu0 %v372
        %v591 = vpop.f32.mrb[0].mxu0
        %v592 = vadd.f32 0.0, %v591
        %v593 = vpop.f32.mrb[0].mxu0
        %v594 = vpop.f32.mrb[0].mxu0
        %v595 = vadd.f32 0.0, %v594
        %v596 = vpop.f32.mrb[0].mxu0
        %597 = vdwg.mxu0
        %v598 = vmax.f32 %v472, 0.0
        %v599 = vmax.f32 %v475, 0.0
        %v600 = vmax.f32 %v480, 0.0
        %v601 = vmax.f32 %v483, 0.0
        %v602 = vmax.f32 %v488, 0.0
        %v603 = vmax.f32 %v491, 0.0
        %v604 = vmax.f32 %v496, 0.0
        %v605 = vmax.f32 %v499, 0.0
        %v606 = vmax.f32 %v504, 0.0
        %v607 = vmax.f32 %v507, 0.0
        %v608 = vmax.f32 %v512, 0.0
        %v609 = vmax.f32 %v515, 0.0
        %v610 = vmax.f32 %v520, 0.0
        %v611 = vmax.f32 %v523, 0.0
        %v612 = vmax.f32 %v528, 0.0
        %v613 = vmax.f32 %v531, 0.0
        %v614 = vmax.f32 %v536, 0.0
        %v615 = vmax.f32 %v539, 0.0
        %v616 = vmax.f32 %v544, 0.0
        %v617 = vmax.f32 %v547, 0.0
        %v618 = vmax.f32 %v552, 0.0
        %v619 = vmax.f32 %v555, 0.0
        %v620 = vmax.f32 %v560, 0.0
        %v621 = vmax.f32 %v563, 0.0
        %v622 = vmax.f32 %v568, 0.0
        %v623 = vmax.f32 %v571, 0.0
        %v624 = vmax.f32 %v576, 0.0
        %v625 = vmax.f32 %v579, 0.0
        %v626 = vmax.f32 %v584, 0.0
        %v627 = vmax.f32 %v587, 0.0
        %v628 = vmax.f32 %v592, 0.0
        %v629 = vmax.f32 %v595, 0.0
        %v630 = vpack.c.bf16 %v599, %v598
        %v631 = vpack.c.bf16 %v601, %v600
        %v632 = vpack.c.bf16 %v603, %v602
        %v633 = vpack.c.bf16 %v605, %v604
        %v634 = vpack.c.bf16 %v607, %v606
        %v635 = vpack.c.bf16 %v609, %v608
        %v636 = vpack.c.bf16 %v611, %v610
        %v637 = vpack.c.bf16 %v613, %v612
        %v638 = vpack.c.bf16 %v615, %v614
        %v639 = vpack.c.bf16 %v617, %v616
        %v640 = vpack.c.bf16 %v619, %v618
        %v641 = vpack.c.bf16 %v621, %v620
        %v642 = vpack.c.bf16 %v623, %v622
        %v643 = vpack.c.bf16 %v625, %v624
        %v644 = vpack.c.bf16 %v627, %v626
        %v645 = vpack.c.bf16 %v629, %v628
        %s646 = scalar_lea.vmem [#allocation3], 8
        %647 = vst [vmem:[%s646] sm:$0xff] %v630
        %648 = vst [vmem:[%s646 + $0x8] sm:$0xff] %v631
        %649 = vst [vmem:[%s646 + $0x10] sm:$0xff] %v632
        %650 = vst [vmem:[%s646 + $0x18] sm:$0xff] %v633
        %651 = vst [vmem:[%s646 + $0x20] sm:$0xff] %v634
        %652 = vst [vmem:[%s646 + $0x28] sm:$0xff] %v635
        %653 = vst [vmem:[%s646 + $0x30] sm:$0xff] %v636
        %654 = vst [vmem:[%s646 + $0x38] sm:$0xff] %v637
        %655 = vst [vmem:[%s646 + $0x40] sm:$0xff] %v638
        %656 = vst [vmem:[%s646 + $0x48] sm:$0xff] %v639
        %657 = vst [vmem:[%s646 + $0x50] sm:$0xff] %v640
        %658 = vst [vmem:[%s646 + $0x58] sm:$0xff] %v641
        %659 = vst [vmem:[%s646 + $0x60] sm:$0xff] %v642
        %660 = vst [vmem:[%s646 + $0x68] sm:$0xff] %v643
        %661 = vst [vmem:[%s646 + $0x70] sm:$0xff] %v644
        %662 = vst [vmem:[%s646 + $0x78] sm:$0xff] %v645
        %v663 = vld [vmem:[#allocation3] sm:$0xff]
        %v664 = vld [vmem:[#allocation3 + $0x8] sm:$0xff]
        %v665 = vld [vmem:[#allocation3 + $0x10] sm:$0xff]
        %v666 = vld [vmem:[#allocation3 + $0x18] sm:$0xff]
        %v667 = vld [vmem:[#allocation3 + $0x20] sm:$0xff]
        %v668 = vld [vmem:[#allocation3 + $0x28] sm:$0xff]
        %v669 = vld [vmem:[#allocation3 + $0x30] sm:$0xff]
        %v670 = vld [vmem:[#allocation3 + $0x38] sm:$0xff]
        %v671 = vld [vmem:[#allocation3 + $0x40] sm:$0xff]
        %v672 = vld [vmem:[#allocation3 + $0x48] sm:$0xff]
        %v673 = vld [vmem:[#allocation3 + $0x50] sm:$0xff]
        %v674 = vld [vmem:[#allocation3 + $0x58] sm:$0xff]
        %v675 = vld [vmem:[#allocation3 + $0x60] sm:$0xff]
        %v676 = vld [vmem:[#allocation3 + $0x68] sm:$0xff]
        %v677 = vld [vmem:[#allocation3 + $0x70] sm:$0xff]
        %v678 = vld [vmem:[#allocation3 + $0x78] sm:$0xff]
        %v679 = vld [vmem:[%s646] sm:$0xff]
        %v680 = vld [vmem:[%s646 + $0x8] sm:$0xff]
        %v681 = vld [vmem:[%s646 + $0x10] sm:$0xff]
        %v682 = vld [vmem:[%s646 + $0x18] sm:$0xff]
        %v683 = vld [vmem:[%s646 + $0x20] sm:$0xff]
        %v684 = vld [vmem:[%s646 + $0x28] sm:$0xff]
        %v685 = vld [vmem:[%s646 + $0x30] sm:$0xff]
        %v686 = vld [vmem:[%s646 + $0x38] sm:$0xff]
        %v687 = vld [vmem:[%s646 + $0x40] sm:$0xff]
        %v688 = vld [vmem:[%s646 + $0x48] sm:$0xff]
        %v689 = vld [vmem:[%s646 + $0x50] sm:$0xff]
        %v690 = vld [vmem:[%s646 + $0x58] sm:$0xff]
        %v691 = vld [vmem:[%s646 + $0x60] sm:$0xff]
        %v692 = vld [vmem:[%s646 + $0x68] sm:$0xff]
        %v693 = vld [vmem:[%s646 + $0x70] sm:$0xff]
        %v694 = vld [vmem:[%s646 + $0x78] sm:$0xff]
        %s695 = scalar_lea.vmem [#allocation3], 16
        %v696 = vld [vmem:[%s695] sm:$0xff]
        %v697 = vld [vmem:[%s695 + $0x8] sm:$0xff]
        %v698 = vld [vmem:[%s695 + $0x10] sm:$0xff]
        %v699 = vld [vmem:[%s695 + $0x18] sm:$0xff]
        %v700 = vld [vmem:[%s695 + $0x20] sm:$0xff]
        %v701 = vld [vmem:[%s695 + $0x28] sm:$0xff]
        %v702 = vld [vmem:[%s695 + $0x30] sm:$0xff]
        %v703 = vld [vmem:[%s695 + $0x38] sm:$0xff]
        %v704 = vld [vmem:[%s695 + $0x40] sm:$0xff]
        %v705 = vld [vmem:[%s695 + $0x48] sm:$0xff]
        %v706 = vld [vmem:[%s695 + $0x50] sm:$0xff]
        %v707 = vld [vmem:[%s695 + $0x58] sm:$0xff]
        %v708 = vld [vmem:[%s695 + $0x60] sm:$0xff]
        %v709 = vld [vmem:[%s695 + $0x68] sm:$0xff]
        %v710 = vld [vmem:[%s695 + $0x70] sm:$0xff]
        %v711 = vld [vmem:[%s695 + $0x78] sm:$0xff]
        %v712 = vld [vmem:[#allocation2] sm:$0xff]
        %v713 = vld [vmem:[#allocation2 + $0x8] sm:$0xff]
        %v714 = vld [vmem:[#allocation2 + $0x10] sm:$0xff]
        %v715 = vld [vmem:[#allocation2 + $0x18] sm:$0xff]
        %v716 = vld [vmem:[#allocation2 + $0x20] sm:$0xff]
        %v717 = vld [vmem:[#allocation2 + $0x28] sm:$0xff]
        %v718 = vld [vmem:[#allocation2 + $0x30] sm:$0xff]
        %v719 = vld [vmem:[#allocation2 + $0x38] sm:$0xff]
        %v720 = vld [vmem:[#allocation2 + $0x40] sm:$0xff]
        %v721 = vld [vmem:[#allocation2 + $0x48] sm:$0xff]
        %v722 = vld [vmem:[#allocation2 + $0x50] sm:$0xff]
        %v723 = vld [vmem:[#allocation2 + $0x58] sm:$0xff]
        %v724 = vld [vmem:[#allocation2 + $0x60] sm:$0xff]
        %v725 = vld [vmem:[#allocation2 + $0x68] sm:$0xff]
        %v726 = vld [vmem:[#allocation2 + $0x70] sm:$0xff]
        %v727 = vld [vmem:[#allocation2 + $0x78] sm:$0xff]
        %v728 = vld [vmem:[#allocation2 + $0x80] sm:$0xff]
        %v729 = vld [vmem:[#allocation2 + $0x88] sm:$0xff]
        %v730 = vld [vmem:[#allocation2 + $0x90] sm:$0xff]
        %v731 = vld [vmem:[#allocation2 + $0x98] sm:$0xff]
        %v732 = vld [vmem:[#allocation2 + $0xa0] sm:$0xff]
        %v733 = vld [vmem:[#allocation2 + $0xa8] sm:$0xff]
        %v734 = vld [vmem:[#allocation2 + $0xb0] sm:$0xff]
        %v735 = vld [vmem:[#allocation2 + $0xb8] sm:$0xff]
        %v736 = vld [vmem:[#allocation2 + $0xc0] sm:$0xff]
        %v737 = vld [vmem:[#allocation2 + $0xc8] sm:$0xff]
        %v738 = vld [vmem:[#allocation2 + $0xd0] sm:$0xff]
        %v739 = vld [vmem:[#allocation2 + $0xd8] sm:$0xff]
        %v740 = vld [vmem:[#allocation2 + $0xe0] sm:$0xff]
        %v741 = vld [vmem:[#allocation2 + $0xe8] sm:$0xff]
        %v742 = vld [vmem:[#allocation2 + $0xf0] sm:$0xff]
        %v743 = vld [vmem:[#allocation2 + $0xf8] sm:$0xff]
        %v744 = vld [vmem:[#allocation9] sm:$0xf]
        %v745 = vld [vmem:[#allocation9 + $0x4] sm:$0xf]
        %v746 = vld [vmem:[#allocation9 + $0x8] sm:$0xf]
        %v747 = vld [vmem:[#allocation9 + $0xc] sm:$0xf]
        %v748 = vld [vmem:[#allocation9 + $0x10] sm:$0xf]
        %v749 = vld [vmem:[#allocation9 + $0x14] sm:$0xf]
        %v750 = vld [vmem:[#allocation9 + $0x18] sm:$0xf]
        %v751 = vld [vmem:[#allocation9 + $0x1c] sm:$0xf]
        %v752 = vld [vmem:[#allocation9 + $0x20] sm:$0xf]
        %v753 = vld [vmem:[#allocation9 + $0x24] sm:$0xf]
        %v754 = vld [vmem:[#allocation9 + $0x28] sm:$0xf]
        %v755 = vld [vmem:[#allocation9 + $0x2c] sm:$0xf]
        %v756 = vld [vmem:[#allocation9 + $0x30] sm:$0xf]
        %v757 = vld [vmem:[#allocation9 + $0x34] sm:$0xf]
        %v758 = vld [vmem:[#allocation9 + $0x38] sm:$0xf]
        %v759 = vld [vmem:[#allocation9 + $0x3c] sm:$0xf]
        %v760 = vld [vmem:[#allocation9 + $0x40] sm:$0xf]
        %v761 = vld [vmem:[#allocation9 + $0x44] sm:$0xf]
        %v762 = vld [vmem:[#allocation9 + $0x48] sm:$0xf]
        %v763 = vld [vmem:[#allocation9 + $0x4c] sm:$0xf]
        %v764 = vld [vmem:[#allocation9 + $0x50] sm:$0xf]
        %v765 = vld [vmem:[#allocation9 + $0x54] sm:$0xf]
        %v766 = vld [vmem:[#allocation9 + $0x58] sm:$0xf]
        %v767 = vld [vmem:[#allocation9 + $0x5c] sm:$0xf]
        %v768 = vld [vmem:[#allocation9 + $0x60] sm:$0xf]
        %v769 = vld [vmem:[#allocation9 + $0x64] sm:$0xf]
        %v770 = vld [vmem:[#allocation9 + $0x68] sm:$0xf]
        %v771 = vld [vmem:[#allocation9 + $0x6c] sm:$0xf]
        %v772 = vld [vmem:[#allocation9 + $0x70] sm:$0xf]
        %v773 = vld [vmem:[#allocation9 + $0x74] sm:$0xf]
        %v774 = vld [vmem:[#allocation9 + $0x78] sm:$0xf]
        %v775 = vld [vmem:[#allocation9 + $0x7c] sm:$0xf]
        %v776 = vld [vmem:[#allocation9 + $0x80] sm:$0xf]
        %v777 = vld [vmem:[#allocation9 + $0x84] sm:$0xf]
        %v778 = vld [vmem:[#allocation9 + $0x88] sm:$0xf]
        %v779 = vld [vmem:[#allocation9 + $0x8c] sm:$0xf]
        %v780 = vld [vmem:[#allocation9 + $0x90] sm:$0xf]
        %v781 = vld [vmem:[#allocation9 + $0x94] sm:$0xf]
        %v782 = vld [vmem:[#allocation9 + $0x98] sm:$0xf]
        %v783 = vld [vmem:[#allocation9 + $0x9c] sm:$0xf]
        %v784 = vld [vmem:[#allocation9 + $0xa0] sm:$0xf]
        %v785 = vld [vmem:[#allocation9 + $0xa4] sm:$0xf]
        %v786 = vld [vmem:[#allocation9 + $0xa8] sm:$0xf]
        %v787 = vld [vmem:[#allocation9 + $0xac] sm:$0xf]
        %v788 = vld [vmem:[#allocation9 + $0xb0] sm:$0xf]
        %v789 = vld [vmem:[#allocation9 + $0xb4] sm:$0xf]
        %v790 = vld [vmem:[#allocation9 + $0xb8] sm:$0xf]
        %v791 = vld [vmem:[#allocation9 + $0xbc] sm:$0xf]
        %v840 = vunpack.c.l.b16 %v744
        %v841 = vunpack.c.l.b16 %v745
        %v842 = vunpack.c.l.b16 %v746
        %v843 = vunpack.c.l.b16 %v747
        %v844 = vunpack.c.l.b16 %v748
        %v845 = vunpack.c.l.b16 %v749
        %v846 = vunpack.c.l.b16 %v750
        %v847 = vunpack.c.l.b16 %v751
        %v848 = vunpack.c.l.b16 %v752
        %v849 = vunpack.c.l.b16 %v753
        %v850 = vunpack.c.l.b16 %v754
        %v851 = vunpack.c.l.b16 %v755
        %v852 = vunpack.c.l.b16 %v756
        %v853 = vunpack.c.l.b16 %v757
        %v854 = vunpack.c.l.b16 %v758
        %v855 = vunpack.c.l.b16 %v759
        %v856 = vunpack.c.l.b16 %v760
        %v857 = vunpack.c.l.b16 %v761
        %v858 = vunpack.c.l.b16 %v762
        %v859 = vunpack.c.l.b16 %v763
        %v860 = vunpack.c.l.b16 %v764
        %v861 = vunpack.c.l.b16 %v765
        %v862 = vunpack.c.l.b16 %v766
        %v863 = vunpack.c.l.b16 %v767
        %v864 = vunpack.c.l.b16 %v768
        %v865 = vunpack.c.l.b16 %v769
        %v866 = vunpack.c.l.b16 %v770
        %v867 = vunpack.c.l.b16 %v771
        %v868 = vunpack.c.l.b16 %v772
        %v869 = vunpack.c.l.b16 %v773
        %v870 = vunpack.c.l.b16 %v774
        %v871 = vunpack.c.l.b16 %v775
        %v872 = vunpack.c.l.b16 %v776
        %v873 = vunpack.c.l.b16 %v777
        %v874 = vunpack.c.l.b16 %v778
        %v875 = vunpack.c.l.b16 %v779
        %v876 = vunpack.c.l.b16 %v780
        %v877 = vunpack.c.l.b16 %v781
        %v878 = vunpack.c.l.b16 %v782
        %v879 = vunpack.c.l.b16 %v783
        %v880 = vunpack.c.l.b16 %v784
        %v881 = vunpack.c.l.b16 %v785
        %v882 = vunpack.c.l.b16 %v786
        %v883 = vunpack.c.l.b16 %v787
        %v884 = vunpack.c.l.b16 %v788
        %v885 = vunpack.c.l.b16 %v789
        %v886 = vunpack.c.l.b16 %v790
        %v887 = vunpack.c.l.b16 %v791
        %v888 = vpack.c.b16 %v841, %v840
        %v889 = vpack.c.b16 %v843, %v842
        %v890 = vpack.c.b16 %v845, %v844
        %v891 = vpack.c.b16 %v847, %v846
        %v892 = vpack.c.b16 %v849, %v848
        %v893 = vpack.c.b16 %v851, %v850
        %v894 = vpack.c.b16 %v853, %v852
        %v895 = vpack.c.b16 %v855, %v854
        %v896 = vpack.c.b16 %v857, %v856
        %v897 = vpack.c.b16 %v859, %v858
        %v898 = vpack.c.b16 %v861, %v860
        %v899 = vpack.c.b16 %v863, %v862
        %v900 = vpack.c.b16 %v865, %v864
        %v901 = vpack.c.b16 %v867, %v866
        %v902 = vpack.c.b16 %v869, %v868
        %v903 = vpack.c.b16 %v871, %v870
        %v904 = vpack.c.b16 %v873, %v872
        %v905 = vpack.c.b16 %v875, %v874
        %v906 = vpack.c.b16 %v877, %v876
        %v907 = vpack.c.b16 %v879, %v878
        %v908 = vpack.c.b16 %v881, %v880
        %v909 = vpack.c.b16 %v883, %v882
        %v910 = vpack.c.b16 %v885, %v884
        %v911 = vpack.c.b16 %v887, %v886
        %936 = vmatprep.subr.bf16.mxu0 0
        %937 = vmatpush1.bf16.msra.mxu0 %v888
        %938 = vmatprep.subr.bf16.mxu0 0
        %939 = vmatpush1.bf16.msra.mxu0 %v889
        %940 = vmatprep.subr.bf16.mxu0 0
        %941 = vmatpush1.bf16.msra.mxu0 %v890
        %942 = vmatprep.subr.bf16.mxu0 0
        %943 = vmatpush1.bf16.msra.mxu0 %v891
        %944 = vmatprep.subr.bf16.mxu0 0
        %945 = vmatpush1.bf16.msra.mxu0 %v892
        %946 = vmatprep.subr.bf16.mxu0 0
        %947 = vmatpush1.bf16.msra.mxu0 %v893
        %948 = vmatprep.subr.bf16.mxu0 0
        %949 = vmatpush1.bf16.msra.mxu0 %v894
        %950 = vmatprep.subr.bf16.mxu0 0
        %951 = vmatpush1.bf16.msra.mxu0 %v895
        %952 = vmatprep.subr.bf16.mxu0 0
        %953 = vmatpush1.bf16.msra.mxu0 %v896
        %954 = vmatprep.subr.bf16.mxu0 0
        %955 = vmatpush1.bf16.msra.mxu0 %v897
        %956 = vmatprep.subr.bf16.mxu0 0
        %957 = vmatpush1.bf16.msra.mxu0 %v898
        %958 = vmatprep.subr.bf16.mxu0 0
        %959 = vmatpush1.bf16.msra.mxu0 %v899
        %960 = vmatprep.subr.bf16.mxu0 0
        %961 = vmatpush1.bf16.msra.mxu0 %v900
        %962 = vmatprep.subr.bf16.mxu0 0
        %963 = vmatpush1.bf16.msra.mxu0 %v901
        %964 = vmatprep.subr.bf16.mxu0 0
        %965 = vmatpush1.bf16.msra.mxu0 %v902
        %966 = vmatprep.subr.bf16.mxu0 0
        %967 = vmatpush1.bf16.msra.mxu0 %v903
        %968 = vmatprep.mubr.bf16.mxu0 %v679
        %969 = vmatmul.mubr.bf16.gmra.mrb[0].mxu0 %v663
        %v970 = vpop.f32.mrb[0].mxu0
        %v971 = vadd.f32 0.0, %v970
        %v972 = vpop.f32.mrb[0].mxu0
        %v973 = vpop.f32.mrb[0].mxu0
        %v974 = vadd.f32 0.0, %v973
        %v975 = vpop.f32.mrb[0].mxu0
        %976 = vmatprep.mubr.bf16.mxu0 %v680
        %977 = vmatmul.mubr.bf16.gmra.mrb[0].mxu0 %v664
        %v978 = vpop.f32.mrb[0].mxu0
        %v979 = vadd.f32 0.0, %v978
        %v980 = vpop.f32.mrb[0].mxu0
        %v981 = vpop.f32.mrb[0].mxu0
        %v982 = vadd.f32 0.0, %v981
        %v983 = vpop.f32.mrb[0].mxu0
        %984 = vmatprep.mubr.bf16.mxu0 %v681
        %985 = vmatmul.mubr.bf16.gmra.mrb[0].mxu0 %v665
        %v986 = vpop.f32.mrb[0].mxu0
        %v987 = vadd.f32 0.0, %v986
        %v988 = vpop.f32.mrb[0].mxu0
        %v989 = vpop.f32.mrb[0].mxu0
        %v990 = vadd.f32 0.0, %v989
        %v991 = vpop.f32.mrb[0].mxu0
        %992 = vmatprep.mubr.bf16.mxu0 %v682
        %993 = vmatmul.mubr.bf16.gmra.mrb[0].mxu0 %v666
        %v994 = vpop.f32.mrb[0].mxu0
        %v995 = vadd.f32 0.0, %v994
        %v996 = vpop.f32.mrb[0].mxu0
        %v997 = vpop.f32.mrb[0].mxu0
        %v998 = vadd.f32 0.0, %v997
        %v999 = vpop.f32.mrb[0].mxu0
        %1000 = vmatprep.mubr.bf16.mxu0 %v683
        %1001 = vmatmul.mubr.bf16.gmra.mrb[0].mxu0 %v667
        %v1002 = vpop.f32.mrb[0].mxu0
        %v1003 = vadd.f32 0.0, %v1002
        %v1004 = vpop.f32.mrb[0].mxu0
        %v1005 = vpop.f32.mrb[0].mxu0
        %v1006 = vadd.f32 0.0, %v1005
        %v1007 = vpop.f32.mrb[0].mxu0
        %1008 = vmatprep.mubr.bf16.mxu0 %v684
        %1009 = vmatmul.mubr.bf16.gmra.mrb[0].mxu0 %v668
        %v1010 = vpop.f32.mrb[0].mxu0
        %v1011 = vadd.f32 0.0, %v1010
        %v1012 = vpop.f32.mrb[0].mxu0
        %v1013 = vpop.f32.mrb[0].mxu0
        %v1014 = vadd.f32 0.0, %v1013
        %v1015 = vpop.f32.mrb[0].mxu0
        %1016 = vmatprep.mubr.bf16.mxu0 %v685
        %1017 = vmatmul.mubr.bf16.gmra.mrb[0].mxu0 %v669
        %v1018 = vpop.f32.mrb[0].mxu0
        %v1019 = vadd.f32 0.0, %v1018
        %v1020 = vpop.f32.mrb[0].mxu0
        %v1021 = vpop.f32.mrb[0].mxu0
        %v1022 = vadd.f32 0.0, %v1021
        %v1023 = vpop.f32.mrb[0].mxu0
        %1024 = vmatprep.mubr.bf16.mxu0 %v686
        %1025 = vmatmul.mubr.bf16.gmra.mrb[0].mxu0 %v670
        %v1026 = vpop.f32.mrb[0].mxu0
        %v1027 = vadd.f32 0.0, %v1026
        %v1028 = vpop.f32.mrb[0].mxu0
        %v1029 = vpop.f32.mrb[0].mxu0
        %v1030 = vadd.f32 0.0, %v1029
        %v1031 = vpop.f32.mrb[0].mxu0
        %1032 = vmatprep.mubr.bf16.mxu0 %v687
        %1033 = vmatmul.mubr.bf16.gmra.mrb[0].mxu0 %v671
        %v1034 = vpop.f32.mrb[0].mxu0
        %v1035 = vadd.f32 0.0, %v1034
        %v1036 = vpop.f32.mrb[0].mxu0
        %v1037 = vpop.f32.mrb[0].mxu0
        %v1038 = vadd.f32 0.0, %v1037
        %v1039 = vpop.f32.mrb[0].mxu0
        %1040 = vmatprep.mubr.bf16.mxu0 %v688
        %1041 = vmatmul.mubr.bf16.gmra.mrb[0].mxu0 %v672
        %v1042 = vpop.f32.mrb[0].mxu0
        %v1043 = vadd.f32 0.0, %v1042
        %v1044 = vpop.f32.mrb[0].mxu0
        %v1045 = vpop.f32.mrb[0].mxu0
        %v1046 = vadd.f32 0.0, %v1045
        %v1047 = vpop.f32.mrb[0].mxu0
        %1048 = vmatprep.mubr.bf16.mxu0 %v689
        %1049 = vmatmul.mubr.bf16.gmra.mrb[0].mxu0 %v673
        %v1050 = vpop.f32.mrb[0].mxu0
        %v1051 = vadd.f32 0.0, %v1050
        %v1052 = vpop.f32.mrb[0].mxu0
        %v1053 = vpop.f32.mrb[0].mxu0
        %v1054 = vadd.f32 0.0, %v1053
        %v1055 = vpop.f32.mrb[0].mxu0
        %1056 = vmatprep.mubr.bf16.mxu0 %v690
        %1057 = vmatmul.mubr.bf16.gmra.mrb[0].mxu0 %v674
        %v1058 = vpop.f32.mrb[0].mxu0
        %v1059 = vadd.f32 0.0, %v1058
        %v1060 = vpop.f32.mrb[0].mxu0
        %v1061 = vpop.f32.mrb[0].mxu0
        %v1062 = vadd.f32 0.0, %v1061
        %v1063 = vpop.f32.mrb[0].mxu0
        %1064 = vmatprep.mubr.bf16.mxu0 %v691
        %1065 = vmatmul.mubr.bf16.gmra.mrb[0].mxu0 %v675
        %v1066 = vpop.f32.mrb[0].mxu0
        %v1067 = vadd.f32 0.0, %v1066
        %v1068 = vpop.f32.mrb[0].mxu0
        %v1069 = vpop.f32.mrb[0].mxu0
        %v1070 = vadd.f32 0.0, %v1069
        %v1071 = vpop.f32.mrb[0].mxu0
        %1072 = vmatprep.mubr.bf16.mxu0 %v692
        %1073 = vmatmul.mubr.bf16.gmra.mrb[0].mxu0 %v676
        %v1074 = vpop.f32.mrb[0].mxu0
        %v1075 = vadd.f32 0.0, %v1074
        %v1076 = vpop.f32.mrb[0].mxu0
        %v1077 = vpop.f32.mrb[0].mxu0
        %v1078 = vadd.f32 0.0, %v1077
        %v1079 = vpop.f32.mrb[0].mxu0
        %1080 = vmatprep.mubr.bf16.mxu0 %v693
        %1081 = vmatmul.mubr.bf16.gmra.mrb[0].mxu0 %v677
        %v1082 = vpop.f32.mrb[0].mxu0
        %v1083 = vadd.f32 0.0, %v1082
        %v1084 = vpop.f32.mrb[0].mxu0
        %v1085 = vpop.f32.mrb[0].mxu0
        %v1086 = vadd.f32 0.0, %v1085
        %v1087 = vpop.f32.mrb[0].mxu0
        %1088 = vmatprep.mubr.bf16.mxu0 %v694
        %1089 = vmatmul.mubr.bf16.gmra.mrb[0].mxu0 %v678
        %v1090 = vpop.f32.mrb[0].mxu0
        %v1091 = vadd.f32 0.0, %v1090
        %v1092 = vpop.f32.mrb[0].mxu0
        %v1093 = vpop.f32.mrb[0].mxu0
        %v1094 = vadd.f32 0.0, %v1093
        %v1095 = vpop.f32.mrb[0].mxu0
        %1096 = vdwg.mxu0
        %1097 = vmatprep.subr.bf16.mxu0 0
        %1098 = vmatpush1.bf16.msra.mxu0 %v904
        %1099 = vmatprep.subr.bf16.mxu0 0
        %1100 = vmatpush1.bf16.msra.mxu0 %v905
        %1101 = vmatprep.subr.bf16.mxu0 0
        %1102 = vmatpush1.bf16.msra.mxu0 %v906
        %1103 = vmatprep.subr.bf16.mxu0 0
        %1104 = vmatpush1.bf16.msra.mxu0 %v907
        %1105 = vmatprep.subr.bf16.mxu0 0
        %1106 = vmatpush1.bf16.msra.mxu0 %v908
        %1107 = vmatprep.subr.bf16.mxu0 0
        %1108 = vmatpush1.bf16.msra.mxu0 %v909
        %1109 = vmatprep.subr.bf16.mxu0 0
        %1110 = vmatpush1.bf16.msra.mxu0 %v910
        %1111 = vmatprep.subr.bf16.mxu0 0
        %1112 = vmatpush1.bf16.msra.mxu0 %v911
        %1113 = vmatprep.subr.bf16.mxu0 0
        %1114 = vmatpush1.bf16.msra.mxu0 0
        %1115 = vmatprep.subr.bf16.mxu0 0
        %1116 = vmatpush1.bf16.msra.mxu0 0
        %1117 = vmatprep.subr.bf16.mxu0 0
        %1118 = vmatpush1.bf16.msra.mxu0 0
        %1119 = vmatprep.subr.bf16.mxu0 0
        %1120 = vmatpush1.bf16.msra.mxu0 0
        %1121 = vmatprep.subr.bf16.mxu0 0
        %1122 = vmatpush1.bf16.msra.mxu0 0
        %1123 = vmatprep.subr.bf16.mxu0 0
        %1124 = vmatpush1.bf16.msra.mxu0 0
        %1125 = vmatprep.subr.bf16.mxu0 0
        %1126 = vmatpush1.bf16.msra.mxu0 0
        %1127 = vmatprep.subr.bf16.mxu0 0
        %1128 = vmatpush1.bf16.msra.mxu0 0
        %1129 = vmatprep.mubr.bf16.mxu0 0
        %1130 = vmatmul.mubr.bf16.gmra.mrb[0].mxu0 %v696
        %v1131 = vpop.f32.mrb[0].mxu0
        %v1132 = vadd.f32 %v971, %v1131
        %v1133 = vpop.f32.mrb[0].mxu0
        %v1134 = vpop.f32.mrb[0].mxu0
        %v1135 = vadd.f32 %v974, %v1134
        %v1136 = vpop.f32.mrb[0].mxu0
        %1137 = vmatprep.mubr.bf16.mxu0 0
        %1138 = vmatmul.mubr.bf16.gmra.mrb[0].mxu0 %v697
        %v1139 = vpop.f32.mrb[0].mxu0
        %v1140 = vadd.f32 %v979, %v1139
        %v1141 = vpop.f32.mrb[0].mxu0
        %v1142 = vpop.f32.mrb[0].mxu0
        %v1143 = vadd.f32 %v982, %v1142
        %v1144 = vpop.f32.mrb[0].mxu0
        %1145 = vmatprep.mubr.bf16.mxu0 0
        %1146 = vmatmul.mubr.bf16.gmra.mrb[0].mxu0 %v698
        %v1147 = vpop.f32.mrb[0].mxu0
        %v1148 = vadd.f32 %v987, %v1147
        %v1149 = vpop.f32.mrb[0].mxu0
        %v1150 = vpop.f32.mrb[0].mxu0
        %v1151 = vadd.f32 %v990, %v1150
        %v1152 = vpop.f32.mrb[0].mxu0
        %1153 = vmatprep.mubr.bf16.mxu0 0
        %1154 = vmatmul.mubr.bf16.gmra.mrb[0].mxu0 %v699
        %v1155 = vpop.f32.mrb[0].mxu0
        %v1156 = vadd.f32 %v995, %v1155
        %v1157 = vpop.f32.mrb[0].mxu0
        %v1158 = vpop.f32.mrb[0].mxu0
        %v1159 = vadd.f32 %v998, %v1158
        %v1160 = vpop.f32.mrb[0].mxu0
        %1161 = vmatprep.mubr.bf16.mxu0 0
        %1162 = vmatmul.mubr.bf16.gmra.mrb[0].mxu0 %v700
        %v1163 = vpop.f32.mrb[0].mxu0
        %v1164 = vadd.f32 %v1003, %v1163
        %v1165 = vpop.f32.mrb[0].mxu0
        %v1166 = vpop.f32.mrb[0].mxu0
        %v1167 = vadd.f32 %v1006, %v1166
        %v1168 = vpop.f32.mrb[0].mxu0
        %1169 = vmatprep.mubr.bf16.mxu0 0
        %1170 = vmatmul.mubr.bf16.gmra.mrb[0].mxu0 %v701
        %v1171 = vpop.f32.mrb[0].mxu0
        %v1172 = vadd.f32 %v1011, %v1171
        %v1173 = vpop.f32.mrb[0].mxu0
        %v1174 = vpop.f32.mrb[0].mxu0
        %v1175 = vadd.f32 %v1014, %v1174
        %v1176 = vpop.f32.mrb[0].mxu0
        %1177 = vmatprep.mubr.bf16.mxu0 0
        %1178 = vmatmul.mubr.bf16.gmra.mrb[0].mxu0 %v702
        %v1179 = vpop.f32.mrb[0].mxu0
        %v1180 = vadd.f32 %v1019, %v1179
        %v1181 = vpop.f32.mrb[0].mxu0
        %v1182 = vpop.f32.mrb[0].mxu0
        %v1183 = vadd.f32 %v1022, %v1182
        %v1184 = vpop.f32.mrb[0].mxu0
        %1185 = vmatprep.mubr.bf16.mxu0 0
        %1186 = vmatmul.mubr.bf16.gmra.mrb[0].mxu0 %v703
        %v1187 = vpop.f32.mrb[0].mxu0
        %v1188 = vadd.f32 %v1027, %v1187
        %v1189 = vpop.f32.mrb[0].mxu0
        %v1190 = vpop.f32.mrb[0].mxu0
        %v1191 = vadd.f32 %v1030, %v1190
        %v1192 = vpop.f32.mrb[0].mxu0
        %1193 = vmatprep.mubr.bf16.mxu0 0
        %1194 = vmatmul.mubr.bf16.gmra.mrb[0].mxu0 %v704
        %v1195 = vpop.f32.mrb[0].mxu0
        %v1196 = vadd.f32 %v1035, %v1195
        %v1197 = vpop.f32.mrb[0].mxu0
        %v1198 = vpop.f32.mrb[0].mxu0
        %v1199 = vadd.f32 %v1038, %v1198
        %v1200 = vpop.f32.mrb[0].mxu0
        %1201 = vmatprep.mubr.bf16.mxu0 0
        %1202 = vmatmul.mubr.bf16.gmra.mrb[0].mxu0 %v705
        %v1203 = vpop.f32.mrb[0].mxu0
        %v1204 = vadd.f32 %v1043, %v1203
        %v1205 = vpop.f32.mrb[0].mxu0
        %v1206 = vpop.f32.mrb[0].mxu0
        %v1207 = vadd.f32 %v1046, %v1206
        %v1208 = vpop.f32.mrb[0].mxu0
        %1209 = vmatprep.mubr.bf16.mxu0 0
        %1210 = vmatmul.mubr.bf16.gmra.mrb[0].mxu0 %v706
        %v1211 = vpop.f32.mrb[0].mxu0
        %v1212 = vadd.f32 %v1051, %v1211
        %v1213 = vpop.f32.mrb[0].mxu0
        %v1214 = vpop.f32.mrb[0].mxu0
        %v1215 = vadd.f32 %v1054, %v1214
        %v1216 = vpop.f32.mrb[0].mxu0
        %1217 = vmatprep.mubr.bf16.mxu0 0
        %1218 = vmatmul.mubr.bf16.gmra.mrb[0].mxu0 %v707
        %v1219 = vpop.f32.mrb[0].mxu0
        %v1220 = vadd.f32 %v1059, %v1219
        %v1221 = vpop.f32.mrb[0].mxu0
        %v1222 = vpop.f32.mrb[0].mxu0
        %v1223 = vadd.f32 %v1062, %v1222
        %v1224 = vpop.f32.mrb[0].mxu0
        %1225 = vmatprep.mubr.bf16.mxu0 0
        %1226 = vmatmul.mubr.bf16.gmra.mrb[0].mxu0 %v708
        %v1227 = vpop.f32.mrb[0].mxu0
        %v1228 = vadd.f32 %v1067, %v1227
        %v1229 = vpop.f32.mrb[0].mxu0
        %v1230 = vpop.f32.mrb[0].mxu0
        %v1231 = vadd.f32 %v1070, %v1230
        %v1232 = vpop.f32.mrb[0].mxu0
        %1233 = vmatprep.mubr.bf16.mxu0 0
        %1234 = vmatmul.mubr.bf16.gmra.mrb[0].mxu0 %v709
        %v1235 = vpop.f32.mrb[0].mxu0
        %v1236 = vadd.f32 %v1075, %v1235
        %v1237 = vpop.f32.mrb[0].mxu0
        %v1238 = vpop.f32.mrb[0].mxu0
        %v1239 = vadd.f32 %v1078, %v1238
        %v1240 = vpop.f32.mrb[0].mxu0
        %1241 = vmatprep.mubr.bf16.mxu0 0
        %1242 = vmatmul.mubr.bf16.gmra.mrb[0].mxu0 %v710
        %v1243 = vpop.f32.mrb[0].mxu0
        %v1244 = vadd.f32 %v1083, %v1243
        %v1245 = vpop.f32.mrb[0].mxu0
        %v1246 = vpop.f32.mrb[0].mxu0
        %v1247 = vadd.f32 %v1086, %v1246
        %v1248 = vpop.f32.mrb[0].mxu0
        %1249 = vmatprep.mubr.bf16.mxu0 0
        %1250 = vmatmul.mubr.bf16.gmra.mrb[0].mxu0 %v711
        %v1251 = vpop.f32.mrb[0].mxu0
        %v1252 = vadd.f32 %v1091, %v1251
        %v1253 = vpop.f32.mrb[0].mxu0
        %v1254 = vpop.f32.mrb[0].mxu0
        %v1255 = vadd.f32 %v1094, %v1254
        %v1256 = vpop.f32.mrb[0].mxu0
        %1257 = vdwg.mxu0
        %v1258 = vrot.slane %v1132, 7
        %v1259 = vrot.slane %v1135, 7
        %v1260 = vrot.slane %v1140, 7
        %v1261 = vrot.slane %v1143, 7
        %v1262 = vrot.slane %v1148, 7
        %v1263 = vrot.slane %v1151, 7
        %v1264 = vrot.slane %v1156, 7
        %v1265 = vrot.slane %v1159, 7
        %v1266 = vrot.slane %v1164, 7
        %v1267 = vrot.slane %v1167, 7
        %v1268 = vrot.slane %v1172, 7
        %v1269 = vrot.slane %v1175, 7
        %v1270 = vrot.slane %v1180, 7
        %v1271 = vrot.slane %v1183, 7
        %v1272 = vrot.slane %v1188, 7
        %v1273 = vrot.slane %v1191, 7
        %v1274 = vrot.slane %v1196, 7
        %v1275 = vrot.slane %v1199, 7
        %v1276 = vrot.slane %v1204, 7
        %v1277 = vrot.slane %v1207, 7
        %v1278 = vrot.slane %v1212, 7
        %v1279 = vrot.slane %v1215, 7
        %v1280 = vrot.slane %v1220, 7
        %v1281 = vrot.slane %v1223, 7
        %v1282 = vrot.slane %v1228, 7
        %v1283 = vrot.slane %v1231, 7
        %v1284 = vrot.slane %v1236, 7
        %v1285 = vrot.slane %v1239, 7
        %v1286 = vrot.slane %v1244, 7
        %v1287 = vrot.slane %v1247, 7
        %v1288 = vrot.slane %v1252, 7
        %v1289 = vrot.slane %v1255, 7
        %vm1290 = vcmp.lt.s32.totalorder %v319, 1
        %v1291 = vsel %vm1290, %v1288, %v1289
        %v1292 = vsel %vm1290, %v1287, %v1288
        %v1293 = vsel %vm1290, %v1286, %v1287
        %v1294 = vsel %vm1290, %v1285, %v1286
        %v1295 = vsel %vm1290, %v1284, %v1285
        %v1296 = vsel %vm1290, %v1283, %v1284
        %v1297 = vsel %vm1290, %v1282, %v1283
        %v1298 = vsel %vm1290, %v1281, %v1282
        %v1299 = vsel %vm1290, %v1280, %v1281
        %v1300 = vsel %vm1290, %v1279, %v1280
        %v1301 = vsel %vm1290, %v1278, %v1279
        %v1302 = vsel %vm1290, %v1277, %v1278
        %v1303 = vsel %vm1290, %v1276, %v1277
        %v1304 = vsel %vm1290, %v1275, %v1276
        %v1305 = vsel %vm1290, %v1274, %v1275
        %v1306 = vsel %vm1290, %v1273, %v1274
        %v1307 = vsel %vm1290, %v1272, %v1273
        %v1308 = vsel %vm1290, %v1271, %v1272
        %v1309 = vsel %vm1290, %v1270, %v1271
        %v1310 = vsel %vm1290, %v1269, %v1270
        %v1311 = vsel %vm1290, %v1268, %v1269
        %v1312 = vsel %vm1290, %v1267, %v1268
        %v1313 = vsel %vm1290, %v1266, %v1267
        %v1314 = vsel %vm1290, %v1265, %v1266
        %v1315 = vsel %vm1290, %v1264, %v1265
        %v1316 = vsel %vm1290, %v1263, %v1264
        %v1317 = vsel %vm1290, %v1262, %v1263
        %v1318 = vsel %vm1290, %v1261, %v1262
        %v1319 = vsel %vm1290, %v1260, %v1261
        %v1320 = vsel %vm1290, %v1259, %v1260
        %v1321 = vsel %vm1290, %v1258, %v1259
        %v1322 = vsel %vm1290, %v1289, %v1258
        %v1323 = vsel %vm321, 1, 0
        %v1324 = vsel %vm322, 1, 0
        %vm1325 = vcmp.eq.s32.totalorder %v1323, 1
        %vm1326 = vcmp.eq.s32.totalorder %v1324, 1
        %v1327 = vsel %vm1325, %v1322, 0.0
        %v1328 = vsel %vm1326, %v1321, 0.0
        %v1329 = vsel %vm1325, %v1320, 0.0
        %v1330 = vsel %vm1326, %v1319, 0.0
        %v1331 = vsel %vm1325, %v1318, 0.0
        %v1332 = vsel %vm1326, %v1317, 0.0
        %v1333 = vsel %vm1325, %v1316, 0.0
        %v1334 = vsel %vm1326, %v1315, 0.0
        %v1335 = vsel %vm1325, %v1314, 0.0
        %v1336 = vsel %vm1326, %v1313, 0.0
        %v1337 = vsel %vm1325, %v1312, 0.0
        %v1338 = vsel %vm1326, %v1311, 0.0
        %v1339 = vsel %vm1325, %v1310, 0.0
        %v1340 = vsel %vm1326, %v1309, 0.0
        %v1341 = vsel %vm1325, %v1308, 0.0
        %v1342 = vsel %vm1326, %v1307, 0.0
        %v1343 = vsel %vm1325, %v1306, 0.0
        %v1344 = vsel %vm1326, %v1305, 0.0
        %v1345 = vsel %vm1325, %v1304, 0.0
        %v1346 = vsel %vm1326, %v1303, 0.0
        %v1347 = vsel %vm1325, %v1302, 0.0
        %v1348 = vsel %vm1326, %v1301, 0.0
        %v1349 = vsel %vm1325, %v1300, 0.0
        %v1350 = vsel %vm1326, %v1299, 0.0
        %v1351 = vsel %vm1325, %v1298, 0.0
        %v1352 = vsel %vm1326, %v1297, 0.0
        %v1353 = vsel %vm1325, %v1296, 0.0
        %v1354 = vsel %vm1326, %v1295, 0.0
        %v1355 = vsel %vm1325, %v1294, 0.0
        %v1356 = vsel %vm1326, %v1293, 0.0
        %v1357 = vsel %vm1325, %v1292, 0.0
        %v1358 = vsel %vm1326, %v1291, 0.0
        %v1359 = vadd.f32 %v712, %v1327
        %v1360 = vadd.f32 %v713, %v1328
        %v1361 = vadd.f32 %v714, %v1329
        %v1362 = vadd.f32 %v715, %v1330
        %v1363 = vadd.f32 %v716, %v1331
        %v1364 = vadd.f32 %v717, %v1332
        %v1365 = vadd.f32 %v718, %v1333
        %v1366 = vadd.f32 %v719, %v1334
        %v1367 = vadd.f32 %v720, %v1335
        %v1368 = vadd.f32 %v721, %v1336
        %v1369 = vadd.f32 %v722, %v1337
        %v1370 = vadd.f32 %v723, %v1338
        %v1371 = vadd.f32 %v724, %v1339
        %v1372 = vadd.f32 %v725, %v1340
        %v1373 = vadd.f32 %v726, %v1341
        %v1374 = vadd.f32 %v727, %v1342
        %v1375 = vadd.f32 %v728, %v1343
        %v1376 = vadd.f32 %v729, %v1344
        %v1377 = vadd.f32 %v730, %v1345
        %v1378 = vadd.f32 %v731, %v1346
        %v1379 = vadd.f32 %v732, %v1347
        %v1380 = vadd.f32 %v733, %v1348
        %v1381 = vadd.f32 %v734, %v1349
        %v1382 = vadd.f32 %v735, %v1350
        %v1383 = vadd.f32 %v736, %v1351
        %v1384 = vadd.f32 %v737, %v1352
        %v1385 = vadd.f32 %v738, %v1353
        %v1386 = vadd.f32 %v739, %v1354
        %v1387 = vadd.f32 %v740, %v1355
        %v1388 = vadd.f32 %v741, %v1356
        %v1389 = vadd.f32 %v742, %v1357
        %v1390 = vadd.f32 %v743, %v1358
        %s1391 = scalar_lea.vmem [#allocation9], 192
        %v1392 = vld [vmem:[%s1391] sm:$0xf]
        %v1393 = vld [vmem:[%s1391 + $0x4] sm:$0xf]
        %v1394 = vld [vmem:[%s1391 + $0x8] sm:$0xf]
        %v1395 = vld [vmem:[%s1391 + $0xc] sm:$0xf]
        %v1396 = vld [vmem:[%s1391 + $0x10] sm:$0xf]
        %v1397 = vld [vmem:[%s1391 + $0x14] sm:$0xf]
        %v1398 = vld [vmem:[%s1391 + $0x18] sm:$0xf]
        %v1399 = vld [vmem:[%s1391 + $0x1c] sm:$0xf]
        %v1400 = vld [vmem:[%s1391 + $0x20] sm:$0xf]
        %v1401 = vld [vmem:[%s1391 + $0x24] sm:$0xf]
        %v1402 = vld [vmem:[%s1391 + $0x28] sm:$0xf]
        %v1403 = vld [vmem:[%s1391 + $0x2c] sm:$0xf]
        %v1404 = vld [vmem:[%s1391 + $0x30] sm:$0xf]
        %v1405 = vld [vmem:[%s1391 + $0x34] sm:$0xf]
        %v1406 = vld [vmem:[%s1391 + $0x38] sm:$0xf]
        %v1407 = vld [vmem:[%s1391 + $0x3c] sm:$0xf]
        %v1408 = vld [vmem:[%s1391 + $0x40] sm:$0xf]
        %v1409 = vld [vmem:[%s1391 + $0x44] sm:$0xf]
        %v1410 = vld [vmem:[%s1391 + $0x48] sm:$0xf]
        %v1411 = vld [vmem:[%s1391 + $0x4c] sm:$0xf]
        %v1412 = vld [vmem:[%s1391 + $0x50] sm:$0xf]
        %v1413 = vld [vmem:[%s1391 + $0x54] sm:$0xf]
        %v1414 = vld [vmem:[%s1391 + $0x58] sm:$0xf]
        %v1415 = vld [vmem:[%s1391 + $0x5c] sm:$0xf]
        %v1416 = vld [vmem:[%s1391 + $0x60] sm:$0xf]
        %v1417 = vld [vmem:[%s1391 + $0x64] sm:$0xf]
        %v1418 = vld [vmem:[%s1391 + $0x68] sm:$0xf]
        %v1419 = vld [vmem:[%s1391 + $0x6c] sm:$0xf]
        %v1420 = vld [vmem:[%s1391 + $0x70] sm:$0xf]
        %v1421 = vld [vmem:[%s1391 + $0x74] sm:$0xf]
        %v1422 = vld [vmem:[%s1391 + $0x78] sm:$0xf]
        %v1423 = vld [vmem:[%s1391 + $0x7c] sm:$0xf]
        %v1424 = vld [vmem:[%s1391 + $0x80] sm:$0xf]
        %v1425 = vld [vmem:[%s1391 + $0x84] sm:$0xf]
        %v1426 = vld [vmem:[%s1391 + $0x88] sm:$0xf]
        %v1427 = vld [vmem:[%s1391 + $0x8c] sm:$0xf]
        %v1428 = vld [vmem:[%s1391 + $0x90] sm:$0xf]
        %v1429 = vld [vmem:[%s1391 + $0x94] sm:$0xf]
        %v1430 = vld [vmem:[%s1391 + $0x98] sm:$0xf]
        %v1431 = vld [vmem:[%s1391 + $0x9c] sm:$0xf]
        %v1432 = vld [vmem:[%s1391 + $0xa0] sm:$0xf]
        %v1433 = vld [vmem:[%s1391 + $0xa4] sm:$0xf]
        %v1434 = vld [vmem:[%s1391 + $0xa8] sm:$0xf]
        %v1435 = vld [vmem:[%s1391 + $0xac] sm:$0xf]
        %v1436 = vld [vmem:[%s1391 + $0xb0] sm:$0xf]
        %v1437 = vld [vmem:[%s1391 + $0xb4] sm:$0xf]
        %v1438 = vld [vmem:[%s1391 + $0xb8] sm:$0xf]
        %v1439 = vld [vmem:[%s1391 + $0xbc] sm:$0xf]
        %v1488 = vunpack.c.l.b16 %v1392
        %v1489 = vunpack.c.l.b16 %v1393
        %v1490 = vunpack.c.l.b16 %v1394
        %v1491 = vunpack.c.l.b16 %v1395
        %v1492 = vunpack.c.l.b16 %v1396
        %v1493 = vunpack.c.l.b16 %v1397
        %v1494 = vunpack.c.l.b16 %v1398
        %v1495 = vunpack.c.l.b16 %v1399
        %v1496 = vunpack.c.l.b16 %v1400
        %v1497 = vunpack.c.l.b16 %v1401
        %v1498 = vunpack.c.l.b16 %v1402
        %v1499 = vunpack.c.l.b16 %v1403
        %v1500 = vunpack.c.l.b16 %v1404
        %v1501 = vunpack.c.l.b16 %v1405
        %v1502 = vunpack.c.l.b16 %v1406
        %v1503 = vunpack.c.l.b16 %v1407
        %v1504 = vunpack.c.l.b16 %v1408
        %v1505 = vunpack.c.l.b16 %v1409
        %v1506 = vunpack.c.l.b16 %v1410
        %v1507 = vunpack.c.l.b16 %v1411
        %v1508 = vunpack.c.l.b16 %v1412
        %v1509 = vunpack.c.l.b16 %v1413
        %v1510 = vunpack.c.l.b16 %v1414
        %v1511 = vunpack.c.l.b16 %v1415
        %v1512 = vunpack.c.l.b16 %v1416
        %v1513 = vunpack.c.l.b16 %v1417
        %v1514 = vunpack.c.l.b16 %v1418
        %v1515 = vunpack.c.l.b16 %v1419
        %v1516 = vunpack.c.l.b16 %v1420
        %v1517 = vunpack.c.l.b16 %v1421
        %v1518 = vunpack.c.l.b16 %v1422
        %v1519 = vunpack.c.l.b16 %v1423
        %v1520 = vunpack.c.l.b16 %v1424
        %v1521 = vunpack.c.l.b16 %v1425
        %v1522 = vunpack.c.l.b16 %v1426
        %v1523 = vunpack.c.l.b16 %v1427
        %v1524 = vunpack.c.l.b16 %v1428
        %v1525 = vunpack.c.l.b16 %v1429
        %v1526 = vunpack.c.l.b16 %v1430
        %v1527 = vunpack.c.l.b16 %v1431
        %v1528 = vunpack.c.l.b16 %v1432
        %v1529 = vunpack.c.l.b16 %v1433
        %v1530 = vunpack.c.l.b16 %v1434
        %v1531 = vunpack.c.l.b16 %v1435
        %v1532 = vunpack.c.l.b16 %v1436
        %v1533 = vunpack.c.l.b16 %v1437
        %v1534 = vunpack.c.l.b16 %v1438
        %v1535 = vunpack.c.l.b16 %v1439
        %v1536 = vpack.c.b16 %v1489, %v1488
        %v1537 = vpack.c.b16 %v1491, %v1490
        %v1538 = vpack.c.b16 %v1493, %v1492
        %v1539 = vpack.c.b16 %v1495, %v1494
        %v1540 = vpack.c.b16 %v1497, %v1496
        %v1541 = vpack.c.b16 %v1499, %v1498
        %v1542 = vpack.c.b16 %v1501, %v1500
        %v1543 = vpack.c.b16 %v1503, %v1502
        %v1544 = vpack.c.b16 %v1505, %v1504
        %v1545 = vpack.c.b16 %v1507, %v1506
        %v1546 = vpack.c.b16 %v1509, %v1508
        %v1547 = vpack.c.b16 %v1511, %v1510
        %v1548 = vpack.c.b16 %v1513, %v1512
        %v1549 = vpack.c.b16 %v1515, %v1514
        %v1550 = vpack.c.b16 %v1517, %v1516
        %v1551 = vpack.c.b16 %v1519, %v1518
        %v1552 = vpack.c.b16 %v1521, %v1520
        %v1553 = vpack.c.b16 %v1523, %v1522
        %v1554 = vpack.c.b16 %v1525, %v1524
        %v1555 = vpack.c.b16 %v1527, %v1526
        %v1556 = vpack.c.b16 %v1529, %v1528
        %v1557 = vpack.c.b16 %v1531, %v1530
        %v1558 = vpack.c.b16 %v1533, %v1532
        %v1559 = vpack.c.b16 %v1535, %v1534
        %1584 = vmatprep.subr.bf16.mxu0 0
        %1585 = vmatpush1.bf16.msra.mxu0 %v1536
        %1586 = vmatprep.subr.bf16.mxu0 0
        %1587 = vmatpush1.bf16.msra.mxu0 %v1537
        %1588 = vmatprep.subr.bf16.mxu0 0
        %1589 = vmatpush1.bf16.msra.mxu0 %v1538
        %1590 = vmatprep.subr.bf16.mxu0 0
        %1591 = vmatpush1.bf16.msra.mxu0 %v1539
        %1592 = vmatprep.subr.bf16.mxu0 0
        %1593 = vmatpush1.bf16.msra.mxu0 %v1540
        %1594 = vmatprep.subr.bf16.mxu0 0
        %1595 = vmatpush1.bf16.msra.mxu0 %v1541
        %1596 = vmatprep.subr.bf16.mxu0 0
        %1597 = vmatpush1.bf16.msra.mxu0 %v1542
        %1598 = vmatprep.subr.bf16.mxu0 0
        %1599 = vmatpush1.bf16.msra.mxu0 %v1543
        %1600 = vmatprep.subr.bf16.mxu0 0
        %1601 = vmatpush1.bf16.msra.mxu0 %v1544
        %1602 = vmatprep.subr.bf16.mxu0 0
        %1603 = vmatpush1.bf16.msra.mxu0 %v1545
        %1604 = vmatprep.subr.bf16.mxu0 0
        %1605 = vmatpush1.bf16.msra.mxu0 %v1546
        %1606 = vmatprep.subr.bf16.mxu0 0
        %1607 = vmatpush1.bf16.msra.mxu0 %v1547
        %1608 = vmatprep.subr.bf16.mxu0 0
        %1609 = vmatpush1.bf16.msra.mxu0 %v1548
        %1610 = vmatprep.subr.bf16.mxu0 0
        %1611 = vmatpush1.bf16.msra.mxu0 %v1549
        %1612 = vmatprep.subr.bf16.mxu0 0
        %1613 = vmatpush1.bf16.msra.mxu0 %v1550
        %1614 = vmatprep.subr.bf16.mxu0 0
        %1615 = vmatpush1.bf16.msra.mxu0 %v1551
        %1616 = vmatprep.mubr.bf16.mxu0 %v679
        %1617 = vmatmul.mubr.bf16.gmra.mrb[0].mxu0 %v663
        %v1618 = vpop.f32.mrb[0].mxu0
        %v1619 = vadd.f32 0.0, %v1618
        %v1620 = vpop.f32.mrb[0].mxu0
        %v1621 = vpop.f32.mrb[0].mxu0
        %v1622 = vadd.f32 0.0, %v1621
        %v1623 = vpop.f32.mrb[0].mxu0
        %1624 = vmatprep.mubr.bf16.mxu0 %v680
        %1625 = vmatmul.mubr.bf16.gmra.mrb[0].mxu0 %v664
        %v1626 = vpop.f32.mrb[0].mxu0
        %v1627 = vadd.f32 0.0, %v1626
        %v1628 = vpop.f32.mrb[0].mxu0
        %v1629 = vpop.f32.mrb[0].mxu0
        %v1630 = vadd.f32 0.0, %v1629
        %v1631 = vpop.f32.mrb[0].mxu0
        %1632 = vmatprep.mubr.bf16.mxu0 %v681
        %1633 = vmatmul.mubr.bf16.gmra.mrb[0].mxu0 %v665
        %v1634 = vpop.f32.mrb[0].mxu0
        %v1635 = vadd.f32 0.0, %v1634
        %v1636 = vpop.f32.mrb[0].mxu0
        %v1637 = vpop.f32.mrb[0].mxu0
        %v1638 = vadd.f32 0.0, %v1637
        %v1639 = vpop.f32.mrb[0].mxu0
        %1640 = vmatprep.mubr.bf16.mxu0 %v682
        %1641 = vmatmul.mubr.bf16.gmra.mrb[0].mxu0 %v666
        %v1642 = vpop.f32.mrb[0].mxu0
        %v1643 = vadd.f32 0.0, %v1642
        %v1644 = vpop.f32.mrb[0].mxu0
        %v1645 = vpop.f32.mrb[0].mxu0
        %v1646 = vadd.f32 0.0, %v1645
        %v1647 = vpop.f32.mrb[0].mxu0
        %1648 = vmatprep.mubr.bf16.mxu0 %v683
        %1649 = vmatmul.mubr.bf16.gmra.mrb[0].mxu0 %v667
        %v1650 = vpop.f32.mrb[0].mxu0
        %v1651 = vadd.f32 0.0, %v1650
        %v1652 = vpop.f32.mrb[0].mxu0
        %v1653 = vpop.f32.mrb[0].mxu0
        %v1654 = vadd.f32 0.0, %v1653
        %v1655 = vpop.f32.mrb[0].mxu0
        %1656 = vmatprep.mubr.bf16.mxu0 %v684
        %1657 = vmatmul.mubr.bf16.gmra.mrb[0].mxu0 %v668
        %v1658 = vpop.f32.mrb[0].mxu0
        %v1659 = vadd.f32 0.0, %v1658
        %v1660 = vpop.f32.mrb[0].mxu0
        %v1661 = vpop.f32.mrb[0].mxu0
        %v1662 = vadd.f32 0.0, %v1661
        %v1663 = vpop.f32.mrb[0].mxu0
        %1664 = vmatprep.mubr.bf16.mxu0 %v685
        %1665 = vmatmul.mubr.bf16.gmra.mrb[0].mxu0 %v669
        %v1666 = vpop.f32.mrb[0].mxu0
        %v1667 = vadd.f32 0.0, %v1666
        %v1668 = vpop.f32.mrb[0].mxu0
        %v1669 = vpop.f32.mrb[0].mxu0
        %v1670 = vadd.f32 0.0, %v1669
        %v1671 = vpop.f32.mrb[0].mxu0
        %1672 = vmatprep.mubr.bf16.mxu0 %v686
        %1673 = vmatmul.mubr.bf16.gmra.mrb[0].mxu0 %v670
        %v1674 = vpop.f32.mrb[0].mxu0
        %v1675 = vadd.f32 0.0, %v1674
        %v1676 = vpop.f32.mrb[0].mxu0
        %v1677 = vpop.f32.mrb[0].mxu0
        %v1678 = vadd.f32 0.0, %v1677
        %v1679 = vpop.f32.mrb[0].mxu0
        %1680 = vmatprep.mubr.bf16.mxu0 %v687
        %1681 = vmatmul.mubr.bf16.gmra.mrb[0].mxu0 %v671
        %v1682 = vpop.f32.mrb[0].mxu0
        %v1683 = vadd.f32 0.0, %v1682
        %v1684 = vpop.f32.mrb[0].mxu0
        %v1685 = vpop.f32.mrb[0].mxu0
        %v1686 = vadd.f32 0.0, %v1685
        %v1687 = vpop.f32.mrb[0].mxu0
        %1688 = vmatprep.mubr.bf16.mxu0 %v688
        %1689 = vmatmul.mubr.bf16.gmra.mrb[0].mxu0 %v672
        %v1690 = vpop.f32.mrb[0].mxu0
        %v1691 = vadd.f32 0.0, %v1690
        %v1692 = vpop.f32.mrb[0].mxu0
        %v1693 = vpop.f32.mrb[0].mxu0
        %v1694 = vadd.f32 0.0, %v1693
        %v1695 = vpop.f32.mrb[0].mxu0
        %1696 = vmatprep.mubr.bf16.mxu0 %v689
        %1697 = vmatmul.mubr.bf16.gmra.mrb[0].mxu0 %v673
        %v1698 = vpop.f32.mrb[0].mxu0
        %v1699 = vadd.f32 0.0, %v1698
        %v1700 = vpop.f32.mrb[0].mxu0
        %v1701 = vpop.f32.mrb[0].mxu0
        %v1702 = vadd.f32 0.0, %v1701
        %v1703 = vpop.f32.mrb[0].mxu0
        %1704 = vmatprep.mubr.bf16.mxu0 %v690
        %1705 = vmatmul.mubr.bf16.gmra.mrb[0].mxu0 %v674
        %v1706 = vpop.f32.mrb[0].mxu0
        %v1707 = vadd.f32 0.0, %v1706
        %v1708 = vpop.f32.mrb[0].mxu0
        %v1709 = vpop.f32.mrb[0].mxu0
        %v1710 = vadd.f32 0.0, %v1709
        %v1711 = vpop.f32.mrb[0].mxu0
        %1712 = vmatprep.mubr.bf16.mxu0 %v691
        %1713 = vmatmul.mubr.bf16.gmra.mrb[0].mxu0 %v675
        %v1714 = vpop.f32.mrb[0].mxu0
        %v1715 = vadd.f32 0.0, %v1714
        %v1716 = vpop.f32.mrb[0].mxu0
        %v1717 = vpop.f32.mrb[0].mxu0
        %v1718 = vadd.f32 0.0, %v1717
        %v1719 = vpop.f32.mrb[0].mxu0
        %1720 = vmatprep.mubr.bf16.mxu0 %v692
        %1721 = vmatmul.mubr.bf16.gmra.mrb[0].mxu0 %v676
        %v1722 = vpop.f32.mrb[0].mxu0
        %v1723 = vadd.f32 0.0, %v1722
        %v1724 = vpop.f32.mrb[0].mxu0
        %v1725 = vpop.f32.mrb[0].mxu0
        %v1726 = vadd.f32 0.0, %v1725
        %v1727 = vpop.f32.mrb[0].mxu0
        %1728 = vmatprep.mubr.bf16.mxu0 %v693
        %1729 = vmatmul.mubr.bf16.gmra.mrb[0].mxu0 %v677
        %v1730 = vpop.f32.mrb[0].mxu0
        %v1731 = vadd.f32 0.0, %v1730
        %v1732 = vpop.f32.mrb[0].mxu0
        %v1733 = vpop.f32.mrb[0].mxu0
        %v1734 = vadd.f32 0.0, %v1733
        %v1735 = vpop.f32.mrb[0].mxu0
        %1736 = vmatprep.mubr.bf16.mxu0 %v694
        %1737 = vmatmul.mubr.bf16.gmra.mrb[0].mxu0 %v678
        %v1738 = vpop.f32.mrb[0].mxu0
        %v1739 = vadd.f32 0.0, %v1738
        %v1740 = vpop.f32.mrb[0].mxu0
        %v1741 = vpop.f32.mrb[0].mxu0
        %v1742 = vadd.f32 0.0, %v1741
        %v1743 = vpop.f32.mrb[0].mxu0
        %1744 = vdwg.mxu0
        %1745 = vmatprep.subr.bf16.mxu0 0
        %1746 = vmatpush1.bf16.msra.mxu0 %v1552
        %1747 = vmatprep.subr.bf16.mxu0 0
        %1748 = vmatpush1.bf16.msra.mxu0 %v1553
        %1749 = vmatprep.subr.bf16.mxu0 0
        %1750 = vmatpush1.bf16.msra.mxu0 %v1554
        %1751 = vmatprep.subr.bf16.mxu0 0
        %1752 = vmatpush1.bf16.msra.mxu0 %v1555
        %1753 = vmatprep.subr.bf16.mxu0 0
        %1754 = vmatpush1.bf16.msra.mxu0 %v1556
        %1755 = vmatprep.subr.bf16.mxu0 0
        %1756 = vmatpush1.bf16.msra.mxu0 %v1557
        %1757 = vmatprep.subr.bf16.mxu0 0
        %1758 = vmatpush1.bf16.msra.mxu0 %v1558
        %1759 = vmatprep.subr.bf16.mxu0 0
        %1760 = vmatpush1.bf16.msra.mxu0 %v1559
        %1761 = vmatprep.subr.bf16.mxu0 0
        %1762 = vmatpush1.bf16.msra.mxu0 0
        %1763 = vmatprep.subr.bf16.mxu0 0
        %1764 = vmatpush1.bf16.msra.mxu0 0
        %1765 = vmatprep.subr.bf16.mxu0 0
        %1766 = vmatpush1.bf16.msra.mxu0 0
        %1767 = vmatprep.subr.bf16.mxu0 0
        %1768 = vmatpush1.bf16.msra.mxu0 0
        %1769 = vmatprep.subr.bf16.mxu0 0
        %1770 = vmatpush1.bf16.msra.mxu0 0
        %1771 = vmatprep.subr.bf16.mxu0 0
        %1772 = vmatpush1.bf16.msra.mxu0 0
        %1773 = vmatprep.subr.bf16.mxu0 0
        %1774 = vmatpush1.bf16.msra.mxu0 0
        %1775 = vmatprep.subr.bf16.mxu0 0
        %1776 = vmatpush1.bf16.msra.mxu0 0
        %1777 = vmatprep.mubr.bf16.mxu0 0
        %1778 = vmatmul.mubr.bf16.gmra.mrb[0].mxu0 %v696
        %v1779 = vpop.f32.mrb[0].mxu0
        %v1780 = vadd.f32 %v1619, %v1779
        %v1781 = vpop.f32.mrb[0].mxu0
        %v1782 = vpop.f32.mrb[0].mxu0
        %v1783 = vadd.f32 %v1622, %v1782
        %v1784 = vpop.f32.mrb[0].mxu0
        %1785 = vmatprep.mubr.bf16.mxu0 0
        %1786 = vmatmul.mubr.bf16.gmra.mrb[0].mxu0 %v697
        %v1787 = vpop.f32.mrb[0].mxu0
        %v1788 = vadd.f32 %v1627, %v1787
        %v1789 = vpop.f32.mrb[0].mxu0
        %v1790 = vpop.f32.mrb[0].mxu0
        %v1791 = vadd.f32 %v1630, %v1790
        %v1792 = vpop.f32.mrb[0].mxu0
        %1793 = vmatprep.mubr.bf16.mxu0 0
        %1794 = vmatmul.mubr.bf16.gmra.mrb[0].mxu0 %v698
        %v1795 = vpop.f32.mrb[0].mxu0
        %v1796 = vadd.f32 %v1635, %v1795
        %v1797 = vpop.f32.mrb[0].mxu0
        %v1798 = vpop.f32.mrb[0].mxu0
        %v1799 = vadd.f32 %v1638, %v1798
        %v1800 = vpop.f32.mrb[0].mxu0
        %1801 = vmatprep.mubr.bf16.mxu0 0
        %1802 = vmatmul.mubr.bf16.gmra.mrb[0].mxu0 %v699
        %v1803 = vpop.f32.mrb[0].mxu0
        %v1804 = vadd.f32 %v1643, %v1803
        %v1805 = vpop.f32.mrb[0].mxu0
        %v1806 = vpop.f32.mrb[0].mxu0
        %v1807 = vadd.f32 %v1646, %v1806
        %v1808 = vpop.f32.mrb[0].mxu0
        %1809 = vmatprep.mubr.bf16.mxu0 0
        %1810 = vmatmul.mubr.bf16.gmra.mrb[0].mxu0 %v700
        %v1811 = vpop.f32.mrb[0].mxu0
        %v1812 = vadd.f32 %v1651, %v1811
        %v1813 = vpop.f32.mrb[0].mxu0
        %v1814 = vpop.f32.mrb[0].mxu0
        %v1815 = vadd.f32 %v1654, %v1814
        %v1816 = vpop.f32.mrb[0].mxu0
        %1817 = vmatprep.mubr.bf16.mxu0 0
        %1818 = vmatmul.mubr.bf16.gmra.mrb[0].mxu0 %v701
        %v1819 = vpop.f32.mrb[0].mxu0
        %v1820 = vadd.f32 %v1659, %v1819
        %v1821 = vpop.f32.mrb[0].mxu0
        %v1822 = vpop.f32.mrb[0].mxu0
        %v1823 = vadd.f32 %v1662, %v1822
        %v1824 = vpop.f32.mrb[0].mxu0
        %1825 = vmatprep.mubr.bf16.mxu0 0
        %1826 = vmatmul.mubr.bf16.gmra.mrb[0].mxu0 %v702
        %v1827 = vpop.f32.mrb[0].mxu0
        %v1828 = vadd.f32 %v1667, %v1827
        %v1829 = vpop.f32.mrb[0].mxu0
        %v1830 = vpop.f32.mrb[0].mxu0
        %v1831 = vadd.f32 %v1670, %v1830
        %v1832 = vpop.f32.mrb[0].mxu0
        %1833 = vmatprep.mubr.bf16.mxu0 0
        %1834 = vmatmul.mubr.bf16.gmra.mrb[0].mxu0 %v703
        %v1835 = vpop.f32.mrb[0].mxu0
        %v1836 = vadd.f32 %v1675, %v1835
        %v1837 = vpop.f32.mrb[0].mxu0
        %v1838 = vpop.f32.mrb[0].mxu0
        %v1839 = vadd.f32 %v1678, %v1838
        %v1840 = vpop.f32.mrb[0].mxu0
        %1841 = vmatprep.mubr.bf16.mxu0 0
        %1842 = vmatmul.mubr.bf16.gmra.mrb[0].mxu0 %v704
        %v1843 = vpop.f32.mrb[0].mxu0
        %v1844 = vadd.f32 %v1683, %v1843
        %v1845 = vpop.f32.mrb[0].mxu0
        %v1846 = vpop.f32.mrb[0].mxu0
        %v1847 = vadd.f32 %v1686, %v1846
        %v1848 = vpop.f32.mrb[0].mxu0
        %1849 = vmatprep.mubr.bf16.mxu0 0
        %1850 = vmatmul.mubr.bf16.gmra.mrb[0].mxu0 %v705
        %v1851 = vpop.f32.mrb[0].mxu0
        %v1852 = vadd.f32 %v1691, %v1851
        %v1853 = vpop.f32.mrb[0].mxu0
        %v1854 = vpop.f32.mrb[0].mxu0
        %v1855 = vadd.f32 %v1694, %v1854
        %v1856 = vpop.f32.mrb[0].mxu0
        %1857 = vmatprep.mubr.bf16.mxu0 0
        %1858 = vmatmul.mubr.bf16.gmra.mrb[0].mxu0 %v706
        %v1859 = vpop.f32.mrb[0].mxu0
        %v1860 = vadd.f32 %v1699, %v1859
        %v1861 = vpop.f32.mrb[0].mxu0
        %v1862 = vpop.f32.mrb[0].mxu0
        %v1863 = vadd.f32 %v1702, %v1862
        %v1864 = vpop.f32.mrb[0].mxu0
        %1865 = vmatprep.mubr.bf16.mxu0 0
        %1866 = vmatmul.mubr.bf16.gmra.mrb[0].mxu0 %v707
        %v1867 = vpop.f32.mrb[0].mxu0
        %v1868 = vadd.f32 %v1707, %v1867
        %v1869 = vpop.f32.mrb[0].mxu0
        %v1870 = vpop.f32.mrb[0].mxu0
        %v1871 = vadd.f32 %v1710, %v1870
        %v1872 = vpop.f32.mrb[0].mxu0
        %1873 = vmatprep.mubr.bf16.mxu0 0
        %1874 = vmatmul.mubr.bf16.gmra.mrb[0].mxu0 %v708
        %v1875 = vpop.f32.mrb[0].mxu0
        %v1876 = vadd.f32 %v1715, %v1875
        %v1877 = vpop.f32.mrb[0].mxu0
        %v1878 = vpop.f32.mrb[0].mxu0
        %v1879 = vadd.f32 %v1718, %v1878
        %v1880 = vpop.f32.mrb[0].mxu0
        %1881 = vmatprep.mubr.bf16.mxu0 0
        %1882 = vmatmul.mubr.bf16.gmra.mrb[0].mxu0 %v709
        %v1883 = vpop.f32.mrb[0].mxu0
        %v1884 = vadd.f32 %v1723, %v1883
        %v1885 = vpop.f32.mrb[0].mxu0
        %v1886 = vpop.f32.mrb[0].mxu0
        %v1887 = vadd.f32 %v1726, %v1886
        %v1888 = vpop.f32.mrb[0].mxu0
        %1889 = vmatprep.mubr.bf16.mxu0 0
        %1890 = vmatmul.mubr.bf16.gmra.mrb[0].mxu0 %v710
        %v1891 = vpop.f32.mrb[0].mxu0
        %v1892 = vadd.f32 %v1731, %v1891
        %v1893 = vpop.f32.mrb[0].mxu0
        %v1894 = vpop.f32.mrb[0].mxu0
        %v1895 = vadd.f32 %v1734, %v1894
        %v1896 = vpop.f32.mrb[0].mxu0
        %1897 = vmatprep.mubr.bf16.mxu0 0
        %1898 = vmatmul.mubr.bf16.gmra.mrb[0].mxu0 %v711
        %v1899 = vpop.f32.mrb[0].mxu0
        %v1900 = vadd.f32 %v1739, %v1899
        %v1901 = vpop.f32.mrb[0].mxu0
        %v1902 = vpop.f32.mrb[0].mxu0
        %v1903 = vadd.f32 %v1742, %v1902
        %v1904 = vpop.f32.mrb[0].mxu0
        %1905 = vdwg.mxu0
        %v1906 = vadd.f32 %v1359, %v1780
        %v1907 = vadd.f32 %v1360, %v1783
        %v1908 = vadd.f32 %v1361, %v1788
        %v1909 = vadd.f32 %v1362, %v1791
        %v1910 = vadd.f32 %v1363, %v1796
        %v1911 = vadd.f32 %v1364, %v1799
        %v1912 = vadd.f32 %v1365, %v1804
        %v1913 = vadd.f32 %v1366, %v1807
        %v1914 = vadd.f32 %v1367, %v1812
        %v1915 = vadd.f32 %v1368, %v1815
        %v1916 = vadd.f32 %v1369, %v1820
        %v1917 = vadd.f32 %v1370, %v1823
        %v1918 = vadd.f32 %v1371, %v1828
        %v1919 = vadd.f32 %v1372, %v1831
        %v1920 = vadd.f32 %v1373, %v1836
        %v1921 = vadd.f32 %v1374, %v1839
        %v1922 = vadd.f32 %v1375, %v1844
        %v1923 = vadd.f32 %v1376, %v1847
        %v1924 = vadd.f32 %v1377, %v1852
        %v1925 = vadd.f32 %v1378, %v1855
        %v1926 = vadd.f32 %v1379, %v1860
        %v1927 = vadd.f32 %v1380, %v1863
        %v1928 = vadd.f32 %v1381, %v1868
        %v1929 = vadd.f32 %v1382, %v1871
        %v1930 = vadd.f32 %v1383, %v1876
        %v1931 = vadd.f32 %v1384, %v1879
        %v1932 = vadd.f32 %v1385, %v1884
        %v1933 = vadd.f32 %v1386, %v1887
        %v1934 = vadd.f32 %v1387, %v1892
        %v1935 = vadd.f32 %v1388, %v1895
        %v1936 = vadd.f32 %v1389, %v1900
        %v1937 = vadd.f32 %v1390, %v1903
        %s1938 = scalar_lea.vmem [#allocation9], 384
        %v1939 = vld [vmem:[%s1938] sm:$0xf]
        %v1940 = vld [vmem:[%s1938 + $0x4] sm:$0xf]
        %v1941 = vld [vmem:[%s1938 + $0x8] sm:$0xf]
        %v1942 = vld [vmem:[%s1938 + $0xc] sm:$0xf]
        %v1943 = vld [vmem:[%s1938 + $0x10] sm:$0xf]
        %v1944 = vld [vmem:[%s1938 + $0x14] sm:$0xf]
        %v1945 = vld [vmem:[%s1938 + $0x18] sm:$0xf]
        %v1946 = vld [vmem:[%s1938 + $0x1c] sm:$0xf]
        %v1947 = vld [vmem:[%s1938 + $0x20] sm:$0xf]
        %v1948 = vld [vmem:[%s1938 + $0x24] sm:$0xf]
        %v1949 = vld [vmem:[%s1938 + $0x28] sm:$0xf]
        %v1950 = vld [vmem:[%s1938 + $0x2c] sm:$0xf]
        %v1951 = vld [vmem:[%s1938 + $0x30] sm:$0xf]
        %v1952 = vld [vmem:[%s1938 + $0x34] sm:$0xf]
        %v1953 = vld [vmem:[%s1938 + $0x38] sm:$0xf]
        %v1954 = vld [vmem:[%s1938 + $0x3c] sm:$0xf]
        %v1955 = vld [vmem:[%s1938 + $0x40] sm:$0xf]
        %v1956 = vld [vmem:[%s1938 + $0x44] sm:$0xf]
        %v1957 = vld [vmem:[%s1938 + $0x48] sm:$0xf]
        %v1958 = vld [vmem:[%s1938 + $0x4c] sm:$0xf]
        %v1959 = vld [vmem:[%s1938 + $0x50] sm:$0xf]
        %v1960 = vld [vmem:[%s1938 + $0x54] sm:$0xf]
        %v1961 = vld [vmem:[%s1938 + $0x58] sm:$0xf]
        %v1962 = vld [vmem:[%s1938 + $0x5c] sm:$0xf]
        %v1963 = vld [vmem:[%s1938 + $0x60] sm:$0xf]
        %v1964 = vld [vmem:[%s1938 + $0x64] sm:$0xf]
        %v1965 = vld [vmem:[%s1938 + $0x68] sm:$0xf]
        %v1966 = vld [vmem:[%s1938 + $0x6c] sm:$0xf]
        %v1967 = vld [vmem:[%s1938 + $0x70] sm:$0xf]
        %v1968 = vld [vmem:[%s1938 + $0x74] sm:$0xf]
        %v1969 = vld [vmem:[%s1938 + $0x78] sm:$0xf]
        %v1970 = vld [vmem:[%s1938 + $0x7c] sm:$0xf]
        %v1971 = vld [vmem:[%s1938 + $0x80] sm:$0xf]
        %v1972 = vld [vmem:[%s1938 + $0x84] sm:$0xf]
        %v1973 = vld [vmem:[%s1938 + $0x88] sm:$0xf]
        %v1974 = vld [vmem:[%s1938 + $0x8c] sm:$0xf]
        %v1975 = vld [vmem:[%s1938 + $0x90] sm:$0xf]
        %v1976 = vld [vmem:[%s1938 + $0x94] sm:$0xf]
        %v1977 = vld [vmem:[%s1938 + $0x98] sm:$0xf]
        %v1978 = vld [vmem:[%s1938 + $0x9c] sm:$0xf]
        %v1979 = vld [vmem:[%s1938 + $0xa0] sm:$0xf]
        %v1980 = vld [vmem:[%s1938 + $0xa4] sm:$0xf]
        %v1981 = vld [vmem:[%s1938 + $0xa8] sm:$0xf]
        %v1982 = vld [vmem:[%s1938 + $0xac] sm:$0xf]
        %v1983 = vld [vmem:[%s1938 + $0xb0] sm:$0xf]
        %v1984 = vld [vmem:[%s1938 + $0xb4] sm:$0xf]
        %v1985 = vld [vmem:[%s1938 + $0xb8] sm:$0xf]
        %v1986 = vld [vmem:[%s1938 + $0xbc] sm:$0xf]
        %v2035 = vunpack.c.l.b16 %v1939
        %v2036 = vunpack.c.l.b16 %v1940
        %v2037 = vunpack.c.l.b16 %v1941
        %v2038 = vunpack.c.l.b16 %v1942
        %v2039 = vunpack.c.l.b16 %v1943
        %v2040 = vunpack.c.l.b16 %v1944
        %v2041 = vunpack.c.l.b16 %v1945
        %v2042 = vunpack.c.l.b16 %v1946
        %v2043 = vunpack.c.l.b16 %v1947
        %v2044 = vunpack.c.l.b16 %v1948
        %v2045 = vunpack.c.l.b16 %v1949
        %v2046 = vunpack.c.l.b16 %v1950
        %v2047 = vunpack.c.l.b16 %v1951
        %v2048 = vunpack.c.l.b16 %v1952
        %v2049 = vunpack.c.l.b16 %v1953
        %v2050 = vunpack.c.l.b16 %v1954
        %v2051 = vunpack.c.l.b16 %v1955
        %v2052 = vunpack.c.l.b16 %v1956
        %v2053 = vunpack.c.l.b16 %v1957
        %v2054 = vunpack.c.l.b16 %v1958
        %v2055 = vunpack.c.l.b16 %v1959
        %v2056 = vunpack.c.l.b16 %v1960
        %v2057 = vunpack.c.l.b16 %v1961
        %v2058 = vunpack.c.l.b16 %v1962
        %v2059 = vunpack.c.l.b16 %v1963
        %v2060 = vunpack.c.l.b16 %v1964
        %v2061 = vunpack.c.l.b16 %v1965
        %v2062 = vunpack.c.l.b16 %v1966
        %v2063 = vunpack.c.l.b16 %v1967
        %v2064 = vunpack.c.l.b16 %v1968
        %v2065 = vunpack.c.l.b16 %v1969
        %v2066 = vunpack.c.l.b16 %v1970
        %v2067 = vunpack.c.l.b16 %v1971
        %v2068 = vunpack.c.l.b16 %v1972
        %v2069 = vunpack.c.l.b16 %v1973
        %v2070 = vunpack.c.l.b16 %v1974
        %v2071 = vunpack.c.l.b16 %v1975
        %v2072 = vunpack.c.l.b16 %v1976
        %v2073 = vunpack.c.l.b16 %v1977
        %v2074 = vunpack.c.l.b16 %v1978
        %v2075 = vunpack.c.l.b16 %v1979
        %v2076 = vunpack.c.l.b16 %v1980
        %v2077 = vunpack.c.l.b16 %v1981
        %v2078 = vunpack.c.l.b16 %v1982
        %v2079 = vunpack.c.l.b16 %v1983
        %v2080 = vunpack.c.l.b16 %v1984
        %v2081 = vunpack.c.l.b16 %v1985
        %v2082 = vunpack.c.l.b16 %v1986
        %v2083 = vpack.c.b16 %v2036, %v2035
        %v2084 = vpack.c.b16 %v2038, %v2037
        %v2085 = vpack.c.b16 %v2040, %v2039
        %v2086 = vpack.c.b16 %v2042, %v2041
        %v2087 = vpack.c.b16 %v2044, %v2043
        %v2088 = vpack.c.b16 %v2046, %v2045
        %v2089 = vpack.c.b16 %v2048, %v2047
        %v2090 = vpack.c.b16 %v2050, %v2049
        %v2091 = vpack.c.b16 %v2052, %v2051
        %v2092 = vpack.c.b16 %v2054, %v2053
        %v2093 = vpack.c.b16 %v2056, %v2055
        %v2094 = vpack.c.b16 %v2058, %v2057
        %v2095 = vpack.c.b16 %v2060, %v2059
        %v2096 = vpack.c.b16 %v2062, %v2061
        %v2097 = vpack.c.b16 %v2064, %v2063
        %v2098 = vpack.c.b16 %v2066, %v2065
        %v2099 = vpack.c.b16 %v2068, %v2067
        %v2100 = vpack.c.b16 %v2070, %v2069
        %v2101 = vpack.c.b16 %v2072, %v2071
        %v2102 = vpack.c.b16 %v2074, %v2073
        %v2103 = vpack.c.b16 %v2076, %v2075
        %v2104 = vpack.c.b16 %v2078, %v2077
        %v2105 = vpack.c.b16 %v2080, %v2079
        %v2106 = vpack.c.b16 %v2082, %v2081
        %2131 = vmatprep.subr.bf16.mxu0 0
        %2132 = vmatpush1.bf16.msra.mxu0 %v2083
        %2133 = vmatprep.subr.bf16.mxu0 0
        %2134 = vmatpush1.bf16.msra.mxu0 %v2084
        %2135 = vmatprep.subr.bf16.mxu0 0
        %2136 = vmatpush1.bf16.msra.mxu0 %v2085
        %2137 = vmatprep.subr.bf16.mxu0 0
        %2138 = vmatpush1.bf16.msra.mxu0 %v2086
        %2139 = vmatprep.subr.bf16.mxu0 0
        %2140 = vmatpush1.bf16.msra.mxu0 %v2087
        %2141 = vmatprep.subr.bf16.mxu0 0
        %2142 = vmatpush1.bf16.msra.mxu0 %v2088
        %2143 = vmatprep.subr.bf16.mxu0 0
        %2144 = vmatpush1.bf16.msra.mxu0 %v2089
        %2145 = vmatprep.subr.bf16.mxu0 0
        %2146 = vmatpush1.bf16.msra.mxu0 %v2090
        %2147 = vmatprep.subr.bf16.mxu0 0
        %2148 = vmatpush1.bf16.msra.mxu0 %v2091
        %2149 = vmatprep.subr.bf16.mxu0 0
        %2150 = vmatpush1.bf16.msra.mxu0 %v2092
        %2151 = vmatprep.subr.bf16.mxu0 0
        %2152 = vmatpush1.bf16.msra.mxu0 %v2093
        %2153 = vmatprep.subr.bf16.mxu0 0
        %2154 = vmatpush1.bf16.msra.mxu0 %v2094
        %2155 = vmatprep.subr.bf16.mxu0 0
        %2156 = vmatpush1.bf16.msra.mxu0 %v2095
        %2157 = vmatprep.subr.bf16.mxu0 0
        %2158 = vmatpush1.bf16.msra.mxu0 %v2096
        %2159 = vmatprep.subr.bf16.mxu0 0
        %2160 = vmatpush1.bf16.msra.mxu0 %v2097
        %2161 = vmatprep.subr.bf16.mxu0 0
        %2162 = vmatpush1.bf16.msra.mxu0 %v2098
        %2163 = vmatprep.mubr.bf16.mxu0 %v679
        %2164 = vmatmul.mubr.bf16.gmra.mrb[0].mxu0 %v663
        %v2165 = vpop.f32.mrb[0].mxu0
        %v2166 = vadd.f32 0.0, %v2165
        %v2167 = vpop.f32.mrb[0].mxu0
        %v2168 = vpop.f32.mrb[0].mxu0
        %v2169 = vadd.f32 0.0, %v2168
        %v2170 = vpop.f32.mrb[0].mxu0
        %2171 = vmatprep.mubr.bf16.mxu0 %v680
        %2172 = vmatmul.mubr.bf16.gmra.mrb[0].mxu0 %v664
        %v2173 = vpop.f32.mrb[0].mxu0
        %v2174 = vadd.f32 0.0, %v2173
        %v2175 = vpop.f32.mrb[0].mxu0
        %v2176 = vpop.f32.mrb[0].mxu0
        %v2177 = vadd.f32 0.0, %v2176
        %v2178 = vpop.f32.mrb[0].mxu0
        %2179 = vmatprep.mubr.bf16.mxu0 %v681
        %2180 = vmatmul.mubr.bf16.gmra.mrb[0].mxu0 %v665
        %v2181 = vpop.f32.mrb[0].mxu0
        %v2182 = vadd.f32 0.0, %v2181
        %v2183 = vpop.f32.mrb[0].mxu0
        %v2184 = vpop.f32.mrb[0].mxu0
        %v2185 = vadd.f32 0.0, %v2184
        %v2186 = vpop.f32.mrb[0].mxu0
        %2187 = vmatprep.mubr.bf16.mxu0 %v682
        %2188 = vmatmul.mubr.bf16.gmra.mrb[0].mxu0 %v666
        %v2189 = vpop.f32.mrb[0].mxu0
        %v2190 = vadd.f32 0.0, %v2189
        %v2191 = vpop.f32.mrb[0].mxu0
        %v2192 = vpop.f32.mrb[0].mxu0
        %v2193 = vadd.f32 0.0, %v2192
        %v2194 = vpop.f32.mrb[0].mxu0
        %2195 = vmatprep.mubr.bf16.mxu0 %v683
        %2196 = vmatmul.mubr.bf16.gmra.mrb[0].mxu0 %v667
        %v2197 = vpop.f32.mrb[0].mxu0
        %v2198 = vadd.f32 0.0, %v2197
        %v2199 = vpop.f32.mrb[0].mxu0
        %v2200 = vpop.f32.mrb[0].mxu0
        %v2201 = vadd.f32 0.0, %v2200
        %v2202 = vpop.f32.mrb[0].mxu0
        %2203 = vmatprep.mubr.bf16.mxu0 %v684
        %2204 = vmatmul.mubr.bf16.gmra.mrb[0].mxu0 %v668
        %v2205 = vpop.f32.mrb[0].mxu0
        %v2206 = vadd.f32 0.0, %v2205
        %v2207 = vpop.f32.mrb[0].mxu0
        %v2208 = vpop.f32.mrb[0].mxu0
        %v2209 = vadd.f32 0.0, %v2208
        %v2210 = vpop.f32.mrb[0].mxu0
        %2211 = vmatprep.mubr.bf16.mxu0 %v685
        %2212 = vmatmul.mubr.bf16.gmra.mrb[0].mxu0 %v669
        %v2213 = vpop.f32.mrb[0].mxu0
        %v2214 = vadd.f32 0.0, %v2213
        %v2215 = vpop.f32.mrb[0].mxu0
        %v2216 = vpop.f32.mrb[0].mxu0
        %v2217 = vadd.f32 0.0, %v2216
        %v2218 = vpop.f32.mrb[0].mxu0
        %2219 = vmatprep.mubr.bf16.mxu0 %v686
        %2220 = vmatmul.mubr.bf16.gmra.mrb[0].mxu0 %v670
        %v2221 = vpop.f32.mrb[0].mxu0
        %v2222 = vadd.f32 0.0, %v2221
        %v2223 = vpop.f32.mrb[0].mxu0
        %v2224 = vpop.f32.mrb[0].mxu0
        %v2225 = vadd.f32 0.0, %v2224
        %v2226 = vpop.f32.mrb[0].mxu0
        %2227 = vmatprep.mubr.bf16.mxu0 %v687
        %2228 = vmatmul.mubr.bf16.gmra.mrb[0].mxu0 %v671
        %v2229 = vpop.f32.mrb[0].mxu0
        %v2230 = vadd.f32 0.0, %v2229
        %v2231 = vpop.f32.mrb[0].mxu0
        %v2232 = vpop.f32.mrb[0].mxu0
        %v2233 = vadd.f32 0.0, %v2232
        %v2234 = vpop.f32.mrb[0].mxu0
        %2235 = vmatprep.mubr.bf16.mxu0 %v688
        %2236 = vmatmul.mubr.bf16.gmra.mrb[0].mxu0 %v672
        %v2237 = vpop.f32.mrb[0].mxu0
        %v2238 = vadd.f32 0.0, %v2237
        %v2239 = vpop.f32.mrb[0].mxu0
        %v2240 = vpop.f32.mrb[0].mxu0
        %v2241 = vadd.f32 0.0, %v2240
        %v2242 = vpop.f32.mrb[0].mxu0
        %2243 = vmatprep.mubr.bf16.mxu0 %v689
        %2244 = vmatmul.mubr.bf16.gmra.mrb[0].mxu0 %v673
        %v2245 = vpop.f32.mrb[0].mxu0
        %v2246 = vadd.f32 0.0, %v2245
        %v2247 = vpop.f32.mrb[0].mxu0
        %v2248 = vpop.f32.mrb[0].mxu0
        %v2249 = vadd.f32 0.0, %v2248
        %v2250 = vpop.f32.mrb[0].mxu0
        %2251 = vmatprep.mubr.bf16.mxu0 %v690
        %2252 = vmatmul.mubr.bf16.gmra.mrb[0].mxu0 %v674
        %v2253 = vpop.f32.mrb[0].mxu0
        %v2254 = vadd.f32 0.0, %v2253
        %v2255 = vpop.f32.mrb[0].mxu0
        %v2256 = vpop.f32.mrb[0].mxu0
        %v2257 = vadd.f32 0.0, %v2256
        %v2258 = vpop.f32.mrb[0].mxu0
        %2259 = vmatprep.mubr.bf16.mxu0 %v691
        %2260 = vmatmul.mubr.bf16.gmra.mrb[0].mxu0 %v675
        %v2261 = vpop.f32.mrb[0].mxu0
        %v2262 = vadd.f32 0.0, %v2261
        %v2263 = vpop.f32.mrb[0].mxu0
        %v2264 = vpop.f32.mrb[0].mxu0
        %v2265 = vadd.f32 0.0, %v2264
        %v2266 = vpop.f32.mrb[0].mxu0
        %2267 = vmatprep.mubr.bf16.mxu0 %v692
        %2268 = vmatmul.mubr.bf16.gmra.mrb[0].mxu0 %v676
        %v2269 = vpop.f32.mrb[0].mxu0
        %v2270 = vadd.f32 0.0, %v2269
        %v2271 = vpop.f32.mrb[0].mxu0
        %v2272 = vpop.f32.mrb[0].mxu0
        %v2273 = vadd.f32 0.0, %v2272
        %v2274 = vpop.f32.mrb[0].mxu0
        %2275 = vmatprep.mubr.bf16.mxu0 %v693
        %2276 = vmatmul.mubr.bf16.gmra.mrb[0].mxu0 %v677
        %v2277 = vpop.f32.mrb[0].mxu0
        %v2278 = vadd.f32 0.0, %v2277
        %v2279 = vpop.f32.mrb[0].mxu0
        %v2280 = vpop.f32.mrb[0].mxu0
        %v2281 = vadd.f32 0.0, %v2280
        %v2282 = vpop.f32.mrb[0].mxu0
        %2283 = vmatprep.mubr.bf16.mxu0 %v694
        %2284 = vmatmul.mubr.bf16.gmra.mrb[0].mxu0 %v678
        %v2285 = vpop.f32.mrb[0].mxu0
        %v2286 = vadd.f32 0.0, %v2285
        %v2287 = vpop.f32.mrb[0].mxu0
        %v2288 = vpop.f32.mrb[0].mxu0
        %v2289 = vadd.f32 0.0, %v2288
        %v2290 = vpop.f32.mrb[0].mxu0
        %2291 = vdwg.mxu0
        %2292 = vmatprep.subr.bf16.mxu0 0
        %2293 = vmatpush1.bf16.msra.mxu0 %v2099
        %2294 = vmatprep.subr.bf16.mxu0 0
        %2295 = vmatpush1.bf16.msra.mxu0 %v2100
        %2296 = vmatprep.subr.bf16.mxu0 0
        %2297 = vmatpush1.bf16.msra.mxu0 %v2101
        %2298 = vmatprep.subr.bf16.mxu0 0
        %2299 = vmatpush1.bf16.msra.mxu0 %v2102
        %2300 = vmatprep.subr.bf16.mxu0 0
        %2301 = vmatpush1.bf16.msra.mxu0 %v2103
        %2302 = vmatprep.subr.bf16.mxu0 0
        %2303 = vmatpush1.bf16.msra.mxu0 %v2104
        %2304 = vmatprep.subr.bf16.mxu0 0
        %2305 = vmatpush1.bf16.msra.mxu0 %v2105
        %2306 = vmatprep.subr.bf16.mxu0 0
        %2307 = vmatpush1.bf16.msra.mxu0 %v2106
        %2308 = vmatprep.subr.bf16.mxu0 0
        %2309 = vmatpush1.bf16.msra.mxu0 0
        %2310 = vmatprep.subr.bf16.mxu0 0
        %2311 = vmatpush1.bf16.msra.mxu0 0
        %2312 = vmatprep.subr.bf16.mxu0 0
        %2313 = vmatpush1.bf16.msra.mxu0 0
        %2314 = vmatprep.subr.bf16.mxu0 0
        %2315 = vmatpush1.bf16.msra.mxu0 0
        %2316 = vmatprep.subr.bf16.mxu0 0
        %2317 = vmatpush1.bf16.msra.mxu0 0
        %2318 = vmatprep.subr.bf16.mxu0 0
        %2319 = vmatpush1.bf16.msra.mxu0 0
        %2320 = vmatprep.subr.bf16.mxu0 0
        %2321 = vmatpush1.bf16.msra.mxu0 0
        %2322 = vmatprep.subr.bf16.mxu0 0
        %2323 = vmatpush1.bf16.msra.mxu0 0
        %2324 = vmatprep.mubr.bf16.mxu0 0
        %2325 = vmatmul.mubr.bf16.gmra.mrb[0].mxu0 %v696
        %v2326 = vpop.f32.mrb[0].mxu0
        %v2327 = vadd.f32 %v2166, %v2326
        %v2328 = vpop.f32.mrb[0].mxu0
        %v2329 = vpop.f32.mrb[0].mxu0
        %v2330 = vadd.f32 %v2169, %v2329
        %v2331 = vpop.f32.mrb[0].mxu0
        %2332 = vmatprep.mubr.bf16.mxu0 0
        %2333 = vmatmul.mubr.bf16.gmra.mrb[0].mxu0 %v697
        %v2334 = vpop.f32.mrb[0].mxu0
        %v2335 = vadd.f32 %v2174, %v2334
        %v2336 = vpop.f32.mrb[0].mxu0
        %v2337 = vpop.f32.mrb[0].mxu0
        %v2338 = vadd.f32 %v2177, %v2337
        %v2339 = vpop.f32.mrb[0].mxu0
        %2340 = vmatprep.mubr.bf16.mxu0 0
        %2341 = vmatmul.mubr.bf16.gmra.mrb[0].mxu0 %v698
        %v2342 = vpop.f32.mrb[0].mxu0
        %v2343 = vadd.f32 %v2182, %v2342
        %v2344 = vpop.f32.mrb[0].mxu0
        %v2345 = vpop.f32.mrb[0].mxu0
        %v2346 = vadd.f32 %v2185, %v2345
        %v2347 = vpop.f32.mrb[0].mxu0
        %2348 = vmatprep.mubr.bf16.mxu0 0
        %2349 = vmatmul.mubr.bf16.gmra.mrb[0].mxu0 %v699
        %v2350 = vpop.f32.mrb[0].mxu0
        %v2351 = vadd.f32 %v2190, %v2350
        %v2352 = vpop.f32.mrb[0].mxu0
        %v2353 = vpop.f32.mrb[0].mxu0
        %v2354 = vadd.f32 %v2193, %v2353
        %v2355 = vpop.f32.mrb[0].mxu0
        %2356 = vmatprep.mubr.bf16.mxu0 0
        %2357 = vmatmul.mubr.bf16.gmra.mrb[0].mxu0 %v700
        %v2358 = vpop.f32.mrb[0].mxu0
        %v2359 = vadd.f32 %v2198, %v2358
        %v2360 = vpop.f32.mrb[0].mxu0
        %v2361 = vpop.f32.mrb[0].mxu0
        %v2362 = vadd.f32 %v2201, %v2361
        %v2363 = vpop.f32.mrb[0].mxu0
        %2364 = vmatprep.mubr.bf16.mxu0 0
        %2365 = vmatmul.mubr.bf16.gmra.mrb[0].mxu0 %v701
        %v2366 = vpop.f32.mrb[0].mxu0
        %v2367 = vadd.f32 %v2206, %v2366
        %v2368 = vpop.f32.mrb[0].mxu0
        %v2369 = vpop.f32.mrb[0].mxu0
        %v2370 = vadd.f32 %v2209, %v2369
        %v2371 = vpop.f32.mrb[0].mxu0
        %2372 = vmatprep.mubr.bf16.mxu0 0
        %2373 = vmatmul.mubr.bf16.gmra.mrb[0].mxu0 %v702
        %v2374 = vpop.f32.mrb[0].mxu0
        %v2375 = vadd.f32 %v2214, %v2374
        %v2376 = vpop.f32.mrb[0].mxu0
        %v2377 = vpop.f32.mrb[0].mxu0
        %v2378 = vadd.f32 %v2217, %v2377
        %v2379 = vpop.f32.mrb[0].mxu0
        %2380 = vmatprep.mubr.bf16.mxu0 0
        %2381 = vmatmul.mubr.bf16.gmra.mrb[0].mxu0 %v703
        %v2382 = vpop.f32.mrb[0].mxu0
        %v2383 = vadd.f32 %v2222, %v2382
        %v2384 = vpop.f32.mrb[0].mxu0
        %v2385 = vpop.f32.mrb[0].mxu0
        %v2386 = vadd.f32 %v2225, %v2385
        %v2387 = vpop.f32.mrb[0].mxu0
        %2388 = vmatprep.mubr.bf16.mxu0 0
        %2389 = vmatmul.mubr.bf16.gmra.mrb[0].mxu0 %v704
        %v2390 = vpop.f32.mrb[0].mxu0
        %v2391 = vadd.f32 %v2230, %v2390
        %v2392 = vpop.f32.mrb[0].mxu0
        %v2393 = vpop.f32.mrb[0].mxu0
        %v2394 = vadd.f32 %v2233, %v2393
        %v2395 = vpop.f32.mrb[0].mxu0
        %2396 = vmatprep.mubr.bf16.mxu0 0
        %2397 = vmatmul.mubr.bf16.gmra.mrb[0].mxu0 %v705
        %v2398 = vpop.f32.mrb[0].mxu0
        %v2399 = vadd.f32 %v2238, %v2398
        %v2400 = vpop.f32.mrb[0].mxu0
        %v2401 = vpop.f32.mrb[0].mxu0
        %v2402 = vadd.f32 %v2241, %v2401
        %v2403 = vpop.f32.mrb[0].mxu0
        %2404 = vmatprep.mubr.bf16.mxu0 0
        %2405 = vmatmul.mubr.bf16.gmra.mrb[0].mxu0 %v706
        %v2406 = vpop.f32.mrb[0].mxu0
        %v2407 = vadd.f32 %v2246, %v2406
        %v2408 = vpop.f32.mrb[0].mxu0
        %v2409 = vpop.f32.mrb[0].mxu0
        %v2410 = vadd.f32 %v2249, %v2409
        %v2411 = vpop.f32.mrb[0].mxu0
        %2412 = vmatprep.mubr.bf16.mxu0 0
        %2413 = vmatmul.mubr.bf16.gmra.mrb[0].mxu0 %v707
        %v2414 = vpop.f32.mrb[0].mxu0
        %v2415 = vadd.f32 %v2254, %v2414
        %v2416 = vpop.f32.mrb[0].mxu0
        %v2417 = vpop.f32.mrb[0].mxu0
        %v2418 = vadd.f32 %v2257, %v2417
        %v2419 = vpop.f32.mrb[0].mxu0
        %2420 = vmatprep.mubr.bf16.mxu0 0
        %2421 = vmatmul.mubr.bf16.gmra.mrb[0].mxu0 %v708
        %v2422 = vpop.f32.mrb[0].mxu0
        %v2423 = vadd.f32 %v2262, %v2422
        %v2424 = vpop.f32.mrb[0].mxu0
        %v2425 = vpop.f32.mrb[0].mxu0
        %v2426 = vadd.f32 %v2265, %v2425
        %v2427 = vpop.f32.mrb[0].mxu0
        %2428 = vmatprep.mubr.bf16.mxu0 0
        %2429 = vmatmul.mubr.bf16.gmra.mrb[0].mxu0 %v709
        %v2430 = vpop.f32.mrb[0].mxu0
        %v2431 = vadd.f32 %v2270, %v2430
        %v2432 = vpop.f32.mrb[0].mxu0
        %v2433 = vpop.f32.mrb[0].mxu0
        %v2434 = vadd.f32 %v2273, %v2433
        %v2435 = vpop.f32.mrb[0].mxu0
        %2436 = vmatprep.mubr.bf16.mxu0 0
        %2437 = vmatmul.mubr.bf16.gmra.mrb[0].mxu0 %v710
        %v2438 = vpop.f32.mrb[0].mxu0
        %v2439 = vadd.f32 %v2278, %v2438
        %v2440 = vpop.f32.mrb[0].mxu0
        %v2441 = vpop.f32.mrb[0].mxu0
        %v2442 = vadd.f32 %v2281, %v2441
        %v2443 = vpop.f32.mrb[0].mxu0
        %2444 = vmatprep.mubr.bf16.mxu0 0
        %2445 = vmatmul.mubr.bf16.gmra.mrb[0].mxu0 %v711
        %v2446 = vpop.f32.mrb[0].mxu0
        %v2447 = vadd.f32 %v2286, %v2446
        %v2448 = vpop.f32.mrb[0].mxu0
        %v2449 = vpop.f32.mrb[0].mxu0
        %v2450 = vadd.f32 %v2289, %v2449
        %v2451 = vpop.f32.mrb[0].mxu0
        %2452 = vdwg.mxu0
        %v2453 = vrot.slane %v2327, 1
        %v2454 = vrot.slane %v2330, 1
        %v2455 = vrot.slane %v2335, 1
        %v2456 = vrot.slane %v2338, 1
        %v2457 = vrot.slane %v2343, 1
        %v2458 = vrot.slane %v2346, 1
        %v2459 = vrot.slane %v2351, 1
        %v2460 = vrot.slane %v2354, 1
        %v2461 = vrot.slane %v2359, 1
        %v2462 = vrot.slane %v2362, 1
        %v2463 = vrot.slane %v2367, 1
        %v2464 = vrot.slane %v2370, 1
        %v2465 = vrot.slane %v2375, 1
        %v2466 = vrot.slane %v2378, 1
        %v2467 = vrot.slane %v2383, 1
        %v2468 = vrot.slane %v2386, 1
        %v2469 = vrot.slane %v2391, 1
        %v2470 = vrot.slane %v2394, 1
        %v2471 = vrot.slane %v2399, 1
        %v2472 = vrot.slane %v2402, 1
        %v2473 = vrot.slane %v2407, 1
        %v2474 = vrot.slane %v2410, 1
        %v2475 = vrot.slane %v2415, 1
        %v2476 = vrot.slane %v2418, 1
        %v2477 = vrot.slane %v2423, 1
        %v2478 = vrot.slane %v2426, 1
        %v2479 = vrot.slane %v2431, 1
        %v2480 = vrot.slane %v2434, 1
        %v2481 = vrot.slane %v2439, 1
        %v2482 = vrot.slane %v2442, 1
        %v2483 = vrot.slane %v2447, 1
        %v2484 = vrot.slane %v2450, 1
        %vm2485 = vcmp.lt.s32.totalorder %v319, 7
        %v2486 = vsel %vm2485, %v2483, %v2484
        %v2487 = vsel %vm2485, %v2482, %v2483
        %v2488 = vsel %vm2485, %v2481, %v2482
        %v2489 = vsel %vm2485, %v2480, %v2481
        %v2490 = vsel %vm2485, %v2479, %v2480
        %v2491 = vsel %vm2485, %v2478, %v2479
        %v2492 = vsel %vm2485, %v2477, %v2478
        %v2493 = vsel %vm2485, %v2476, %v2477
        %v2494 = vsel %vm2485, %v2475, %v2476
        %v2495 = vsel %vm2485, %v2474, %v2475
        %v2496 = vsel %vm2485, %v2473, %v2474
        %v2497 = vsel %vm2485, %v2472, %v2473
        %v2498 = vsel %vm2485, %v2471, %v2472
        %v2499 = vsel %vm2485, %v2470, %v2471
        %v2500 = vsel %vm2485, %v2469, %v2470
        %v2501 = vsel %vm2485, %v2468, %v2469
        %v2502 = vsel %vm2485, %v2467, %v2468
        %v2503 = vsel %vm2485, %v2466, %v2467
        %v2504 = vsel %vm2485, %v2465, %v2466
        %v2505 = vsel %vm2485, %v2464, %v2465
        %v2506 = vsel %vm2485, %v2463, %v2464
        %v2507 = vsel %vm2485, %v2462, %v2463
        %v2508 = vsel %vm2485, %v2461, %v2462
        %v2509 = vsel %vm2485, %v2460, %v2461
        %v2510 = vsel %vm2485, %v2459, %v2460
        %v2511 = vsel %vm2485, %v2458, %v2459
        %v2512 = vsel %vm2485, %v2457, %v2458
        %v2513 = vsel %vm2485, %v2456, %v2457
        %v2514 = vsel %vm2485, %v2455, %v2456
        %v2515 = vsel %vm2485, %v2454, %v2455
        %v2516 = vsel %vm2485, %v2453, %v2454
        %v2517 = vsel %vm2485, %v2484, %v2453
        %v2518 = vsel %vm323, 1, 0
        %v2519 = vsel %vm324, 1, 0
        %vm2520 = vcmp.eq.s32.totalorder %v2518, 1
        %vm2521 = vcmp.eq.s32.totalorder %v2519, 1
        %v2522 = vsel %vm2520, %v2516, 0.0
        %v2523 = vsel %vm2521, %v2515, 0.0
        %v2524 = vsel %vm2520, %v2514, 0.0
        %v2525 = vsel %vm2521, %v2513, 0.0
        %v2526 = vsel %vm2520, %v2512, 0.0
        %v2527 = vsel %vm2521, %v2511, 0.0
        %v2528 = vsel %vm2520, %v2510, 0.0
        %v2529 = vsel %vm2521, %v2509, 0.0
        %v2530 = vsel %vm2520, %v2508, 0.0
        %v2531 = vsel %vm2521, %v2507, 0.0
        %v2532 = vsel %vm2520, %v2506, 0.0
        %v2533 = vsel %vm2521, %v2505, 0.0
        %v2534 = vsel %vm2520, %v2504, 0.0
        %v2535 = vsel %vm2521, %v2503, 0.0
        %v2536 = vsel %vm2520, %v2502, 0.0
        %v2537 = vsel %vm2521, %v2501, 0.0
        %v2538 = vsel %vm2520, %v2500, 0.0
        %v2539 = vsel %vm2521, %v2499, 0.0
        %v2540 = vsel %vm2520, %v2498, 0.0
        %v2541 = vsel %vm2521, %v2497, 0.0
        %v2542 = vsel %vm2520, %v2496, 0.0
        %v2543 = vsel %vm2521, %v2495, 0.0
        %v2544 = vsel %vm2520, %v2494, 0.0
        %v2545 = vsel %vm2521, %v2493, 0.0
        %v2546 = vsel %vm2520, %v2492, 0.0
        %v2547 = vsel %vm2521, %v2491, 0.0
        %v2548 = vsel %vm2520, %v2490, 0.0
        %v2549 = vsel %vm2521, %v2489, 0.0
        %v2550 = vsel %vm2520, %v2488, 0.0
        %v2551 = vsel %vm2521, %v2487, 0.0
        %v2552 = vsel %vm2520, %v2486, 0.0
        %v2553 = vsel %vm2521, %v2517, 0.0
        %v2554 = vadd.f32 %v1906, %v2522
        %v2555 = vadd.f32 %v1907, %v2523
        %v2556 = vadd.f32 %v1908, %v2524
        %v2557 = vadd.f32 %v1909, %v2525
        %v2558 = vadd.f32 %v1910, %v2526
        %v2559 = vadd.f32 %v1911, %v2527
        %v2560 = vadd.f32 %v1912, %v2528
        %v2561 = vadd.f32 %v1913, %v2529
        %v2562 = vadd.f32 %v1914, %v2530
        %v2563 = vadd.f32 %v1915, %v2531
        %v2564 = vadd.f32 %v1916, %v2532
        %v2565 = vadd.f32 %v1917, %v2533
        %v2566 = vadd.f32 %v1918, %v2534
        %v2567 = vadd.f32 %v1919, %v2535
        %v2568 = vadd.f32 %v1920, %v2536
        %v2569 = vadd.f32 %v1921, %v2537
        %v2570 = vadd.f32 %v1922, %v2538
        %v2571 = vadd.f32 %v1923, %v2539
        %v2572 = vadd.f32 %v1924, %v2540
        %v2573 = vadd.f32 %v1925, %v2541
        %v2574 = vadd.f32 %v1926, %v2542
        %v2575 = vadd.f32 %v1927, %v2543
        %v2576 = vadd.f32 %v1928, %v2544
        %v2577 = vadd.f32 %v1929, %v2545
        %v2578 = vadd.f32 %v1930, %v2546
        %v2579 = vadd.f32 %v1931, %v2547
        %v2580 = vadd.f32 %v1932, %v2548
        %v2581 = vadd.f32 %v1933, %v2549
        %v2582 = vadd.f32 %v1934, %v2550
        %v2583 = vadd.f32 %v1935, %v2551
        %v2584 = vadd.f32 %v1936, %v2552
        %v2585 = vadd.f32 %v1937, %v2553
        %2586 = vst [vmem:[#allocation2] sm:$0xff] %v2554
        %2587 = vst [vmem:[#allocation2 + $0x8] sm:$0xff] %v2555
        %2588 = vst [vmem:[#allocation2 + $0x10] sm:$0xff] %v2556
        %2589 = vst [vmem:[#allocation2 + $0x18] sm:$0xff] %v2557
        %2590 = vst [vmem:[#allocation2 + $0x20] sm:$0xff] %v2558
        %2591 = vst [vmem:[#allocation2 + $0x28] sm:$0xff] %v2559
        %2592 = vst [vmem:[#allocation2 + $0x30] sm:$0xff] %v2560
        %2593 = vst [vmem:[#allocation2 + $0x38] sm:$0xff] %v2561
        %2594 = vst [vmem:[#allocation2 + $0x40] sm:$0xff] %v2562
        %2595 = vst [vmem:[#allocation2 + $0x48] sm:$0xff] %v2563
        %2596 = vst [vmem:[#allocation2 + $0x50] sm:$0xff] %v2564
        %2597 = vst [vmem:[#allocation2 + $0x58] sm:$0xff] %v2565
        %2598 = vst [vmem:[#allocation2 + $0x60] sm:$0xff] %v2566
        %2599 = vst [vmem:[#allocation2 + $0x68] sm:$0xff] %v2567
        %2600 = vst [vmem:[#allocation2 + $0x70] sm:$0xff] %v2568
        %2601 = vst [vmem:[#allocation2 + $0x78] sm:$0xff] %v2569
        %2602 = vst [vmem:[#allocation2 + $0x80] sm:$0xff] %v2570
        %2603 = vst [vmem:[#allocation2 + $0x88] sm:$0xff] %v2571
        %2604 = vst [vmem:[#allocation2 + $0x90] sm:$0xff] %v2572
        %2605 = vst [vmem:[#allocation2 + $0x98] sm:$0xff] %v2573
        %2606 = vst [vmem:[#allocation2 + $0xa0] sm:$0xff] %v2574
        %2607 = vst [vmem:[#allocation2 + $0xa8] sm:$0xff] %v2575
        %2608 = vst [vmem:[#allocation2 + $0xb0] sm:$0xff] %v2576
        %2609 = vst [vmem:[#allocation2 + $0xb8] sm:$0xff] %v2577
        %2610 = vst [vmem:[#allocation2 + $0xc0] sm:$0xff] %v2578
        %2611 = vst [vmem:[#allocation2 + $0xc8] sm:$0xff] %v2579
        %2612 = vst [vmem:[#allocation2 + $0xd0] sm:$0xff] %v2580
        %2613 = vst [vmem:[#allocation2 + $0xd8] sm:$0xff] %v2581
        %2614 = vst [vmem:[#allocation2 + $0xe0] sm:$0xff] %v2582
        %2615 = vst [vmem:[#allocation2 + $0xe8] sm:$0xff] %v2583
        %2616 = vst [vmem:[#allocation2 + $0xf0] sm:$0xff] %v2584
        %2617 = vst [vmem:[#allocation2 + $0xf8] sm:$0xff] %v2585
        %v2618 = vld [vmem:[#allocation2] sm:$0xff]
        %v2619 = vld [vmem:[#allocation2 + $0x8] sm:$0xff]
        %v2620 = vld [vmem:[#allocation2 + $0x10] sm:$0xff]
        %v2621 = vld [vmem:[#allocation2 + $0x18] sm:$0xff]
        %v2622 = vld [vmem:[#allocation2 + $0x20] sm:$0xff]
        %v2623 = vld [vmem:[#allocation2 + $0x28] sm:$0xff]
        %v2624 = vld [vmem:[#allocation2 + $0x30] sm:$0xff]
        %v2625 = vld [vmem:[#allocation2 + $0x38] sm:$0xff]
        %v2626 = vld [vmem:[#allocation2 + $0x40] sm:$0xff]
        %v2627 = vld [vmem:[#allocation2 + $0x48] sm:$0xff]
        %v2628 = vld [vmem:[#allocation2 + $0x50] sm:$0xff]
        %v2629 = vld [vmem:[#allocation2 + $0x58] sm:$0xff]
        %v2630 = vld [vmem:[#allocation2 + $0x60] sm:$0xff]
        %v2631 = vld [vmem:[#allocation2 + $0x68] sm:$0xff]
        %v2632 = vld [vmem:[#allocation2 + $0x70] sm:$0xff]
        %v2633 = vld [vmem:[#allocation2 + $0x78] sm:$0xff]
        %v2634 = vld [vmem:[#allocation2 + $0x80] sm:$0xff]
        %v2635 = vld [vmem:[#allocation2 + $0x88] sm:$0xff]
        %v2636 = vld [vmem:[#allocation2 + $0x90] sm:$0xff]
        %v2637 = vld [vmem:[#allocation2 + $0x98] sm:$0xff]
        %v2638 = vld [vmem:[#allocation2 + $0xa0] sm:$0xff]
        %v2639 = vld [vmem:[#allocation2 + $0xa8] sm:$0xff]
        %v2640 = vld [vmem:[#allocation2 + $0xb0] sm:$0xff]
        %v2641 = vld [vmem:[#allocation2 + $0xb8] sm:$0xff]
        %v2642 = vld [vmem:[#allocation2 + $0xc0] sm:$0xff]
        %v2643 = vld [vmem:[#allocation2 + $0xc8] sm:$0xff]
        %v2644 = vld [vmem:[#allocation2 + $0xd0] sm:$0xff]
        %v2645 = vld [vmem:[#allocation2 + $0xd8] sm:$0xff]
        %v2646 = vld [vmem:[#allocation2 + $0xe0] sm:$0xff]
        %v2647 = vld [vmem:[#allocation2 + $0xe8] sm:$0xff]
        %v2648 = vld [vmem:[#allocation2 + $0xf0] sm:$0xff]
        %v2649 = vld [vmem:[#allocation2 + $0xf8] sm:$0xff]
        %v2650 = vpack.c.bf16 %v2619, %v2618
        %v2651 = vpack.c.bf16 %v2621, %v2620
        %v2652 = vpack.c.bf16 %v2623, %v2622
        %v2653 = vpack.c.bf16 %v2625, %v2624
        %v2654 = vpack.c.bf16 %v2627, %v2626
        %v2655 = vpack.c.bf16 %v2629, %v2628
        %v2656 = vpack.c.bf16 %v2631, %v2630
        %v2657 = vpack.c.bf16 %v2633, %v2632
        %v2658 = vpack.c.bf16 %v2635, %v2634
        %v2659 = vpack.c.bf16 %v2637, %v2636
        %v2660 = vpack.c.bf16 %v2639, %v2638
        %v2661 = vpack.c.bf16 %v2641, %v2640
        %v2662 = vpack.c.bf16 %v2643, %v2642
        %v2663 = vpack.c.bf16 %v2645, %v2644
        %v2664 = vpack.c.bf16 %v2647, %v2646
        %v2665 = vpack.c.bf16 %v2649, %v2648
        %s2666 = scalar_lea.vmem [#allocation7], 64
        %v2667 = vld [vmem:[%s2666] sm:$0xf]
        %v2668 = vld [vmem:[%s2666 + $0x4] sm:$0xf]
        %v2669 = vld [vmem:[%s2666 + $0x8] sm:$0xf]
        %v2670 = vld [vmem:[%s2666 + $0xc] sm:$0xf]
        %v2671 = vld [vmem:[%s2666 + $0x10] sm:$0xf]
        %v2672 = vld [vmem:[%s2666 + $0x14] sm:$0xf]
        %v2673 = vld [vmem:[%s2666 + $0x18] sm:$0xf]
        %v2674 = vld [vmem:[%s2666 + $0x1c] sm:$0xf]
        %v2675 = vld [vmem:[%s2666 + $0x20] sm:$0xf]
        %v2676 = vld [vmem:[%s2666 + $0x24] sm:$0xf]
        %v2677 = vld [vmem:[%s2666 + $0x28] sm:$0xf]
        %v2678 = vld [vmem:[%s2666 + $0x2c] sm:$0xf]
        %v2679 = vld [vmem:[%s2666 + $0x30] sm:$0xf]
        %v2680 = vld [vmem:[%s2666 + $0x34] sm:$0xf]
        %v2681 = vld [vmem:[%s2666 + $0x38] sm:$0xf]
        %v2682 = vld [vmem:[%s2666 + $0x3c] sm:$0xf]
        %v2699 = vunpack.c.l.b16 %v2667
        %v2700 = vunpack.c.l.b16 %v2668
        %v2701 = vunpack.c.l.b16 %v2669
        %v2702 = vunpack.c.l.b16 %v2670
        %v2703 = vunpack.c.l.b16 %v2671
        %v2704 = vunpack.c.l.b16 %v2672
        %v2705 = vunpack.c.l.b16 %v2673
        %v2706 = vunpack.c.l.b16 %v2674
        %v2707 = vunpack.c.l.b16 %v2675
        %v2708 = vunpack.c.l.b16 %v2676
        %v2709 = vunpack.c.l.b16 %v2677
        %v2710 = vunpack.c.l.b16 %v2678
        %v2711 = vunpack.c.l.b16 %v2679
        %v2712 = vunpack.c.l.b16 %v2680
        %v2713 = vunpack.c.l.b16 %v2681
        %v2714 = vunpack.c.l.b16 %v2682
        %v2715 = vpack.c.b16 %v2700, %v2699
        %v2716 = vpack.c.b16 %v2702, %v2701
        %v2717 = vpack.c.b16 %v2704, %v2703
        %v2718 = vpack.c.b16 %v2706, %v2705
        %v2719 = vpack.c.b16 %v2708, %v2707
        %v2720 = vpack.c.b16 %v2710, %v2709
        %v2721 = vpack.c.b16 %v2712, %v2711
        %v2722 = vpack.c.b16 %v2714, %v2713
        %2731 = vmatprep.subr.bf16.mxu0 0
        %2732 = vmatpush1.bf16.msra.mxu0 %v2715
        %2733 = vmatprep.subr.bf16.mxu0 0
        %2734 = vmatpush1.bf16.msra.mxu0 %v2716
        %2735 = vmatprep.subr.bf16.mxu0 0
        %2736 = vmatpush1.bf16.msra.mxu0 %v2717
        %2737 = vmatprep.subr.bf16.mxu0 0
        %2738 = vmatpush1.bf16.msra.mxu0 %v2718
        %2739 = vmatprep.subr.bf16.mxu0 0
        %2740 = vmatpush1.bf16.msra.mxu0 %v2719
        %2741 = vmatprep.subr.bf16.mxu0 0
        %2742 = vmatpush1.bf16.msra.mxu0 %v2720
        %2743 = vmatprep.subr.bf16.mxu0 0
        %2744 = vmatpush1.bf16.msra.mxu0 %v2721
        %2745 = vmatprep.subr.bf16.mxu0 0
        %2746 = vmatpush1.bf16.msra.mxu0 %v2722
        %2747 = vmatprep.subr.bf16.mxu0 0
        %2748 = vmatpush1.bf16.msra.mxu0 0
        %2749 = vmatprep.subr.bf16.mxu0 0
        %2750 = vmatpush1.bf16.msra.mxu0 0
        %2751 = vmatprep.subr.bf16.mxu0 0
        %2752 = vmatpush1.bf16.msra.mxu0 0
        %2753 = vmatprep.subr.bf16.mxu0 0
        %2754 = vmatpush1.bf16.msra.mxu0 0
        %2755 = vmatprep.subr.bf16.mxu0 0
        %2756 = vmatpush1.bf16.msra.mxu0 0
        %2757 = vmatprep.subr.bf16.mxu0 0
        %2758 = vmatpush1.bf16.msra.mxu0 0
        %2759 = vmatprep.subr.bf16.mxu0 0
        %2760 = vmatpush1.bf16.msra.mxu0 0
        %2761 = vmatprep.subr.bf16.mxu0 0
        %2762 = vmatpush1.bf16.msra.mxu0 0
        %2763 = vmatprep.mubr.bf16.mxu0 0
        %2764 = vmatmul.mubr.bf16.gmra.mrb[0].mxu0 %v2650
        %v2765 = vpop.f32.mrb[0].mxu0
        %v2766 = vadd.f32 0.0, %v2765
        %v2767 = vpop.f32.mrb[0].mxu0
        %v2768 = vpop.f32.mrb[0].mxu0
        %v2769 = vadd.f32 0.0, %v2768
        %v2770 = vpop.f32.mrb[0].mxu0
        %2771 = vmatprep.mubr.bf16.mxu0 0
        %2772 = vmatmul.mubr.bf16.gmra.mrb[0].mxu0 %v2651
        %v2773 = vpop.f32.mrb[0].mxu0
        %v2774 = vadd.f32 0.0, %v2773
        %v2775 = vpop.f32.mrb[0].mxu0
        %v2776 = vpop.f32.mrb[0].mxu0
        %v2777 = vadd.f32 0.0, %v2776
        %v2778 = vpop.f32.mrb[0].mxu0
        %2779 = vmatprep.mubr.bf16.mxu0 0
        %2780 = vmatmul.mubr.bf16.gmra.mrb[0].mxu0 %v2652
        %v2781 = vpop.f32.mrb[0].mxu0
        %v2782 = vadd.f32 0.0, %v2781
        %v2783 = vpop.f32.mrb[0].mxu0
        %v2784 = vpop.f32.mrb[0].mxu0
        %v2785 = vadd.f32 0.0, %v2784
        %v2786 = vpop.f32.mrb[0].mxu0
        %2787 = vmatprep.mubr.bf16.mxu0 0
        %2788 = vmatmul.mubr.bf16.gmra.mrb[0].mxu0 %v2653
        %v2789 = vpop.f32.mrb[0].mxu0
        %v2790 = vadd.f32 0.0, %v2789
        %v2791 = vpop.f32.mrb[0].mxu0
        %v2792 = vpop.f32.mrb[0].mxu0
        %v2793 = vadd.f32 0.0, %v2792
        %v2794 = vpop.f32.mrb[0].mxu0
        %2795 = vmatprep.mubr.bf16.mxu0 0
        %2796 = vmatmul.mubr.bf16.gmra.mrb[0].mxu0 %v2654
        %v2797 = vpop.f32.mrb[0].mxu0
        %v2798 = vadd.f32 0.0, %v2797
        %v2799 = vpop.f32.mrb[0].mxu0
        %v2800 = vpop.f32.mrb[0].mxu0
        %v2801 = vadd.f32 0.0, %v2800
        %v2802 = vpop.f32.mrb[0].mxu0
        %2803 = vmatprep.mubr.bf16.mxu0 0
        %2804 = vmatmul.mubr.bf16.gmra.mrb[0].mxu0 %v2655
        %v2805 = vpop.f32.mrb[0].mxu0
        %v2806 = vadd.f32 0.0, %v2805
        %v2807 = vpop.f32.mrb[0].mxu0
        %v2808 = vpop.f32.mrb[0].mxu0
        %v2809 = vadd.f32 0.0, %v2808
        %v2810 = vpop.f32.mrb[0].mxu0
        %2811 = vmatprep.mubr.bf16.mxu0 0
        %2812 = vmatmul.mubr.bf16.gmra.mrb[0].mxu0 %v2656
        %v2813 = vpop.f32.mrb[0].mxu0
        %v2814 = vadd.f32 0.0, %v2813
        %v2815 = vpop.f32.mrb[0].mxu0
        %v2816 = vpop.f32.mrb[0].mxu0
        %v2817 = vadd.f32 0.0, %v2816
        %v2818 = vpop.f32.mrb[0].mxu0
        %2819 = vmatprep.mubr.bf16.mxu0 0
        %2820 = vmatmul.mubr.bf16.gmra.mrb[0].mxu0 %v2657
        %v2821 = vpop.f32.mrb[0].mxu0
        %v2822 = vadd.f32 0.0, %v2821
        %v2823 = vpop.f32.mrb[0].mxu0
        %v2824 = vpop.f32.mrb[0].mxu0
        %v2825 = vadd.f32 0.0, %v2824
        %v2826 = vpop.f32.mrb[0].mxu0
        %2827 = vmatprep.mubr.bf16.mxu0 0
        %2828 = vmatmul.mubr.bf16.gmra.mrb[0].mxu0 %v2658
        %v2829 = vpop.f32.mrb[0].mxu0
        %v2830 = vadd.f32 0.0, %v2829
        %v2831 = vpop.f32.mrb[0].mxu0
        %v2832 = vpop.f32.mrb[0].mxu0
        %v2833 = vadd.f32 0.0, %v2832
        %v2834 = vpop.f32.mrb[0].mxu0
        %2835 = vmatprep.mubr.bf16.mxu0 0
        %2836 = vmatmul.mubr.bf16.gmra.mrb[0].mxu0 %v2659
        %v2837 = vpop.f32.mrb[0].mxu0
        %v2838 = vadd.f32 0.0, %v2837
        %v2839 = vpop.f32.mrb[0].mxu0
        %v2840 = vpop.f32.mrb[0].mxu0
        %v2841 = vadd.f32 0.0, %v2840
        %v2842 = vpop.f32.mrb[0].mxu0
        %2843 = vmatprep.mubr.bf16.mxu0 0
        %2844 = vmatmul.mubr.bf16.gmra.mrb[0].mxu0 %v2660
        %v2845 = vpop.f32.mrb[0].mxu0
        %v2846 = vadd.f32 0.0, %v2845
        %v2847 = vpop.f32.mrb[0].mxu0
        %v2848 = vpop.f32.mrb[0].mxu0
        %v2849 = vadd.f32 0.0, %v2848
        %v2850 = vpop.f32.mrb[0].mxu0
        %2851 = vmatprep.mubr.bf16.mxu0 0
        %2852 = vmatmul.mubr.bf16.gmra.mrb[0].mxu0 %v2661
        %v2853 = vpop.f32.mrb[0].mxu0
        %v2854 = vadd.f32 0.0, %v2853
        %v2855 = vpop.f32.mrb[0].mxu0
        %v2856 = vpop.f32.mrb[0].mxu0
        %v2857 = vadd.f32 0.0, %v2856
        %v2858 = vpop.f32.mrb[0].mxu0
        %2859 = vmatprep.mubr.bf16.mxu0 0
        %2860 = vmatmul.mubr.bf16.gmra.mrb[0].mxu0 %v2662
        %v2861 = vpop.f32.mrb[0].mxu0
        %v2862 = vadd.f32 0.0, %v2861
        %v2863 = vpop.f32.mrb[0].mxu0
        %v2864 = vpop.f32.mrb[0].mxu0
        %v2865 = vadd.f32 0.0, %v2864
        %v2866 = vpop.f32.mrb[0].mxu0
        %2867 = vmatprep.mubr.bf16.mxu0 0
        %2868 = vmatmul.mubr.bf16.gmra.mrb[0].mxu0 %v2663
        %v2869 = vpop.f32.mrb[0].mxu0
        %v2870 = vadd.f32 0.0, %v2869
        %v2871 = vpop.f32.mrb[0].mxu0
        %v2872 = vpop.f32.mrb[0].mxu0
        %v2873 = vadd.f32 0.0, %v2872
        %v2874 = vpop.f32.mrb[0].mxu0
        %2875 = vmatprep.mubr.bf16.mxu0 0
        %2876 = vmatmul.mubr.bf16.gmra.mrb[0].mxu0 %v2664
        %v2877 = vpop.f32.mrb[0].mxu0
        %v2878 = vadd.f32 0.0, %v2877
        %v2879 = vpop.f32.mrb[0].mxu0
        %v2880 = vpop.f32.mrb[0].mxu0
        %v2881 = vadd.f32 0.0, %v2880
        %v2882 = vpop.f32.mrb[0].mxu0
        %2883 = vmatprep.mubr.bf16.mxu0 0
        %2884 = vmatmul.mubr.bf16.gmra.mrb[0].mxu0 %v2665
        %v2885 = vpop.f32.mrb[0].mxu0
        %v2886 = vadd.f32 0.0, %v2885
        %v2887 = vpop.f32.mrb[0].mxu0
        %v2888 = vpop.f32.mrb[0].mxu0
        %v2889 = vadd.f32 0.0, %v2888
        %v2890 = vpop.f32.mrb[0].mxu0
        %2891 = vdwg.mxu0
        %v2892 = vmax.f32 %v2766, 0.0
        %v2893 = vmax.f32 %v2769, 0.0
        %v2894 = vmax.f32 %v2774, 0.0
        %v2895 = vmax.f32 %v2777, 0.0
        %v2896 = vmax.f32 %v2782, 0.0
        %v2897 = vmax.f32 %v2785, 0.0
        %v2898 = vmax.f32 %v2790, 0.0
        %v2899 = vmax.f32 %v2793, 0.0
        %v2900 = vmax.f32 %v2798, 0.0
        %v2901 = vmax.f32 %v2801, 0.0
        %v2902 = vmax.f32 %v2806, 0.0
        %v2903 = vmax.f32 %v2809, 0.0
        %v2904 = vmax.f32 %v2814, 0.0
        %v2905 = vmax.f32 %v2817, 0.0
        %v2906 = vmax.f32 %v2822, 0.0
        %v2907 = vmax.f32 %v2825, 0.0
        %v2908 = vmax.f32 %v2830, 0.0
        %v2909 = vmax.f32 %v2833, 0.0
        %v2910 = vmax.f32 %v2838, 0.0
        %v2911 = vmax.f32 %v2841, 0.0
        %v2912 = vmax.f32 %v2846, 0.0
        %v2913 = vmax.f32 %v2849, 0.0
        %v2914 = vmax.f32 %v2854, 0.0
        %v2915 = vmax.f32 %v2857, 0.0
        %v2916 = vmax.f32 %v2862, 0.0
        %v2917 = vmax.f32 %v2865, 0.0
        %v2918 = vmax.f32 %v2870, 0.0
        %v2919 = vmax.f32 %v2873, 0.0
        %v2920 = vmax.f32 %v2878, 0.0
        %v2921 = vmax.f32 %v2881, 0.0
        %v2922 = vmax.f32 %v2886, 0.0
        %v2923 = vmax.f32 %v2889, 0.0
        %v2924 = vpack.c.bf16 %v2893, %v2892
        %v2925 = vpack.c.bf16 %v2895, %v2894
        %v2926 = vpack.c.bf16 %v2897, %v2896
        %v2927 = vpack.c.bf16 %v2899, %v2898
        %v2928 = vpack.c.bf16 %v2901, %v2900
        %v2929 = vpack.c.bf16 %v2903, %v2902
        %v2930 = vpack.c.bf16 %v2905, %v2904
        %v2931 = vpack.c.bf16 %v2907, %v2906
        %v2932 = vpack.c.bf16 %v2909, %v2908
        %v2933 = vpack.c.bf16 %v2911, %v2910
        %v2934 = vpack.c.bf16 %v2913, %v2912
        %v2935 = vpack.c.bf16 %v2915, %v2914
        %v2936 = vpack.c.bf16 %v2917, %v2916
        %v2937 = vpack.c.bf16 %v2919, %v2918
        %v2938 = vpack.c.bf16 %v2921, %v2920
        %v2939 = vpack.c.bf16 %v2923, %v2922
        %2940 = vst [vmem:[%s646] sm:$0xff] %v2924
        %2941 = vst [vmem:[%s646 + $0x8] sm:$0xff] %v2925
        %2942 = vst [vmem:[%s646 + $0x10] sm:$0xff] %v2926
        %2943 = vst [vmem:[%s646 + $0x18] sm:$0xff] %v2927
        %2944 = vst [vmem:[%s646 + $0x20] sm:$0xff] %v2928
        %2945 = vst [vmem:[%s646 + $0x28] sm:$0xff] %v2929
        %2946 = vst [vmem:[%s646 + $0x30] sm:$0xff] %v2930
        %2947 = vst [vmem:[%s646 + $0x38] sm:$0xff] %v2931
        %2948 = vst [vmem:[%s646 + $0x40] sm:$0xff] %v2932
        %2949 = vst [vmem:[%s646 + $0x48] sm:$0xff] %v2933
        %2950 = vst [vmem:[%s646 + $0x50] sm:$0xff] %v2934
        %2951 = vst [vmem:[%s646 + $0x58] sm:$0xff] %v2935
        %2952 = vst [vmem:[%s646 + $0x60] sm:$0xff] %v2936
        %2953 = vst [vmem:[%s646 + $0x68] sm:$0xff] %v2937
        %2954 = vst [vmem:[%s646 + $0x70] sm:$0xff] %v2938
        %2955 = vst [vmem:[%s646 + $0x78] sm:$0xff] %v2939
        %v2956 = vld [vmem:[#allocation3] sm:$0xff]
        %v2957 = vld [vmem:[#allocation3 + $0x8] sm:$0xff]
        %v2958 = vld [vmem:[#allocation3 + $0x10] sm:$0xff]
        %v2959 = vld [vmem:[#allocation3 + $0x18] sm:$0xff]
        %v2960 = vld [vmem:[#allocation3 + $0x20] sm:$0xff]
        %v2961 = vld [vmem:[#allocation3 + $0x28] sm:$0xff]
        %v2962 = vld [vmem:[#allocation3 + $0x30] sm:$0xff]
        %v2963 = vld [vmem:[#allocation3 + $0x38] sm:$0xff]
        %v2964 = vld [vmem:[#allocation3 + $0x40] sm:$0xff]
        %v2965 = vld [vmem:[#allocation3 + $0x48] sm:$0xff]
        %v2966 = vld [vmem:[#allocation3 + $0x50] sm:$0xff]
        %v2967 = vld [vmem:[#allocation3 + $0x58] sm:$0xff]
        %v2968 = vld [vmem:[#allocation3 + $0x60] sm:$0xff]
        %v2969 = vld [vmem:[#allocation3 + $0x68] sm:$0xff]
        %v2970 = vld [vmem:[#allocation3 + $0x70] sm:$0xff]
        %v2971 = vld [vmem:[#allocation3 + $0x78] sm:$0xff]
        %v2972 = vld [vmem:[%s646] sm:$0xff]
        %v2973 = vld [vmem:[%s646 + $0x8] sm:$0xff]
        %v2974 = vld [vmem:[%s646 + $0x10] sm:$0xff]
        %v2975 = vld [vmem:[%s646 + $0x18] sm:$0xff]
        %v2976 = vld [vmem:[%s646 + $0x20] sm:$0xff]
        %v2977 = vld [vmem:[%s646 + $0x28] sm:$0xff]
        %v2978 = vld [vmem:[%s646 + $0x30] sm:$0xff]
        %v2979 = vld [vmem:[%s646 + $0x38] sm:$0xff]
        %v2980 = vld [vmem:[%s646 + $0x40] sm:$0xff]
        %v2981 = vld [vmem:[%s646 + $0x48] sm:$0xff]
        %v2982 = vld [vmem:[%s646 + $0x50] sm:$0xff]
        %v2983 = vld [vmem:[%s646 + $0x58] sm:$0xff]
        %v2984 = vld [vmem:[%s646 + $0x60] sm:$0xff]
        %v2985 = vld [vmem:[%s646 + $0x68] sm:$0xff]
        %v2986 = vld [vmem:[%s646 + $0x70] sm:$0xff]
        %v2987 = vld [vmem:[%s646 + $0x78] sm:$0xff]
        %v2988 = vld [vmem:[%s695] sm:$0xff]
        %v2989 = vld [vmem:[%s695 + $0x8] sm:$0xff]
        %v2990 = vld [vmem:[%s695 + $0x10] sm:$0xff]
        %v2991 = vld [vmem:[%s695 + $0x18] sm:$0xff]
        %v2992 = vld [vmem:[%s695 + $0x20] sm:$0xff]
        %v2993 = vld [vmem:[%s695 + $0x28] sm:$0xff]
        %v2994 = vld [vmem:[%s695 + $0x30] sm:$0xff]
        %v2995 = vld [vmem:[%s695 + $0x38] sm:$0xff]
        %v2996 = vld [vmem:[%s695 + $0x40] sm:$0xff]
        %v2997 = vld [vmem:[%s695 + $0x48] sm:$0xff]
        %v2998 = vld [vmem:[%s695 + $0x50] sm:$0xff]
        %v2999 = vld [vmem:[%s695 + $0x58] sm:$0xff]
        %v3000 = vld [vmem:[%s695 + $0x60] sm:$0xff]
        %v3001 = vld [vmem:[%s695 + $0x68] sm:$0xff]
        %v3002 = vld [vmem:[%s695 + $0x70] sm:$0xff]
        %v3003 = vld [vmem:[%s695 + $0x78] sm:$0xff]
        %v3004 = vld [vmem:[#allocation2] sm:$0xff]
        %v3005 = vld [vmem:[#allocation2 + $0x8] sm:$0xff]
        %v3006 = vld [vmem:[#allocation2 + $0x10] sm:$0xff]
        %v3007 = vld [vmem:[#allocation2 + $0x18] sm:$0xff]
        %v3008 = vld [vmem:[#allocation2 + $0x20] sm:$0xff]
        %v3009 = vld [vmem:[#allocation2 + $0x28] sm:$0xff]
        %v3010 = vld [vmem:[#allocation2 + $0x30] sm:$0xff]
        %v3011 = vld [vmem:[#allocation2 + $0x38] sm:$0xff]
        %v3012 = vld [vmem:[#allocation2 + $0x40] sm:$0xff]
        %v3013 = vld [vmem:[#allocation2 + $0x48] sm:$0xff]
        %v3014 = vld [vmem:[#allocation2 + $0x50] sm:$0xff]
        %v3015 = vld [vmem:[#allocation2 + $0x58] sm:$0xff]
        %v3016 = vld [vmem:[#allocation2 + $0x60] sm:$0xff]
        %v3017 = vld [vmem:[#allocation2 + $0x68] sm:$0xff]
        %v3018 = vld [vmem:[#allocation2 + $0x70] sm:$0xff]
        %v3019 = vld [vmem:[#allocation2 + $0x78] sm:$0xff]
        %v3020 = vld [vmem:[#allocation2 + $0x80] sm:$0xff]
        %v3021 = vld [vmem:[#allocation2 + $0x88] sm:$0xff]
        %v3022 = vld [vmem:[#allocation2 + $0x90] sm:$0xff]
        %v3023 = vld [vmem:[#allocation2 + $0x98] sm:$0xff]
        %v3024 = vld [vmem:[#allocation2 + $0xa0] sm:$0xff]
        %v3025 = vld [vmem:[#allocation2 + $0xa8] sm:$0xff]
        %v3026 = vld [vmem:[#allocation2 + $0xb0] sm:$0xff]
        %v3027 = vld [vmem:[#allocation2 + $0xb8] sm:$0xff]
        %v3028 = vld [vmem:[#allocation2 + $0xc0] sm:$0xff]
        %v3029 = vld [vmem:[#allocation2 + $0xc8] sm:$0xff]
        %v3030 = vld [vmem:[#allocation2 + $0xd0] sm:$0xff]
        %v3031 = vld [vmem:[#allocation2 + $0xd8] sm:$0xff]
        %v3032 = vld [vmem:[#allocation2 + $0xe0] sm:$0xff]
        %v3033 = vld [vmem:[#allocation2 + $0xe8] sm:$0xff]
        %v3034 = vld [vmem:[#allocation2 + $0xf0] sm:$0xff]
        %v3035 = vld [vmem:[#allocation2 + $0xf8] sm:$0xff]
        %s3036 = scalar_lea.vmem [#allocation9], 576
        %v3037 = vld [vmem:[%s3036] sm:$0xf]
        %v3038 = vld [vmem:[%s3036 + $0x4] sm:$0xf]
        %v3039 = vld [vmem:[%s3036 + $0x8] sm:$0xf]
        %v3040 = vld [vmem:[%s3036 + $0xc] sm:$0xf]
        %v3041 = vld [vmem:[%s3036 + $0x10] sm:$0xf]
        %v3042 = vld [vmem:[%s3036 + $0x14] sm:$0xf]
        %v3043 = vld [vmem:[%s3036 + $0x18] sm:$0xf]
        %v3044 = vld [vmem:[%s3036 + $0x1c] sm:$0xf]
        %v3045 = vld [vmem:[%s3036 + $0x20] sm:$0xf]
        %v3046 = vld [vmem:[%s3036 + $0x24] sm:$0xf]
        %v3047 = vld [vmem:[%s3036 + $0x28] sm:$0xf]
        %v3048 = vld [vmem:[%s3036 + $0x2c] sm:$0xf]
        %v3049 = vld [vmem:[%s3036 + $0x30] sm:$0xf]
        %v3050 = vld [vmem:[%s3036 + $0x34] sm:$0xf]
        %v3051 = vld [vmem:[%s3036 + $0x38] sm:$0xf]
        %v3052 = vld [vmem:[%s3036 + $0x3c] sm:$0xf]
        %v3053 = vld [vmem:[%s3036 + $0x40] sm:$0xf]
        %v3054 = vld [vmem:[%s3036 + $0x44] sm:$0xf]
        %v3055 = vld [vmem:[%s3036 + $0x48] sm:$0xf]
        %v3056 = vld [vmem:[%s3036 + $0x4c] sm:$0xf]
        %v3057 = vld [vmem:[%s3036 + $0x50] sm:$0xf]
        %v3058 = vld [vmem:[%s3036 + $0x54] sm:$0xf]
        %v3059 = vld [vmem:[%s3036 + $0x58] sm:$0xf]
        %v3060 = vld [vmem:[%s3036 + $0x5c] sm:$0xf]
        %v3061 = vld [vmem:[%s3036 + $0x60] sm:$0xf]
        %v3062 = vld [vmem:[%s3036 + $0x64] sm:$0xf]
        %v3063 = vld [vmem:[%s3036 + $0x68] sm:$0xf]
        %v3064 = vld [vmem:[%s3036 + $0x6c] sm:$0xf]
        %v3065 = vld [vmem:[%s3036 + $0x70] sm:$0xf]
        %v3066 = vld [vmem:[%s3036 + $0x74] sm:$0xf]
        %v3067 = vld [vmem:[%s3036 + $0x78] sm:$0xf]
        %v3068 = vld [vmem:[%s3036 + $0x7c] sm:$0xf]
        %v3069 = vld [vmem:[%s3036 + $0x80] sm:$0xf]
        %v3070 = vld [vmem:[%s3036 + $0x84] sm:$0xf]
        %v3071 = vld [vmem:[%s3036 + $0x88] sm:$0xf]
        %v3072 = vld [vmem:[%s3036 + $0x8c] sm:$0xf]
        %v3073 = vld [vmem:[%s3036 + $0x90] sm:$0xf]
        %v3074 = vld [vmem:[%s3036 + $0x94] sm:$0xf]
        %v3075 = vld [vmem:[%s3036 + $0x98] sm:$0xf]
        %v3076 = vld [vmem:[%s3036 + $0x9c] sm:$0xf]
        %v3077 = vld [vmem:[%s3036 + $0xa0] sm:$0xf]
        %v3078 = vld [vmem:[%s3036 + $0xa4] sm:$0xf]
        %v3079 = vld [vmem:[%s3036 + $0xa8] sm:$0xf]
        %v3080 = vld [vmem:[%s3036 + $0xac] sm:$0xf]
        %v3081 = vld [vmem:[%s3036 + $0xb0] sm:$0xf]
        %v3082 = vld [vmem:[%s3036 + $0xb4] sm:$0xf]
        %v3083 = vld [vmem:[%s3036 + $0xb8] sm:$0xf]
        %v3084 = vld [vmem:[%s3036 + $0xbc] sm:$0xf]
        %v3133 = vunpack.c.l.b16 %v3037
        %v3134 = vunpack.c.l.b16 %v3038
        %v3135 = vunpack.c.l.b16 %v3039
        %v3136 = vunpack.c.l.b16 %v3040
        %v3137 = vunpack.c.l.b16 %v3041
        %v3138 = vunpack.c.l.b16 %v3042
        %v3139 = vunpack.c.l.b16 %v3043
        %v3140 = vunpack.c.l.b16 %v3044
        %v3141 = vunpack.c.l.b16 %v3045
        %v3142 = vunpack.c.l.b16 %v3046
        %v3143 = vunpack.c.l.b16 %v3047
        %v3144 = vunpack.c.l.b16 %v3048
        %v3145 = vunpack.c.l.b16 %v3049
        %v3146 = vunpack.c.l.b16 %v3050
        %v3147 = vunpack.c.l.b16 %v3051
        %v3148 = vunpack.c.l.b16 %v3052
        %v3149 = vunpack.c.l.b16 %v3053
        %v3150 = vunpack.c.l.b16 %v3054
        %v3151 = vunpack.c.l.b16 %v3055
        %v3152 = vunpack.c.l.b16 %v3056
        %v3153 = vunpack.c.l.b16 %v3057
        %v3154 = vunpack.c.l.b16 %v3058
        %v3155 = vunpack.c.l.b16 %v3059
        %v3156 = vunpack.c.l.b16 %v3060
        %v3157 = vunpack.c.l.b16 %v3061
        %v3158 = vunpack.c.l.b16 %v3062
        %v3159 = vunpack.c.l.b16 %v3063
        %v3160 = vunpack.c.l.b16 %v3064
        %v3161 = vunpack.c.l.b16 %v3065
        %v3162 = vunpack.c.l.b16 %v3066
        %v3163 = vunpack.c.l.b16 %v3067
        %v3164 = vunpack.c.l.b16 %v3068
        %v3165 = vunpack.c.l.b16 %v3069
        %v3166 = vunpack.c.l.b16 %v3070
        %v3167 = vunpack.c.l.b16 %v3071
        %v3168 = vunpack.c.l.b16 %v3072
        %v3169 = vunpack.c.l.b16 %v3073
        %v3170 = vunpack.c.l.b16 %v3074
        %v3171 = vunpack.c.l.b16 %v3075
        %v3172 = vunpack.c.l.b16 %v3076
        %v3173 = vunpack.c.l.b16 %v3077
        %v3174 = vunpack.c.l.b16 %v3078
        %v3175 = vunpack.c.l.b16 %v3079
        %v3176 = vunpack.c.l.b16 %v3080
        %v3177 = vunpack.c.l.b16 %v3081
        %v3178 = vunpack.c.l.b16 %v3082
        %v3179 = vunpack.c.l.b16 %v3083
        %v3180 = vunpack.c.l.b16 %v3084
        %v3181 = vpack.c.b16 %v3134, %v3133
        %v3182 = vpack.c.b16 %v3136, %v3135
        %v3183 = vpack.c.b16 %v3138, %v3137
        %v3184 = vpack.c.b16 %v3140, %v3139
        %v3185 = vpack.c.b16 %v3142, %v3141
        %v3186 = vpack.c.b16 %v3144, %v3143
        %v3187 = vpack.c.b16 %v3146, %v3145
        %v3188 = vpack.c.b16 %v3148, %v3147
        %v3189 = vpack.c.b16 %v3150, %v3149
        %v3190 = vpack.c.b16 %v3152, %v3151
        %v3191 = vpack.c.b16 %v3154, %v3153
        %v3192 = vpack.c.b16 %v3156, %v3155
        %v3193 = vpack.c.b16 %v3158, %v3157
        %v3194 = vpack.c.b16 %v3160, %v3159
        %v3195 = vpack.c.b16 %v3162, %v3161
        %v3196 = vpack.c.b16 %v3164, %v3163
        %v3197 = vpack.c.b16 %v3166, %v3165
        %v3198 = vpack.c.b16 %v3168, %v3167
        %v3199 = vpack.c.b16 %v3170, %v3169
        %v3200 = vpack.c.b16 %v3172, %v3171
        %v3201 = vpack.c.b16 %v3174, %v3173
        %v3202 = vpack.c.b16 %v3176, %v3175
        %v3203 = vpack.c.b16 %v3178, %v3177
        %v3204 = vpack.c.b16 %v3180, %v3179
        %3229 = vmatprep.subr.bf16.mxu0 0
        %3230 = vmatpush1.bf16.msra.mxu0 %v3181
        %3231 = vmatprep.subr.bf16.mxu0 0
        %3232 = vmatpush1.bf16.msra.mxu0 %v3182
        %3233 = vmatprep.subr.bf16.mxu0 0
        %3234 = vmatpush1.bf16.msra.mxu0 %v3183
        %3235 = vmatprep.subr.bf16.mxu0 0
        %3236 = vmatpush1.bf16.msra.mxu0 %v3184
        %3237 = vmatprep.subr.bf16.mxu0 0
        %3238 = vmatpush1.bf16.msra.mxu0 %v3185
        %3239 = vmatprep.subr.bf16.mxu0 0
        %3240 = vmatpush1.bf16.msra.mxu0 %v3186
        %3241 = vmatprep.subr.bf16.mxu0 0
        %3242 = vmatpush1.bf16.msra.mxu0 %v3187
        %3243 = vmatprep.subr.bf16.mxu0 0
        %3244 = vmatpush1.bf16.msra.mxu0 %v3188
        %3245 = vmatprep.subr.bf16.mxu0 0
        %3246 = vmatpush1.bf16.msra.mxu0 %v3189
        %3247 = vmatprep.subr.bf16.mxu0 0
        %3248 = vmatpush1.bf16.msra.mxu0 %v3190
        %3249 = vmatprep.subr.bf16.mxu0 0
        %3250 = vmatpush1.bf16.msra.mxu0 %v3191
        %3251 = vmatprep.subr.bf16.mxu0 0
        %3252 = vmatpush1.bf16.msra.mxu0 %v3192
        %3253 = vmatprep.subr.bf16.mxu0 0
        %3254 = vmatpush1.bf16.msra.mxu0 %v3193
        %3255 = vmatprep.subr.bf16.mxu0 0
        %3256 = vmatpush1.bf16.msra.mxu0 %v3194
        %3257 = vmatprep.subr.bf16.mxu0 0
        %3258 = vmatpush1.bf16.msra.mxu0 %v3195
        %3259 = vmatprep.subr.bf16.mxu0 0
        %3260 = vmatpush1.bf16.msra.mxu0 %v3196
        %3261 = vmatprep.mubr.bf16.mxu0 %v2972
        %3262 = vmatmul.mubr.bf16.gmra.mrb[0].mxu0 %v2956
        %v3263 = vpop.f32.mrb[0].mxu0
        %v3264 = vadd.f32 0.0, %v3263
        %v3265 = vpop.f32.mrb[0].mxu0
        %v3266 = vpop.f32.mrb[0].mxu0
        %v3267 = vadd.f32 0.0, %v3266
        %v3268 = vpop.f32.mrb[0].mxu0
        %3269 = vmatprep.mubr.bf16.mxu0 %v2973
        %3270 = vmatmul.mubr.bf16.gmra.mrb[0].mxu0 %v2957
        %v3271 = vpop.f32.mrb[0].mxu0
        %v3272 = vadd.f32 0.0, %v3271
        %v3273 = vpop.f32.mrb[0].mxu0
        %v3274 = vpop.f32.mrb[0].mxu0
        %v3275 = vadd.f32 0.0, %v3274
        %v3276 = vpop.f32.mrb[0].mxu0
        %3277 = vmatprep.mubr.bf16.mxu0 %v2974
        %3278 = vmatmul.mubr.bf16.gmra.mrb[0].mxu0 %v2958
        %v3279 = vpop.f32.mrb[0].mxu0
        %v3280 = vadd.f32 0.0, %v3279
        %v3281 = vpop.f32.mrb[0].mxu0
        %v3282 = vpop.f32.mrb[0].mxu0
        %v3283 = vadd.f32 0.0, %v3282
        %v3284 = vpop.f32.mrb[0].mxu0
        %3285 = vmatprep.mubr.bf16.mxu0 %v2975
        %3286 = vmatmul.mubr.bf16.gmra.mrb[0].mxu0 %v2959
        %v3287 = vpop.f32.mrb[0].mxu0
        %v3288 = vadd.f32 0.0, %v3287
        %v3289 = vpop.f32.mrb[0].mxu0
        %v3290 = vpop.f32.mrb[0].mxu0
        %v3291 = vadd.f32 0.0, %v3290
        %v3292 = vpop.f32.mrb[0].mxu0
        %3293 = vmatprep.mubr.bf16.mxu0 %v2976
        %3294 = vmatmul.mubr.bf16.gmra.mrb[0].mxu0 %v2960
        %v3295 = vpop.f32.mrb[0].mxu0
        %v3296 = vadd.f32 0.0, %v3295
        %v3297 = vpop.f32.mrb[0].mxu0
        %v3298 = vpop.f32.mrb[0].mxu0
        %v3299 = vadd.f32 0.0, %v3298
        %v3300 = vpop.f32.mrb[0].mxu0
        %3301 = vmatprep.mubr.bf16.mxu0 %v2977
        %3302 = vmatmul.mubr.bf16.gmra.mrb[0].mxu0 %v2961
        %v3303 = vpop.f32.mrb[0].mxu0
        %v3304 = vadd.f32 0.0, %v3303
        %v3305 = vpop.f32.mrb[0].mxu0
        %v3306 = vpop.f32.mrb[0].mxu0
        %v3307 = vadd.f32 0.0, %v3306
        %v3308 = vpop.f32.mrb[0].mxu0
        %3309 = vmatprep.mubr.bf16.mxu0 %v2978
        %3310 = vmatmul.mubr.bf16.gmra.mrb[0].mxu0 %v2962
        %v3311 = vpop.f32.mrb[0].mxu0
        %v3312 = vadd.f32 0.0, %v3311
        %v3313 = vpop.f32.mrb[0].mxu0
        %v3314 = vpop.f32.mrb[0].mxu0
        %v3315 = vadd.f32 0.0, %v3314
        %v3316 = vpop.f32.mrb[0].mxu0
        %3317 = vmatprep.mubr.bf16.mxu0 %v2979
        %3318 = vmatmul.mubr.bf16.gmra.mrb[0].mxu0 %v2963
        %v3319 = vpop.f32.mrb[0].mxu0
        %v3320 = vadd.f32 0.0, %v3319
        %v3321 = vpop.f32.mrb[0].mxu0
        %v3322 = vpop.f32.mrb[0].mxu0
        %v3323 = vadd.f32 0.0, %v3322
        %v3324 = vpop.f32.mrb[0].mxu0
        %3325 = vmatprep.mubr.bf16.mxu0 %v2980
        %3326 = vmatmul.mubr.bf16.gmra.mrb[0].mxu0 %v2964
        %v3327 = vpop.f32.mrb[0].mxu0
        %v3328 = vadd.f32 0.0, %v3327
        %v3329 = vpop.f32.mrb[0].mxu0
        %v3330 = vpop.f32.mrb[0].mxu0
        %v3331 = vadd.f32 0.0, %v3330
        %v3332 = vpop.f32.mrb[0].mxu0
        %3333 = vmatprep.mubr.bf16.mxu0 %v2981
        %3334 = vmatmul.mubr.bf16.gmra.mrb[0].mxu0 %v2965
        %v3335 = vpop.f32.mrb[0].mxu0
        %v3336 = vadd.f32 0.0, %v3335
        %v3337 = vpop.f32.mrb[0].mxu0
        %v3338 = vpop.f32.mrb[0].mxu0
        %v3339 = vadd.f32 0.0, %v3338
        %v3340 = vpop.f32.mrb[0].mxu0
        %3341 = vmatprep.mubr.bf16.mxu0 %v2982
        %3342 = vmatmul.mubr.bf16.gmra.mrb[0].mxu0 %v2966
        %v3343 = vpop.f32.mrb[0].mxu0
        %v3344 = vadd.f32 0.0, %v3343
        %v3345 = vpop.f32.mrb[0].mxu0
        %v3346 = vpop.f32.mrb[0].mxu0
        %v3347 = vadd.f32 0.0, %v3346
        %v3348 = vpop.f32.mrb[0].mxu0
        %3349 = vmatprep.mubr.bf16.mxu0 %v2983
        %3350 = vmatmul.mubr.bf16.gmra.mrb[0].mxu0 %v2967
        %v3351 = vpop.f32.mrb[0].mxu0
        %v3352 = vadd.f32 0.0, %v3351
        %v3353 = vpop.f32.mrb[0].mxu0
        %v3354 = vpop.f32.mrb[0].mxu0
        %v3355 = vadd.f32 0.0, %v3354
        %v3356 = vpop.f32.mrb[0].mxu0
        %3357 = vmatprep.mubr.bf16.mxu0 %v2984
        %3358 = vmatmul.mubr.bf16.gmra.mrb[0].mxu0 %v2968
        %v3359 = vpop.f32.mrb[0].mxu0
        %v3360 = vadd.f32 0.0, %v3359
        %v3361 = vpop.f32.mrb[0].mxu0
        %v3362 = vpop.f32.mrb[0].mxu0
        %v3363 = vadd.f32 0.0, %v3362
        %v3364 = vpop.f32.mrb[0].mxu0
        %3365 = vmatprep.mubr.bf16.mxu0 %v2985
        %3366 = vmatmul.mubr.bf16.gmra.mrb[0].mxu0 %v2969
        %v3367 = vpop.f32.mrb[0].mxu0
        %v3368 = vadd.f32 0.0, %v3367
        %v3369 = vpop.f32.mrb[0].mxu0
        %v3370 = vpop.f32.mrb[0].mxu0
        %v3371 = vadd.f32 0.0, %v3370
        %v3372 = vpop.f32.mrb[0].mxu0
        %3373 = vmatprep.mubr.bf16.mxu0 %v2986
        %3374 = vmatmul.mubr.bf16.gmra.mrb[0].mxu0 %v2970
        %v3375 = vpop.f32.mrb[0].mxu0
        %v3376 = vadd.f32 0.0, %v3375
        %v3377 = vpop.f32.mrb[0].mxu0
        %v3378 = vpop.f32.mrb[0].mxu0
        %v3379 = vadd.f32 0.0, %v3378
        %v3380 = vpop.f32.mrb[0].mxu0
        %3381 = vmatprep.mubr.bf16.mxu0 %v2987
        %3382 = vmatmul.mubr.bf16.gmra.mrb[0].mxu0 %v2971
        %v3383 = vpop.f32.mrb[0].mxu0
        %v3384 = vadd.f32 0.0, %v3383
        %v3385 = vpop.f32.mrb[0].mxu0
        %v3386 = vpop.f32.mrb[0].mxu0
        %v3387 = vadd.f32 0.0, %v3386
        %v3388 = vpop.f32.mrb[0].mxu0
        %3389 = vdwg.mxu0
        %3390 = vmatprep.subr.bf16.mxu0 0
        %3391 = vmatpush1.bf16.msra.mxu0 %v3197
        %3392 = vmatprep.subr.bf16.mxu0 0
        %3393 = vmatpush1.bf16.msra.mxu0 %v3198
        %3394 = vmatprep.subr.bf16.mxu0 0
        %3395 = vmatpush1.bf16.msra.mxu0 %v3199
        %3396 = vmatprep.subr.bf16.mxu0 0
        %3397 = vmatpush1.bf16.msra.mxu0 %v3200
        %3398 = vmatprep.subr.bf16.mxu0 0
        %3399 = vmatpush1.bf16.msra.mxu0 %v3201
        %3400 = vmatprep.subr.bf16.mxu0 0
        %3401 = vmatpush1.bf16.msra.mxu0 %v3202
        %3402 = vmatprep.subr.bf16.mxu0 0
        %3403 = vmatpush1.bf16.msra.mxu0 %v3203
        %3404 = vmatprep.subr.bf16.mxu0 0
        %3405 = vmatpush1.bf16.msra.mxu0 %v3204
        %3406 = vmatprep.subr.bf16.mxu0 0
        %3407 = vmatpush1.bf16.msra.mxu0 0
        %3408 = vmatprep.subr.bf16.mxu0 0
        %3409 = vmatpush1.bf16.msra.mxu0 0
        %3410 = vmatprep.subr.bf16.mxu0 0
        %3411 = vmatpush1.bf16.msra.mxu0 0
        %3412 = vmatprep.subr.bf16.mxu0 0
        %3413 = vmatpush1.bf16.msra.mxu0 0
        %3414 = vmatprep.subr.bf16.mxu0 0
        %3415 = vmatpush1.bf16.msra.mxu0 0
        %3416 = vmatprep.subr.bf16.mxu0 0
        %3417 = vmatpush1.bf16.msra.mxu0 0
        %3418 = vmatprep.subr.bf16.mxu0 0
        %3419 = vmatpush1.bf16.msra.mxu0 0
        %3420 = vmatprep.subr.bf16.mxu0 0
        %3421 = vmatpush1.bf16.msra.mxu0 0
        %3422 = vmatprep.mubr.bf16.mxu0 0
        %3423 = vmatmul.mubr.bf16.gmra.mrb[0].mxu0 %v2988
        %v3424 = vpop.f32.mrb[0].mxu0
        %v3425 = vadd.f32 %v3264, %v3424
        %v3426 = vpop.f32.mrb[0].mxu0
        %v3427 = vpop.f32.mrb[0].mxu0
        %v3428 = vadd.f32 %v3267, %v3427
        %v3429 = vpop.f32.mrb[0].mxu0
        %3430 = vmatprep.mubr.bf16.mxu0 0
        %3431 = vmatmul.mubr.bf16.gmra.mrb[0].mxu0 %v2989
        %v3432 = vpop.f32.mrb[0].mxu0
        %v3433 = vadd.f32 %v3272, %v3432
        %v3434 = vpop.f32.mrb[0].mxu0
        %v3435 = vpop.f32.mrb[0].mxu0
        %v3436 = vadd.f32 %v3275, %v3435
        %v3437 = vpop.f32.mrb[0].mxu0
        %3438 = vmatprep.mubr.bf16.mxu0 0
        %3439 = vmatmul.mubr.bf16.gmra.mrb[0].mxu0 %v2990
        %v3440 = vpop.f32.mrb[0].mxu0
        %v3441 = vadd.f32 %v3280, %v3440
        %v3442 = vpop.f32.mrb[0].mxu0
        %v3443 = vpop.f32.mrb[0].mxu0
        %v3444 = vadd.f32 %v3283, %v3443
        %v3445 = vpop.f32.mrb[0].mxu0
        %3446 = vmatprep.mubr.bf16.mxu0 0
        %3447 = vmatmul.mubr.bf16.gmra.mrb[0].mxu0 %v2991
        %v3448 = vpop.f32.mrb[0].mxu0
        %v3449 = vadd.f32 %v3288, %v3448
        %v3450 = vpop.f32.mrb[0].mxu0
        %v3451 = vpop.f32.mrb[0].mxu0
        %v3452 = vadd.f32 %v3291, %v3451
        %v3453 = vpop.f32.mrb[0].mxu0
        %3454 = vmatprep.mubr.bf16.mxu0 0
        %3455 = vmatmul.mubr.bf16.gmra.mrb[0].mxu0 %v2992
        %v3456 = vpop.f32.mrb[0].mxu0
        %v3457 = vadd.f32 %v3296, %v3456
        %v3458 = vpop.f32.mrb[0].mxu0
        %v3459 = vpop.f32.mrb[0].mxu0
        %v3460 = vadd.f32 %v3299, %v3459
        %v3461 = vpop.f32.mrb[0].mxu0
        %3462 = vmatprep.mubr.bf16.mxu0 0
        %3463 = vmatmul.mubr.bf16.gmra.mrb[0].mxu0 %v2993
        %v3464 = vpop.f32.mrb[0].mxu0
        %v3465 = vadd.f32 %v3304, %v3464
        %v3466 = vpop.f32.mrb[0].mxu0
        %v3467 = vpop.f32.mrb[0].mxu0
        %v3468 = vadd.f32 %v3307, %v3467
        %v3469 = vpop.f32.mrb[0].mxu0
        %3470 = vmatprep.mubr.bf16.mxu0 0
        %3471 = vmatmul.mubr.bf16.gmra.mrb[0].mxu0 %v2994
        %v3472 = vpop.f32.mrb[0].mxu0
        %v3473 = vadd.f32 %v3312, %v3472
        %v3474 = vpop.f32.mrb[0].mxu0
        %v3475 = vpop.f32.mrb[0].mxu0
        %v3476 = vadd.f32 %v3315, %v3475
        %v3477 = vpop.f32.mrb[0].mxu0
        %3478 = vmatprep.mubr.bf16.mxu0 0
        %3479 = vmatmul.mubr.bf16.gmra.mrb[0].mxu0 %v2995
        %v3480 = vpop.f32.mrb[0].mxu0
        %v3481 = vadd.f32 %v3320, %v3480
        %v3482 = vpop.f32.mrb[0].mxu0
        %v3483 = vpop.f32.mrb[0].mxu0
        %v3484 = vadd.f32 %v3323, %v3483
        %v3485 = vpop.f32.mrb[0].mxu0
        %3486 = vmatprep.mubr.bf16.mxu0 0
        %3487 = vmatmul.mubr.bf16.gmra.mrb[0].mxu0 %v2996
        %v3488 = vpop.f32.mrb[0].mxu0
        %v3489 = vadd.f32 %v3328, %v3488
        %v3490 = vpop.f32.mrb[0].mxu0
        %v3491 = vpop.f32.mrb[0].mxu0
        %v3492 = vadd.f32 %v3331, %v3491
        %v3493 = vpop.f32.mrb[0].mxu0
        %3494 = vmatprep.mubr.bf16.mxu0 0
        %3495 = vmatmul.mubr.bf16.gmra.mrb[0].mxu0 %v2997
        %v3496 = vpop.f32.mrb[0].mxu0
        %v3497 = vadd.f32 %v3336, %v3496
        %v3498 = vpop.f32.mrb[0].mxu0
        %v3499 = vpop.f32.mrb[0].mxu0
        %v3500 = vadd.f32 %v3339, %v3499
        %v3501 = vpop.f32.mrb[0].mxu0
        %3502 = vmatprep.mubr.bf16.mxu0 0
        %3503 = vmatmul.mubr.bf16.gmra.mrb[0].mxu0 %v2998
        %v3504 = vpop.f32.mrb[0].mxu0
        %v3505 = vadd.f32 %v3344, %v3504
        %v3506 = vpop.f32.mrb[0].mxu0
        %v3507 = vpop.f32.mrb[0].mxu0
        %v3508 = vadd.f32 %v3347, %v3507
        %v3509 = vpop.f32.mrb[0].mxu0
        %3510 = vmatprep.mubr.bf16.mxu0 0
        %3511 = vmatmul.mubr.bf16.gmra.mrb[0].mxu0 %v2999
        %v3512 = vpop.f32.mrb[0].mxu0
        %v3513 = vadd.f32 %v3352, %v3512
        %v3514 = vpop.f32.mrb[0].mxu0
        %v3515 = vpop.f32.mrb[0].mxu0
        %v3516 = vadd.f32 %v3355, %v3515
        %v3517 = vpop.f32.mrb[0].mxu0
        %3518 = vmatprep.mubr.bf16.mxu0 0
        %3519 = vmatmul.mubr.bf16.gmra.mrb[0].mxu0 %v3000
        %v3520 = vpop.f32.mrb[0].mxu0
        %v3521 = vadd.f32 %v3360, %v3520
        %v3522 = vpop.f32.mrb[0].mxu0
        %v3523 = vpop.f32.mrb[0].mxu0
        %v3524 = vadd.f32 %v3363, %v3523
        %v3525 = vpop.f32.mrb[0].mxu0
        %3526 = vmatprep.mubr.bf16.mxu0 0
        %3527 = vmatmul.mubr.bf16.gmra.mrb[0].mxu0 %v3001
        %v3528 = vpop.f32.mrb[0].mxu0
        %v3529 = vadd.f32 %v3368, %v3528
        %v3530 = vpop.f32.mrb[0].mxu0
        %v3531 = vpop.f32.mrb[0].mxu0
        %v3532 = vadd.f32 %v3371, %v3531
        %v3533 = vpop.f32.mrb[0].mxu0
        %3534 = vmatprep.mubr.bf16.mxu0 0
        %3535 = vmatmul.mubr.bf16.gmra.mrb[0].mxu0 %v3002
        %v3536 = vpop.f32.mrb[0].mxu0
        %v3537 = vadd.f32 %v3376, %v3536
        %v3538 = vpop.f32.mrb[0].mxu0
        %v3539 = vpop.f32.mrb[0].mxu0
        %v3540 = vadd.f32 %v3379, %v3539
        %v3541 = vpop.f32.mrb[0].mxu0
        %3542 = vmatprep.mubr.bf16.mxu0 0
        %3543 = vmatmul.mubr.bf16.gmra.mrb[0].mxu0 %v3003
        %v3544 = vpop.f32.mrb[0].mxu0
        %v3545 = vadd.f32 %v3384, %v3544
        %v3546 = vpop.f32.mrb[0].mxu0
        %v3547 = vpop.f32.mrb[0].mxu0
        %v3548 = vadd.f32 %v3387, %v3547
        %v3549 = vpop.f32.mrb[0].mxu0
        %3550 = vdwg.mxu0
        %v3551 = vrot.slane %v3425, 7
        %v3552 = vrot.slane %v3428, 7
        %v3553 = vrot.slane %v3433, 7
        %v3554 = vrot.slane %v3436, 7
        %v3555 = vrot.slane %v3441, 7
        %v3556 = vrot.slane %v3444, 7
        %v3557 = vrot.slane %v3449, 7
        %v3558 = vrot.slane %v3452, 7
        %v3559 = vrot.slane %v3457, 7
        %v3560 = vrot.slane %v3460, 7
        %v3561 = vrot.slane %v3465, 7
        %v3562 = vrot.slane %v3468, 7
        %v3563 = vrot.slane %v3473, 7
        %v3564 = vrot.slane %v3476, 7
        %v3565 = vrot.slane %v3481, 7
        %v3566 = vrot.slane %v3484, 7
        %v3567 = vrot.slane %v3489, 7
        %v3568 = vrot.slane %v3492, 7
        %v3569 = vrot.slane %v3497, 7
        %v3570 = vrot.slane %v3500, 7
        %v3571 = vrot.slane %v3505, 7
        %v3572 = vrot.slane %v3508, 7
        %v3573 = vrot.slane %v3513, 7
        %v3574 = vrot.slane %v3516, 7
        %v3575 = vrot.slane %v3521, 7
        %v3576 = vrot.slane %v3524, 7
        %v3577 = vrot.slane %v3529, 7
        %v3578 = vrot.slane %v3532, 7
        %v3579 = vrot.slane %v3537, 7
        %v3580 = vrot.slane %v3540, 7
        %v3581 = vrot.slane %v3545, 7
        %v3582 = vrot.slane %v3548, 7
        %v3583 = vsel %vm1290, %v3581, %v3582
        %v3584 = vsel %vm1290, %v3580, %v3581
        %v3585 = vsel %vm1290, %v3579, %v3580
        %v3586 = vsel %vm1290, %v3578, %v3579
        %v3587 = vsel %vm1290, %v3577, %v3578
        %v3588 = vsel %vm1290, %v3576, %v3577
        %v3589 = vsel %vm1290, %v3575, %v3576
        %v3590 = vsel %vm1290, %v3574, %v3575
        %v3591 = vsel %vm1290, %v3573, %v3574
        %v3592 = vsel %vm1290, %v3572, %v3573
        %v3593 = vsel %vm1290, %v3571, %v3572
        %v3594 = vsel %vm1290, %v3570, %v3571
        %v3595 = vsel %vm1290, %v3569, %v3570
        %v3596 = vsel %vm1290, %v3568, %v3569
        %v3597 = vsel %vm1290, %v3567, %v3568
        %v3598 = vsel %vm1290, %v3566, %v3567
        %v3599 = vsel %vm1290, %v3565, %v3566
        %v3600 = vsel %vm1290, %v3564, %v3565
        %v3601 = vsel %vm1290, %v3563, %v3564
        %v3602 = vsel %vm1290, %v3562, %v3563
        %v3603 = vsel %vm1290, %v3561, %v3562
        %v3604 = vsel %vm1290, %v3560, %v3561
        %v3605 = vsel %vm1290, %v3559, %v3560
        %v3606 = vsel %vm1290, %v3558, %v3559
        %v3607 = vsel %vm1290, %v3557, %v3558
        %v3608 = vsel %vm1290, %v3556, %v3557
        %v3609 = vsel %vm1290, %v3555, %v3556
        %v3610 = vsel %vm1290, %v3554, %v3555
        %v3611 = vsel %vm1290, %v3553, %v3554
        %v3612 = vsel %vm1290, %v3552, %v3553
        %v3613 = vsel %vm1290, %v3551, %v3552
        %v3614 = vsel %vm1290, %v3582, %v3551
        %v3615 = vsel %vm1325, %v3614, 0.0
        %v3616 = vsel %vm1326, %v3613, 0.0
        %v3617 = vsel %vm1325, %v3612, 0.0
        %v3618 = vsel %vm1326, %v3611, 0.0
        %v3619 = vsel %vm1325, %v3610, 0.0
        %v3620 = vsel %vm1326, %v3609, 0.0
        %v3621 = vsel %vm1325, %v3608, 0.0
        %v3622 = vsel %vm1326, %v3607, 0.0
        %v3623 = vsel %vm1325, %v3606, 0.0
        %v3624 = vsel %vm1326, %v3605, 0.0
        %v3625 = vsel %vm1325, %v3604, 0.0
        %v3626 = vsel %vm1326, %v3603, 0.0
        %v3627 = vsel %vm1325, %v3602, 0.0
        %v3628 = vsel %vm1326, %v3601, 0.0
        %v3629 = vsel %vm1325, %v3600, 0.0
        %v3630 = vsel %vm1326, %v3599, 0.0
        %v3631 = vsel %vm1325, %v3598, 0.0
        %v3632 = vsel %vm1326, %v3597, 0.0
        %v3633 = vsel %vm1325, %v3596, 0.0
        %v3634 = vsel %vm1326, %v3595, 0.0
        %v3635 = vsel %vm1325, %v3594, 0.0
        %v3636 = vsel %vm1326, %v3593, 0.0
        %v3637 = vsel %vm1325, %v3592, 0.0
        %v3638 = vsel %vm1326, %v3591, 0.0
        %v3639 = vsel %vm1325, %v3590, 0.0
        %v3640 = vsel %vm1326, %v3589, 0.0
        %v3641 = vsel %vm1325, %v3588, 0.0
        %v3642 = vsel %vm1326, %v3587, 0.0
        %v3643 = vsel %vm1325, %v3586, 0.0
        %v3644 = vsel %vm1326, %v3585, 0.0
        %v3645 = vsel %vm1325, %v3584, 0.0
        %v3646 = vsel %vm1326, %v3583, 0.0
        %v3647 = vadd.f32 %v3004, %v3615
        %v3648 = vadd.f32 %v3005, %v3616
        %v3649 = vadd.f32 %v3006, %v3617
        %v3650 = vadd.f32 %v3007, %v3618
        %v3651 = vadd.f32 %v3008, %v3619
        %v3652 = vadd.f32 %v3009, %v3620
        %v3653 = vadd.f32 %v3010, %v3621
        %v3654 = vadd.f32 %v3011, %v3622
        %v3655 = vadd.f32 %v3012, %v3623
        %v3656 = vadd.f32 %v3013, %v3624
        %v3657 = vadd.f32 %v3014, %v3625
        %v3658 = vadd.f32 %v3015, %v3626
        %v3659 = vadd.f32 %v3016, %v3627
        %v3660 = vadd.f32 %v3017, %v3628
        %v3661 = vadd.f32 %v3018, %v3629
        %v3662 = vadd.f32 %v3019, %v3630
        %v3663 = vadd.f32 %v3020, %v3631
        %v3664 = vadd.f32 %v3021, %v3632
        %v3665 = vadd.f32 %v3022, %v3633
        %v3666 = vadd.f32 %v3023, %v3634
        %v3667 = vadd.f32 %v3024, %v3635
        %v3668 = vadd.f32 %v3025, %v3636
        %v3669 = vadd.f32 %v3026, %v3637
        %v3670 = vadd.f32 %v3027, %v3638
        %v3671 = vadd.f32 %v3028, %v3639
        %v3672 = vadd.f32 %v3029, %v3640
        %v3673 = vadd.f32 %v3030, %v3641
        %v3674 = vadd.f32 %v3031, %v3642
        %v3675 = vadd.f32 %v3032, %v3643
        %v3676 = vadd.f32 %v3033, %v3644
        %v3677 = vadd.f32 %v3034, %v3645
        %v3678 = vadd.f32 %v3035, %v3646
        %s3679 = scalar_lea.vmem [#allocation9], 768
        %v3680 = vld [vmem:[%s3679] sm:$0xf]
        %v3681 = vld [vmem:[%s3679 + $0x4] sm:$0xf]
        %v3682 = vld [vmem:[%s3679 + $0x8] sm:$0xf]
        %v3683 = vld [vmem:[%s3679 + $0xc] sm:$0xf]
        %v3684 = vld [vmem:[%s3679 + $0x10] sm:$0xf]
        %v3685 = vld [vmem:[%s3679 + $0x14] sm:$0xf]
        %v3686 = vld [vmem:[%s3679 + $0x18] sm:$0xf]
        %v3687 = vld [vmem:[%s3679 + $0x1c] sm:$0xf]
        %v3688 = vld [vmem:[%s3679 + $0x20] sm:$0xf]
        %v3689 = vld [vmem:[%s3679 + $0x24] sm:$0xf]
        %v3690 = vld [vmem:[%s3679 + $0x28] sm:$0xf]
        %v3691 = vld [vmem:[%s3679 + $0x2c] sm:$0xf]
        %v3692 = vld [vmem:[%s3679 + $0x30] sm:$0xf]
        %v3693 = vld [vmem:[%s3679 + $0x34] sm:$0xf]
        %v3694 = vld [vmem:[%s3679 + $0x38] sm:$0xf]
        %v3695 = vld [vmem:[%s3679 + $0x3c] sm:$0xf]
        %v3696 = vld [vmem:[%s3679 + $0x40] sm:$0xf]
        %v3697 = vld [vmem:[%s3679 + $0x44] sm:$0xf]
        %v3698 = vld [vmem:[%s3679 + $0x48] sm:$0xf]
        %v3699 = vld [vmem:[%s3679 + $0x4c] sm:$0xf]
        %v3700 = vld [vmem:[%s3679 + $0x50] sm:$0xf]
        %v3701 = vld [vmem:[%s3679 + $0x54] sm:$0xf]
        %v3702 = vld [vmem:[%s3679 + $0x58] sm:$0xf]
        %v3703 = vld [vmem:[%s3679 + $0x5c] sm:$0xf]
        %v3704 = vld [vmem:[%s3679 + $0x60] sm:$0xf]
        %v3705 = vld [vmem:[%s3679 + $0x64] sm:$0xf]
        %v3706 = vld [vmem:[%s3679 + $0x68] sm:$0xf]
        %v3707 = vld [vmem:[%s3679 + $0x6c] sm:$0xf]
        %v3708 = vld [vmem:[%s3679 + $0x70] sm:$0xf]
        %v3709 = vld [vmem:[%s3679 + $0x74] sm:$0xf]
        %v3710 = vld [vmem:[%s3679 + $0x78] sm:$0xf]
        %v3711 = vld [vmem:[%s3679 + $0x7c] sm:$0xf]
        %v3712 = vld [vmem:[%s3679 + $0x80] sm:$0xf]
        %v3713 = vld [vmem:[%s3679 + $0x84] sm:$0xf]
        %v3714 = vld [vmem:[%s3679 + $0x88] sm:$0xf]
        %v3715 = vld [vmem:[%s3679 + $0x8c] sm:$0xf]
        %v3716 = vld [vmem:[%s3679 + $0x90] sm:$0xf]
        %v3717 = vld [vmem:[%s3679 + $0x94] sm:$0xf]
        %v3718 = vld [vmem:[%s3679 + $0x98] sm:$0xf]
        %v3719 = vld [vmem:[%s3679 + $0x9c] sm:$0xf]
        %v3720 = vld [vmem:[%s3679 + $0xa0] sm:$0xf]
        %v3721 = vld [vmem:[%s3679 + $0xa4] sm:$0xf]
        %v3722 = vld [vmem:[%s3679 + $0xa8] sm:$0xf]
        %v3723 = vld [vmem:[%s3679 + $0xac] sm:$0xf]
        %v3724 = vld [vmem:[%s3679 + $0xb0] sm:$0xf]
        %v3725 = vld [vmem:[%s3679 + $0xb4] sm:$0xf]
        %v3726 = vld [vmem:[%s3679 + $0xb8] sm:$0xf]
        %v3727 = vld [vmem:[%s3679 + $0xbc] sm:$0xf]
        %v3776 = vunpack.c.l.b16 %v3680
        %v3777 = vunpack.c.l.b16 %v3681
        %v3778 = vunpack.c.l.b16 %v3682
        %v3779 = vunpack.c.l.b16 %v3683
        %v3780 = vunpack.c.l.b16 %v3684
        %v3781 = vunpack.c.l.b16 %v3685
        %v3782 = vunpack.c.l.b16 %v3686
        %v3783 = vunpack.c.l.b16 %v3687
        %v3784 = vunpack.c.l.b16 %v3688
        %v3785 = vunpack.c.l.b16 %v3689
        %v3786 = vunpack.c.l.b16 %v3690
        %v3787 = vunpack.c.l.b16 %v3691
        %v3788 = vunpack.c.l.b16 %v3692
        %v3789 = vunpack.c.l.b16 %v3693
        %v3790 = vunpack.c.l.b16 %v3694
        %v3791 = vunpack.c.l.b16 %v3695
        %v3792 = vunpack.c.l.b16 %v3696
        %v3793 = vunpack.c.l.b16 %v3697
        %v3794 = vunpack.c.l.b16 %v3698
        %v3795 = vunpack.c.l.b16 %v3699
        %v3796 = vunpack.c.l.b16 %v3700
        %v3797 = vunpack.c.l.b16 %v3701
        %v3798 = vunpack.c.l.b16 %v3702
        %v3799 = vunpack.c.l.b16 %v3703
        %v3800 = vunpack.c.l.b16 %v3704
        %v3801 = vunpack.c.l.b16 %v3705
        %v3802 = vunpack.c.l.b16 %v3706
        %v3803 = vunpack.c.l.b16 %v3707
        %v3804 = vunpack.c.l.b16 %v3708
        %v3805 = vunpack.c.l.b16 %v3709
        %v3806 = vunpack.c.l.b16 %v3710
        %v3807 = vunpack.c.l.b16 %v3711
        %v3808 = vunpack.c.l.b16 %v3712
        %v3809 = vunpack.c.l.b16 %v3713
        %v3810 = vunpack.c.l.b16 %v3714
        %v3811 = vunpack.c.l.b16 %v3715
        %v3812 = vunpack.c.l.b16 %v3716
        %v3813 = vunpack.c.l.b16 %v3717
        %v3814 = vunpack.c.l.b16 %v3718
        %v3815 = vunpack.c.l.b16 %v3719
        %v3816 = vunpack.c.l.b16 %v3720
        %v3817 = vunpack.c.l.b16 %v3721
        %v3818 = vunpack.c.l.b16 %v3722
        %v3819 = vunpack.c.l.b16 %v3723
        %v3820 = vunpack.c.l.b16 %v3724
        %v3821 = vunpack.c.l.b16 %v3725
        %v3822 = vunpack.c.l.b16 %v3726
        %v3823 = vunpack.c.l.b16 %v3727
        %v3824 = vpack.c.b16 %v3777, %v3776
        %v3825 = vpack.c.b16 %v3779, %v3778
        %v3826 = vpack.c.b16 %v3781, %v3780
        %v3827 = vpack.c.b16 %v3783, %v3782
        %v3828 = vpack.c.b16 %v3785, %v3784
        %v3829 = vpack.c.b16 %v3787, %v3786
        %v3830 = vpack.c.b16 %v3789, %v3788
        %v3831 = vpack.c.b16 %v3791, %v3790
        %v3832 = vpack.c.b16 %v3793, %v3792
        %v3833 = vpack.c.b16 %v3795, %v3794
        %v3834 = vpack.c.b16 %v3797, %v3796
        %v3835 = vpack.c.b16 %v3799, %v3798
        %v3836 = vpack.c.b16 %v3801, %v3800
        %v3837 = vpack.c.b16 %v3803, %v3802
        %v3838 = vpack.c.b16 %v3805, %v3804
        %v3839 = vpack.c.b16 %v3807, %v3806
        %v3840 = vpack.c.b16 %v3809, %v3808
        %v3841 = vpack.c.b16 %v3811, %v3810
        %v3842 = vpack.c.b16 %v3813, %v3812
        %v3843 = vpack.c.b16 %v3815, %v3814
        %v3844 = vpack.c.b16 %v3817, %v3816
        %v3845 = vpack.c.b16 %v3819, %v3818
        %v3846 = vpack.c.b16 %v3821, %v3820
        %v3847 = vpack.c.b16 %v3823, %v3822
        %3872 = vmatprep.subr.bf16.mxu0 0
        %3873 = vmatpush1.bf16.msra.mxu0 %v3824
        %3874 = vmatprep.subr.bf16.mxu0 0
        %3875 = vmatpush1.bf16.msra.mxu0 %v3825
        %3876 = vmatprep.subr.bf16.mxu0 0
        %3877 = vmatpush1.bf16.msra.mxu0 %v3826
        %3878 = vmatprep.subr.bf16.mxu0 0
        %3879 = vmatpush1.bf16.msra.mxu0 %v3827
        %3880 = vmatprep.subr.bf16.mxu0 0
        %3881 = vmatpush1.bf16.msra.mxu0 %v3828
        %3882 = vmatprep.subr.bf16.mxu0 0
        %3883 = vmatpush1.bf16.msra.mxu0 %v3829
        %3884 = vmatprep.subr.bf16.mxu0 0
        %3885 = vmatpush1.bf16.msra.mxu0 %v3830
        %3886 = vmatprep.subr.bf16.mxu0 0
        %3887 = vmatpush1.bf16.msra.mxu0 %v3831
        %3888 = vmatprep.subr.bf16.mxu0 0
        %3889 = vmatpush1.bf16.msra.mxu0 %v3832
        %3890 = vmatprep.subr.bf16.mxu0 0
        %3891 = vmatpush1.bf16.msra.mxu0 %v3833
        %3892 = vmatprep.subr.bf16.mxu0 0
        %3893 = vmatpush1.bf16.msra.mxu0 %v3834
        %3894 = vmatprep.subr.bf16.mxu0 0
        %3895 = vmatpush1.bf16.msra.mxu0 %v3835
        %3896 = vmatprep.subr.bf16.mxu0 0
        %3897 = vmatpush1.bf16.msra.mxu0 %v3836
        %3898 = vmatprep.subr.bf16.mxu0 0
        %3899 = vmatpush1.bf16.msra.mxu0 %v3837
        %3900 = vmatprep.subr.bf16.mxu0 0
        %3901 = vmatpush1.bf16.msra.mxu0 %v3838
        %3902 = vmatprep.subr.bf16.mxu0 0
        %3903 = vmatpush1.bf16.msra.mxu0 %v3839
        %3904 = vmatprep.mubr.bf16.mxu0 %v2972
        %3905 = vmatmul.mubr.bf16.gmra.mrb[0].mxu0 %v2956
        %v3906 = vpop.f32.mrb[0].mxu0
        %v3907 = vadd.f32 0.0, %v3906
        %v3908 = vpop.f32.mrb[0].mxu0
        %v3909 = vpop.f32.mrb[0].mxu0
        %v3910 = vadd.f32 0.0, %v3909
        %v3911 = vpop.f32.mrb[0].mxu0
        %3912 = vmatprep.mubr.bf16.mxu0 %v2973
        %3913 = vmatmul.mubr.bf16.gmra.mrb[0].mxu0 %v2957
        %v3914 = vpop.f32.mrb[0].mxu0
        %v3915 = vadd.f32 0.0, %v3914
        %v3916 = vpop.f32.mrb[0].mxu0
        %v3917 = vpop.f32.mrb[0].mxu0
        %v3918 = vadd.f32 0.0, %v3917
        %v3919 = vpop.f32.mrb[0].mxu0
        %3920 = vmatprep.mubr.bf16.mxu0 %v2974
        %3921 = vmatmul.mubr.bf16.gmra.mrb[0].mxu0 %v2958
        %v3922 = vpop.f32.mrb[0].mxu0
        %v3923 = vadd.f32 0.0, %v3922
        %v3924 = vpop.f32.mrb[0].mxu0
        %v3925 = vpop.f32.mrb[0].mxu0
        %v3926 = vadd.f32 0.0, %v3925
        %v3927 = vpop.f32.mrb[0].mxu0
        %3928 = vmatprep.mubr.bf16.mxu0 %v2975
        %3929 = vmatmul.mubr.bf16.gmra.mrb[0].mxu0 %v2959
        %v3930 = vpop.f32.mrb[0].mxu0
        %v3931 = vadd.f32 0.0, %v3930
        %v3932 = vpop.f32.mrb[0].mxu0
        %v3933 = vpop.f32.mrb[0].mxu0
        %v3934 = vadd.f32 0.0, %v3933
        %v3935 = vpop.f32.mrb[0].mxu0
        %3936 = vmatprep.mubr.bf16.mxu0 %v2976
        %3937 = vmatmul.mubr.bf16.gmra.mrb[0].mxu0 %v2960
        %v3938 = vpop.f32.mrb[0].mxu0
        %v3939 = vadd.f32 0.0, %v3938
        %v3940 = vpop.f32.mrb[0].mxu0
        %v3941 = vpop.f32.mrb[0].mxu0
        %v3942 = vadd.f32 0.0, %v3941
        %v3943 = vpop.f32.mrb[0].mxu0
        %3944 = vmatprep.mubr.bf16.mxu0 %v2977
        %3945 = vmatmul.mubr.bf16.gmra.mrb[0].mxu0 %v2961
        %v3946 = vpop.f32.mrb[0].mxu0
        %v3947 = vadd.f32 0.0, %v3946
        %v3948 = vpop.f32.mrb[0].mxu0
        %v3949 = vpop.f32.mrb[0].mxu0
        %v3950 = vadd.f32 0.0, %v3949
        %v3951 = vpop.f32.mrb[0].mxu0
        %3952 = vmatprep.mubr.bf16.mxu0 %v2978
        %3953 = vmatmul.mubr.bf16.gmra.mrb[0].mxu0 %v2962
        %v3954 = vpop.f32.mrb[0].mxu0
        %v3955 = vadd.f32 0.0, %v3954
        %v3956 = vpop.f32.mrb[0].mxu0
        %v3957 = vpop.f32.mrb[0].mxu0
        %v3958 = vadd.f32 0.0, %v3957
        %v3959 = vpop.f32.mrb[0].mxu0
        %3960 = vmatprep.mubr.bf16.mxu0 %v2979
        %3961 = vmatmul.mubr.bf16.gmra.mrb[0].mxu0 %v2963
        %v3962 = vpop.f32.mrb[0].mxu0
        %v3963 = vadd.f32 0.0, %v3962
        %v3964 = vpop.f32.mrb[0].mxu0
        %v3965 = vpop.f32.mrb[0].mxu0
        %v3966 = vadd.f32 0.0, %v3965
        %v3967 = vpop.f32.mrb[0].mxu0
        %3968 = vmatprep.mubr.bf16.mxu0 %v2980
        %3969 = vmatmul.mubr.bf16.gmra.mrb[0].mxu0 %v2964
        %v3970 = vpop.f32.mrb[0].mxu0
        %v3971 = vadd.f32 0.0, %v3970
        %v3972 = vpop.f32.mrb[0].mxu0
        %v3973 = vpop.f32.mrb[0].mxu0
        %v3974 = vadd.f32 0.0, %v3973
        %v3975 = vpop.f32.mrb[0].mxu0
        %3976 = vmatprep.mubr.bf16.mxu0 %v2981
        %3977 = vmatmul.mubr.bf16.gmra.mrb[0].mxu0 %v2965
        %v3978 = vpop.f32.mrb[0].mxu0
        %v3979 = vadd.f32 0.0, %v3978
        %v3980 = vpop.f32.mrb[0].mxu0
        %v3981 = vpop.f32.mrb[0].mxu0
        %v3982 = vadd.f32 0.0, %v3981
        %v3983 = vpop.f32.mrb[0].mxu0
        %3984 = vmatprep.mubr.bf16.mxu0 %v2982
        %3985 = vmatmul.mubr.bf16.gmra.mrb[0].mxu0 %v2966
        %v3986 = vpop.f32.mrb[0].mxu0
        %v3987 = vadd.f32 0.0, %v3986
        %v3988 = vpop.f32.mrb[0].mxu0
        %v3989 = vpop.f32.mrb[0].mxu0
        %v3990 = vadd.f32 0.0, %v3989
        %v3991 = vpop.f32.mrb[0].mxu0
        %3992 = vmatprep.mubr.bf16.mxu0 %v2983
        %3993 = vmatmul.mubr.bf16.gmra.mrb[0].mxu0 %v2967
        %v3994 = vpop.f32.mrb[0].mxu0
        %v3995 = vadd.f32 0.0, %v3994
        %v3996 = vpop.f32.mrb[0].mxu0
        %v3997 = vpop.f32.mrb[0].mxu0
        %v3998 = vadd.f32 0.0, %v3997
        %v3999 = vpop.f32.mrb[0].mxu0
        %4000 = vmatprep.mubr.bf16.mxu0 %v2984
        %4001 = vmatmul.mubr.bf16.gmra.mrb[0].mxu0 %v2968
        %v4002 = vpop.f32.mrb[0].mxu0
        %v4003 = vadd.f32 0.0, %v4002
        %v4004 = vpop.f32.mrb[0].mxu0
        %v4005 = vpop.f32.mrb[0].mxu0
        %v4006 = vadd.f32 0.0, %v4005
        %v4007 = vpop.f32.mrb[0].mxu0
        %4008 = vmatprep.mubr.bf16.mxu0 %v2985
        %4009 = vmatmul.mubr.bf16.gmra.mrb[0].mxu0 %v2969
        %v4010 = vpop.f32.mrb[0].mxu0
        %v4011 = vadd.f32 0.0, %v4010
        %v4012 = vpop.f32.mrb[0].mxu0
        %v4013 = vpop.f32.mrb[0].mxu0
        %v4014 = vadd.f32 0.0, %v4013
        %v4015 = vpop.f32.mrb[0].mxu0
        %4016 = vmatprep.mubr.bf16.mxu0 %v2986
        %4017 = vmatmul.mubr.bf16.gmra.mrb[0].mxu0 %v2970
        %v4018 = vpop.f32.mrb[0].mxu0
        %v4019 = vadd.f32 0.0, %v4018
        %v4020 = vpop.f32.mrb[0].mxu0
        %v4021 = vpop.f32.mrb[0].mxu0
        %v4022 = vadd.f32 0.0, %v4021
        %v4023 = vpop.f32.mrb[0].mxu0
        %4024 = vmatprep.mubr.bf16.mxu0 %v2987
        %4025 = vmatmul.mubr.bf16.gmra.mrb[0].mxu0 %v2971
        %v4026 = vpop.f32.mrb[0].mxu0
        %v4027 = vadd.f32 0.0, %v4026
        %v4028 = vpop.f32.mrb[0].mxu0
        %v4029 = vpop.f32.mrb[0].mxu0
        %v4030 = vadd.f32 0.0, %v4029
        %v4031 = vpop.f32.mrb[0].mxu0
        %4032 = vdwg.mxu0
        %4033 = vmatprep.subr.bf16.mxu0 0
        %4034 = vmatpush1.bf16.msra.mxu0 %v3840
        %4035 = vmatprep.subr.bf16.mxu0 0
        %4036 = vmatpush1.bf16.msra.mxu0 %v3841
        %4037 = vmatprep.subr.bf16.mxu0 0
        %4038 = vmatpush1.bf16.msra.mxu0 %v3842
        %4039 = vmatprep.subr.bf16.mxu0 0
        %4040 = vmatpush1.bf16.msra.mxu0 %v3843
        %4041 = vmatprep.subr.bf16.mxu0 0
        %4042 = vmatpush1.bf16.msra.mxu0 %v3844
        %4043 = vmatprep.subr.bf16.mxu0 0
        %4044 = vmatpush1.bf16.msra.mxu0 %v3845
        %4045 = vmatprep.subr.bf16.mxu0 0
        %4046 = vmatpush1.bf16.msra.mxu0 %v3846
        %4047 = vmatprep.subr.bf16.mxu0 0
        %4048 = vmatpush1.bf16.msra.mxu0 %v3847
        %4049 = vmatprep.subr.bf16.mxu0 0
        %4050 = vmatpush1.bf16.msra.mxu0 0
        %4051 = vmatprep.subr.bf16.mxu0 0
        %4052 = vmatpush1.bf16.msra.mxu0 0
        %4053 = vmatprep.subr.bf16.mxu0 0
        %4054 = vmatpush1.bf16.msra.mxu0 0
        %4055 = vmatprep.subr.bf16.mxu0 0
        %4056 = vmatpush1.bf16.msra.mxu0 0
        %4057 = vmatprep.subr.bf16.mxu0 0
        %4058 = vmatpush1.bf16.msra.mxu0 0
        %4059 = vmatprep.subr.bf16.mxu0 0
        %4060 = vmatpush1.bf16.msra.mxu0 0
        %4061 = vmatprep.subr.bf16.mxu0 0
        %4062 = vmatpush1.bf16.msra.mxu0 0
        %4063 = vmatprep.subr.bf16.mxu0 0
        %4064 = vmatpush1.bf16.msra.mxu0 0
        %4065 = vmatprep.mubr.bf16.mxu0 0
        %4066 = vmatmul.mubr.bf16.gmra.mrb[0].mxu0 %v2988
        %v4067 = vpop.f32.mrb[0].mxu0
        %v4068 = vadd.f32 %v3907, %v4067
        %v4069 = vpop.f32.mrb[0].mxu0
        %v4070 = vpop.f32.mrb[0].mxu0
        %v4071 = vadd.f32 %v3910, %v4070
        %v4072 = vpop.f32.mrb[0].mxu0
        %4073 = vmatprep.mubr.bf16.mxu0 0
        %4074 = vmatmul.mubr.bf16.gmra.mrb[0].mxu0 %v2989
        %v4075 = vpop.f32.mrb[0].mxu0
        %v4076 = vadd.f32 %v3915, %v4075
        %v4077 = vpop.f32.mrb[0].mxu0
        %v4078 = vpop.f32.mrb[0].mxu0
        %v4079 = vadd.f32 %v3918, %v4078
        %v4080 = vpop.f32.mrb[0].mxu0
        %4081 = vmatprep.mubr.bf16.mxu0 0
        %4082 = vmatmul.mubr.bf16.gmra.mrb[0].mxu0 %v2990
        %v4083 = vpop.f32.mrb[0].mxu0
        %v4084 = vadd.f32 %v3923, %v4083
        %v4085 = vpop.f32.mrb[0].mxu0
        %v4086 = vpop.f32.mrb[0].mxu0
        %v4087 = vadd.f32 %v3926, %v4086
        %v4088 = vpop.f32.mrb[0].mxu0
        %4089 = vmatprep.mubr.bf16.mxu0 0
        %4090 = vmatmul.mubr.bf16.gmra.mrb[0].mxu0 %v2991
        %v4091 = vpop.f32.mrb[0].mxu0
        %v4092 = vadd.f32 %v3931, %v4091
        %v4093 = vpop.f32.mrb[0].mxu0
        %v4094 = vpop.f32.mrb[0].mxu0
        %v4095 = vadd.f32 %v3934, %v4094
        %v4096 = vpop.f32.mrb[0].mxu0
        %4097 = vmatprep.mubr.bf16.mxu0 0
        %4098 = vmatmul.mubr.bf16.gmra.mrb[0].mxu0 %v2992
        %v4099 = vpop.f32.mrb[0].mxu0
        %v4100 = vadd.f32 %v3939, %v4099
        %v4101 = vpop.f32.mrb[0].mxu0
        %v4102 = vpop.f32.mrb[0].mxu0
        %v4103 = vadd.f32 %v3942, %v4102
        %v4104 = vpop.f32.mrb[0].mxu0
        %4105 = vmatprep.mubr.bf16.mxu0 0
        %4106 = vmatmul.mubr.bf16.gmra.mrb[0].mxu0 %v2993
        %v4107 = vpop.f32.mrb[0].mxu0
        %v4108 = vadd.f32 %v3947, %v4107
        %v4109 = vpop.f32.mrb[0].mxu0
        %v4110 = vpop.f32.mrb[0].mxu0
        %v4111 = vadd.f32 %v3950, %v4110
        %v4112 = vpop.f32.mrb[0].mxu0
        %4113 = vmatprep.mubr.bf16.mxu0 0
        %4114 = vmatmul.mubr.bf16.gmra.mrb[0].mxu0 %v2994
        %v4115 = vpop.f32.mrb[0].mxu0
        %v4116 = vadd.f32 %v3955, %v4115
        %v4117 = vpop.f32.mrb[0].mxu0
        %v4118 = vpop.f32.mrb[0].mxu0
        %v4119 = vadd.f32 %v3958, %v4118
        %v4120 = vpop.f32.mrb[0].mxu0
        %4121 = vmatprep.mubr.bf16.mxu0 0
        %4122 = vmatmul.mubr.bf16.gmra.mrb[0].mxu0 %v2995
        %v4123 = vpop.f32.mrb[0].mxu0
        %v4124 = vadd.f32 %v3963, %v4123
        %v4125 = vpop.f32.mrb[0].mxu0
        %v4126 = vpop.f32.mrb[0].mxu0
        %v4127 = vadd.f32 %v3966, %v4126
        %v4128 = vpop.f32.mrb[0].mxu0
        %4129 = vmatprep.mubr.bf16.mxu0 0
        %4130 = vmatmul.mubr.bf16.gmra.mrb[0].mxu0 %v2996
        %v4131 = vpop.f32.mrb[0].mxu0
        %v4132 = vadd.f32 %v3971, %v4131
        %v4133 = vpop.f32.mrb[0].mxu0
        %v4134 = vpop.f32.mrb[0].mxu0
        %v4135 = vadd.f32 %v3974, %v4134
        %v4136 = vpop.f32.mrb[0].mxu0
        %4137 = vmatprep.mubr.bf16.mxu0 0
        %4138 = vmatmul.mubr.bf16.gmra.mrb[0].mxu0 %v2997
        %v4139 = vpop.f32.mrb[0].mxu0
        %v4140 = vadd.f32 %v3979, %v4139
        %v4141 = vpop.f32.mrb[0].mxu0
        %v4142 = vpop.f32.mrb[0].mxu0
        %v4143 = vadd.f32 %v3982, %v4142
        %v4144 = vpop.f32.mrb[0].mxu0
        %4145 = vmatprep.mubr.bf16.mxu0 0
        %4146 = vmatmul.mubr.bf16.gmra.mrb[0].mxu0 %v2998
        %v4147 = vpop.f32.mrb[0].mxu0
        %v4148 = vadd.f32 %v3987, %v4147
        %v4149 = vpop.f32.mrb[0].mxu0
        %v4150 = vpop.f32.mrb[0].mxu0
        %v4151 = vadd.f32 %v3990, %v4150
        %v4152 = vpop.f32.mrb[0].mxu0
        %4153 = vmatprep.mubr.bf16.mxu0 0
        %4154 = vmatmul.mubr.bf16.gmra.mrb[0].mxu0 %v2999
        %v4155 = vpop.f32.mrb[0].mxu0
        %v4156 = vadd.f32 %v3995, %v4155
        %v4157 = vpop.f32.mrb[0].mxu0
        %v4158 = vpop.f32.mrb[0].mxu0
        %v4159 = vadd.f32 %v3998, %v4158
        %v4160 = vpop.f32.mrb[0].mxu0
        %4161 = vmatprep.mubr.bf16.mxu0 0
        %4162 = vmatmul.mubr.bf16.gmra.mrb[0].mxu0 %v3000
        %v4163 = vpop.f32.mrb[0].mxu0
        %v4164 = vadd.f32 %v4003, %v4163
        %v4165 = vpop.f32.mrb[0].mxu0
        %v4166 = vpop.f32.mrb[0].mxu0
        %v4167 = vadd.f32 %v4006, %v4166
        %v4168 = vpop.f32.mrb[0].mxu0
        %4169 = vmatprep.mubr.bf16.mxu0 0
        %4170 = vmatmul.mubr.bf16.gmra.mrb[0].mxu0 %v3001
        %v4171 = vpop.f32.mrb[0].mxu0
        %v4172 = vadd.f32 %v4011, %v4171
        %v4173 = vpop.f32.mrb[0].mxu0
        %v4174 = vpop.f32.mrb[0].mxu0
        %v4175 = vadd.f32 %v4014, %v4174
        %v4176 = vpop.f32.mrb[0].mxu0
        %4177 = vmatprep.mubr.bf16.mxu0 0
        %4178 = vmatmul.mubr.bf16.gmra.mrb[0].mxu0 %v3002
        %v4179 = vpop.f32.mrb[0].mxu0
        %v4180 = vadd.f32 %v4019, %v4179
        %v4181 = vpop.f32.mrb[0].mxu0
        %v4182 = vpop.f32.mrb[0].mxu0
        %v4183 = vadd.f32 %v4022, %v4182
        %v4184 = vpop.f32.mrb[0].mxu0
        %4185 = vmatprep.mubr.bf16.mxu0 0
        %4186 = vmatmul.mubr.bf16.gmra.mrb[0].mxu0 %v3003
        %v4187 = vpop.f32.mrb[0].mxu0
        %v4188 = vadd.f32 %v4027, %v4187
        %v4189 = vpop.f32.mrb[0].mxu0
        %v4190 = vpop.f32.mrb[0].mxu0
        %v4191 = vadd.f32 %v4030, %v4190
        %v4192 = vpop.f32.mrb[0].mxu0
        %4193 = vdwg.mxu0
        %v4194 = vadd.f32 %v3647, %v4068
        %v4195 = vadd.f32 %v3648, %v4071
        %v4196 = vadd.f32 %v3649, %v4076
        %v4197 = vadd.f32 %v3650, %v4079
        %v4198 = vadd.f32 %v3651, %v4084
        %v4199 = vadd.f32 %v3652, %v4087
        %v4200 = vadd.f32 %v3653, %v4092
        %v4201 = vadd.f32 %v3654, %v4095
        %v4202 = vadd.f32 %v3655, %v4100
        %v4203 = vadd.f32 %v3656, %v4103
        %v4204 = vadd.f32 %v3657, %v4108
        %v4205 = vadd.f32 %v3658, %v4111
        %v4206 = vadd.f32 %v3659, %v4116
        %v4207 = vadd.f32 %v3660, %v4119
        %v4208 = vadd.f32 %v3661, %v4124
        %v4209 = vadd.f32 %v3662, %v4127
        %v4210 = vadd.f32 %v3663, %v4132
        %v4211 = vadd.f32 %v3664, %v4135
        %v4212 = vadd.f32 %v3665, %v4140
        %v4213 = vadd.f32 %v3666, %v4143
        %v4214 = vadd.f32 %v3667, %v4148
        %v4215 = vadd.f32 %v3668, %v4151
        %v4216 = vadd.f32 %v3669, %v4156
        %v4217 = vadd.f32 %v3670, %v4159
        %v4218 = vadd.f32 %v3671, %v4164
        %v4219 = vadd.f32 %v3672, %v4167
        %v4220 = vadd.f32 %v3673, %v4172
        %v4221 = vadd.f32 %v3674, %v4175
        %v4222 = vadd.f32 %v3675, %v4180
        %v4223 = vadd.f32 %v3676, %v4183
        %v4224 = vadd.f32 %v3677, %v4188
        %v4225 = vadd.f32 %v3678, %v4191
        %s4226 = scalar_lea.vmem [#allocation9], 960
        %v4227 = vld [vmem:[%s4226] sm:$0xf]
        %v4228 = vld [vmem:[%s4226 + $0x4] sm:$0xf]
        %v4229 = vld [vmem:[%s4226 + $0x8] sm:$0xf]
        %v4230 = vld [vmem:[%s4226 + $0xc] sm:$0xf]
        %v4231 = vld [vmem:[%s4226 + $0x10] sm:$0xf]
        %v4232 = vld [vmem:[%s4226 + $0x14] sm:$0xf]
        %v4233 = vld [vmem:[%s4226 + $0x18] sm:$0xf]
        %v4234 = vld [vmem:[%s4226 + $0x1c] sm:$0xf]
        %v4235 = vld [vmem:[%s4226 + $0x20] sm:$0xf]
        %v4236 = vld [vmem:[%s4226 + $0x24] sm:$0xf]
        %v4237 = vld [vmem:[%s4226 + $0x28] sm:$0xf]
        %v4238 = vld [vmem:[%s4226 + $0x2c] sm:$0xf]
        %v4239 = vld [vmem:[%s4226 + $0x30] sm:$0xf]
        %v4240 = vld [vmem:[%s4226 + $0x34] sm:$0xf]
        %v4241 = vld [vmem:[%s4226 + $0x38] sm:$0xf]
        %v4242 = vld [vmem:[%s4226 + $0x3c] sm:$0xf]
        %v4243 = vld [vmem:[%s4226 + $0x40] sm:$0xf]
        %v4244 = vld [vmem:[%s4226 + $0x44] sm:$0xf]
        %v4245 = vld [vmem:[%s4226 + $0x48] sm:$0xf]
        %v4246 = vld [vmem:[%s4226 + $0x4c] sm:$0xf]
        %v4247 = vld [vmem:[%s4226 + $0x50] sm:$0xf]
        %v4248 = vld [vmem:[%s4226 + $0x54] sm:$0xf]
        %v4249 = vld [vmem:[%s4226 + $0x58] sm:$0xf]
        %v4250 = vld [vmem:[%s4226 + $0x5c] sm:$0xf]
        %v4251 = vld [vmem:[%s4226 + $0x60] sm:$0xf]
        %v4252 = vld [vmem:[%s4226 + $0x64] sm:$0xf]
        %v4253 = vld [vmem:[%s4226 + $0x68] sm:$0xf]
        %v4254 = vld [vmem:[%s4226 + $0x6c] sm:$0xf]
        %v4255 = vld [vmem:[%s4226 + $0x70] sm:$0xf]
        %v4256 = vld [vmem:[%s4226 + $0x74] sm:$0xf]
        %v4257 = vld [vmem:[%s4226 + $0x78] sm:$0xf]
        %v4258 = vld [vmem:[%s4226 + $0x7c] sm:$0xf]
        %v4259 = vld [vmem:[%s4226 + $0x80] sm:$0xf]
        %v4260 = vld [vmem:[%s4226 + $0x84] sm:$0xf]
        %v4261 = vld [vmem:[%s4226 + $0x88] sm:$0xf]
        %v4262 = vld [vmem:[%s4226 + $0x8c] sm:$0xf]
        %v4263 = vld [vmem:[%s4226 + $0x90] sm:$0xf]
        %v4264 = vld [vmem:[%s4226 + $0x94] sm:$0xf]
        %v4265 = vld [vmem:[%s4226 + $0x98] sm:$0xf]
        %v4266 = vld [vmem:[%s4226 + $0x9c] sm:$0xf]
        %v4267 = vld [vmem:[%s4226 + $0xa0] sm:$0xf]
        %v4268 = vld [vmem:[%s4226 + $0xa4] sm:$0xf]
        %v4269 = vld [vmem:[%s4226 + $0xa8] sm:$0xf]
        %v4270 = vld [vmem:[%s4226 + $0xac] sm:$0xf]
        %v4271 = vld [vmem:[%s4226 + $0xb0] sm:$0xf]
        %v4272 = vld [vmem:[%s4226 + $0xb4] sm:$0xf]
        %v4273 = vld [vmem:[%s4226 + $0xb8] sm:$0xf]
        %v4274 = vld [vmem:[%s4226 + $0xbc] sm:$0xf]
        %v4323 = vunpack.c.l.b16 %v4227
        %v4324 = vunpack.c.l.b16 %v4228
        %v4325 = vunpack.c.l.b16 %v4229
        %v4326 = vunpack.c.l.b16 %v4230
        %v4327 = vunpack.c.l.b16 %v4231
        %v4328 = vunpack.c.l.b16 %v4232
        %v4329 = vunpack.c.l.b16 %v4233
        %v4330 = vunpack.c.l.b16 %v4234
        %v4331 = vunpack.c.l.b16 %v4235
        %v4332 = vunpack.c.l.b16 %v4236
        %v4333 = vunpack.c.l.b16 %v4237
        %v4334 = vunpack.c.l.b16 %v4238
        %v4335 = vunpack.c.l.b16 %v4239
        %v4336 = vunpack.c.l.b16 %v4240
        %v4337 = vunpack.c.l.b16 %v4241
        %v4338 = vunpack.c.l.b16 %v4242
        %v4339 = vunpack.c.l.b16 %v4243
        %v4340 = vunpack.c.l.b16 %v4244
        %v4341 = vunpack.c.l.b16 %v4245
        %v4342 = vunpack.c.l.b16 %v4246
        %v4343 = vunpack.c.l.b16 %v4247
        %v4344 = vunpack.c.l.b16 %v4248
        %v4345 = vunpack.c.l.b16 %v4249
        %v4346 = vunpack.c.l.b16 %v4250
        %v4347 = vunpack.c.l.b16 %v4251
        %v4348 = vunpack.c.l.b16 %v4252
        %v4349 = vunpack.c.l.b16 %v4253
        %v4350 = vunpack.c.l.b16 %v4254
        %v4351 = vunpack.c.l.b16 %v4255
        %v4352 = vunpack.c.l.b16 %v4256
        %v4353 = vunpack.c.l.b16 %v4257
        %v4354 = vunpack.c.l.b16 %v4258
        %v4355 = vunpack.c.l.b16 %v4259
        %v4356 = vunpack.c.l.b16 %v4260
        %v4357 = vunpack.c.l.b16 %v4261
        %v4358 = vunpack.c.l.b16 %v4262
        %v4359 = vunpack.c.l.b16 %v4263
        %v4360 = vunpack.c.l.b16 %v4264
        %v4361 = vunpack.c.l.b16 %v4265
        %v4362 = vunpack.c.l.b16 %v4266
        %v4363 = vunpack.c.l.b16 %v4267
        %v4364 = vunpack.c.l.b16 %v4268
        %v4365 = vunpack.c.l.b16 %v4269
        %v4366 = vunpack.c.l.b16 %v4270
        %v4367 = vunpack.c.l.b16 %v4271
        %v4368 = vunpack.c.l.b16 %v4272
        %v4369 = vunpack.c.l.b16 %v4273
        %v4370 = vunpack.c.l.b16 %v4274
        %v4371 = vpack.c.b16 %v4324, %v4323
        %v4372 = vpack.c.b16 %v4326, %v4325
        %v4373 = vpack.c.b16 %v4328, %v4327
        %v4374 = vpack.c.b16 %v4330, %v4329
        %v4375 = vpack.c.b16 %v4332, %v4331
        %v4376 = vpack.c.b16 %v4334, %v4333
        %v4377 = vpack.c.b16 %v4336, %v4335
        %v4378 = vpack.c.b16 %v4338, %v4337
        %v4379 = vpack.c.b16 %v4340, %v4339
        %v4380 = vpack.c.b16 %v4342, %v4341
        %v4381 = vpack.c.b16 %v4344, %v4343
        %v4382 = vpack.c.b16 %v4346, %v4345
        %v4383 = vpack.c.b16 %v4348, %v4347
        %v4384 = vpack.c.b16 %v4350, %v4349
        %v4385 = vpack.c.b16 %v4352, %v4351
        %v4386 = vpack.c.b16 %v4354, %v4353
        %v4387 = vpack.c.b16 %v4356, %v4355
        %v4388 = vpack.c.b16 %v4358, %v4357
        %v4389 = vpack.c.b16 %v4360, %v4359
        %v4390 = vpack.c.b16 %v4362, %v4361
        %v4391 = vpack.c.b16 %v4364, %v4363
        %v4392 = vpack.c.b16 %v4366, %v4365
        %v4393 = vpack.c.b16 %v4368, %v4367
        %v4394 = vpack.c.b16 %v4370, %v4369
        %4419 = vmatprep.subr.bf16.mxu0 0
        %4420 = vmatpush1.bf16.msra.mxu0 %v4371
        %4421 = vmatprep.subr.bf16.mxu0 0
        %4422 = vmatpush1.bf16.msra.mxu0 %v4372
        %4423 = vmatprep.subr.bf16.mxu0 0
        %4424 = vmatpush1.bf16.msra.mxu0 %v4373
        %4425 = vmatprep.subr.bf16.mxu0 0
        %4426 = vmatpush1.bf16.msra.mxu0 %v4374
        %4427 = vmatprep.subr.bf16.mxu0 0
        %4428 = vmatpush1.bf16.msra.mxu0 %v4375
        %4429 = vmatprep.subr.bf16.mxu0 0
        %4430 = vmatpush1.bf16.msra.mxu0 %v4376
        %4431 = vmatprep.subr.bf16.mxu0 0
        %4432 = vmatpush1.bf16.msra.mxu0 %v4377
        %4433 = vmatprep.subr.bf16.mxu0 0
        %4434 = vmatpush1.bf16.msra.mxu0 %v4378
        %4435 = vmatprep.subr.bf16.mxu0 0
        %4436 = vmatpush1.bf16.msra.mxu0 %v4379
        %4437 = vmatprep.subr.bf16.mxu0 0
        %4438 = vmatpush1.bf16.msra.mxu0 %v4380
        %4439 = vmatprep.subr.bf16.mxu0 0
        %4440 = vmatpush1.bf16.msra.mxu0 %v4381
        %4441 = vmatprep.subr.bf16.mxu0 0
        %4442 = vmatpush1.bf16.msra.mxu0 %v4382
        %4443 = vmatprep.subr.bf16.mxu0 0
        %4444 = vmatpush1.bf16.msra.mxu0 %v4383
        %4445 = vmatprep.subr.bf16.mxu0 0
        %4446 = vmatpush1.bf16.msra.mxu0 %v4384
        %4447 = vmatprep.subr.bf16.mxu0 0
        %4448 = vmatpush1.bf16.msra.mxu0 %v4385
        %4449 = vmatprep.subr.bf16.mxu0 0
        %4450 = vmatpush1.bf16.msra.mxu0 %v4386
        %4451 = vmatprep.mubr.bf16.mxu0 %v2972
        %4452 = vmatmul.mubr.bf16.gmra.mrb[0].mxu0 %v2956
        %v4453 = vpop.f32.mrb[0].mxu0
        %v4454 = vadd.f32 0.0, %v4453
        %v4455 = vpop.f32.mrb[0].mxu0
        %v4456 = vpop.f32.mrb[0].mxu0
        %v4457 = vadd.f32 0.0, %v4456
        %v4458 = vpop.f32.mrb[0].mxu0
        %4459 = vmatprep.mubr.bf16.mxu0 %v2973
        %4460 = vmatmul.mubr.bf16.gmra.mrb[0].mxu0 %v2957
        %v4461 = vpop.f32.mrb[0].mxu0
        %v4462 = vadd.f32 0.0, %v4461
        %v4463 = vpop.f32.mrb[0].mxu0
        %v4464 = vpop.f32.mrb[0].mxu0
        %v4465 = vadd.f32 0.0, %v4464
        %v4466 = vpop.f32.mrb[0].mxu0
        %4467 = vmatprep.mubr.bf16.mxu0 %v2974
        %4468 = vmatmul.mubr.bf16.gmra.mrb[0].mxu0 %v2958
        %v4469 = vpop.f32.mrb[0].mxu0
        %v4470 = vadd.f32 0.0, %v4469
        %v4471 = vpop.f32.mrb[0].mxu0
        %v4472 = vpop.f32.mrb[0].mxu0
        %v4473 = vadd.f32 0.0, %v4472
        %v4474 = vpop.f32.mrb[0].mxu0
        %4475 = vmatprep.mubr.bf16.mxu0 %v2975
        %4476 = vmatmul.mubr.bf16.gmra.mrb[0].mxu0 %v2959
        %v4477 = vpop.f32.mrb[0].mxu0
        %v4478 = vadd.f32 0.0, %v4477
        %v4479 = vpop.f32.mrb[0].mxu0
        %v4480 = vpop.f32.mrb[0].mxu0
        %v4481 = vadd.f32 0.0, %v4480
        %v4482 = vpop.f32.mrb[0].mxu0
        %4483 = vmatprep.mubr.bf16.mxu0 %v2976
        %4484 = vmatmul.mubr.bf16.gmra.mrb[0].mxu0 %v2960
        %v4485 = vpop.f32.mrb[0].mxu0
        %v4486 = vadd.f32 0.0, %v4485
        %v4487 = vpop.f32.mrb[0].mxu0
        %v4488 = vpop.f32.mrb[0].mxu0
        %v4489 = vadd.f32 0.0, %v4488
        %v4490 = vpop.f32.mrb[0].mxu0
        %4491 = vmatprep.mubr.bf16.mxu0 %v2977
        %4492 = vmatmul.mubr.bf16.gmra.mrb[0].mxu0 %v2961
        %v4493 = vpop.f32.mrb[0].mxu0
        %v4494 = vadd.f32 0.0, %v4493
        %v4495 = vpop.f32.mrb[0].mxu0
        %v4496 = vpop.f32.mrb[0].mxu0
        %v4497 = vadd.f32 0.0, %v4496
        %v4498 = vpop.f32.mrb[0].mxu0
        %4499 = vmatprep.mubr.bf16.mxu0 %v2978
        %4500 = vmatmul.mubr.bf16.gmra.mrb[0].mxu0 %v2962
        %v4501 = vpop.f32.mrb[0].mxu0
        %v4502 = vadd.f32 0.0, %v4501
        %v4503 = vpop.f32.mrb[0].mxu0
        %v4504 = vpop.f32.mrb[0].mxu0
        %v4505 = vadd.f32 0.0, %v4504
        %v4506 = vpop.f32.mrb[0].mxu0
        %4507 = vmatprep.mubr.bf16.mxu0 %v2979
        %4508 = vmatmul.mubr.bf16.gmra.mrb[0].mxu0 %v2963
        %v4509 = vpop.f32.mrb[0].mxu0
        %v4510 = vadd.f32 0.0, %v4509
        %v4511 = vpop.f32.mrb[0].mxu0
        %v4512 = vpop.f32.mrb[0].mxu0
        %v4513 = vadd.f32 0.0, %v4512
        %v4514 = vpop.f32.mrb[0].mxu0
        %4515 = vmatprep.mubr.bf16.mxu0 %v2980
        %4516 = vmatmul.mubr.bf16.gmra.mrb[0].mxu0 %v2964
        %v4517 = vpop.f32.mrb[0].mxu0
        %v4518 = vadd.f32 0.0, %v4517
        %v4519 = vpop.f32.mrb[0].mxu0
        %v4520 = vpop.f32.mrb[0].mxu0
        %v4521 = vadd.f32 0.0, %v4520
        %v4522 = vpop.f32.mrb[0].mxu0
        %4523 = vmatprep.mubr.bf16.mxu0 %v2981
        %4524 = vmatmul.mubr.bf16.gmra.mrb[0].mxu0 %v2965
        %v4525 = vpop.f32.mrb[0].mxu0
        %v4526 = vadd.f32 0.0, %v4525
        %v4527 = vpop.f32.mrb[0].mxu0
        %v4528 = vpop.f32.mrb[0].mxu0
        %v4529 = vadd.f32 0.0, %v4528
        %v4530 = vpop.f32.mrb[0].mxu0
        %4531 = vmatprep.mubr.bf16.mxu0 %v2982
        %4532 = vmatmul.mubr.bf16.gmra.mrb[0].mxu0 %v2966
        %v4533 = vpop.f32.mrb[0].mxu0
        %v4534 = vadd.f32 0.0, %v4533
        %v4535 = vpop.f32.mrb[0].mxu0
        %v4536 = vpop.f32.mrb[0].mxu0
        %v4537 = vadd.f32 0.0, %v4536
        %v4538 = vpop.f32.mrb[0].mxu0
        %4539 = vmatprep.mubr.bf16.mxu0 %v2983
        %4540 = vmatmul.mubr.bf16.gmra.mrb[0].mxu0 %v2967
        %v4541 = vpop.f32.mrb[0].mxu0
        %v4542 = vadd.f32 0.0, %v4541
        %v4543 = vpop.f32.mrb[0].mxu0
        %v4544 = vpop.f32.mrb[0].mxu0
        %v4545 = vadd.f32 0.0, %v4544
        %v4546 = vpop.f32.mrb[0].mxu0
        %4547 = vmatprep.mubr.bf16.mxu0 %v2984
        %4548 = vmatmul.mubr.bf16.gmra.mrb[0].mxu0 %v2968
        %v4549 = vpop.f32.mrb[0].mxu0
        %v4550 = vadd.f32 0.0, %v4549
        %v4551 = vpop.f32.mrb[0].mxu0
        %v4552 = vpop.f32.mrb[0].mxu0
        %v4553 = vadd.f32 0.0, %v4552
        %v4554 = vpop.f32.mrb[0].mxu0
        %4555 = vmatprep.mubr.bf16.mxu0 %v2985
        %4556 = vmatmul.mubr.bf16.gmra.mrb[0].mxu0 %v2969
        %v4557 = vpop.f32.mrb[0].mxu0
        %v4558 = vadd.f32 0.0, %v4557
        %v4559 = vpop.f32.mrb[0].mxu0
        %v4560 = vpop.f32.mrb[0].mxu0
        %v4561 = vadd.f32 0.0, %v4560
        %v4562 = vpop.f32.mrb[0].mxu0
        %4563 = vmatprep.mubr.bf16.mxu0 %v2986
        %4564 = vmatmul.mubr.bf16.gmra.mrb[0].mxu0 %v2970
        %v4565 = vpop.f32.mrb[0].mxu0
        %v4566 = vadd.f32 0.0, %v4565
        %v4567 = vpop.f32.mrb[0].mxu0
        %v4568 = vpop.f32.mrb[0].mxu0
        %v4569 = vadd.f32 0.0, %v4568
        %v4570 = vpop.f32.mrb[0].mxu0
        %4571 = vmatprep.mubr.bf16.mxu0 %v2987
        %4572 = vmatmul.mubr.bf16.gmra.mrb[0].mxu0 %v2971
        %v4573 = vpop.f32.mrb[0].mxu0
        %v4574 = vadd.f32 0.0, %v4573
        %v4575 = vpop.f32.mrb[0].mxu0
        %v4576 = vpop.f32.mrb[0].mxu0
        %v4577 = vadd.f32 0.0, %v4576
        %v4578 = vpop.f32.mrb[0].mxu0
        %4579 = vdwg.mxu0
        %4580 = vmatprep.subr.bf16.mxu0 0
        %4581 = vmatpush1.bf16.msra.mxu0 %v4387
        %4582 = vmatprep.subr.bf16.mxu0 0
        %4583 = vmatpush1.bf16.msra.mxu0 %v4388
        %4584 = vmatprep.subr.bf16.mxu0 0
        %4585 = vmatpush1.bf16.msra.mxu0 %v4389
        %4586 = vmatprep.subr.bf16.mxu0 0
        %4587 = vmatpush1.bf16.msra.mxu0 %v4390
        %4588 = vmatprep.subr.bf16.mxu0 0
        %4589 = vmatpush1.bf16.msra.mxu0 %v4391
        %4590 = vmatprep.subr.bf16.mxu0 0
        %4591 = vmatpush1.bf16.msra.mxu0 %v4392
        %4592 = vmatprep.subr.bf16.mxu0 0
        %4593 = vmatpush1.bf16.msra.mxu0 %v4393
        %4594 = vmatprep.subr.bf16.mxu0 0
        %4595 = vmatpush1.bf16.msra.mxu0 %v4394
        %4596 = vmatprep.subr.bf16.mxu0 0
        %4597 = vmatpush1.bf16.msra.mxu0 0
        %4598 = vmatprep.subr.bf16.mxu0 0
        %4599 = vmatpush1.bf16.msra.mxu0 0
        %4600 = vmatprep.subr.bf16.mxu0 0
        %4601 = vmatpush1.bf16.msra.mxu0 0
        %4602 = vmatprep.subr.bf16.mxu0 0
        %4603 = vmatpush1.bf16.msra.mxu0 0
        %4604 = vmatprep.subr.bf16.mxu0 0
        %4605 = vmatpush1.bf16.msra.mxu0 0
        %4606 = vmatprep.subr.bf16.mxu0 0
        %4607 = vmatpush1.bf16.msra.mxu0 0
        %4608 = vmatprep.subr.bf16.mxu0 0
        %4609 = vmatpush1.bf16.msra.mxu0 0
        %4610 = vmatprep.subr.bf16.mxu0 0
        %4611 = vmatpush1.bf16.msra.mxu0 0
        %4612 = vmatprep.mubr.bf16.mxu0 0
        %4613 = vmatmul.mubr.bf16.gmra.mrb[0].mxu0 %v2988
        %v4614 = vpop.f32.mrb[0].mxu0
        %v4615 = vadd.f32 %v4454, %v4614
        %v4616 = vpop.f32.mrb[0].mxu0
        %v4617 = vpop.f32.mrb[0].mxu0
        %v4618 = vadd.f32 %v4457, %v4617
        %v4619 = vpop.f32.mrb[0].mxu0
        %4620 = vmatprep.mubr.bf16.mxu0 0
        %4621 = vmatmul.mubr.bf16.gmra.mrb[0].mxu0 %v2989
        %v4622 = vpop.f32.mrb[0].mxu0
        %v4623 = vadd.f32 %v4462, %v4622
        %v4624 = vpop.f32.mrb[0].mxu0
        %v4625 = vpop.f32.mrb[0].mxu0
        %v4626 = vadd.f32 %v4465, %v4625
        %v4627 = vpop.f32.mrb[0].mxu0
        %4628 = vmatprep.mubr.bf16.mxu0 0
        %4629 = vmatmul.mubr.bf16.gmra.mrb[0].mxu0 %v2990
        %v4630 = vpop.f32.mrb[0].mxu0
        %v4631 = vadd.f32 %v4470, %v4630
        %v4632 = vpop.f32.mrb[0].mxu0
        %v4633 = vpop.f32.mrb[0].mxu0
        %v4634 = vadd.f32 %v4473, %v4633
        %v4635 = vpop.f32.mrb[0].mxu0
        %4636 = vmatprep.mubr.bf16.mxu0 0
        %4637 = vmatmul.mubr.bf16.gmra.mrb[0].mxu0 %v2991
        %v4638 = vpop.f32.mrb[0].mxu0
        %v4639 = vadd.f32 %v4478, %v4638
        %v4640 = vpop.f32.mrb[0].mxu0
        %v4641 = vpop.f32.mrb[0].mxu0
        %v4642 = vadd.f32 %v4481, %v4641
        %v4643 = vpop.f32.mrb[0].mxu0
        %4644 = vmatprep.mubr.bf16.mxu0 0
        %4645 = vmatmul.mubr.bf16.gmra.mrb[0].mxu0 %v2992
        %v4646 = vpop.f32.mrb[0].mxu0
        %v4647 = vadd.f32 %v4486, %v4646
        %v4648 = vpop.f32.mrb[0].mxu0
        %v4649 = vpop.f32.mrb[0].mxu0
        %v4650 = vadd.f32 %v4489, %v4649
        %v4651 = vpop.f32.mrb[0].mxu0
        %4652 = vmatprep.mubr.bf16.mxu0 0
        %4653 = vmatmul.mubr.bf16.gmra.mrb[0].mxu0 %v2993
        %v4654 = vpop.f32.mrb[0].mxu0
        %v4655 = vadd.f32 %v4494, %v4654
        %v4656 = vpop.f32.mrb[0].mxu0
        %v4657 = vpop.f32.mrb[0].mxu0
        %v4658 = vadd.f32 %v4497, %v4657
        %v4659 = vpop.f32.mrb[0].mxu0
        %4660 = vmatprep.mubr.bf16.mxu0 0
        %4661 = vmatmul.mubr.bf16.gmra.mrb[0].mxu0 %v2994
        %v4662 = vpop.f32.mrb[0].mxu0
        %v4663 = vadd.f32 %v4502, %v4662
        %v4664 = vpop.f32.mrb[0].mxu0
        %v4665 = vpop.f32.mrb[0].mxu0
        %v4666 = vadd.f32 %v4505, %v4665
        %v4667 = vpop.f32.mrb[0].mxu0
        %4668 = vmatprep.mubr.bf16.mxu0 0
        %4669 = vmatmul.mubr.bf16.gmra.mrb[0].mxu0 %v2995
        %v4670 = vpop.f32.mrb[0].mxu0
        %v4671 = vadd.f32 %v4510, %v4670
        %v4672 = vpop.f32.mrb[0].mxu0
        %v4673 = vpop.f32.mrb[0].mxu0
        %v4674 = vadd.f32 %v4513, %v4673
        %v4675 = vpop.f32.mrb[0].mxu0
        %4676 = vmatprep.mubr.bf16.mxu0 0
        %4677 = vmatmul.mubr.bf16.gmra.mrb[0].mxu0 %v2996
        %v4678 = vpop.f32.mrb[0].mxu0
        %v4679 = vadd.f32 %v4518, %v4678
        %v4680 = vpop.f32.mrb[0].mxu0
        %v4681 = vpop.f32.mrb[0].mxu0
        %v4682 = vadd.f32 %v4521, %v4681
        %v4683 = vpop.f32.mrb[0].mxu0
        %4684 = vmatprep.mubr.bf16.mxu0 0
        %4685 = vmatmul.mubr.bf16.gmra.mrb[0].mxu0 %v2997
        %v4686 = vpop.f32.mrb[0].mxu0
        %v4687 = vadd.f32 %v4526, %v4686
        %v4688 = vpop.f32.mrb[0].mxu0
        %v4689 = vpop.f32.mrb[0].mxu0
        %v4690 = vadd.f32 %v4529, %v4689
        %v4691 = vpop.f32.mrb[0].mxu0
        %4692 = vmatprep.mubr.bf16.mxu0 0
        %4693 = vmatmul.mubr.bf16.gmra.mrb[0].mxu0 %v2998
        %v4694 = vpop.f32.mrb[0].mxu0
        %v4695 = vadd.f32 %v4534, %v4694
        %v4696 = vpop.f32.mrb[0].mxu0
        %v4697 = vpop.f32.mrb[0].mxu0
        %v4698 = vadd.f32 %v4537, %v4697
        %v4699 = vpop.f32.mrb[0].mxu0
        %4700 = vmatprep.mubr.bf16.mxu0 0
        %4701 = vmatmul.mubr.bf16.gmra.mrb[0].mxu0 %v2999
        %v4702 = vpop.f32.mrb[0].mxu0
        %v4703 = vadd.f32 %v4542, %v4702
        %v4704 = vpop.f32.mrb[0].mxu0
        %v4705 = vpop.f32.mrb[0].mxu0
        %v4706 = vadd.f32 %v4545, %v4705
        %v4707 = vpop.f32.mrb[0].mxu0
        %4708 = vmatprep.mubr.bf16.mxu0 0
        %4709 = vmatmul.mubr.bf16.gmra.mrb[0].mxu0 %v3000
        %v4710 = vpop.f32.mrb[0].mxu0
        %v4711 = vadd.f32 %v4550, %v4710
        %v4712 = vpop.f32.mrb[0].mxu0
        %v4713 = vpop.f32.mrb[0].mxu0
        %v4714 = vadd.f32 %v4553, %v4713
        %v4715 = vpop.f32.mrb[0].mxu0
        %4716 = vmatprep.mubr.bf16.mxu0 0
        %4717 = vmatmul.mubr.bf16.gmra.mrb[0].mxu0 %v3001
        %v4718 = vpop.f32.mrb[0].mxu0
        %v4719 = vadd.f32 %v4558, %v4718
        %v4720 = vpop.f32.mrb[0].mxu0
        %v4721 = vpop.f32.mrb[0].mxu0
        %v4722 = vadd.f32 %v4561, %v4721
        %v4723 = vpop.f32.mrb[0].mxu0
        %4724 = vmatprep.mubr.bf16.mxu0 0
        %4725 = vmatmul.mubr.bf16.gmra.mrb[0].mxu0 %v3002
        %v4726 = vpop.f32.mrb[0].mxu0
        %v4727 = vadd.f32 %v4566, %v4726
        %v4728 = vpop.f32.mrb[0].mxu0
        %v4729 = vpop.f32.mrb[0].mxu0
        %v4730 = vadd.f32 %v4569, %v4729
        %v4731 = vpop.f32.mrb[0].mxu0
        %4732 = vmatprep.mubr.bf16.mxu0 0
        %4733 = vmatmul.mubr.bf16.gmra.mrb[0].mxu0 %v3003
        %v4734 = vpop.f32.mrb[0].mxu0
        %v4735 = vadd.f32 %v4574, %v4734
        %v4736 = vpop.f32.mrb[0].mxu0
        %v4737 = vpop.f32.mrb[0].mxu0
        %v4738 = vadd.f32 %v4577, %v4737
        %v4739 = vpop.f32.mrb[0].mxu0
        %4740 = vdwg.mxu0
        %v4741 = vrot.slane %v4615, 1
        %v4742 = vrot.slane %v4618, 1
        %v4743 = vrot.slane %v4623, 1
        %v4744 = vrot.slane %v4626, 1
        %v4745 = vrot.slane %v4631, 1
        %v4746 = vrot.slane %v4634, 1
        %v4747 = vrot.slane %v4639, 1
        %v4748 = vrot.slane %v4642, 1
        %v4749 = vrot.slane %v4647, 1
        %v4750 = vrot.slane %v4650, 1
        %v4751 = vrot.slane %v4655, 1
        %v4752 = vrot.slane %v4658, 1
        %v4753 = vrot.slane %v4663, 1
        %v4754 = vrot.slane %v4666, 1
        %v4755 = vrot.slane %v4671, 1
        %v4756 = vrot.slane %v4674, 1
        %v4757 = vrot.slane %v4679, 1
        %v4758 = vrot.slane %v4682, 1
        %v4759 = vrot.slane %v4687, 1
        %v4760 = vrot.slane %v4690, 1
        %v4761 = vrot.slane %v4695, 1
        %v4762 = vrot.slane %v4698, 1
        %v4763 = vrot.slane %v4703, 1
        %v4764 = vrot.slane %v4706, 1
        %v4765 = vrot.slane %v4711, 1
        %v4766 = vrot.slane %v4714, 1
        %v4767 = vrot.slane %v4719, 1
        %v4768 = vrot.slane %v4722, 1
        %v4769 = vrot.slane %v4727, 1
        %v4770 = vrot.slane %v4730, 1
        %v4771 = vrot.slane %v4735, 1
        %v4772 = vrot.slane %v4738, 1
        %v4773 = vsel %vm2485, %v4771, %v4772
        %v4774 = vsel %vm2485, %v4770, %v4771
        %v4775 = vsel %vm2485, %v4769, %v4770
        %v4776 = vsel %vm2485, %v4768, %v4769
        %v4777 = vsel %vm2485, %v4767, %v4768
        %v4778 = vsel %vm2485, %v4766, %v4767
        %v4779 = vsel %vm2485, %v4765, %v4766
        %v4780 = vsel %vm2485, %v4764, %v4765
        %v4781 = vsel %vm2485, %v4763, %v4764
        %v4782 = vsel %vm2485, %v4762, %v4763
        %v4783 = vsel %vm2485, %v4761, %v4762
        %v4784 = vsel %vm2485, %v4760, %v4761
        %v4785 = vsel %vm2485, %v4759, %v4760
        %v4786 = vsel %vm2485, %v4758, %v4759
        %v4787 = vsel %vm2485, %v4757, %v4758
        %v4788 = vsel %vm2485, %v4756, %v4757
        %v4789 = vsel %vm2485, %v4755, %v4756
        %v4790 = vsel %vm2485, %v4754, %v4755
        %v4791 = vsel %vm2485, %v4753, %v4754
        %v4792 = vsel %vm2485, %v4752, %v4753
        %v4793 = vsel %vm2485, %v4751, %v4752
        %v4794 = vsel %vm2485, %v4750, %v4751
        %v4795 = vsel %vm2485, %v4749, %v4750
        %v4796 = vsel %vm2485, %v4748, %v4749
        %v4797 = vsel %vm2485, %v4747, %v4748
        %v4798 = vsel %vm2485, %v4746, %v4747
        %v4799 = vsel %vm2485, %v4745, %v4746
        %v4800 = vsel %vm2485, %v4744, %v4745
        %v4801 = vsel %vm2485, %v4743, %v4744
        %v4802 = vsel %vm2485, %v4742, %v4743
        %v4803 = vsel %vm2485, %v4741, %v4742
        %v4804 = vsel %vm2485, %v4772, %v4741
        %v4805 = vsel %vm2520, %v4803, 0.0
        %v4806 = vsel %vm2521, %v4802, 0.0
        %v4807 = vsel %vm2520, %v4801, 0.0
        %v4808 = vsel %vm2521, %v4800, 0.0
        %v4809 = vsel %vm2520, %v4799, 0.0
        %v4810 = vsel %vm2521, %v4798, 0.0
        %v4811 = vsel %vm2520, %v4797, 0.0
        %v4812 = vsel %vm2521, %v4796, 0.0
        %v4813 = vsel %vm2520, %v4795, 0.0
        %v4814 = vsel %vm2521, %v4794, 0.0
        %v4815 = vsel %vm2520, %v4793, 0.0
        %v4816 = vsel %vm2521, %v4792, 0.0
        %v4817 = vsel %vm2520, %v4791, 0.0
        %v4818 = vsel %vm2521, %v4790, 0.0
        %v4819 = vsel %vm2520, %v4789, 0.0
        %v4820 = vsel %vm2521, %v4788, 0.0
        %v4821 = vsel %vm2520, %v4787, 0.0
        %v4822 = vsel %vm2521, %v4786, 0.0
        %v4823 = vsel %vm2520, %v4785, 0.0
        %v4824 = vsel %vm2521, %v4784, 0.0
        %v4825 = vsel %vm2520, %v4783, 0.0
        %v4826 = vsel %vm2521, %v4782, 0.0
        %v4827 = vsel %vm2520, %v4781, 0.0
        %v4828 = vsel %vm2521, %v4780, 0.0
        %v4829 = vsel %vm2520, %v4779, 0.0
        %v4830 = vsel %vm2521, %v4778, 0.0
        %v4831 = vsel %vm2520, %v4777, 0.0
        %v4832 = vsel %vm2521, %v4776, 0.0
        %v4833 = vsel %vm2520, %v4775, 0.0
        %v4834 = vsel %vm2521, %v4774, 0.0
        %v4835 = vsel %vm2520, %v4773, 0.0
        %v4836 = vsel %vm2521, %v4804, 0.0
        %v4837 = vadd.f32 %v4194, %v4805
        %v4838 = vadd.f32 %v4195, %v4806
        %v4839 = vadd.f32 %v4196, %v4807
        %v4840 = vadd.f32 %v4197, %v4808
        %v4841 = vadd.f32 %v4198, %v4809
        %v4842 = vadd.f32 %v4199, %v4810
        %v4843 = vadd.f32 %v4200, %v4811
        %v4844 = vadd.f32 %v4201, %v4812
        %v4845 = vadd.f32 %v4202, %v4813
        %v4846 = vadd.f32 %v4203, %v4814
        %v4847 = vadd.f32 %v4204, %v4815
        %v4848 = vadd.f32 %v4205, %v4816
        %v4849 = vadd.f32 %v4206, %v4817
        %v4850 = vadd.f32 %v4207, %v4818
        %v4851 = vadd.f32 %v4208, %v4819
        %v4852 = vadd.f32 %v4209, %v4820
        %v4853 = vadd.f32 %v4210, %v4821
        %v4854 = vadd.f32 %v4211, %v4822
        %v4855 = vadd.f32 %v4212, %v4823
        %v4856 = vadd.f32 %v4213, %v4824
        %v4857 = vadd.f32 %v4214, %v4825
        %v4858 = vadd.f32 %v4215, %v4826
        %v4859 = vadd.f32 %v4216, %v4827
        %v4860 = vadd.f32 %v4217, %v4828
        %v4861 = vadd.f32 %v4218, %v4829
        %v4862 = vadd.f32 %v4219, %v4830
        %v4863 = vadd.f32 %v4220, %v4831
        %v4864 = vadd.f32 %v4221, %v4832
        %v4865 = vadd.f32 %v4222, %v4833
        %v4866 = vadd.f32 %v4223, %v4834
        %v4867 = vadd.f32 %v4224, %v4835
        %v4868 = vadd.f32 %v4225, %v4836
        %4869 = vst [vmem:[#allocation2] sm:$0xff] %v4837
        %4870 = vst [vmem:[#allocation2 + $0x8] sm:$0xff] %v4838
        %4871 = vst [vmem:[#allocation2 + $0x10] sm:$0xff] %v4839
        %4872 = vst [vmem:[#allocation2 + $0x18] sm:$0xff] %v4840
        %4873 = vst [vmem:[#allocation2 + $0x20] sm:$0xff] %v4841
        %4874 = vst [vmem:[#allocation2 + $0x28] sm:$0xff] %v4842
        %4875 = vst [vmem:[#allocation2 + $0x30] sm:$0xff] %v4843
        %4876 = vst [vmem:[#allocation2 + $0x38] sm:$0xff] %v4844
        %4877 = vst [vmem:[#allocation2 + $0x40] sm:$0xff] %v4845
        %4878 = vst [vmem:[#allocation2 + $0x48] sm:$0xff] %v4846
        %4879 = vst [vmem:[#allocation2 + $0x50] sm:$0xff] %v4847
        %4880 = vst [vmem:[#allocation2 + $0x58] sm:$0xff] %v4848
        %4881 = vst [vmem:[#allocation2 + $0x60] sm:$0xff] %v4849
        %4882 = vst [vmem:[#allocation2 + $0x68] sm:$0xff] %v4850
        %4883 = vst [vmem:[#allocation2 + $0x70] sm:$0xff] %v4851
        %4884 = vst [vmem:[#allocation2 + $0x78] sm:$0xff] %v4852
        %4885 = vst [vmem:[#allocation2 + $0x80] sm:$0xff] %v4853
        %4886 = vst [vmem:[#allocation2 + $0x88] sm:$0xff] %v4854
        %4887 = vst [vmem:[#allocation2 + $0x90] sm:$0xff] %v4855
        %4888 = vst [vmem:[#allocation2 + $0x98] sm:$0xff] %v4856
        %4889 = vst [vmem:[#allocation2 + $0xa0] sm:$0xff] %v4857
        %4890 = vst [vmem:[#allocation2 + $0xa8] sm:$0xff] %v4858
        %4891 = vst [vmem:[#allocation2 + $0xb0] sm:$0xff] %v4859
        %4892 = vst [vmem:[#allocation2 + $0xb8] sm:$0xff] %v4860
        %4893 = vst [vmem:[#allocation2 + $0xc0] sm:$0xff] %v4861
        %4894 = vst [vmem:[#allocation2 + $0xc8] sm:$0xff] %v4862
        %4895 = vst [vmem:[#allocation2 + $0xd0] sm:$0xff] %v4863
        %4896 = vst [vmem:[#allocation2 + $0xd8] sm:$0xff] %v4864
        %4897 = vst [vmem:[#allocation2 + $0xe0] sm:$0xff] %v4865
        %4898 = vst [vmem:[#allocation2 + $0xe8] sm:$0xff] %v4866
        %4899 = vst [vmem:[#allocation2 + $0xf0] sm:$0xff] %v4867
        %4900 = vst [vmem:[#allocation2 + $0xf8] sm:$0xff] %v4868
        %v4901 = vld [vmem:[#allocation2] sm:$0xff]
        %v4902 = vld [vmem:[#allocation2 + $0x8] sm:$0xff]
        %v4903 = vld [vmem:[#allocation2 + $0x10] sm:$0xff]
        %v4904 = vld [vmem:[#allocation2 + $0x18] sm:$0xff]
        %v4905 = vld [vmem:[#allocation2 + $0x20] sm:$0xff]
        %v4906 = vld [vmem:[#allocation2 + $0x28] sm:$0xff]
        %v4907 = vld [vmem:[#allocation2 + $0x30] sm:$0xff]
        %v4908 = vld [vmem:[#allocation2 + $0x38] sm:$0xff]
        %v4909 = vld [vmem:[#allocation2 + $0x40] sm:$0xff]
        %v4910 = vld [vmem:[#allocation2 + $0x48] sm:$0xff]
        %v4911 = vld [vmem:[#allocation2 + $0x50] sm:$0xff]
        %v4912 = vld [vmem:[#allocation2 + $0x58] sm:$0xff]
        %v4913 = vld [vmem:[#allocation2 + $0x60] sm:$0xff]
        %v4914 = vld [vmem:[#allocation2 + $0x68] sm:$0xff]
        %v4915 = vld [vmem:[#allocation2 + $0x70] sm:$0xff]
        %v4916 = vld [vmem:[#allocation2 + $0x78] sm:$0xff]
        %v4917 = vld [vmem:[#allocation2 + $0x80] sm:$0xff]
        %v4918 = vld [vmem:[#allocation2 + $0x88] sm:$0xff]
        %v4919 = vld [vmem:[#allocation2 + $0x90] sm:$0xff]
        %v4920 = vld [vmem:[#allocation2 + $0x98] sm:$0xff]
        %v4921 = vld [vmem:[#allocation2 + $0xa0] sm:$0xff]
        %v4922 = vld [vmem:[#allocation2 + $0xa8] sm:$0xff]
        %v4923 = vld [vmem:[#allocation2 + $0xb0] sm:$0xff]
        %v4924 = vld [vmem:[#allocation2 + $0xb8] sm:$0xff]
        %v4925 = vld [vmem:[#allocation2 + $0xc0] sm:$0xff]
        %v4926 = vld [vmem:[#allocation2 + $0xc8] sm:$0xff]
        %v4927 = vld [vmem:[#allocation2 + $0xd0] sm:$0xff]
        %v4928 = vld [vmem:[#allocation2 + $0xd8] sm:$0xff]
        %v4929 = vld [vmem:[#allocation2 + $0xe0] sm:$0xff]
        %v4930 = vld [vmem:[#allocation2 + $0xe8] sm:$0xff]
        %v4931 = vld [vmem:[#allocation2 + $0xf0] sm:$0xff]
        %v4932 = vld [vmem:[#allocation2 + $0xf8] sm:$0xff]
        %v4933 = vpack.c.bf16 %v4902, %v4901
        %v4934 = vpack.c.bf16 %v4904, %v4903
        %v4935 = vpack.c.bf16 %v4906, %v4905
        %v4936 = vpack.c.bf16 %v4908, %v4907
        %v4937 = vpack.c.bf16 %v4910, %v4909
        %v4938 = vpack.c.bf16 %v4912, %v4911
        %v4939 = vpack.c.bf16 %v4914, %v4913
        %v4940 = vpack.c.bf16 %v4916, %v4915
        %v4941 = vpack.c.bf16 %v4918, %v4917
        %v4942 = vpack.c.bf16 %v4920, %v4919
        %v4943 = vpack.c.bf16 %v4922, %v4921
        %v4944 = vpack.c.bf16 %v4924, %v4923
        %v4945 = vpack.c.bf16 %v4926, %v4925
        %v4946 = vpack.c.bf16 %v4928, %v4927
        %v4947 = vpack.c.bf16 %v4930, %v4929
        %v4948 = vpack.c.bf16 %v4932, %v4931
        %v4965 = vunpack.c.l.b16 %v4933
        %v4966 = vunpack.c.h.b16 %v4933
        %v4967 = vunpack.c.l.b16 %v4934
        %v4968 = vunpack.c.h.b16 %v4934
        %v4969 = vunpack.c.l.b16 %v4935
        %v4970 = vunpack.c.h.b16 %v4935
        %v4971 = vunpack.c.l.b16 %v4936
        %v4972 = vunpack.c.h.b16 %v4936
        %v4973 = vunpack.c.l.b16 %v4937
        %v4974 = vunpack.c.h.b16 %v4937
        %v4975 = vunpack.c.l.b16 %v4938
        %v4976 = vunpack.c.h.b16 %v4938
        %v4977 = vunpack.c.l.b16 %v4939
        %v4978 = vunpack.c.h.b16 %v4939
        %v4979 = vunpack.c.l.b16 %v4940
        %v4980 = vunpack.c.h.b16 %v4940
        %v4981 = vunpack.c.l.b16 %v4941
        %v4982 = vunpack.c.h.b16 %v4941
        %v4983 = vunpack.c.l.b16 %v4942
        %v4984 = vunpack.c.h.b16 %v4942
        %v4985 = vunpack.c.l.b16 %v4943
        %v4986 = vunpack.c.h.b16 %v4943
        %v4987 = vunpack.c.l.b16 %v4944
        %v4988 = vunpack.c.h.b16 %v4944
        %v4989 = vunpack.c.l.b16 %v4945
        %v4990 = vunpack.c.h.b16 %v4945
        %v4991 = vunpack.c.l.b16 %v4946
        %v4992 = vunpack.c.h.b16 %v4946
        %v4993 = vunpack.c.l.b16 %v4947
        %v4994 = vunpack.c.h.b16 %v4947
        %v4995 = vunpack.c.l.b16 %v4948
        %v4996 = vunpack.c.h.b16 %v4948
        %v4997 = vpack.c.b16 %v4965, %v4965
        %v4998 = vpack.c.b16 %v4966, %v4966
        %v4999 = vpack.c.b16 %v4967, %v4967
        %v5000 = vpack.c.b16 %v4968, %v4968
        %v5001 = vpack.c.b16 %v4969, %v4969
        %v5002 = vpack.c.b16 %v4970, %v4970
        %v5003 = vpack.c.b16 %v4971, %v4971
        %v5004 = vpack.c.b16 %v4972, %v4972
        %v5005 = vpack.c.b16 %v4973, %v4973
        %v5006 = vpack.c.b16 %v4974, %v4974
        %v5007 = vpack.c.b16 %v4975, %v4975
        %v5008 = vpack.c.b16 %v4976, %v4976
        %v5009 = vpack.c.b16 %v4977, %v4977
        %v5010 = vpack.c.b16 %v4978, %v4978
        %v5011 = vpack.c.b16 %v4979, %v4979
        %v5012 = vpack.c.b16 %v4980, %v4980
        %v5013 = vpack.c.b16 %v4981, %v4981
        %v5014 = vpack.c.b16 %v4982, %v4982
        %v5015 = vpack.c.b16 %v4983, %v4983
        %v5016 = vpack.c.b16 %v4984, %v4984
        %v5017 = vpack.c.b16 %v4985, %v4985
        %v5018 = vpack.c.b16 %v4986, %v4986
        %v5019 = vpack.c.b16 %v4987, %v4987
        %v5020 = vpack.c.b16 %v4988, %v4988
        %v5021 = vpack.c.b16 %v4989, %v4989
        %v5022 = vpack.c.b16 %v4990, %v4990
        %v5023 = vpack.c.b16 %v4991, %v4991
        %v5024 = vpack.c.b16 %v4992, %v4992
        %v5025 = vpack.c.b16 %v4993, %v4993
        %v5026 = vpack.c.b16 %v4994, %v4994
        %v5027 = vpack.c.b16 %v4995, %v4995
        %v5028 = vpack.c.b16 %v4996, %v4996
        %5061 = vst [vmem:[%s217] sm:$0xf] %v4997
        %5062 = vst [vmem:[%s217 + $0x4] sm:$0xf] %v4998
        %5063 = vst [vmem:[%s217 + $0x8] sm:$0xf] %v4999
        %5064 = vst [vmem:[%s217 + $0xc] sm:$0xf] %v5000
        %5065 = vst [vmem:[%s217 + $0x10] sm:$0xf] %v5001
        %5066 = vst [vmem:[%s217 + $0x14] sm:$0xf] %v5002
        %5067 = vst [vmem:[%s217 + $0x18] sm:$0xf] %v5003
        %5068 = vst [vmem:[%s217 + $0x1c] sm:$0xf] %v5004
        %5069 = vst [vmem:[%s217 + $0x20] sm:$0xf] %v5005
        %5070 = vst [vmem:[%s217 + $0x24] sm:$0xf] %v5006
        %5071 = vst [vmem:[%s217 + $0x28] sm:$0xf] %v5007
        %5072 = vst [vmem:[%s217 + $0x2c] sm:$0xf] %v5008
        %5073 = vst [vmem:[%s217 + $0x30] sm:$0xf] %v5009
        %5074 = vst [vmem:[%s217 + $0x34] sm:$0xf] %v5010
        %5075 = vst [vmem:[%s217 + $0x38] sm:$0xf] %v5011
        %5076 = vst [vmem:[%s217 + $0x3c] sm:$0xf] %v5012
        %5077 = vst [vmem:[%s217 + $0x40] sm:$0xf] %v5013
        %5078 = vst [vmem:[%s217 + $0x44] sm:$0xf] %v5014
        %5079 = vst [vmem:[%s217 + $0x48] sm:$0xf] %v5015
        %5080 = vst [vmem:[%s217 + $0x4c] sm:$0xf] %v5016
        %5081 = vst [vmem:[%s217 + $0x50] sm:$0xf] %v5017
        %5082 = vst [vmem:[%s217 + $0x54] sm:$0xf] %v5018
        %5083 = vst [vmem:[%s217 + $0x58] sm:$0xf] %v5019
        %5084 = vst [vmem:[%s217 + $0x5c] sm:$0xf] %v5020
        %5085 = vst [vmem:[%s217 + $0x60] sm:$0xf] %v5021
        %5086 = vst [vmem:[%s217 + $0x64] sm:$0xf] %v5022
        %5087 = vst [vmem:[%s217 + $0x68] sm:$0xf] %v5023
        %5088 = vst [vmem:[%s217 + $0x6c] sm:$0xf] %v5024
        %5089 = vst [vmem:[%s217 + $0x70] sm:$0xf] %v5025
        %5090 = vst [vmem:[%s217 + $0x74] sm:$0xf] %v5026
        %5091 = vst [vmem:[%s217 + $0x78] sm:$0xf] %v5027
        %5092 = vst [vmem:[%s217 + $0x7c] sm:$0xf] %v5028
        %s5093 = sand.u32 %s97, 1
        %s5094 = scalar_lea.sflag [#allocation6], %s5093
        %s5095 = sand.u32 %s97, 1
        %s5096 = smul.addr %s5095, 128
        %s5097 = scalar_lea.vmem [#allocation10], %s5096
        // Predicated region
        $region45: #{csp_block_forward.4} parent=31 // pred_check
          %p5098 = pneg %p107
        $region46: #{csp_block_forward.4} parent=31 // pred_check_branch
          %5100 = sbr.rel (%p5098) target = $region48
        $region47: #{csp_block_forward.4} parent=31 // pred_region
          %s5102 = ssub.s32 2048, 2048
          %5103 = vsyncadd %s5094, %s5102
          %s5104 = smul.addr %s21, 32
          %s5105 = smul.addr %s5104, 64
          %s5106 = scalar_lea.hbm %s3, %s5105
          %s5107 = sshll.u32 %s5097, 4
          %s5108 = int_to_ptr.vmem [resolvable:$true] %s5107
          %5113 = dma.vmem_to_hbm [thread:$0]  %s5108, 2048, %s5106, %s5094, 64, 64, 4
        $region48: #{csp_block_forward.4} parent=31 // pred_fallthru
          _
      $region32: #{csp_block_forward.4} parent=5 // pred_fallthru
        _
      %p5114 = scmp.le.s32.totalorder 2, %s16
      // Predicated region
      $region49: #{csp_block_forward.4} parent=5 // pred_check
        %p5115 = pneg %p5114
      $region50: #{csp_block_forward.4} parent=5 // pred_check_branch
        %5117 = sbr.rel (%p5115) target = $region52
      $region51: #{csp_block_forward.4} parent=5 // pred_region
        %s5118 = ssub.s32 %s16, 2
        // Predicated region
        $region53: #{csp_block_forward.4} parent=51 // pred_check
          %p5119 = pneg %p113
        $region54: #{csp_block_forward.4} parent=51 // pred_check_branch
          %5121 = sbr.rel (%p5119) target = $region56
        $region55: #{csp_block_forward.4} parent=51 // pred_region
          %s5122 = sand.u32 %s98, 1
          %s5123 = scalar_lea.sflag [#allocation6], %s5122
          %s5124 = sand.u32 %s98, 1
          %s5125 = smul.addr %s5124, 128
          %s5126 = scalar_lea.vmem [#allocation10], %s5125
          %5127 = dma.done %s5123, 2048
        $region56: #{csp_block_forward.4} parent=51 // pred_fallthru
          _
      $region52: #{csp_block_forward.4} parent=5 // pred_fallthru
        _
    $region6: #{csp_block_forward.4} parent=1 // loop_footer
      %s20 = sadd.s32 1, %s16
    $region7: #{csp_block_forward.4} parent=1 // loop_footer_branch
      %15 = sbr.rel target = $region3
    $region8: #{csp_block_forward.4} parent=1 // loop_exit
      _
    %5128 = vsyncpa [#allocation5], 1
    %s5129 = scalar_lea.sflag [#allocation5], 1
    %5130 = vsyncpa %s5129, 1
    %5131 = vsyncpa [#allocation8], 1
    %5132 = vsyncpa [#allocation6], 1
    %s5133 = scalar_lea.sflag [#allocation6], 1
    %5134 = vsyncpa %s5133, 1

</llo_original>
